<compile_context>
chip_gen: v5e
topology: v5e:2x2
jax: 0.10.0
libtpu: 0.0.40
codegen_flags: <defaults>
</compile_context>

<pallas_src>
import jax
import jax.numpy as jnp
import numpy as np
from jax.experimental import pallas as pl
from jax.experimental.pallas import tpu as pltpu

D = 300            # embedding / model dim
KQ = 600           # attn_k / attn_q output dim
V = 600            # attn_v output dim
NHEAD = 5
DH = KQ // NHEAD   # 120 (softmax scale base, per the PyTorch code)
DHP = 128          # per-head dim padded to a full lane register
KQP = NHEAD * DHP  # 640, padded head-major QKV width
HID = 1024         # impf hidden dim
VOCAB = 90000
LN_EPS = 1e-5


def _round_up(x, m):
    return ((x + m - 1) // m) * m


def _ceil_div(a, b):
    return -(-a // b)


# ---------------------------------------------------------------------------
# Encoder kernel: SAF.encode on a group of G (batch, item) slabs.
# ---------------------------------------------------------------------------
def encode_kernel(x_ref, wkqv_ref, wp_ref, bp_ref, g_ref, b_ref, o_ref):
    g, n, d = x_ref.shape
    x = x_ref[...].reshape(g * n, d)                                   # (G*N, D) f32
    xb = x.astype(jnp.bfloat16)

    # Fused QKV projection on padded, head-major bf16 weights (f32 accumulation).
    kqv = jnp.dot(xb, wkqv_ref[...],
                  preferred_element_type=jnp.float32)                  # (G*N, 3*KQP)
    k3 = kqv[:, 0 * KQP:1 * KQP].reshape(g, n, KQP)
    q3 = kqv[:, 1 * KQP:2 * KQP].reshape(g, n, KQP)
    v3 = kqv[:, 2 * KQP:3 * KQP].reshape(g, n, KQP)

    scale = 1.0 / (DH ** 0.5)   # PyTorch divides by sqrt(120), not the padded 128

    # Per-head attention, batched over the G slabs.  Head slices are 128-lane aligned;
    # padded lanes are exact zeros so they do not perturb scores or head outputs.
    heads = []
    for h in range(NHEAD):
        lo, hi = h * DHP, (h + 1) * DHP
        kh = k3[:, :, lo:hi].astype(jnp.bfloat16)                       # (G, N, 128)
        qh = q3[:, :, lo:hi].astype(jnp.bfloat16)
        vh = v3[:, :, lo:hi].astype(jnp.bfloat16)
        # scores[g, n, m] = <k_n, q_m> / sqrt(DH); softmax over m (dim=-2 of ...nmh).
        s = jnp.einsum("gnd,gmd->gnm", kh, qh,
                       preferred_element_type=jnp.float32) * scale      # (G, N, N) f32
        s = s - jnp.max(s, axis=-1, keepdims=True)
        e = jnp.exp(s)
        a = e * pl.reciprocal(jnp.sum(e, axis=-1, keepdims=True), approx=True)
        heads.append(jnp.einsum("gnm,gmd->gnd", a.astype(jnp.bfloat16), vh,
                                preferred_element_type=jnp.float32))    # (G, N, 128)

    # Single output projection over the padded head-concat (padded rows of wp are zero).
    o_cat = jnp.concatenate(heads, axis=-1).reshape(g * n, KQP)         # (G*N, 640)
    proj = jnp.dot(o_cat.astype(jnp.bfloat16), wp_ref[...],
                   preferred_element_type=jnp.float32) + bp_ref[...]    # (G*N, D)

    # Residual + LayerNorm(300) in f32 (residual uses the exact f32 input).
    res = proj + x
    mu = jnp.mean(res, axis=-1, keepdims=True)
    var = jnp.mean((res - mu) ** 2, axis=-1, keepdims=True)
    ln = (res - mu) * jax.lax.rsqrt(var + LN_EPS) * g_ref[...] + b_ref[...]

    # Mean over the N tokens of each slab -> lane-dense (G, D) output block.
    o_ref[...] = jnp.mean(ln.reshape(g, n, d), axis=1)


def _pad_heads_cols(w_t):
    """(D, KQ) -> (D, NHEAD*128) head-major with zero-padded head tails."""
    w = w_t.reshape(D, NHEAD, DH)
    w = jnp.pad(w, ((0, 0), (0, 0), (0, DHP - DH)))
    return w.reshape(D, KQP)


def _pad_heads_rows(wp_t):
    """(V, D) -> (NHEAD*128, D) head-major with zero-padded head tails."""
    w = wp_t.reshape(NHEAD, DH, D)
    w = jnp.pad(w, ((0, 0), (0, DHP - DH), (0, 0)))
    return w.reshape(KQP, D)


def encode_pallas(sa_pre_flat, params, group=None):
    """sa_pre_flat: (B*I, N, D) float32 -> sa_post (B*I, D) float32."""
    bi, n, d = sa_pre_flat.shape
    assert d == D

    # Slab-group size: ~64 slabs (~512 matmul rows) per step, at least 2 grid steps
    # when possible (v7x megacore sharding), minimal zero padding, multiple of 8.
    if group is None:
        if bi <= 8:
            group = 8
        else:
            n_steps = max(2, _ceil_div(bi, 64))
            group = _round_up(_ceil_div(bi, n_steps), 8)
    bi_pad = _round_up(bi, group)
    if bi_pad != bi:
        # NOTE: padded slabs are all-zero; they produce garbage LN rows that are
        # sliced off below and never consumed.
        sa_pre_flat = jnp.pad(sa_pre_flat, ((0, bi_pad - bi), (0, 0), (0, 0)))

    # Head-major padded weights, fused QKV, cast to bf16 for the MXU fast path.
    wk_p = _pad_heads_cols(params["wk"].T)
    wq_p = _pad_heads_cols(params["wq"].T)
    wv_p = _pad_heads_cols(params["wv"].T)
    wkqv = jnp.concatenate([wk_p, wq_p, wv_p], axis=1).astype(jnp.bfloat16)  # (D, 1920)
    wp_p = _pad_heads_rows(params["wp"].T).astype(jnp.bfloat16)              # (640, D)
    bp = params["bp"].reshape(1, D)
    gamma = params["gamma"].reshape(1, D)
    beta = params["beta"].reshape(1, D)

    out = pl.pallas_call(
        encode_kernel,
        out_shape=jax.ShapeDtypeStruct((bi_pad, D), jnp.float32),
        grid_spec=pltpu.PrefetchScalarGridSpec(
            num_scalar_prefetch=0,
            grid=(bi_pad // group,),
            in_specs=[
                pl.BlockSpec((group, n, D), lambda i: (i, 0, 0)),   # slab group
                pl.BlockSpec((D, 3 * KQP), lambda i: (0, 0)),       # fused W_{k,q,v}^T (bf16)
                pl.BlockSpec((KQP, D), lambda i: (0, 0)),           # W_proj^T (bf16, padded)
                pl.BlockSpec((1, D), lambda i: (0, 0)),             # b_proj
                pl.BlockSpec((1, D), lambda i: (0, 0)),             # LN gamma
                pl.BlockSpec((1, D), lambda i: (0, 0)),             # LN beta
            ],
            out_specs=pl.BlockSpec((group, D), lambda i: (i, 0)),
        ),
        compiler_params=pltpu.CompilerParams(
            dimension_semantics=("parallel",),
            vmem_limit_bytes=48 * 1024 * 1024),
    )(sa_pre_flat, wkqv, wp_p, bp, gamma, beta)
    return out[:bi]


# ---------------------------------------------------------------------------
# Ranking head kernel: impf = ReLU(LN(Linear(sa_post))).max(items); cls(cat(impf, sa_post)).
# GB batches per grid step, lane-dense (GB, I) output.
# ---------------------------------------------------------------------------
def head_kernel(sp_ref, w1_ref, b1_ref, g1_ref, be1_ref, wci_ref, wcs_ref, bc_ref, o_ref):
    gb, i, d = sp_ref.shape
    sp = sp_ref[...]                                                     # (GB, I, D) f32
    sp2 = sp.reshape(gb * i, d)

    h = jnp.dot(sp2.astype(jnp.bfloat16), w1_ref[...],
                preferred_element_type=jnp.float32) + b1_ref[...]        # (GB*I, HID)
    mu = jnp.mean(h, axis=-1, keepdims=True)
    var = jnp.mean((h - mu) ** 2, axis=-1, keepdims=True)
    ln = (h - mu) * jax.lax.rsqrt(var + LN_EPS) * g1_ref[...] + be1_ref[...]
    relu = jnp.maximum(ln, 0.0)

    impf = jnp.max(relu.reshape(gb, i, HID), axis=1)                     # (GB, HID)

    # cls Linear(1324 -> 1) split across the concat boundary; tiny dots done as
    # VPU/XLU lane reductions instead of MXU pushes, in f32.
    y_impf = jnp.sum(impf * wci_ref[...], axis=-1, keepdims=True)        # (GB, 1)
    y_sa = jnp.sum(sp * wcs_ref[...], axis=-1)                           # (GB, I)
    o_ref[...] = y_impf + y_sa + bc_ref[...]                             # (GB, I)


def head_pallas(sa_post, params, gb=None):
    """sa_post: (B, I, D) -> (B, I) ranking scores."""
    b, i, d = sa_post.shape
    assert d == D

    # GB batches per step: ~128 matmul rows, >= 2 grid steps when B is big enough
    # (v7x megacore), GB multiple of 8 (unless the whole B fits in one step) so the
    # lane-dense (GB, I) output block satisfies the (8, 128) rule.
    if gb is None:
        rows_per_step = max(1, 128 // max(i, 1))
        if b <= rows_per_step and b <= 8:
            gb = b
        else:
            n_steps = max(2, _ceil_div(b, rows_per_step))
            gb = _round_up(_ceil_div(b, n_steps), 8)
    b_pad = _round_up(b, gb)
    if b_pad != b:
        sa_post = jnp.pad(sa_post, ((0, b_pad - b), (0, 0), (0, 0)))

    w1_t = params["w1"].T.astype(jnp.bfloat16)    # (D, HID) bf16 for the MXU
    b1 = params["b1"].reshape(1, HID)
    g1 = params["g1"].reshape(1, HID)
    be1 = params["be1"].reshape(1, HID)
    wci = params["wc"][:, :HID].reshape(1, HID)   # cls weight, impf part
    wcs = params["wc"][:, HID:].reshape(1, D)     # cls weight, sa_post part
    bc = params["bc"].reshape(1, 1)

    out = pl.pallas_call(
        head_kernel,
        out_shape=jax.ShapeDtypeStruct((b_pad, i), jnp.float32),
        grid_spec=pltpu.PrefetchScalarGridSpec(
            num_scalar_prefetch=0,
            grid=(b_pad // gb,),
            in_specs=[
                pl.BlockSpec((gb, i, D), lambda g: (g, 0, 0)),   # sa_post, GB batches
                pl.BlockSpec((D, HID), lambda g: (0, 0)),        # impf W^T (bf16)
                pl.BlockSpec((1, HID), lambda g: (0, 0)),        # impf b
                pl.BlockSpec((1, HID), lambda g: (0, 0)),        # LN gamma
                pl.BlockSpec((1, HID), lambda g: (0, 0)),        # LN beta
                pl.BlockSpec((1, HID), lambda g: (0, 0)),        # cls W (impf cols)
                pl.BlockSpec((1, D), lambda g: (0, 0)),          # cls W (sa cols)
                pl.BlockSpec((1, 1), lambda g: (0, 0)),          # cls b
            ],
            out_specs=pl.BlockSpec((gb, i), lambda g: (g, 0)),   # lane-dense (GB, I)
        ),
        compiler_params=pltpu.CompilerParams(
            dimension_semantics=("parallel",)),
    )(sa_post, w1_t, b1, g1, be1, wci, wcs, bc)
    return out[:b]


# ---------------------------------------------------------------------------
# Full RankingAwareNet.forward (eval mode).
# ---------------------------------------------------------------------------
def ranking_forward(user_ids, item_ids, user_features, item_features, params):
    del user_ids, item_ids  # unused by the PyTorch forward
    item = params["item_embed"][item_features]                        # (B, I, TI, D)
    user = params["user_embed"][user_features].mean(axis=2)           # (B, U, D)
    b, i = item.shape[0], item.shape[1]
    user = jnp.broadcast_to(user[:, None], (b, i) + user.shape[1:])   # (B, I, U, D)
    sa_pre = jnp.concatenate([user, item], axis=2)                    # (B, I, N, D)
    n = sa_pre.shape[2]

    sa_post = encode_pallas(sa_pre.reshape(b * i, n, D), params)      # (B*I, D)
    sa_post = sa_post.reshape(b, i, D)
    # TODO(synk): Dropout layers (p=0.4 in SAF, p=0.5 in cls) are identity here
    # (eval-mode forward only); do not use this kernel for a training forward.
    return head_pallas(sa_post, params)                               # (B, I)


# ---------------------------------------------------------------------------
# Pure-JAX reference mirroring the PyTorch module (eval mode), all f32.
# ---------------------------------------------------------------------------
def encode_reference(user_features, item_features, params):
    item = params["item_embed"][item_features]
    user = params["user_embed"][user_features].mean(axis=2)
    b, i = item.shape[0], item.shape[1]
    user = jnp.broadcast_to(user[:, None], (b, i) + user.shape[1:])
    sa_pre = jnp.concatenate([user, item], axis=2)                    # (B, I, N, D)

    x = sa_pre
    k = x @ params["wk"].T
    q = x @ params["wq"].T
    v = x @ params["wv"].T
    shp = x.shape[:-1] + (NHEAD, DH)
    k, q, v = k.reshape(shp), q.reshape(shp), v.reshape(shp)
    scores = jnp.einsum("...nhd,...mhd->...nmh", k, q) / jnp.sqrt(jnp.float32(DH))
    attn = jax.nn.softmax(scores, axis=-2)
    o = jnp.einsum("...nmh,...mhd->...nhd", attn, v).reshape(x.shape[:-1] + (V,))
    proj = o @ params["wp"].T + params["bp"]
    res = proj + sa_pre
    mu = res.mean(-1, keepdims=True)
    var = ((res - mu) ** 2).mean(-1, keepdims=True)
    ln = (res - mu) / jnp.sqrt(var + LN_EPS) * params["gamma"] + params["beta"]
    return ln.mean(-2)                                                # (B, I, D)


def ranking_reference(user_features, item_features, params):
    sa_post = encode_reference(user_features, item_features, params)  # (B, I, D)
    h = sa_post @ params["w1"].T + params["b1"]
    mu = h.mean(-1, keepdims=True)
    var = ((h - mu) ** 2).mean(-1, keepdims=True)
    ln = (h - mu) / jnp.sqrt(var + LN_EPS) * params["g1"] + params["be1"]
    relu = jnp.maximum(ln, 0.0)
    impf = relu.max(-2)                                               # (B, HID)
    b, i, _ = sa_post.shape
    impf = jnp.broadcast_to(impf[:, None, :], (b, i, HID))
    pf = jnp.concatenate([impf, sa_post], axis=-1)                    # (B, I, 1324)
    return (pf @ params["wc"].T + params["bc"]).squeeze()             # (B, I)


def init_params(key):
    ks = jax.random.split(key, 11)
    u = lambda k, shape, bound: jax.random.uniform(k, shape, jnp.float32, -bound, bound)
    return {
        # SAF encoder
        "user_embed": u(ks[0], (VOCAB, D), 0.05),
        "item_embed": u(ks[1], (VOCAB, D), 0.05),
        "wk": u(ks[2], (KQ, D), 1.0 / np.sqrt(D)),
        "wq": u(ks[3], (KQ, D), 1.0 / np.sqrt(D)),
        "wv": u(ks[4], (V, D), 1.0 / np.sqrt(D)),
        "wp": u(ks[5], (D, V), 1.0 / np.sqrt(V)),
        "bp": u(ks[6], (D,), 1.0 / np.sqrt(V)),
        "gamma": jnp.ones((D,), jnp.float32),
        "beta": jnp.zeros((D,), jnp.float32),
        # RankingAwareNet head
        "w1": u(ks[7], (HID, D), 1.0 / np.sqrt(D)),
        "b1": u(ks[8], (HID,), 1.0 / np.sqrt(D)),
        "g1": jnp.ones((HID,), jnp.float32),
        "be1": jnp.zeros((HID,), jnp.float32),
        "wc": u(ks[9], (1, HID + D), 1.0 / np.sqrt(HID + D)),
        "bc": u(ks[10], (1,), 1.0 / np.sqrt(HID + D)),
    }


if __name__ == "__main__":
    key = jax.random.PRNGKey(0)
    kp, k1, k2, k3, k4 = jax.random.split(key, 5)

    params = init_params(kp)

    # Small shapes: batch=2, items=3, user feature tokens=(3 slots x 4), item feature tokens=5
    B, I, U, TU, TI = 2, 3, 3, 4, 5
    user_ids = jax.random.randint(k1, (B,), 0, VOCAB)
    item_ids = jax.random.randint(k2, (B, I), 0, VOCAB)
    user_features = jax.random.randint(k3, (B, U, TU), 0, VOCAB)
    item_features = jax.random.randint(k4, (B, I, TI), 0, VOCAB)

    out = ranking_forward(user_ids, item_ids, user_features, item_features, params)
    out = jax.block_until_ready(out)

    ref = jax.block_until_ready(ranking_reference(user_features, item_features, params))
    # Tolerance accounts for bf16 MXU operands (f32 accumulation), the approximate
    # (EUP) softmax reciprocal, and reassociated reductions; outputs are O(1).
    np.testing.assert_allclose(np.asarray(out), np.asarray(ref), rtol=2e-2, atol=2e-2)

    print("KERNEL_OK")
</pallas_src>

<mosaic_0001>
module attributes {stable_mosaic.version = 11 : i64} {
  func.func @encode_kernel(%arg0: i32, %arg1: memref<8x8x300xf32, #tpu.memory_space<vmem>>, %arg2: memref<300x1920xbf16, #tpu.memory_space<vmem>>, %arg3: memref<640x300xbf16, #tpu.memory_space<vmem>>, %arg4: memref<1x300xf32, #tpu.memory_space<vmem>>, %arg5: memref<1x300xf32, #tpu.memory_space<vmem>>, %arg6: memref<1x300xf32, #tpu.memory_space<vmem>>, %arg7: memref<8x300xf32, #tpu.memory_space<vmem>>) attributes {dimension_semantics = [#tpu.dimension_semantics<parallel>], iteration_bounds = array<i64: 1>, scalar_prefetch = 0 : i64, scratch_operands = 0 : i64, tpu.core_type = #tpu.core_type<tc>, window_params = [{transform_indices = @transform_0, window_bounds = array<i64: 8, 8, 300>}, {pipeline_mode = #tpu.pipeline_mode<synchronous>, transform_indices = @transform_1, window_bounds = array<i64: 300, 1920>}, {pipeline_mode = #tpu.pipeline_mode<synchronous>, transform_indices = @transform_2, window_bounds = array<i64: 640, 300>}, {pipeline_mode = #tpu.pipeline_mode<synchronous>, transform_indices = @transform_3, window_bounds = array<i64: 1, 300>}, {pipeline_mode = #tpu.pipeline_mode<synchronous>, transform_indices = @transform_4, window_bounds = array<i64: 1, 300>}, {pipeline_mode = #tpu.pipeline_mode<synchronous>, transform_indices = @transform_5, window_bounds = array<i64: 1, 300>}, {transform_indices = @transform_6, window_bounds = array<i64: 8, 300>}]} {
    %c0 = arith.constant 0 : index
    %c0_0 = arith.constant 0 : index
    %c0_1 = arith.constant 0 : index
    %0 = vector.load %arg1[%c0, %c0_0, %c0_1] : memref<8x8x300xf32, #tpu.memory_space<vmem>>, vector<8x8x300xf32>
    %1 = vector.shape_cast %0 : vector<8x8x300xf32> to vector<64x300xf32>
    %2 = arith.truncf %1 : vector<64x300xf32> to vector<64x300xbf16>
    %c0_2 = arith.constant 0 : index
    %c0_3 = arith.constant 0 : index
    %3 = vector.load %arg2[%c0_2, %c0_3] : memref<300x1920xbf16, #tpu.memory_space<vmem>>, vector<300x1920xbf16>
    %cst = arith.constant dense<0.000000e+00> : vector<64x1920xf32>
    %4 = tpu.matmul %2, %3, %cst {dimension_numbers = #tpu.dot_dimension_numbers<[1], [0], [0], [1], [0, 0, 1, 1], [], []>} : vector<64x300xbf16>, vector<300x1920xbf16>, vector<64x1920xf32> -> vector<64x1920xf32>
    %5 = vector.extract_strided_slice %4 {offsets = [0, 0], sizes = [64, 640], strides = [1, 1]} : vector<64x1920xf32> to vector<64x640xf32>
    %6 = vector.shape_cast %5 : vector<64x640xf32> to vector<8x8x640xf32>
    %7 = vector.extract_strided_slice %4 {offsets = [0, 640], sizes = [64, 640], strides = [1, 1]} : vector<64x1920xf32> to vector<64x640xf32>
    %8 = vector.shape_cast %7 : vector<64x640xf32> to vector<8x8x640xf32>
    %9 = vector.extract_strided_slice %4 {offsets = [0, 1280], sizes = [64, 640], strides = [1, 1]} : vector<64x1920xf32> to vector<64x640xf32>
    %10 = vector.shape_cast %9 : vector<64x640xf32> to vector<8x8x640xf32>
    %11 = vector.extract_strided_slice %6 {offsets = [0, 0, 0], sizes = [8, 8, 128], strides = [1, 1, 1]} : vector<8x8x640xf32> to vector<8x8x128xf32>
    %12 = arith.truncf %11 : vector<8x8x128xf32> to vector<8x8x128xbf16>
    %13 = vector.extract_strided_slice %8 {offsets = [0, 0, 0], sizes = [8, 8, 128], strides = [1, 1, 1]} : vector<8x8x640xf32> to vector<8x8x128xf32>
    %14 = arith.truncf %13 : vector<8x8x128xf32> to vector<8x8x128xbf16>
    %15 = vector.extract_strided_slice %10 {offsets = [0, 0, 0], sizes = [8, 8, 128], strides = [1, 1, 1]} : vector<8x8x640xf32> to vector<8x8x128xf32>
    %16 = arith.truncf %15 : vector<8x8x128xf32> to vector<8x8x128xbf16>
    "tpu.trace_start"() <{level = 10 : i32, message = "gnd,gmd->gnm"}> : () -> ()
    %cst_4 = arith.constant dense<0.000000e+00> : vector<8x8x8xf32>
    %17 = tpu.matmul %12, %14, %cst_4 {dimension_numbers = #tpu.dot_dimension_numbers<[2], [2], [1], [1], [0, 0, 0, 1, 1, 1], [0], [0]>} : vector<8x8x128xbf16>, vector<8x8x128xbf16>, vector<8x8x8xf32> -> vector<8x8x8xf32>
    "tpu.trace_stop"() : () -> ()
    %cst_5 = arith.constant 0.0912870914 : f32
    %18 = vector.broadcast %cst_5 : f32 to vector<8x8x8xf32>
    %19 = arith.mulf %17, %18 : vector<8x8x8xf32>
    %cst_6 = arith.constant dense<0xFF800000> : vector<8x8xf32>
    %20 = vector.multi_reduction <maximumf>, %19, %cst_6 [2] : vector<8x8x8xf32> to vector<8x8xf32>
    %21 = vector.shape_cast %20 : vector<8x8xf32> to vector<8x8x1xf32>
    %22 = vector.broadcast %21 : vector<8x8x1xf32> to vector<8x8x8xf32>
    %23 = arith.subf %19, %22 : vector<8x8x8xf32>
    %24 = math.exp %23 : vector<8x8x8xf32>
    %cst_7 = arith.constant dense<0.000000e+00> : vector<8x8xf32>
    %25 = vector.multi_reduction <add>, %24, %cst_7 [2] : vector<8x8x8xf32> to vector<8x8xf32>
    %26 = vector.shape_cast %25 : vector<8x8xf32> to vector<8x8x1xf32>
    %27 = tpu.reciprocal %26 {approx = true} : vector<8x8x1xf32> -> vector<8x8x1xf32>
    %28 = vector.broadcast %27 : vector<8x8x1xf32> to vector<8x8x8xf32>
    %29 = arith.mulf %24, %28 : vector<8x8x8xf32>
    %30 = arith.truncf %29 : vector<8x8x8xf32> to vector<8x8x8xbf16>
    "tpu.trace_start"() <{level = 10 : i32, message = "gnm,gmd->gnd"}> : () -> ()
    %cst_8 = arith.constant dense<0.000000e+00> : vector<8x8x128xf32>
    %31 = tpu.matmul %30, %16, %cst_8 {dimension_numbers = #tpu.dot_dimension_numbers<[2], [1], [1], [2], [0, 0, 0, 1, 1, 2], [0], [0]>} : vector<8x8x8xbf16>, vector<8x8x128xbf16>, vector<8x8x128xf32> -> vector<8x8x128xf32>
    "tpu.trace_stop"() : () -> ()
    %32 = vector.extract_strided_slice %6 {offsets = [0, 0, 128], sizes = [8, 8, 128], strides = [1, 1, 1]} : vector<8x8x640xf32> to vector<8x8x128xf32>
    %33 = arith.truncf %32 : vector<8x8x128xf32> to vector<8x8x128xbf16>
    %34 = vector.extract_strided_slice %8 {offsets = [0, 0, 128], sizes = [8, 8, 128], strides = [1, 1, 1]} : vector<8x8x640xf32> to vector<8x8x128xf32>
    %35 = arith.truncf %34 : vector<8x8x128xf32> to vector<8x8x128xbf16>
    %36 = vector.extract_strided_slice %10 {offsets = [0, 0, 128], sizes = [8, 8, 128], strides = [1, 1, 1]} : vector<8x8x640xf32> to vector<8x8x128xf32>
    %37 = arith.truncf %36 : vector<8x8x128xf32> to vector<8x8x128xbf16>
    "tpu.trace_start"() <{level = 10 : i32, message = "gnd,gmd->gnm"}> : () -> ()
    %cst_9 = arith.constant dense<0.000000e+00> : vector<8x8x8xf32>
    %38 = tpu.matmul %33, %35, %cst_9 {dimension_numbers = #tpu.dot_dimension_numbers<[2], [2], [1], [1], [0, 0, 0, 1, 1, 1], [0], [0]>} : vector<8x8x128xbf16>, vector<8x8x128xbf16>, vector<8x8x8xf32> -> vector<8x8x8xf32>
    "tpu.trace_stop"() : () -> ()
    %cst_10 = arith.constant 0.0912870914 : f32
    %39 = vector.broadcast %cst_10 : f32 to vector<8x8x8xf32>
    %40 = arith.mulf %38, %39 : vector<8x8x8xf32>
    %cst_11 = arith.constant dense<0xFF800000> : vector<8x8xf32>
    %41 = vector.multi_reduction <maximumf>, %40, %cst_11 [2] : vector<8x8x8xf32> to vector<8x8xf32>
    %42 = vector.shape_cast %41 : vector<8x8xf32> to vector<8x8x1xf32>
    %43 = vector.broadcast %42 : vector<8x8x1xf32> to vector<8x8x8xf32>
    %44 = arith.subf %40, %43 : vector<8x8x8xf32>
    %45 = math.exp %44 : vector<8x8x8xf32>
    %cst_12 = arith.constant dense<0.000000e+00> : vector<8x8xf32>
    %46 = vector.multi_reduction <add>, %45, %cst_12 [2] : vector<8x8x8xf32> to vector<8x8xf32>
    %47 = vector.shape_cast %46 : vector<8x8xf32> to vector<8x8x1xf32>
    %48 = tpu.reciprocal %47 {approx = true} : vector<8x8x1xf32> -> vector<8x8x1xf32>
    %49 = vector.broadcast %48 : vector<8x8x1xf32> to vector<8x8x8xf32>
    %50 = arith.mulf %45, %49 : vector<8x8x8xf32>
    %51 = arith.truncf %50 : vector<8x8x8xf32> to vector<8x8x8xbf16>
    "tpu.trace_start"() <{level = 10 : i32, message = "gnm,gmd->gnd"}> : () -> ()
    %cst_13 = arith.constant dense<0.000000e+00> : vector<8x8x128xf32>
    %52 = tpu.matmul %51, %37, %cst_13 {dimension_numbers = #tpu.dot_dimension_numbers<[2], [1], [1], [2], [0, 0, 0, 1, 1, 2], [0], [0]>} : vector<8x8x8xbf16>, vector<8x8x128xbf16>, vector<8x8x128xf32> -> vector<8x8x128xf32>
    "tpu.trace_stop"() : () -> ()
    %53 = vector.extract_strided_slice %6 {offsets = [0, 0, 256], sizes = [8, 8, 128], strides = [1, 1, 1]} : vector<8x8x640xf32> to vector<8x8x128xf32>
    %54 = arith.truncf %53 : vector<8x8x128xf32> to vector<8x8x128xbf16>
    %55 = vector.extract_strided_slice %8 {offsets = [0, 0, 256], sizes = [8, 8, 128], strides = [1, 1, 1]} : vector<8x8x640xf32> to vector<8x8x128xf32>
    %56 = arith.truncf %55 : vector<8x8x128xf32> to vector<8x8x128xbf16>
    %57 = vector.extract_strided_slice %10 {offsets = [0, 0, 256], sizes = [8, 8, 128], strides = [1, 1, 1]} : vector<8x8x640xf32> to vector<8x8x128xf32>
    %58 = arith.truncf %57 : vector<8x8x128xf32> to vector<8x8x128xbf16>
    "tpu.trace_start"() <{level = 10 : i32, message = "gnd,gmd->gnm"}> : () -> ()
    %cst_14 = arith.constant dense<0.000000e+00> : vector<8x8x8xf32>
    %59 = tpu.matmul %54, %56, %cst_14 {dimension_numbers = #tpu.dot_dimension_numbers<[2], [2], [1], [1], [0, 0, 0, 1, 1, 1], [0], [0]>} : vector<8x8x128xbf16>, vector<8x8x128xbf16>, vector<8x8x8xf32> -> vector<8x8x8xf32>
    "tpu.trace_stop"() : () -> ()
    %cst_15 = arith.constant 0.0912870914 : f32
    %60 = vector.broadcast %cst_15 : f32 to vector<8x8x8xf32>
    %61 = arith.mulf %59, %60 : vector<8x8x8xf32>
    %cst_16 = arith.constant dense<0xFF800000> : vector<8x8xf32>
    %62 = vector.multi_reduction <maximumf>, %61, %cst_16 [2] : vector<8x8x8xf32> to vector<8x8xf32>
    %63 = vector.shape_cast %62 : vector<8x8xf32> to vector<8x8x1xf32>
    %64 = vector.broadcast %63 : vector<8x8x1xf32> to vector<8x8x8xf32>
    %65 = arith.subf %61, %64 : vector<8x8x8xf32>
    %66 = math.exp %65 : vector<8x8x8xf32>
    %cst_17 = arith.constant dense<0.000000e+00> : vector<8x8xf32>
    %67 = vector.multi_reduction <add>, %66, %cst_17 [2] : vector<8x8x8xf32> to vector<8x8xf32>
    %68 = vector.shape_cast %67 : vector<8x8xf32> to vector<8x8x1xf32>
    %69 = tpu.reciprocal %68 {approx = true} : vector<8x8x1xf32> -> vector<8x8x1xf32>
    %70 = vector.broadcast %69 : vector<8x8x1xf32> to vector<8x8x8xf32>
    %71 = arith.mulf %66, %70 : vector<8x8x8xf32>
    %72 = arith.truncf %71 : vector<8x8x8xf32> to vector<8x8x8xbf16>
    "tpu.trace_start"() <{level = 10 : i32, message = "gnm,gmd->gnd"}> : () -> ()
    %cst_18 = arith.constant dense<0.000000e+00> : vector<8x8x128xf32>
    %73 = tpu.matmul %72, %58, %cst_18 {dimension_numbers = #tpu.dot_dimension_numbers<[2], [1], [1], [2], [0, 0, 0, 1, 1, 2], [0], [0]>} : vector<8x8x8xbf16>, vector<8x8x128xbf16>, vector<8x8x128xf32> -> vector<8x8x128xf32>
    "tpu.trace_stop"() : () -> ()
    %74 = vector.extract_strided_slice %6 {offsets = [0, 0, 384], sizes = [8, 8, 128], strides = [1, 1, 1]} : vector<8x8x640xf32> to vector<8x8x128xf32>
    %75 = arith.truncf %74 : vector<8x8x128xf32> to vector<8x8x128xbf16>
    %76 = vector.extract_strided_slice %8 {offsets = [0, 0, 384], sizes = [8, 8, 128], strides = [1, 1, 1]} : vector<8x8x640xf32> to vector<8x8x128xf32>
    %77 = arith.truncf %76 : vector<8x8x128xf32> to vector<8x8x128xbf16>
    %78 = vector.extract_strided_slice %10 {offsets = [0, 0, 384], sizes = [8, 8, 128], strides = [1, 1, 1]} : vector<8x8x640xf32> to vector<8x8x128xf32>
    %79 = arith.truncf %78 : vector<8x8x128xf32> to vector<8x8x128xbf16>
    "tpu.trace_start"() <{level = 10 : i32, message = "gnd,gmd->gnm"}> : () -> ()
    %cst_19 = arith.constant dense<0.000000e+00> : vector<8x8x8xf32>
    %80 = tpu.matmul %75, %77, %cst_19 {dimension_numbers = #tpu.dot_dimension_numbers<[2], [2], [1], [1], [0, 0, 0, 1, 1, 1], [0], [0]>} : vector<8x8x128xbf16>, vector<8x8x128xbf16>, vector<8x8x8xf32> -> vector<8x8x8xf32>
    "tpu.trace_stop"() : () -> ()
    %cst_20 = arith.constant 0.0912870914 : f32
    %81 = vector.broadcast %cst_20 : f32 to vector<8x8x8xf32>
    %82 = arith.mulf %80, %81 : vector<8x8x8xf32>
    %cst_21 = arith.constant dense<0xFF800000> : vector<8x8xf32>
    %83 = vector.multi_reduction <maximumf>, %82, %cst_21 [2] : vector<8x8x8xf32> to vector<8x8xf32>
    %84 = vector.shape_cast %83 : vector<8x8xf32> to vector<8x8x1xf32>
    %85 = vector.broadcast %84 : vector<8x8x1xf32> to vector<8x8x8xf32>
    %86 = arith.subf %82, %85 : vector<8x8x8xf32>
    %87 = math.exp %86 : vector<8x8x8xf32>
    %cst_22 = arith.constant dense<0.000000e+00> : vector<8x8xf32>
    %88 = vector.multi_reduction <add>, %87, %cst_22 [2] : vector<8x8x8xf32> to vector<8x8xf32>
    %89 = vector.shape_cast %88 : vector<8x8xf32> to vector<8x8x1xf32>
    %90 = tpu.reciprocal %89 {approx = true} : vector<8x8x1xf32> -> vector<8x8x1xf32>
    %91 = vector.broadcast %90 : vector<8x8x1xf32> to vector<8x8x8xf32>
    %92 = arith.mulf %87, %91 : vector<8x8x8xf32>
    %93 = arith.truncf %92 : vector<8x8x8xf32> to vector<8x8x8xbf16>
    "tpu.trace_start"() <{level = 10 : i32, message = "gnm,gmd->gnd"}> : () -> ()
    %cst_23 = arith.constant dense<0.000000e+00> : vector<8x8x128xf32>
    %94 = tpu.matmul %93, %79, %cst_23 {dimension_numbers = #tpu.dot_dimension_numbers<[2], [1], [1], [2], [0, 0, 0, 1, 1, 2], [0], [0]>} : vector<8x8x8xbf16>, vector<8x8x128xbf16>, vector<8x8x128xf32> -> vector<8x8x128xf32>
    "tpu.trace_stop"() : () -> ()
    %95 = vector.extract_strided_slice %6 {offsets = [0, 0, 512], sizes = [8, 8, 128], strides = [1, 1, 1]} : vector<8x8x640xf32> to vector<8x8x128xf32>
    %96 = arith.truncf %95 : vector<8x8x128xf32> to vector<8x8x128xbf16>
    %97 = vector.extract_strided_slice %8 {offsets = [0, 0, 512], sizes = [8, 8, 128], strides = [1, 1, 1]} : vector<8x8x640xf32> to vector<8x8x128xf32>
    %98 = arith.truncf %97 : vector<8x8x128xf32> to vector<8x8x128xbf16>
    %99 = vector.extract_strided_slice %10 {offsets = [0, 0, 512], sizes = [8, 8, 128], strides = [1, 1, 1]} : vector<8x8x640xf32> to vector<8x8x128xf32>
    %100 = arith.truncf %99 : vector<8x8x128xf32> to vector<8x8x128xbf16>
    "tpu.trace_start"() <{level = 10 : i32, message = "gnd,gmd->gnm"}> : () -> ()
    %cst_24 = arith.constant dense<0.000000e+00> : vector<8x8x8xf32>
    %101 = tpu.matmul %96, %98, %cst_24 {dimension_numbers = #tpu.dot_dimension_numbers<[2], [2], [1], [1], [0, 0, 0, 1, 1, 1], [0], [0]>} : vector<8x8x128xbf16>, vector<8x8x128xbf16>, vector<8x8x8xf32> -> vector<8x8x8xf32>
    "tpu.trace_stop"() : () -> ()
    %cst_25 = arith.constant 0.0912870914 : f32
    %102 = vector.broadcast %cst_25 : f32 to vector<8x8x8xf32>
    %103 = arith.mulf %101, %102 : vector<8x8x8xf32>
    %cst_26 = arith.constant dense<0xFF800000> : vector<8x8xf32>
    %104 = vector.multi_reduction <maximumf>, %103, %cst_26 [2] : vector<8x8x8xf32> to vector<8x8xf32>
    %105 = vector.shape_cast %104 : vector<8x8xf32> to vector<8x8x1xf32>
    %106 = vector.broadcast %105 : vector<8x8x1xf32> to vector<8x8x8xf32>
    %107 = arith.subf %103, %106 : vector<8x8x8xf32>
    %108 = math.exp %107 : vector<8x8x8xf32>
    %cst_27 = arith.constant dense<0.000000e+00> : vector<8x8xf32>
    %109 = vector.multi_reduction <add>, %108, %cst_27 [2] : vector<8x8x8xf32> to vector<8x8xf32>
    %110 = vector.shape_cast %109 : vector<8x8xf32> to vector<8x8x1xf32>
    %111 = tpu.reciprocal %110 {approx = true} : vector<8x8x1xf32> -> vector<8x8x1xf32>
    %112 = vector.broadcast %111 : vector<8x8x1xf32> to vector<8x8x8xf32>
    %113 = arith.mulf %108, %112 : vector<8x8x8xf32>
    %114 = arith.truncf %113 : vector<8x8x8xf32> to vector<8x8x8xbf16>
    "tpu.trace_start"() <{level = 10 : i32, message = "gnm,gmd->gnd"}> : () -> ()
    %cst_28 = arith.constant dense<0.000000e+00> : vector<8x8x128xf32>
    %115 = tpu.matmul %114, %100, %cst_28 {dimension_numbers = #tpu.dot_dimension_numbers<[2], [1], [1], [2], [0, 0, 0, 1, 1, 2], [0], [0]>} : vector<8x8x8xbf16>, vector<8x8x128xbf16>, vector<8x8x128xf32> -> vector<8x8x128xf32>
    "tpu.trace_stop"() : () -> ()
    %116 = tpu.concatenate %31, %52, %73, %94, %115 in 2 : vector<8x8x128xf32>, vector<8x8x128xf32>, vector<8x8x128xf32>, vector<8x8x128xf32>, vector<8x8x128xf32> -> vector<8x8x640xf32>
    %117 = vector.shape_cast %116 : vector<8x8x640xf32> to vector<64x640xf32>
    %118 = arith.truncf %117 : vector<64x640xf32> to vector<64x640xbf16>
    %c0_29 = arith.constant 0 : index
    %c0_30 = arith.constant 0 : index
    %119 = vector.load %arg3[%c0_29, %c0_30] : memref<640x300xbf16, #tpu.memory_space<vmem>>, vector<640x300xbf16>
    %cst_31 = arith.constant dense<0.000000e+00> : vector<64x300xf32>
    %120 = tpu.matmul %118, %119, %cst_31 {dimension_numbers = #tpu.dot_dimension_numbers<[1], [0], [0], [1], [0, 0, 1, 1], [], []>} : vector<64x640xbf16>, vector<640x300xbf16>, vector<64x300xf32> -> vector<64x300xf32>
    %c0_32 = arith.constant 0 : index
    %c0_33 = arith.constant 0 : index
    %121 = vector.load %arg4[%c0_32, %c0_33] : memref<1x300xf32, #tpu.memory_space<vmem>>, vector<1x300xf32>
    %122 = vector.broadcast %121 : vector<1x300xf32> to vector<64x300xf32>
    %123 = arith.addf %120, %122 : vector<64x300xf32>
    %124 = arith.addf %123, %1 : vector<64x300xf32>
    %cst_34 = arith.constant dense<0.000000e+00> : vector<64xf32>
    %125 = vector.multi_reduction <add>, %124, %cst_34 [1] : vector<64x300xf32> to vector<64xf32>
    %126 = vector.shape_cast %125 : vector<64xf32> to vector<64x1xf32>
    %cst_35 = arith.constant 3.000000e+02 : f32
    %127 = vector.broadcast %cst_35 : f32 to vector<64x1xf32>
    %128 = arith.divf %126, %127 : vector<64x1xf32>
    %129 = vector.broadcast %128 : vector<64x1xf32> to vector<64x300xf32>
    %130 = arith.subf %124, %129 : vector<64x300xf32>
    %131 = arith.mulf %130, %130 : vector<64x300xf32>
    %cst_36 = arith.constant dense<0.000000e+00> : vector<64xf32>
    %132 = vector.multi_reduction <add>, %131, %cst_36 [1] : vector<64x300xf32> to vector<64xf32>
    %133 = vector.shape_cast %132 : vector<64xf32> to vector<64x1xf32>
    %cst_37 = arith.constant 3.000000e+02 : f32
    %134 = vector.broadcast %cst_37 : f32 to vector<64x1xf32>
    %135 = arith.divf %133, %134 : vector<64x1xf32>
    %136 = vector.broadcast %128 : vector<64x1xf32> to vector<64x300xf32>
    %137 = arith.subf %124, %136 : vector<64x300xf32>
    %cst_38 = arith.constant 9.99999974E-6 : f32
    %138 = vector.broadcast %cst_38 : f32 to vector<64x1xf32>
    %139 = arith.addf %135, %138 : vector<64x1xf32>
    %140 = math.rsqrt %139 : vector<64x1xf32>
    %141 = vector.broadcast %140 : vector<64x1xf32> to vector<64x300xf32>
    %142 = arith.mulf %137, %141 : vector<64x300xf32>
    %c0_39 = arith.constant 0 : index
    %c0_40 = arith.constant 0 : index
    %143 = vector.load %arg5[%c0_39, %c0_40] : memref<1x300xf32, #tpu.memory_space<vmem>>, vector<1x300xf32>
    %144 = vector.broadcast %143 : vector<1x300xf32> to vector<64x300xf32>
    %145 = arith.mulf %142, %144 : vector<64x300xf32>
    %c0_41 = arith.constant 0 : index
    %c0_42 = arith.constant 0 : index
    %146 = vector.load %arg6[%c0_41, %c0_42] : memref<1x300xf32, #tpu.memory_space<vmem>>, vector<1x300xf32>
    %147 = vector.broadcast %146 : vector<1x300xf32> to vector<64x300xf32>
    %148 = arith.addf %145, %147 : vector<64x300xf32>
    %149 = vector.shape_cast %148 : vector<64x300xf32> to vector<8x8x300xf32>
    %cst_43 = arith.constant dense<0.000000e+00> : vector<8x300xf32>
    %150 = vector.multi_reduction <add>, %149, %cst_43 [1] : vector<8x8x300xf32> to vector<8x300xf32>
    %cst_44 = arith.constant 8.000000e+00 : f32
    %151 = vector.broadcast %cst_44 : f32 to vector<8x300xf32>
    %152 = arith.divf %150, %151 : vector<8x300xf32>
    %c0_45 = arith.constant 0 : index
    %c0_46 = arith.constant 0 : index
    %153 = vector.load %arg7[%c0_45, %c0_46] : memref<8x300xf32, #tpu.memory_space<vmem>>, vector<8x300xf32>
    tpu.vector_store %arg7[%c0_45, %c0_46], %152 {strides = array<i32>} : memref<8x300xf32, #tpu.memory_space<vmem>>, vector<8x300xf32>,
    return
  }
  func.func @transform_0(%arg0: i32) -> (i32, i32, i32) {
    %c0_i32 = arith.constant 0 : i32
    %c0_i32_0 = arith.constant 0 : i32
    %c0_i32_1 = arith.constant 0 : i32
    return %arg0, %c0_i32, %c0_i32_0 : i32, i32, i32
  }
  func.func @transform_1(%arg0: i32) -> (i32, i32) {
    %c0_i32 = arith.constant 0 : i32
    %c0_i32_0 = arith.constant 0 : i32
    %c0_i32_1 = arith.constant 0 : i32
    return %c0_i32, %c0_i32_0 : i32, i32
  }
  func.func @transform_2(%arg0: i32) -> (i32, i32) {
    %c0_i32 = arith.constant 0 : i32
    %c0_i32_0 = arith.constant 0 : i32
    %c0_i32_1 = arith.constant 0 : i32
    return %c0_i32, %c0_i32_0 : i32, i32
  }
  func.func @transform_3(%arg0: i32) -> (i32, i32) {
    %c0_i32 = arith.constant 0 : i32
    %c0_i32_0 = arith.constant 0 : i32
    %c0_i32_1 = arith.constant 0 : i32
    return %c0_i32, %c0_i32_0 : i32, i32
  }
  func.func @transform_4(%arg0: i32) -> (i32, i32) {
    %c0_i32 = arith.constant 0 : i32
    %c0_i32_0 = arith.constant 0 : i32
    %c0_i32_1 = arith.constant 0 : i32
    return %c0_i32, %c0_i32_0 : i32, i32
  }
  func.func @transform_5(%arg0: i32) -> (i32, i32) {
    %c0_i32 = arith.constant 0 : i32
    %c0_i32_0 = arith.constant 0 : i32
    %c0_i32_1 = arith.constant 0 : i32
    return %c0_i32, %c0_i32_0 : i32, i32
  }
  func.func @transform_6(%arg0: i32) -> (i32, i32) {
    %c0_i32 = arith.constant 0 : i32
    %c0_i32_0 = arith.constant 0 : i32
    return %arg0, %c0_i32 : i32, i32
  }
}

</mosaic_0001>

<llo_original>
// kernel: tpu_custom_call.1
$region0: #{tpu_custom_call.1}
  #allocation0 [shape = 'u32[]', space=smem, size = 0x4, offset = 0x4, fixed_abs, tag = 'smem constant byte address 0x4 - core index']
  #allocation1 [shape = 'u32[72,128]{1,0:T(1,128)}', space=vmem, size = 0x9000, scoped, tag = 'internal scratch']
  %s0 = inlined_call_operand.hbm [shape: f32[8,8,300], index: 0, kind: input, shape index: {}]
  %s1 = inlined_call_operand.hbm [shape: bf16[300,1920], index: 1, kind: input, shape index: {}]
  %s2 = inlined_call_operand.vmem [shape: bf16[640,300], index: 2, kind: input, shape index: {}]
  %s3 = inlined_call_operand.hbm [shape: f32[1,300], index: 3, kind: input, shape index: {}]
  %s4 = inlined_call_operand.hbm [shape: f32[1,300], index: 4, kind: input, shape index: {}]
  %s5 = inlined_call_operand.hbm [shape: f32[1,300], index: 5, kind: input, shape index: {}]
  %s6 = inlined_call_operand.hbm [shape: f32[8,300], index: 6, kind: output, shape index: {}]
  %s7 = sld [smem:[#allocation0]]
  $region54: #{tpu_custom_call.1} parent=0
    _
  %s9 = ssub.s32 1, %s7
  %s10 = scalar_select 0, %s9, %s7
  $region1: #{tpu_custom_call.1} parent=0
    #allocation2 [shape = 'u8[98304]{0}', space=vmem, size = 0x18000, scoped, tag = 'input window, operand 0, single buffered']
    #allocation3 [shape = 's32[1]{0}', space=sflag, size = 0x4, scoped, tag = 'scoped memory for tpu_custom_call.1']
    #allocation4 [shape = 's32[1]{0}', space=sflag, size = 0x4, scoped, tag = 'scoped memory for tpu_custom_call.1']
    #allocation5 [shape = 'u8[1167360]{0}', space=vmem, size = 0x11d000, scoped, tag = 'input window, operand 1, single buffered']
    #allocation6 [shape = 's32[1]{0}', space=sflag, size = 0x4, scoped, tag = 'scoped memory for tpu_custom_call.1']
    #allocation7 [shape = 'u8[1536]{0}', space=vmem, size = 0x800, scoped, tag = 'input window, operand 3, single buffered']
    #allocation8 [shape = 'u8[1536]{0}', space=vmem, size = 0x800, scoped, tag = 'input window, operand 4, single buffered']
    #allocation9 [shape = 's32[1]{0}', space=sflag, size = 0x4, scoped, tag = 'scoped memory for tpu_custom_call.1']
    #allocation10 [shape = 'u8[1536]{0}', space=vmem, size = 0x800, scoped, tag = 'input window, operand 5, single buffered']
    #allocation11 [shape = 'u8[12288]{0}', space=vmem, size = 0x3000, scoped, tag = 'output window, operand 0, single buffered']
    %11 = vsyncpa [#allocation3], 0
    %12 = vsyncpa [#allocation6], 0
    %13 = vsyncpa [#allocation9], 0
    %14 = vsyncpa [#allocation4], 0
    // Predicated region
    $region2: #{tpu_custom_call.1} parent=1 // pred_check
      _
    $region3: #{tpu_custom_call.1} parent=1 // pred_check_branch
      %16 = sbr.rel (0) target = $region5
    $region4: #{tpu_custom_call.1} parent=1 // pred_region
      %18 = vsyncadd [#allocation3], 0
      %s19 = sshll.u32 %s0, 4
      %s20 = int_to_ptr.hbm [resolvable:$true] %s19
      %s21 = sshll.u32 [#allocation2], 4
      %s22 = int_to_ptr.vmem [resolvable:$true] %s21
      %27 = dma.hbm_to_vmem [thread:$0]  %s20, 3072, %s22, [#allocation3], 384, 384, 24
    $region5: #{tpu_custom_call.1} parent=1 // pred_fallthru
      _
    // Predicated region
    $region6: #{tpu_custom_call.1} parent=1 // pred_check
      _
    $region7: #{tpu_custom_call.1} parent=1 // pred_check_branch
      %29 = sbr.rel (0) target = $region9
    $region8: #{tpu_custom_call.1} parent=1 // pred_region
      %31 = vsyncadd [#allocation6], 0
      %s32 = sshll.u32 %s1, 4
      %s33 = int_to_ptr.hbm [resolvable:$true] %s32
      %s34 = sshll.u32 [#allocation5], 4
      %s35 = int_to_ptr.vmem [resolvable:$true] %s34
      %40 = dma.hbm_to_vmem [thread:$0]  %s33, 36480, %s35, [#allocation6], 960, 960, 60
    $region9: #{tpu_custom_call.1} parent=1 // pred_fallthru
      _
    // Predicated region
    $region10: #{tpu_custom_call.1} parent=1 // pred_check
      _
    $region11: #{tpu_custom_call.1} parent=1 // pred_check_branch
      %42 = sbr.rel (0) target = $region13
    $region12: #{tpu_custom_call.1} parent=1 // pred_region
      _
    $region13: #{tpu_custom_call.1} parent=1 // pred_fallthru
      _
    // Predicated region
    $region14: #{tpu_custom_call.1} parent=1 // pred_check
      _
    $region15: #{tpu_custom_call.1} parent=1 // pred_check_branch
      %44 = sbr.rel (0) target = $region17
    $region16: #{tpu_custom_call.1} parent=1 // pred_region
      %46 = vsyncadd [#allocation6], 0
      %s48 = sshll.u32 %s3, 4
      %s49 = int_to_ptr.hbm [resolvable:$true] %s48
      %s50 = sshll.u32 [#allocation7], 4
      %s51 = int_to_ptr.vmem [resolvable:$true] %s50
      %53 = dma.hbm_to_vmem [thread:$0]  %s49, 48, %s51, [#allocation6]
    $region17: #{tpu_custom_call.1} parent=1 // pred_fallthru
      _
    // Predicated region
    $region18: #{tpu_custom_call.1} parent=1 // pred_check
      _
    $region19: #{tpu_custom_call.1} parent=1 // pred_check_branch
      %55 = sbr.rel (0) target = $region21
    $region20: #{tpu_custom_call.1} parent=1 // pred_region
      %57 = vsyncadd [#allocation9], 0
      %s59 = sshll.u32 %s4, 4
      %s60 = int_to_ptr.hbm [resolvable:$true] %s59
      %s61 = sshll.u32 [#allocation8], 4
      %s62 = int_to_ptr.vmem [resolvable:$true] %s61
      %64 = dma.hbm_to_vmem [thread:$0]  %s60, 48, %s62, [#allocation9]
    $region21: #{tpu_custom_call.1} parent=1 // pred_fallthru
      _
    // Predicated region
    $region22: #{tpu_custom_call.1} parent=1 // pred_check
      _
    $region23: #{tpu_custom_call.1} parent=1 // pred_check_branch
      %66 = sbr.rel (0) target = $region25
    $region24: #{tpu_custom_call.1} parent=1 // pred_region
      %68 = vsyncadd [#allocation9], 0
      %s70 = sshll.u32 %s5, 4
      %s71 = int_to_ptr.hbm [resolvable:$true] %s70
      %s72 = sshll.u32 [#allocation10], 4
      %s73 = int_to_ptr.vmem [resolvable:$true] %s72
      %75 = dma.hbm_to_vmem [thread:$0]  %s71, 48, %s73, [#allocation9]
    $region25: #{tpu_custom_call.1} parent=1 // pred_fallthru
      _
    // Predicated region
    $region26: #{tpu_custom_call.1} parent=1 // pred_check
      _
    $region27: #{tpu_custom_call.1} parent=1 // pred_check_branch
      %77 = sbr.rel (0) target = $region29
    $region28: #{tpu_custom_call.1} parent=1 // pred_region
      %79 = dma.done [#allocation3], 3072
    $region29: #{tpu_custom_call.1} parent=1 // pred_fallthru
      _
    // Predicated region
    $region30: #{tpu_custom_call.1} parent=1 // pred_check
      _
    $region31: #{tpu_custom_call.1} parent=1 // pred_check_branch
      %81 = sbr.rel (0) target = $region33
    $region32: #{tpu_custom_call.1} parent=1 // pred_region
      %83 = dma.done [#allocation6], 36480
    $region33: #{tpu_custom_call.1} parent=1 // pred_fallthru
      _
    // Predicated region
    $region34: #{tpu_custom_call.1} parent=1 // pred_check
      _
    $region35: #{tpu_custom_call.1} parent=1 // pred_check_branch
      %85 = sbr.rel (0) target = $region37
    $region36: #{tpu_custom_call.1} parent=1 // pred_region
      %87 = dma.done [#allocation6], 48
    $region37: #{tpu_custom_call.1} parent=1 // pred_fallthru
      _
    // Predicated region
    $region38: #{tpu_custom_call.1} parent=1 // pred_check
      _
    $region39: #{tpu_custom_call.1} parent=1 // pred_check_branch
      %89 = sbr.rel (0) target = $region41
    $region40: #{tpu_custom_call.1} parent=1 // pred_region
      %91 = dma.done [#allocation9], 48
    $region41: #{tpu_custom_call.1} parent=1 // pred_fallthru
      _
    // Predicated region
    $region42: #{tpu_custom_call.1} parent=1 // pred_check
      _
    $region43: #{tpu_custom_call.1} parent=1 // pred_check_branch
      %93 = sbr.rel (0) target = $region45
    $region44: #{tpu_custom_call.1} parent=1 // pred_region
      %95 = dma.done [#allocation9], 48
    $region45: #{tpu_custom_call.1} parent=1 // pred_fallthru
      _
    %v97 = vld [vmem:[#allocation2] sm:$0xff]
    %v98 = vld [vmem:[#allocation2 + $0x8] sm:$0xff]
    %v99 = vld [vmem:[#allocation2 + $0x10] sm:$0xff]
    %v100 = vld [vmem:[#allocation2 + $0x18] sm:$0xff]
    %v101 = vld [vmem:[#allocation2 + $0x20] sm:$0xff]
    %v102 = vld [vmem:[#allocation2 + $0x28] sm:$0xff]
    %v103 = vld [vmem:[#allocation2 + $0x30] sm:$0xff]
    %v104 = vld [vmem:[#allocation2 + $0x38] sm:$0xff]
    %v105 = vld [vmem:[#allocation2 + $0x40] sm:$0xff]
    %v106 = vld [vmem:[#allocation2 + $0x48] sm:$0xff]
    %v107 = vld [vmem:[#allocation2 + $0x50] sm:$0xff]
    %v108 = vld [vmem:[#allocation2 + $0x58] sm:$0xff]
    %v109 = vld [vmem:[#allocation2 + $0x60] sm:$0xff]
    %v110 = vld [vmem:[#allocation2 + $0x68] sm:$0xff]
    %v111 = vld [vmem:[#allocation2 + $0x70] sm:$0xff]
    %v112 = vld [vmem:[#allocation2 + $0x78] sm:$0xff]
    %v113 = vld [vmem:[#allocation2 + $0x80] sm:$0xff]
    %v114 = vld [vmem:[#allocation2 + $0x88] sm:$0xff]
    %v115 = vld [vmem:[#allocation2 + $0x90] sm:$0xff]
    %v116 = vld [vmem:[#allocation2 + $0x98] sm:$0xff]
    %v117 = vld [vmem:[#allocation2 + $0xa0] sm:$0xff]
    %v118 = vld [vmem:[#allocation2 + $0xa8] sm:$0xff]
    %v119 = vld [vmem:[#allocation2 + $0xb0] sm:$0xff]
    %v120 = vld [vmem:[#allocation2 + $0xb8] sm:$0xff]
    %v121 = vpack.c.bf16 %v100, %v97
    %v122 = vpack.c.bf16 %v101, %v98
    %v123 = vpack.c.bf16 %v102, %v99
    %v124 = vpack.c.bf16 %v106, %v103
    %v125 = vpack.c.bf16 %v107, %v104
    %v126 = vpack.c.bf16 %v108, %v105
    %v127 = vpack.c.bf16 %v112, %v109
    %v128 = vpack.c.bf16 %v113, %v110
    %v129 = vpack.c.bf16 %v114, %v111
    %v130 = vpack.c.bf16 %v118, %v115
    %v131 = vpack.c.bf16 %v119, %v116
    %v132 = vpack.c.bf16 %v120, %v117
    %v133 = vld [vmem:[#allocation5] sm:$0xff]
    %v134 = vld [vmem:[#allocation5 + $0x8] sm:$0xff]
    %v135 = vld [vmem:[#allocation5 + $0x10] sm:$0xff]
    %v136 = vld [vmem:[#allocation5 + $0x18] sm:$0xff]
    %v137 = vld [vmem:[#allocation5 + $0x20] sm:$0xff]
    %v138 = vld [vmem:[#allocation5 + $0x28] sm:$0xff]
    %v139 = vld [vmem:[#allocation5 + $0x30] sm:$0xff]
    %v140 = vld [vmem:[#allocation5 + $0x38] sm:$0xf]
    %v141 = vld [vmem:[#allocation5 + $0x3c] sm:$0xff]
    %v142 = vld [vmem:[#allocation5 + $0x44] sm:$0xff]
    %v143 = vld [vmem:[#allocation5 + $0x4c] sm:$0xff]
    %v144 = vld [vmem:[#allocation5 + $0x54] sm:$0xff]
    %v145 = vld [vmem:[#allocation5 + $0x5c] sm:$0xff]
    %v146 = vld [vmem:[#allocation5 + $0x64] sm:$0xff]
    %v147 = vld [vmem:[#allocation5 + $0x6c] sm:$0xff]
    %v148 = vld [vmem:[#allocation5 + $0x74] sm:$0xf]
    %v149 = vld [vmem:[#allocation5 + $0x78] sm:$0xff]
    %v150 = vld [vmem:[#allocation5 + $0x80] sm:$0xff]
    %v151 = vld [vmem:[#allocation5 + $0x88] sm:$0xff]
    %v152 = vld [vmem:[#allocation5 + $0x90] sm:$0xff]
    %v153 = vld [vmem:[#allocation5 + $0x98] sm:$0xff]
    %v154 = vld [vmem:[#allocation5 + $0xa0] sm:$0xff]
    %v155 = vld [vmem:[#allocation5 + $0xa8] sm:$0xff]
    %v156 = vld [vmem:[#allocation5 + $0xb0] sm:$0xf]
    %v157 = vld [vmem:[#allocation5 + $0xb4] sm:$0xff]
    %v158 = vld [vmem:[#allocation5 + $0xbc] sm:$0xff]
    %v159 = vld [vmem:[#allocation5 + $0xc4] sm:$0xff]
    %v160 = vld [vmem:[#allocation5 + $0xcc] sm:$0xff]
    %v161 = vld [vmem:[#allocation5 + $0xd4] sm:$0xff]
    %v162 = vld [vmem:[#allocation5 + $0xdc] sm:$0xff]
    %v163 = vld [vmem:[#allocation5 + $0xe4] sm:$0xff]
    %v164 = vld [vmem:[#allocation5 + $0xec] sm:$0xf]
    %v165 = vld [vmem:[#allocation5 + $0xf0] sm:$0xff]
    %v166 = vld [vmem:[#allocation5 + $0xf8] sm:$0xff]
    %v167 = vld [vmem:[#allocation5 + $0x100] sm:$0xff]
    %v168 = vld [vmem:[#allocation5 + $0x108] sm:$0xff]
    %v169 = vld [vmem:[#allocation5 + $0x110] sm:$0xff]
    %v170 = vld [vmem:[#allocation5 + $0x118] sm:$0xff]
    %v171 = vld [vmem:[#allocation5 + $0x120] sm:$0xff]
    %v172 = vld [vmem:[#allocation5 + $0x128] sm:$0xf]
    %v173 = vld [vmem:[#allocation5 + $0x12c] sm:$0xff]
    %v174 = vld [vmem:[#allocation5 + $0x134] sm:$0xff]
    %v175 = vld [vmem:[#allocation5 + $0x13c] sm:$0xff]
    %v176 = vld [vmem:[#allocation5 + $0x144] sm:$0xff]
    %v177 = vld [vmem:[#allocation5 + $0x14c] sm:$0xff]
    %v178 = vld [vmem:[#allocation5 + $0x154] sm:$0xff]
    %v179 = vld [vmem:[#allocation5 + $0x15c] sm:$0xff]
    %v180 = vld [vmem:[#allocation5 + $0x164] sm:$0xf]
    %v181 = vld [vmem:[#allocation5 + $0x168] sm:$0xff]
    %v182 = vld [vmem:[#allocation5 + $0x170] sm:$0xff]
    %v183 = vld [vmem:[#allocation5 + $0x178] sm:$0xff]
    %v184 = vld [vmem:[#allocation5 + $0x180] sm:$0xff]
    %v185 = vld [vmem:[#allocation5 + $0x188] sm:$0xff]
    %v186 = vld [vmem:[#allocation5 + $0x190] sm:$0xff]
    %v187 = vld [vmem:[#allocation5 + $0x198] sm:$0xff]
    %v188 = vld [vmem:[#allocation5 + $0x1a0] sm:$0xf]
    %v189 = vld [vmem:[#allocation5 + $0x1a4] sm:$0xff]
    %v190 = vld [vmem:[#allocation5 + $0x1ac] sm:$0xff]
    %v191 = vld [vmem:[#allocation5 + $0x1b4] sm:$0xff]
    %v192 = vld [vmem:[#allocation5 + $0x1bc] sm:$0xff]
    %v193 = vld [vmem:[#allocation5 + $0x1c4] sm:$0xff]
    %v194 = vld [vmem:[#allocation5 + $0x1cc] sm:$0xff]
    %v195 = vld [vmem:[#allocation5 + $0x1d4] sm:$0xff]
    %v196 = vld [vmem:[#allocation5 + $0x1dc] sm:$0xf]
    %v197 = vld [vmem:[#allocation5 + $0x1e0] sm:$0xff]
    %v198 = vld [vmem:[#allocation5 + $0x1e8] sm:$0xff]
    %v199 = vld [vmem:[#allocation5 + $0x1f0] sm:$0xff]
    %v200 = vld [vmem:[#allocation5 + $0x1f8] sm:$0xff]
    %v201 = vld [vmem:[#allocation5 + $0x200] sm:$0xff]
    %v202 = vld [vmem:[#allocation5 + $0x208] sm:$0xff]
    %v203 = vld [vmem:[#allocation5 + $0x210] sm:$0xff]
    %v204 = vld [vmem:[#allocation5 + $0x218] sm:$0xf]
    %v205 = vld [vmem:[#allocation5 + $0x21c] sm:$0xff]
    %v206 = vld [vmem:[#allocation5 + $0x224] sm:$0xff]
    %v207 = vld [vmem:[#allocation5 + $0x22c] sm:$0xff]
    %v208 = vld [vmem:[#allocation5 + $0x234] sm:$0xff]
    %v209 = vld [vmem:[#allocation5 + $0x23c] sm:$0xff]
    %v210 = vld [vmem:[#allocation5 + $0x244] sm:$0xff]
    %v211 = vld [vmem:[#allocation5 + $0x24c] sm:$0xff]
    %v212 = vld [vmem:[#allocation5 + $0x254] sm:$0xf]
    %v213 = vld [vmem:[#allocation5 + $0x258] sm:$0xff]
    %v214 = vld [vmem:[#allocation5 + $0x260] sm:$0xff]
    %v215 = vld [vmem:[#allocation5 + $0x268] sm:$0xff]
    %v216 = vld [vmem:[#allocation5 + $0x270] sm:$0xff]
    %v217 = vld [vmem:[#allocation5 + $0x278] sm:$0xff]
    %v218 = vld [vmem:[#allocation5 + $0x280] sm:$0xff]
    %v219 = vld [vmem:[#allocation5 + $0x288] sm:$0xff]
    %v220 = vld [vmem:[#allocation5 + $0x290] sm:$0xf]
    %v221 = vld [vmem:[#allocation5 + $0x294] sm:$0xff]
    %v222 = vld [vmem:[#allocation5 + $0x29c] sm:$0xff]
    %v223 = vld [vmem:[#allocation5 + $0x2a4] sm:$0xff]
    %v224 = vld [vmem:[#allocation5 + $0x2ac] sm:$0xff]
    %v225 = vld [vmem:[#allocation5 + $0x2b4] sm:$0xff]
    %v226 = vld [vmem:[#allocation5 + $0x2bc] sm:$0xff]
    %v227 = vld [vmem:[#allocation5 + $0x2c4] sm:$0xff]
    %v228 = vld [vmem:[#allocation5 + $0x2cc] sm:$0xf]
    %v229 = vld [vmem:[#allocation5 + $0x2d0] sm:$0xff]
    %v230 = vld [vmem:[#allocation5 + $0x2d8] sm:$0xff]
    %v231 = vld [vmem:[#allocation5 + $0x2e0] sm:$0xff]
    %v232 = vld [vmem:[#allocation5 + $0x2e8] sm:$0xff]
    %v233 = vld [vmem:[#allocation5 + $0x2f0] sm:$0xff]
    %v234 = vld [vmem:[#allocation5 + $0x2f8] sm:$0xff]
    %v235 = vld [vmem:[#allocation5 + $0x300] sm:$0xff]
    %v236 = vld [vmem:[#allocation5 + $0x308] sm:$0xf]
    %v237 = vld [vmem:[#allocation5 + $0x30c] sm:$0xff]
    %v238 = vld [vmem:[#allocation5 + $0x314] sm:$0xff]
    %v239 = vld [vmem:[#allocation5 + $0x31c] sm:$0xff]
    %v240 = vld [vmem:[#allocation5 + $0x324] sm:$0xff]
    %v241 = vld [vmem:[#allocation5 + $0x32c] sm:$0xff]
    %v242 = vld [vmem:[#allocation5 + $0x334] sm:$0xff]
    %v243 = vld [vmem:[#allocation5 + $0x33c] sm:$0xff]
    %v244 = vld [vmem:[#allocation5 + $0x344] sm:$0xf]
    %v245 = vld [vmem:[#allocation5 + $0x348] sm:$0xff]
    %v246 = vld [vmem:[#allocation5 + $0x350] sm:$0xff]
    %v247 = vld [vmem:[#allocation5 + $0x358] sm:$0xff]
    %v248 = vld [vmem:[#allocation5 + $0x360] sm:$0xff]
    %v249 = vld [vmem:[#allocation5 + $0x368] sm:$0xff]
    %v250 = vld [vmem:[#allocation5 + $0x370] sm:$0xff]
    %v251 = vld [vmem:[#allocation5 + $0x378] sm:$0xff]
    %v252 = vld [vmem:[#allocation5 + $0x380] sm:$0xf]
    %v253 = vld [vmem:[#allocation5 + $0x384] sm:$0xff]
    %v254 = vld [vmem:[#allocation5 + $0x38c] sm:$0xff]
    %v255 = vld [vmem:[#allocation5 + $0x394] sm:$0xff]
    %v256 = vld [vmem:[#allocation5 + $0x39c] sm:$0xff]
    %v257 = vld [vmem:[#allocation5 + $0x3a4] sm:$0xff]
    %v258 = vld [vmem:[#allocation5 + $0x3ac] sm:$0xff]
    %v259 = vld [vmem:[#allocation5 + $0x3b4] sm:$0xff]
    %v260 = vld [vmem:[#allocation5 + $0x3bc] sm:$0xf]
    %v261 = vld [vmem:[#allocation5 + $0x3c0] sm:$0xff]
    %v262 = vld [vmem:[#allocation5 + $0x3c8] sm:$0xff]
    %v263 = vld [vmem:[#allocation5 + $0x3d0] sm:$0xff]
    %v264 = vld [vmem:[#allocation5 + $0x3d8] sm:$0xff]
    %v265 = vld [vmem:[#allocation5 + $0x3e0] sm:$0xff]
    %v266 = vld [vmem:[#allocation5 + $0x3e8] sm:$0xff]
    %v267 = vld [vmem:[#allocation5 + $0x3f0] sm:$0xff]
    %v268 = vld [vmem:[#allocation5 + $0x3f8] sm:$0xf]
    %v269 = vld [vmem:[#allocation5 + $0x3fc] sm:$0xff]
    %v270 = vld [vmem:[#allocation5 + $0x404] sm:$0xff]
    %v271 = vld [vmem:[#allocation5 + $0x40c] sm:$0xff]
    %v272 = vld [vmem:[#allocation5 + $0x414] sm:$0xff]
    %v273 = vld [vmem:[#allocation5 + $0x41c] sm:$0xff]
    %v274 = vld [vmem:[#allocation5 + $0x424] sm:$0xff]
    %v275 = vld [vmem:[#allocation5 + $0x42c] sm:$0xff]
    %v276 = vld [vmem:[#allocation5 + $0x434] sm:$0xf]
    %v277 = vld [vmem:[#allocation5 + $0x438] sm:$0xff]
    %v278 = vld [vmem:[#allocation5 + $0x440] sm:$0xff]
    %v279 = vld [vmem:[#allocation5 + $0x448] sm:$0xff]
    %v280 = vld [vmem:[#allocation5 + $0x450] sm:$0xff]
    %v281 = vld [vmem:[#allocation5 + $0x458] sm:$0xff]
    %v282 = vld [vmem:[#allocation5 + $0x460] sm:$0xff]
    %v283 = vld [vmem:[#allocation5 + $0x468] sm:$0xff]
    %v284 = vld [vmem:[#allocation5 + $0x470] sm:$0xf]
    %v285 = vld [vmem:[#allocation5 + $0x474] sm:$0xff]
    %v286 = vld [vmem:[#allocation5 + $0x47c] sm:$0xff]
    %v287 = vld [vmem:[#allocation5 + $0x484] sm:$0xff]
    %v288 = vld [vmem:[#allocation5 + $0x48c] sm:$0xff]
    %v289 = vld [vmem:[#allocation5 + $0x494] sm:$0xff]
    %v290 = vld [vmem:[#allocation5 + $0x49c] sm:$0xff]
    %v291 = vld [vmem:[#allocation5 + $0x4a4] sm:$0xff]
    %v292 = vld [vmem:[#allocation5 + $0x4ac] sm:$0xf]
    %v293 = vld [vmem:[#allocation5 + $0x4b0] sm:$0xff]
    %v294 = vld [vmem:[#allocation5 + $0x4b8] sm:$0xff]
    %v295 = vld [vmem:[#allocation5 + $0x4c0] sm:$0xff]
    %v296 = vld [vmem:[#allocation5 + $0x4c8] sm:$0xff]
    %v297 = vld [vmem:[#allocation5 + $0x4d0] sm:$0xff]
    %v298 = vld [vmem:[#allocation5 + $0x4d8] sm:$0xff]
    %v299 = vld [vmem:[#allocation5 + $0x4e0] sm:$0xff]
    %v300 = vld [vmem:[#allocation5 + $0x4e8] sm:$0xf]
    %v301 = vld [vmem:[#allocation5 + $0x4ec] sm:$0xff]
    %v302 = vld [vmem:[#allocation5 + $0x4f4] sm:$0xff]
    %v303 = vld [vmem:[#allocation5 + $0x4fc] sm:$0xff]
    %v304 = vld [vmem:[#allocation5 + $0x504] sm:$0xff]
    %v305 = vld [vmem:[#allocation5 + $0x50c] sm:$0xff]
    %v306 = vld [vmem:[#allocation5 + $0x514] sm:$0xff]
    %v307 = vld [vmem:[#allocation5 + $0x51c] sm:$0xff]
    %v308 = vld [vmem:[#allocation5 + $0x524] sm:$0xf]
    %v309 = vld [vmem:[#allocation5 + $0x528] sm:$0xff]
    %v310 = vld [vmem:[#allocation5 + $0x530] sm:$0xff]
    %v311 = vld [vmem:[#allocation5 + $0x538] sm:$0xff]
    %v312 = vld [vmem:[#allocation5 + $0x540] sm:$0xff]
    %v313 = vld [vmem:[#allocation5 + $0x548] sm:$0xff]
    %v314 = vld [vmem:[#allocation5 + $0x550] sm:$0xff]
    %v315 = vld [vmem:[#allocation5 + $0x558] sm:$0xff]
    %v316 = vld [vmem:[#allocation5 + $0x560] sm:$0xf]
    %v317 = vld [vmem:[#allocation5 + $0x564] sm:$0xff]
    %v318 = vld [vmem:[#allocation5 + $0x56c] sm:$0xff]
    %v319 = vld [vmem:[#allocation5 + $0x574] sm:$0xff]
    %v320 = vld [vmem:[#allocation5 + $0x57c] sm:$0xff]
    %v321 = vld [vmem:[#allocation5 + $0x584] sm:$0xff]
    %v322 = vld [vmem:[#allocation5 + $0x58c] sm:$0xff]
    %v323 = vld [vmem:[#allocation5 + $0x594] sm:$0xff]
    %v324 = vld [vmem:[#allocation5 + $0x59c] sm:$0xf]
    %v325 = vld [vmem:[#allocation5 + $0x5a0] sm:$0xff]
    %v326 = vld [vmem:[#allocation5 + $0x5a8] sm:$0xff]
    %v327 = vld [vmem:[#allocation5 + $0x5b0] sm:$0xff]
    %v328 = vld [vmem:[#allocation5 + $0x5b8] sm:$0xff]
    %v329 = vld [vmem:[#allocation5 + $0x5c0] sm:$0xff]
    %v330 = vld [vmem:[#allocation5 + $0x5c8] sm:$0xff]
    %v331 = vld [vmem:[#allocation5 + $0x5d0] sm:$0xff]
    %v332 = vld [vmem:[#allocation5 + $0x5d8] sm:$0xf]
    %v333 = vld [vmem:[#allocation5 + $0x5dc] sm:$0xff]
    %v334 = vld [vmem:[#allocation5 + $0x5e4] sm:$0xff]
    %v335 = vld [vmem:[#allocation5 + $0x5ec] sm:$0xff]
    %v336 = vld [vmem:[#allocation5 + $0x5f4] sm:$0xff]
    %v337 = vld [vmem:[#allocation5 + $0x5fc] sm:$0xff]
    %v338 = vld [vmem:[#allocation5 + $0x604] sm:$0xff]
    %v339 = vld [vmem:[#allocation5 + $0x60c] sm:$0xff]
    %v340 = vld [vmem:[#allocation5 + $0x614] sm:$0xf]
    %v341 = vld [vmem:[#allocation5 + $0x618] sm:$0xff]
    %v342 = vld [vmem:[#allocation5 + $0x620] sm:$0xff]
    %v343 = vld [vmem:[#allocation5 + $0x628] sm:$0xff]
    %v344 = vld [vmem:[#allocation5 + $0x630] sm:$0xff]
    %v345 = vld [vmem:[#allocation5 + $0x638] sm:$0xff]
    %v346 = vld [vmem:[#allocation5 + $0x640] sm:$0xff]
    %v347 = vld [vmem:[#allocation5 + $0x648] sm:$0xff]
    %v348 = vld [vmem:[#allocation5 + $0x650] sm:$0xf]
    %v349 = vld [vmem:[#allocation5 + $0x654] sm:$0xff]
    %v350 = vld [vmem:[#allocation5 + $0x65c] sm:$0xff]
    %v351 = vld [vmem:[#allocation5 + $0x664] sm:$0xff]
    %v352 = vld [vmem:[#allocation5 + $0x66c] sm:$0xff]
    %v353 = vld [vmem:[#allocation5 + $0x674] sm:$0xff]
    %v354 = vld [vmem:[#allocation5 + $0x67c] sm:$0xff]
    %v355 = vld [vmem:[#allocation5 + $0x684] sm:$0xff]
    %v356 = vld [vmem:[#allocation5 + $0x68c] sm:$0xf]
    %v357 = vld [vmem:[#allocation5 + $0x690] sm:$0xff]
    %v358 = vld [vmem:[#allocation5 + $0x698] sm:$0xff]
    %v359 = vld [vmem:[#allocation5 + $0x6a0] sm:$0xff]
    %v360 = vld [vmem:[#allocation5 + $0x6a8] sm:$0xff]
    %v361 = vld [vmem:[#allocation5 + $0x6b0] sm:$0xff]
    %v362 = vld [vmem:[#allocation5 + $0x6b8] sm:$0xff]
    %v363 = vld [vmem:[#allocation5 + $0x6c0] sm:$0xff]
    %v364 = vld [vmem:[#allocation5 + $0x6c8] sm:$0xf]
    %v365 = vld [vmem:[#allocation5 + $0x6cc] sm:$0xff]
    %v366 = vld [vmem:[#allocation5 + $0x6d4] sm:$0xff]
    %v367 = vld [vmem:[#allocation5 + $0x6dc] sm:$0xff]
    %v368 = vld [vmem:[#allocation5 + $0x6e4] sm:$0xff]
    %v369 = vld [vmem:[#allocation5 + $0x6ec] sm:$0xff]
    %v370 = vld [vmem:[#allocation5 + $0x6f4] sm:$0xff]
    %v371 = vld [vmem:[#allocation5 + $0x6fc] sm:$0xff]
    %v372 = vld [vmem:[#allocation5 + $0x704] sm:$0xf]
    %v373 = vld [vmem:[#allocation5 + $0x708] sm:$0xff]
    %v374 = vld [vmem:[#allocation5 + $0x710] sm:$0xff]
    %v375 = vld [vmem:[#allocation5 + $0x718] sm:$0xff]
    %v376 = vld [vmem:[#allocation5 + $0x720] sm:$0xff]
    %v377 = vld [vmem:[#allocation5 + $0x728] sm:$0xff]
    %v378 = vld [vmem:[#allocation5 + $0x730] sm:$0xff]
    %v379 = vld [vmem:[#allocation5 + $0x738] sm:$0xff]
    %v380 = vld [vmem:[#allocation5 + $0x740] sm:$0xf]
    %v381 = vld [vmem:[#allocation5 + $0x744] sm:$0xff]
    %v382 = vld [vmem:[#allocation5 + $0x74c] sm:$0xff]
    %v383 = vld [vmem:[#allocation5 + $0x754] sm:$0xff]
    %v384 = vld [vmem:[#allocation5 + $0x75c] sm:$0xff]
    %v385 = vld [vmem:[#allocation5 + $0x764] sm:$0xff]
    %v386 = vld [vmem:[#allocation5 + $0x76c] sm:$0xff]
    %v387 = vld [vmem:[#allocation5 + $0x774] sm:$0xff]
    %v388 = vld [vmem:[#allocation5 + $0x77c] sm:$0xf]
    %v389 = vld [vmem:[#allocation5 + $0x780] sm:$0xff]
    %v390 = vld [vmem:[#allocation5 + $0x788] sm:$0xff]
    %v391 = vld [vmem:[#allocation5 + $0x790] sm:$0xff]
    %v392 = vld [vmem:[#allocation5 + $0x798] sm:$0xff]
    %v393 = vld [vmem:[#allocation5 + $0x7a0] sm:$0xff]
    %v394 = vld [vmem:[#allocation5 + $0x7a8] sm:$0xff]
    %v395 = vld [vmem:[#allocation5 + $0x7b0] sm:$0xff]
    %v396 = vld [vmem:[#allocation5 + $0x7b8] sm:$0xf]
    %v397 = vld [vmem:[#allocation5 + $0x7bc] sm:$0xff]
    %v398 = vld [vmem:[#allocation5 + $0x7c4] sm:$0xff]
    %v399 = vld [vmem:[#allocation5 + $0x7cc] sm:$0xff]
    %v400 = vld [vmem:[#allocation5 + $0x7d4] sm:$0xff]
    %v401 = vld [vmem:[#allocation5 + $0x7dc] sm:$0xff]
    %v402 = vld [vmem:[#allocation5 + $0x7e4] sm:$0xff]
    %v403 = vld [vmem:[#allocation5 + $0x7ec] sm:$0xff]
    %v404 = vld [vmem:[#allocation5 + $0x7f4] sm:$0xf]
    %v405 = vld [vmem:[#allocation5 + $0x7f8] sm:$0xff]
    %v406 = vld [vmem:[#allocation5 + $0x800] sm:$0xff]
    %v407 = vld [vmem:[#allocation5 + $0x808] sm:$0xff]
    %v408 = vld [vmem:[#allocation5 + $0x810] sm:$0xff]
    %v409 = vld [vmem:[#allocation5 + $0x818] sm:$0xff]
    %v410 = vld [vmem:[#allocation5 + $0x820] sm:$0xff]
    %v411 = vld [vmem:[#allocation5 + $0x828] sm:$0xff]
    %v412 = vld [vmem:[#allocation5 + $0x830] sm:$0xf]
    %v413 = vld [vmem:[#allocation5 + $0x834] sm:$0xff]
    %v414 = vld [vmem:[#allocation5 + $0x83c] sm:$0xff]
    %v415 = vld [vmem:[#allocation5 + $0x844] sm:$0xff]
    %v416 = vld [vmem:[#allocation5 + $0x84c] sm:$0xff]
    %v417 = vld [vmem:[#allocation5 + $0x854] sm:$0xff]
    %v418 = vld [vmem:[#allocation5 + $0x85c] sm:$0xff]
    %v419 = vld [vmem:[#allocation5 + $0x864] sm:$0xff]
    %v420 = vld [vmem:[#allocation5 + $0x86c] sm:$0xf]
    %v421 = vld [vmem:[#allocation5 + $0x870] sm:$0xff]
    %v422 = vld [vmem:[#allocation5 + $0x878] sm:$0xff]
    %v423 = vld [vmem:[#allocation5 + $0x880] sm:$0xff]
    %v424 = vld [vmem:[#allocation5 + $0x888] sm:$0xff]
    %v425 = vld [vmem:[#allocation5 + $0x890] sm:$0xff]
    %v426 = vld [vmem:[#allocation5 + $0x898] sm:$0xff]
    %v427 = vld [vmem:[#allocation5 + $0x8a0] sm:$0xff]
    %v428 = vld [vmem:[#allocation5 + $0x8a8] sm:$0xf]
    %v429 = vld [vmem:[#allocation5 + $0x8ac] sm:$0x33]
    %v430 = vld [vmem:[#allocation5 + $0x8b4] sm:$0x33]
    %v431 = vld [vmem:[#allocation5 + $0x8bc] sm:$0x33]
    %v432 = vld [vmem:[#allocation5 + $0x8c4] sm:$0x33]
    %v433 = vld [vmem:[#allocation5 + $0x8cc] sm:$0x33]
    %v434 = vld [vmem:[#allocation5 + $0x8d4] sm:$0x33]
    %v435 = vld [vmem:[#allocation5 + $0x8dc] sm:$0x33]
    %v436 = vld [vmem:[#allocation5 + $0x8e4] sm:$0x3]
    %v741 = vunpack.c.l.b16 %v133
    %v742 = vunpack.c.h.b16 %v133
    %v743 = vunpack.c.l.b16 %v134
    %v744 = vunpack.c.h.b16 %v134
    %v745 = vunpack.c.l.b16 %v135
    %v746 = vunpack.c.h.b16 %v135
    %v747 = vunpack.c.l.b16 %v136
    %v748 = vunpack.c.h.b16 %v136
    %v749 = vunpack.c.l.b16 %v137
    %v750 = vunpack.c.h.b16 %v137
    %v751 = vunpack.c.l.b16 %v138
    %v752 = vunpack.c.h.b16 %v138
    %v753 = vunpack.c.l.b16 %v139
    %v754 = vunpack.c.h.b16 %v139
    %v755 = vunpack.c.l.b16 %v140
    %v756 = vunpack.c.l.b16 %v141
    %v757 = vunpack.c.h.b16 %v141
    %v758 = vunpack.c.l.b16 %v142
    %v759 = vunpack.c.h.b16 %v142
    %v760 = vunpack.c.l.b16 %v143
    %v761 = vunpack.c.h.b16 %v143
    %v762 = vunpack.c.l.b16 %v144
    %v763 = vunpack.c.h.b16 %v144
    %v764 = vunpack.c.l.b16 %v145
    %v765 = vunpack.c.h.b16 %v145
    %v766 = vunpack.c.l.b16 %v146
    %v767 = vunpack.c.h.b16 %v146
    %v768 = vunpack.c.l.b16 %v147
    %v769 = vunpack.c.h.b16 %v147
    %v770 = vunpack.c.l.b16 %v148
    %v771 = vunpack.c.l.b16 %v149
    %v772 = vunpack.c.h.b16 %v149
    %v773 = vunpack.c.l.b16 %v150
    %v774 = vunpack.c.h.b16 %v150
    %v775 = vunpack.c.l.b16 %v151
    %v776 = vunpack.c.h.b16 %v151
    %v777 = vunpack.c.l.b16 %v152
    %v778 = vunpack.c.h.b16 %v152
    %v779 = vunpack.c.l.b16 %v153
    %v780 = vunpack.c.h.b16 %v153
    %v781 = vunpack.c.l.b16 %v154
    %v782 = vunpack.c.h.b16 %v154
    %v783 = vunpack.c.l.b16 %v155
    %v784 = vunpack.c.h.b16 %v155
    %v785 = vunpack.c.l.b16 %v156
    %v786 = vunpack.c.l.b16 %v157
    %v787 = vunpack.c.h.b16 %v157
    %v788 = vunpack.c.l.b16 %v158
    %v789 = vunpack.c.h.b16 %v158
    %v790 = vunpack.c.l.b16 %v159
    %v791 = vunpack.c.h.b16 %v159
    %v792 = vunpack.c.l.b16 %v160
    %v793 = vunpack.c.h.b16 %v160
    %v794 = vunpack.c.l.b16 %v161
    %v795 = vunpack.c.h.b16 %v161
    %v796 = vunpack.c.l.b16 %v162
    %v797 = vunpack.c.h.b16 %v162
    %v798 = vunpack.c.l.b16 %v163
    %v799 = vunpack.c.h.b16 %v163
    %v800 = vunpack.c.l.b16 %v164
    %v801 = vunpack.c.l.b16 %v165
    %v802 = vunpack.c.h.b16 %v165
    %v803 = vunpack.c.l.b16 %v166
    %v804 = vunpack.c.h.b16 %v166
    %v805 = vunpack.c.l.b16 %v167
    %v806 = vunpack.c.h.b16 %v167
    %v807 = vunpack.c.l.b16 %v168
    %v808 = vunpack.c.h.b16 %v168
    %v809 = vunpack.c.l.b16 %v169
    %v810 = vunpack.c.h.b16 %v169
    %v811 = vunpack.c.l.b16 %v170
    %v812 = vunpack.c.h.b16 %v170
    %v813 = vunpack.c.l.b16 %v171
    %v814 = vunpack.c.h.b16 %v171
    %v815 = vunpack.c.l.b16 %v172
    %v816 = vunpack.c.l.b16 %v173
    %v817 = vunpack.c.h.b16 %v173
    %v818 = vunpack.c.l.b16 %v174
    %v819 = vunpack.c.h.b16 %v174
    %v820 = vunpack.c.l.b16 %v175
    %v821 = vunpack.c.h.b16 %v175
    %v822 = vunpack.c.l.b16 %v176
    %v823 = vunpack.c.h.b16 %v176
    %v824 = vunpack.c.l.b16 %v177
    %v825 = vunpack.c.h.b16 %v177
    %v826 = vunpack.c.l.b16 %v178
    %v827 = vunpack.c.h.b16 %v178
    %v828 = vunpack.c.l.b16 %v179
    %v829 = vunpack.c.h.b16 %v179
    %v830 = vunpack.c.l.b16 %v180
    %v831 = vunpack.c.l.b16 %v181
    %v832 = vunpack.c.h.b16 %v181
    %v833 = vunpack.c.l.b16 %v182
    %v834 = vunpack.c.h.b16 %v182
    %v835 = vunpack.c.l.b16 %v183
    %v836 = vunpack.c.h.b16 %v183
    %v837 = vunpack.c.l.b16 %v184
    %v838 = vunpack.c.h.b16 %v184
    %v839 = vunpack.c.l.b16 %v185
    %v840 = vunpack.c.h.b16 %v185
    %v841 = vunpack.c.l.b16 %v186
    %v842 = vunpack.c.h.b16 %v186
    %v843 = vunpack.c.l.b16 %v187
    %v844 = vunpack.c.h.b16 %v187
    %v845 = vunpack.c.l.b16 %v188
    %v846 = vunpack.c.l.b16 %v189
    %v847 = vunpack.c.h.b16 %v189
    %v848 = vunpack.c.l.b16 %v190
    %v849 = vunpack.c.h.b16 %v190
    %v850 = vunpack.c.l.b16 %v191
    %v851 = vunpack.c.h.b16 %v191
    %v852 = vunpack.c.l.b16 %v192
    %v853 = vunpack.c.h.b16 %v192
    %v854 = vunpack.c.l.b16 %v193
    %v855 = vunpack.c.h.b16 %v193
    %v856 = vunpack.c.l.b16 %v194
    %v857 = vunpack.c.h.b16 %v194
    %v858 = vunpack.c.l.b16 %v195
    %v859 = vunpack.c.h.b16 %v195
    %v860 = vunpack.c.l.b16 %v196
    %v861 = vunpack.c.l.b16 %v197
    %v862 = vunpack.c.h.b16 %v197
    %v863 = vunpack.c.l.b16 %v198
    %v864 = vunpack.c.h.b16 %v198
    %v865 = vunpack.c.l.b16 %v199
    %v866 = vunpack.c.h.b16 %v199
    %v867 = vunpack.c.l.b16 %v200
    %v868 = vunpack.c.h.b16 %v200
    %v869 = vunpack.c.l.b16 %v201
    %v870 = vunpack.c.h.b16 %v201
    %v871 = vunpack.c.l.b16 %v202
    %v872 = vunpack.c.h.b16 %v202
    %v873 = vunpack.c.l.b16 %v203
    %v874 = vunpack.c.h.b16 %v203
    %v875 = vunpack.c.l.b16 %v204
    %v876 = vunpack.c.l.b16 %v205
    %v877 = vunpack.c.h.b16 %v205
    %v878 = vunpack.c.l.b16 %v206
    %v879 = vunpack.c.h.b16 %v206
    %v880 = vunpack.c.l.b16 %v207
    %v881 = vunpack.c.h.b16 %v207
    %v882 = vunpack.c.l.b16 %v208
    %v883 = vunpack.c.h.b16 %v208
    %v884 = vunpack.c.l.b16 %v209
    %v885 = vunpack.c.h.b16 %v209
    %v886 = vunpack.c.l.b16 %v210
    %v887 = vunpack.c.h.b16 %v210
    %v888 = vunpack.c.l.b16 %v211
    %v889 = vunpack.c.h.b16 %v211
    %v890 = vunpack.c.l.b16 %v212
    %v891 = vunpack.c.l.b16 %v213
    %v892 = vunpack.c.h.b16 %v213
    %v893 = vunpack.c.l.b16 %v214
    %v894 = vunpack.c.h.b16 %v214
    %v895 = vunpack.c.l.b16 %v215
    %v896 = vunpack.c.h.b16 %v215
    %v897 = vunpack.c.l.b16 %v216
    %v898 = vunpack.c.h.b16 %v216
    %v899 = vunpack.c.l.b16 %v217
    %v900 = vunpack.c.h.b16 %v217
    %v901 = vunpack.c.l.b16 %v218
    %v902 = vunpack.c.h.b16 %v218
    %v903 = vunpack.c.l.b16 %v219
    %v904 = vunpack.c.h.b16 %v219
    %v905 = vunpack.c.l.b16 %v220
    %v906 = vunpack.c.l.b16 %v221
    %v907 = vunpack.c.h.b16 %v221
    %v908 = vunpack.c.l.b16 %v222
    %v909 = vunpack.c.h.b16 %v222
    %v910 = vunpack.c.l.b16 %v223
    %v911 = vunpack.c.h.b16 %v223
    %v912 = vunpack.c.l.b16 %v224
    %v913 = vunpack.c.h.b16 %v224
    %v914 = vunpack.c.l.b16 %v225
    %v915 = vunpack.c.h.b16 %v225
    %v916 = vunpack.c.l.b16 %v226
    %v917 = vunpack.c.h.b16 %v226
    %v918 = vunpack.c.l.b16 %v227
    %v919 = vunpack.c.h.b16 %v227
    %v920 = vunpack.c.l.b16 %v228
    %v921 = vunpack.c.l.b16 %v229
    %v922 = vunpack.c.h.b16 %v229
    %v923 = vunpack.c.l.b16 %v230
    %v924 = vunpack.c.h.b16 %v230
    %v925 = vunpack.c.l.b16 %v231
    %v926 = vunpack.c.h.b16 %v231
    %v927 = vunpack.c.l.b16 %v232
    %v928 = vunpack.c.h.b16 %v232
    %v929 = vunpack.c.l.b16 %v233
    %v930 = vunpack.c.h.b16 %v233
    %v931 = vunpack.c.l.b16 %v234
    %v932 = vunpack.c.h.b16 %v234
    %v933 = vunpack.c.l.b16 %v235
    %v934 = vunpack.c.h.b16 %v235
    %v935 = vunpack.c.l.b16 %v236
    %v936 = vunpack.c.l.b16 %v237
    %v937 = vunpack.c.h.b16 %v237
    %v938 = vunpack.c.l.b16 %v238
    %v939 = vunpack.c.h.b16 %v238
    %v940 = vunpack.c.l.b16 %v239
    %v941 = vunpack.c.h.b16 %v239
    %v942 = vunpack.c.l.b16 %v240
    %v943 = vunpack.c.h.b16 %v240
    %v944 = vunpack.c.l.b16 %v241
    %v945 = vunpack.c.h.b16 %v241
    %v946 = vunpack.c.l.b16 %v242
    %v947 = vunpack.c.h.b16 %v242
    %v948 = vunpack.c.l.b16 %v243
    %v949 = vunpack.c.h.b16 %v243
    %v950 = vunpack.c.l.b16 %v244
    %v951 = vunpack.c.l.b16 %v245
    %v952 = vunpack.c.h.b16 %v245
    %v953 = vunpack.c.l.b16 %v246
    %v954 = vunpack.c.h.b16 %v246
    %v955 = vunpack.c.l.b16 %v247
    %v956 = vunpack.c.h.b16 %v247
    %v957 = vunpack.c.l.b16 %v248
    %v958 = vunpack.c.h.b16 %v248
    %v959 = vunpack.c.l.b16 %v249
    %v960 = vunpack.c.h.b16 %v249
    %v961 = vunpack.c.l.b16 %v250
    %v962 = vunpack.c.h.b16 %v250
    %v963 = vunpack.c.l.b16 %v251
    %v964 = vunpack.c.h.b16 %v251
    %v965 = vunpack.c.l.b16 %v252
    %v966 = vunpack.c.l.b16 %v253
    %v967 = vunpack.c.h.b16 %v253
    %v968 = vunpack.c.l.b16 %v254
    %v969 = vunpack.c.h.b16 %v254
    %v970 = vunpack.c.l.b16 %v255
    %v971 = vunpack.c.h.b16 %v255
    %v972 = vunpack.c.l.b16 %v256
    %v973 = vunpack.c.h.b16 %v256
    %v974 = vunpack.c.l.b16 %v257
    %v975 = vunpack.c.h.b16 %v257
    %v976 = vunpack.c.l.b16 %v258
    %v977 = vunpack.c.h.b16 %v258
    %v978 = vunpack.c.l.b16 %v259
    %v979 = vunpack.c.h.b16 %v259
    %v980 = vunpack.c.l.b16 %v260
    %v981 = vunpack.c.l.b16 %v261
    %v982 = vunpack.c.h.b16 %v261
    %v983 = vunpack.c.l.b16 %v262
    %v984 = vunpack.c.h.b16 %v262
    %v985 = vunpack.c.l.b16 %v263
    %v986 = vunpack.c.h.b16 %v263
    %v987 = vunpack.c.l.b16 %v264
    %v988 = vunpack.c.h.b16 %v264
    %v989 = vunpack.c.l.b16 %v265
    %v990 = vunpack.c.h.b16 %v265
    %v991 = vunpack.c.l.b16 %v266
    %v992 = vunpack.c.h.b16 %v266
    %v993 = vunpack.c.l.b16 %v267
    %v994 = vunpack.c.h.b16 %v267
    %v995 = vunpack.c.l.b16 %v268
    %v996 = vunpack.c.l.b16 %v269
    %v997 = vunpack.c.h.b16 %v269
    %v998 = vunpack.c.l.b16 %v270
    %v999 = vunpack.c.h.b16 %v270
    %v1000 = vunpack.c.l.b16 %v271
    %v1001 = vunpack.c.h.b16 %v271
    %v1002 = vunpack.c.l.b16 %v272
    %v1003 = vunpack.c.h.b16 %v272
    %v1004 = vunpack.c.l.b16 %v273
    %v1005 = vunpack.c.h.b16 %v273
    %v1006 = vunpack.c.l.b16 %v274
    %v1007 = vunpack.c.h.b16 %v274
    %v1008 = vunpack.c.l.b16 %v275
    %v1009 = vunpack.c.h.b16 %v275
    %v1010 = vunpack.c.l.b16 %v276
    %v1011 = vunpack.c.l.b16 %v277
    %v1012 = vunpack.c.h.b16 %v277
    %v1013 = vunpack.c.l.b16 %v278
    %v1014 = vunpack.c.h.b16 %v278
    %v1015 = vunpack.c.l.b16 %v279
    %v1016 = vunpack.c.h.b16 %v279
    %v1017 = vunpack.c.l.b16 %v280
    %v1018 = vunpack.c.h.b16 %v280
    %v1019 = vunpack.c.l.b16 %v281
    %v1020 = vunpack.c.h.b16 %v281
    %v1021 = vunpack.c.l.b16 %v282
    %v1022 = vunpack.c.h.b16 %v282
    %v1023 = vunpack.c.l.b16 %v283
    %v1024 = vunpack.c.h.b16 %v283
    %v1025 = vunpack.c.l.b16 %v284
    %v1026 = vunpack.c.l.b16 %v285
    %v1027 = vunpack.c.h.b16 %v285
    %v1028 = vunpack.c.l.b16 %v286
    %v1029 = vunpack.c.h.b16 %v286
    %v1030 = vunpack.c.l.b16 %v287
    %v1031 = vunpack.c.h.b16 %v287
    %v1032 = vunpack.c.l.b16 %v288
    %v1033 = vunpack.c.h.b16 %v288
    %v1034 = vunpack.c.l.b16 %v289
    %v1035 = vunpack.c.h.b16 %v289
    %v1036 = vunpack.c.l.b16 %v290
    %v1037 = vunpack.c.h.b16 %v290
    %v1038 = vunpack.c.l.b16 %v291
    %v1039 = vunpack.c.h.b16 %v291
    %v1040 = vunpack.c.l.b16 %v292
    %v1041 = vunpack.c.l.b16 %v293
    %v1042 = vunpack.c.h.b16 %v293
    %v1043 = vunpack.c.l.b16 %v294
    %v1044 = vunpack.c.h.b16 %v294
    %v1045 = vunpack.c.l.b16 %v295
    %v1046 = vunpack.c.h.b16 %v295
    %v1047 = vunpack.c.l.b16 %v296
    %v1048 = vunpack.c.h.b16 %v296
    %v1049 = vunpack.c.l.b16 %v297
    %v1050 = vunpack.c.h.b16 %v297
    %v1051 = vunpack.c.l.b16 %v298
    %v1052 = vunpack.c.h.b16 %v298
    %v1053 = vunpack.c.l.b16 %v299
    %v1054 = vunpack.c.h.b16 %v299
    %v1055 = vunpack.c.l.b16 %v300
    %v1056 = vunpack.c.l.b16 %v301
    %v1057 = vunpack.c.h.b16 %v301
    %v1058 = vunpack.c.l.b16 %v302
    %v1059 = vunpack.c.h.b16 %v302
    %v1060 = vunpack.c.l.b16 %v303
    %v1061 = vunpack.c.h.b16 %v303
    %v1062 = vunpack.c.l.b16 %v304
    %v1063 = vunpack.c.h.b16 %v304
    %v1064 = vunpack.c.l.b16 %v305
    %v1065 = vunpack.c.h.b16 %v305
    %v1066 = vunpack.c.l.b16 %v306
    %v1067 = vunpack.c.h.b16 %v306
    %v1068 = vunpack.c.l.b16 %v307
    %v1069 = vunpack.c.h.b16 %v307
    %v1070 = vunpack.c.l.b16 %v308
    %v1071 = vunpack.c.l.b16 %v309
    %v1072 = vunpack.c.h.b16 %v309
    %v1073 = vunpack.c.l.b16 %v310
    %v1074 = vunpack.c.h.b16 %v310
    %v1075 = vunpack.c.l.b16 %v311
    %v1076 = vunpack.c.h.b16 %v311
    %v1077 = vunpack.c.l.b16 %v312
    %v1078 = vunpack.c.h.b16 %v312
    %v1079 = vunpack.c.l.b16 %v313
    %v1080 = vunpack.c.h.b16 %v313
    %v1081 = vunpack.c.l.b16 %v314
    %v1082 = vunpack.c.h.b16 %v314
    %v1083 = vunpack.c.l.b16 %v315
    %v1084 = vunpack.c.h.b16 %v315
    %v1085 = vunpack.c.l.b16 %v316
    %v1086 = vunpack.c.l.b16 %v317
    %v1087 = vunpack.c.h.b16 %v317
    %v1088 = vunpack.c.l.b16 %v318
    %v1089 = vunpack.c.h.b16 %v318
    %v1090 = vunpack.c.l.b16 %v319
    %v1091 = vunpack.c.h.b16 %v319
    %v1092 = vunpack.c.l.b16 %v320
    %v1093 = vunpack.c.h.b16 %v320
    %v1094 = vunpack.c.l.b16 %v321
    %v1095 = vunpack.c.h.b16 %v321
    %v1096 = vunpack.c.l.b16 %v322
    %v1097 = vunpack.c.h.b16 %v322
    %v1098 = vunpack.c.l.b16 %v323
    %v1099 = vunpack.c.h.b16 %v323
    %v1100 = vunpack.c.l.b16 %v324
    %v1101 = vunpack.c.l.b16 %v325
    %v1102 = vunpack.c.h.b16 %v325
    %v1103 = vunpack.c.l.b16 %v326
    %v1104 = vunpack.c.h.b16 %v326
    %v1105 = vunpack.c.l.b16 %v327
    %v1106 = vunpack.c.h.b16 %v327
    %v1107 = vunpack.c.l.b16 %v328
    %v1108 = vunpack.c.h.b16 %v328
    %v1109 = vunpack.c.l.b16 %v329
    %v1110 = vunpack.c.h.b16 %v329
    %v1111 = vunpack.c.l.b16 %v330
    %v1112 = vunpack.c.h.b16 %v330
    %v1113 = vunpack.c.l.b16 %v331
    %v1114 = vunpack.c.h.b16 %v331
    %v1115 = vunpack.c.l.b16 %v332
    %v1116 = vunpack.c.l.b16 %v333
    %v1117 = vunpack.c.h.b16 %v333
    %v1118 = vunpack.c.l.b16 %v334
    %v1119 = vunpack.c.h.b16 %v334
    %v1120 = vunpack.c.l.b16 %v335
    %v1121 = vunpack.c.h.b16 %v335
    %v1122 = vunpack.c.l.b16 %v336
    %v1123 = vunpack.c.h.b16 %v336
    %v1124 = vunpack.c.l.b16 %v337
    %v1125 = vunpack.c.h.b16 %v337
    %v1126 = vunpack.c.l.b16 %v338
    %v1127 = vunpack.c.h.b16 %v338
    %v1128 = vunpack.c.l.b16 %v339
    %v1129 = vunpack.c.h.b16 %v339
    %v1130 = vunpack.c.l.b16 %v340
    %v1131 = vunpack.c.l.b16 %v341
    %v1132 = vunpack.c.h.b16 %v341
    %v1133 = vunpack.c.l.b16 %v342
    %v1134 = vunpack.c.h.b16 %v342
    %v1135 = vunpack.c.l.b16 %v343
    %v1136 = vunpack.c.h.b16 %v343
    %v1137 = vunpack.c.l.b16 %v344
    %v1138 = vunpack.c.h.b16 %v344
    %v1139 = vunpack.c.l.b16 %v345
    %v1140 = vunpack.c.h.b16 %v345
    %v1141 = vunpack.c.l.b16 %v346
    %v1142 = vunpack.c.h.b16 %v346
    %v1143 = vunpack.c.l.b16 %v347
    %v1144 = vunpack.c.h.b16 %v347
    %v1145 = vunpack.c.l.b16 %v348
    %v1146 = vunpack.c.l.b16 %v349
    %v1147 = vunpack.c.h.b16 %v349
    %v1148 = vunpack.c.l.b16 %v350
    %v1149 = vunpack.c.h.b16 %v350
    %v1150 = vunpack.c.l.b16 %v351
    %v1151 = vunpack.c.h.b16 %v351
    %v1152 = vunpack.c.l.b16 %v352
    %v1153 = vunpack.c.h.b16 %v352
    %v1154 = vunpack.c.l.b16 %v353
    %v1155 = vunpack.c.h.b16 %v353
    %v1156 = vunpack.c.l.b16 %v354
    %v1157 = vunpack.c.h.b16 %v354
    %v1158 = vunpack.c.l.b16 %v355
    %v1159 = vunpack.c.h.b16 %v355
    %v1160 = vunpack.c.l.b16 %v356
    %v1161 = vunpack.c.l.b16 %v357
    %v1162 = vunpack.c.h.b16 %v357
    %v1163 = vunpack.c.l.b16 %v358
    %v1164 = vunpack.c.h.b16 %v358
    %v1165 = vunpack.c.l.b16 %v359
    %v1166 = vunpack.c.h.b16 %v359
    %v1167 = vunpack.c.l.b16 %v360
    %v1168 = vunpack.c.h.b16 %v360
    %v1169 = vunpack.c.l.b16 %v361
    %v1170 = vunpack.c.h.b16 %v361
    %v1171 = vunpack.c.l.b16 %v362
    %v1172 = vunpack.c.h.b16 %v362
    %v1173 = vunpack.c.l.b16 %v363
    %v1174 = vunpack.c.h.b16 %v363
    %v1175 = vunpack.c.l.b16 %v364
    %v1176 = vunpack.c.l.b16 %v365
    %v1177 = vunpack.c.h.b16 %v365
    %v1178 = vunpack.c.l.b16 %v366
    %v1179 = vunpack.c.h.b16 %v366
    %v1180 = vunpack.c.l.b16 %v367
    %v1181 = vunpack.c.h.b16 %v367
    %v1182 = vunpack.c.l.b16 %v368
    %v1183 = vunpack.c.h.b16 %v368
    %v1184 = vunpack.c.l.b16 %v369
    %v1185 = vunpack.c.h.b16 %v369
    %v1186 = vunpack.c.l.b16 %v370
    %v1187 = vunpack.c.h.b16 %v370
    %v1188 = vunpack.c.l.b16 %v371
    %v1189 = vunpack.c.h.b16 %v371
    %v1190 = vunpack.c.l.b16 %v372
    %v1191 = vunpack.c.l.b16 %v373
    %v1192 = vunpack.c.h.b16 %v373
    %v1193 = vunpack.c.l.b16 %v374
    %v1194 = vunpack.c.h.b16 %v374
    %v1195 = vunpack.c.l.b16 %v375
    %v1196 = vunpack.c.h.b16 %v375
    %v1197 = vunpack.c.l.b16 %v376
    %v1198 = vunpack.c.h.b16 %v376
    %v1199 = vunpack.c.l.b16 %v377
    %v1200 = vunpack.c.h.b16 %v377
    %v1201 = vunpack.c.l.b16 %v378
    %v1202 = vunpack.c.h.b16 %v378
    %v1203 = vunpack.c.l.b16 %v379
    %v1204 = vunpack.c.h.b16 %v379
    %v1205 = vunpack.c.l.b16 %v380
    %v1206 = vunpack.c.l.b16 %v381
    %v1207 = vunpack.c.h.b16 %v381
    %v1208 = vunpack.c.l.b16 %v382
    %v1209 = vunpack.c.h.b16 %v382
    %v1210 = vunpack.c.l.b16 %v383
    %v1211 = vunpack.c.h.b16 %v383
    %v1212 = vunpack.c.l.b16 %v384
    %v1213 = vunpack.c.h.b16 %v384
    %v1214 = vunpack.c.l.b16 %v385
    %v1215 = vunpack.c.h.b16 %v385
    %v1216 = vunpack.c.l.b16 %v386
    %v1217 = vunpack.c.h.b16 %v386
    %v1218 = vunpack.c.l.b16 %v387
    %v1219 = vunpack.c.h.b16 %v387
    %v1220 = vunpack.c.l.b16 %v388
    %v1221 = vunpack.c.l.b16 %v389
    %v1222 = vunpack.c.h.b16 %v389
    %v1223 = vunpack.c.l.b16 %v390
    %v1224 = vunpack.c.h.b16 %v390
    %v1225 = vunpack.c.l.b16 %v391
    %v1226 = vunpack.c.h.b16 %v391
    %v1227 = vunpack.c.l.b16 %v392
    %v1228 = vunpack.c.h.b16 %v392
    %v1229 = vunpack.c.l.b16 %v393
    %v1230 = vunpack.c.h.b16 %v393
    %v1231 = vunpack.c.l.b16 %v394
    %v1232 = vunpack.c.h.b16 %v394
    %v1233 = vunpack.c.l.b16 %v395
    %v1234 = vunpack.c.h.b16 %v395
    %v1235 = vunpack.c.l.b16 %v396
    %v1236 = vunpack.c.l.b16 %v397
    %v1237 = vunpack.c.h.b16 %v397
    %v1238 = vunpack.c.l.b16 %v398
    %v1239 = vunpack.c.h.b16 %v398
    %v1240 = vunpack.c.l.b16 %v399
    %v1241 = vunpack.c.h.b16 %v399
    %v1242 = vunpack.c.l.b16 %v400
    %v1243 = vunpack.c.h.b16 %v400
    %v1244 = vunpack.c.l.b16 %v401
    %v1245 = vunpack.c.h.b16 %v401
    %v1246 = vunpack.c.l.b16 %v402
    %v1247 = vunpack.c.h.b16 %v402
    %v1248 = vunpack.c.l.b16 %v403
    %v1249 = vunpack.c.h.b16 %v403
    %v1250 = vunpack.c.l.b16 %v404
    %v1251 = vunpack.c.l.b16 %v405
    %v1252 = vunpack.c.h.b16 %v405
    %v1253 = vunpack.c.l.b16 %v406
    %v1254 = vunpack.c.h.b16 %v406
    %v1255 = vunpack.c.l.b16 %v407
    %v1256 = vunpack.c.h.b16 %v407
    %v1257 = vunpack.c.l.b16 %v408
    %v1258 = vunpack.c.h.b16 %v408
    %v1259 = vunpack.c.l.b16 %v409
    %v1260 = vunpack.c.h.b16 %v409
    %v1261 = vunpack.c.l.b16 %v410
    %v1262 = vunpack.c.h.b16 %v410
    %v1263 = vunpack.c.l.b16 %v411
    %v1264 = vunpack.c.h.b16 %v411
    %v1265 = vunpack.c.l.b16 %v412
    %v1266 = vunpack.c.l.b16 %v413
    %v1267 = vunpack.c.h.b16 %v413
    %v1268 = vunpack.c.l.b16 %v414
    %v1269 = vunpack.c.h.b16 %v414
    %v1270 = vunpack.c.l.b16 %v415
    %v1271 = vunpack.c.h.b16 %v415
    %v1272 = vunpack.c.l.b16 %v416
    %v1273 = vunpack.c.h.b16 %v416
    %v1274 = vunpack.c.l.b16 %v417
    %v1275 = vunpack.c.h.b16 %v417
    %v1276 = vunpack.c.l.b16 %v418
    %v1277 = vunpack.c.h.b16 %v418
    %v1278 = vunpack.c.l.b16 %v419
    %v1279 = vunpack.c.h.b16 %v419
    %v1280 = vunpack.c.l.b16 %v420
    %v1281 = vunpack.c.l.b16 %v421
    %v1282 = vunpack.c.h.b16 %v421
    %v1283 = vunpack.c.l.b16 %v422
    %v1284 = vunpack.c.h.b16 %v422
    %v1285 = vunpack.c.l.b16 %v423
    %v1286 = vunpack.c.h.b16 %v423
    %v1287 = vunpack.c.l.b16 %v424
    %v1288 = vunpack.c.h.b16 %v424
    %v1289 = vunpack.c.l.b16 %v425
    %v1290 = vunpack.c.h.b16 %v425
    %v1291 = vunpack.c.l.b16 %v426
    %v1292 = vunpack.c.h.b16 %v426
    %v1293 = vunpack.c.l.b16 %v427
    %v1294 = vunpack.c.h.b16 %v427
    %v1295 = vunpack.c.l.b16 %v428
    %v1296 = vunpack.c.l.b16 %v429
    %v1297 = vunpack.c.h.b16 %v429
    %v1298 = vunpack.c.l.b16 %v430
    %v1299 = vunpack.c.h.b16 %v430
    %v1300 = vunpack.c.l.b16 %v431
    %v1301 = vunpack.c.h.b16 %v431
    %v1302 = vunpack.c.l.b16 %v432
    %v1303 = vunpack.c.h.b16 %v432
    %v1304 = vunpack.c.l.b16 %v433
    %v1305 = vunpack.c.h.b16 %v433
    %v1306 = vunpack.c.l.b16 %v434
    %v1307 = vunpack.c.h.b16 %v434
    %v1308 = vunpack.c.l.b16 %v435
    %v1309 = vunpack.c.h.b16 %v435
    %v1310 = vunpack.c.l.b16 %v436
    %v1311 = vpack.c.b16 %v756, %v741
    %v1312 = vpack.c.b16 %v757, %v742
    %v1313 = vpack.c.b16 %v758, %v743
    %v1314 = vpack.c.b16 %v759, %v744
    %v1315 = vpack.c.b16 %v760, %v745
    %v1316 = vpack.c.b16 %v761, %v746
    %v1317 = vpack.c.b16 %v762, %v747
    %v1318 = vpack.c.b16 %v763, %v748
    %v1319 = vpack.c.b16 %v764, %v749
    %v1320 = vpack.c.b16 %v765, %v750
    %v1321 = vpack.c.b16 %v766, %v751
    %v1322 = vpack.c.b16 %v767, %v752
    %v1323 = vpack.c.b16 %v768, %v753
    %v1324 = vpack.c.b16 %v769, %v754
    %v1325 = vpack.c.b16 %v770, %v755
    %v1326 = vpack.c.b16 %v786, %v771
    %v1327 = vpack.c.b16 %v787, %v772
    %v1328 = vpack.c.b16 %v788, %v773
    %v1329 = vpack.c.b16 %v789, %v774
    %v1330 = vpack.c.b16 %v790, %v775
    %v1331 = vpack.c.b16 %v791, %v776
    %v1332 = vpack.c.b16 %v792, %v777
    %v1333 = vpack.c.b16 %v793, %v778
    %v1334 = vpack.c.b16 %v794, %v779
    %v1335 = vpack.c.b16 %v795, %v780
    %v1336 = vpack.c.b16 %v796, %v781
    %v1337 = vpack.c.b16 %v797, %v782
    %v1338 = vpack.c.b16 %v798, %v783
    %v1339 = vpack.c.b16 %v799, %v784
    %v1340 = vpack.c.b16 %v800, %v785
    %v1341 = vpack.c.b16 %v816, %v801
    %v1342 = vpack.c.b16 %v817, %v802
    %v1343 = vpack.c.b16 %v818, %v803
    %v1344 = vpack.c.b16 %v819, %v804
    %v1345 = vpack.c.b16 %v820, %v805
    %v1346 = vpack.c.b16 %v821, %v806
    %v1347 = vpack.c.b16 %v822, %v807
    %v1348 = vpack.c.b16 %v823, %v808
    %v1349 = vpack.c.b16 %v824, %v809
    %v1350 = vpack.c.b16 %v825, %v810
    %v1351 = vpack.c.b16 %v826, %v811
    %v1352 = vpack.c.b16 %v827, %v812
    %v1353 = vpack.c.b16 %v828, %v813
    %v1354 = vpack.c.b16 %v829, %v814
    %v1355 = vpack.c.b16 %v830, %v815
    %v1356 = vpack.c.b16 %v846, %v831
    %v1357 = vpack.c.b16 %v847, %v832
    %v1358 = vpack.c.b16 %v848, %v833
    %v1359 = vpack.c.b16 %v849, %v834
    %v1360 = vpack.c.b16 %v850, %v835
    %v1361 = vpack.c.b16 %v851, %v836
    %v1362 = vpack.c.b16 %v852, %v837
    %v1363 = vpack.c.b16 %v853, %v838
    %v1364 = vpack.c.b16 %v854, %v839
    %v1365 = vpack.c.b16 %v855, %v840
    %v1366 = vpack.c.b16 %v856, %v841
    %v1367 = vpack.c.b16 %v857, %v842
    %v1368 = vpack.c.b16 %v858, %v843
    %v1369 = vpack.c.b16 %v859, %v844
    %v1370 = vpack.c.b16 %v860, %v845
    %v1371 = vpack.c.b16 %v876, %v861
    %v1372 = vpack.c.b16 %v877, %v862
    %v1373 = vpack.c.b16 %v878, %v863
    %v1374 = vpack.c.b16 %v879, %v864
    %v1375 = vpack.c.b16 %v880, %v865
    %v1376 = vpack.c.b16 %v881, %v866
    %v1377 = vpack.c.b16 %v882, %v867
    %v1378 = vpack.c.b16 %v883, %v868
    %v1379 = vpack.c.b16 %v884, %v869
    %v1380 = vpack.c.b16 %v885, %v870
    %v1381 = vpack.c.b16 %v886, %v871
    %v1382 = vpack.c.b16 %v887, %v872
    %v1383 = vpack.c.b16 %v888, %v873
    %v1384 = vpack.c.b16 %v889, %v874
    %v1385 = vpack.c.b16 %v890, %v875
    %v1386 = vpack.c.b16 %v906, %v891
    %v1387 = vpack.c.b16 %v907, %v892
    %v1388 = vpack.c.b16 %v908, %v893
    %v1389 = vpack.c.b16 %v909, %v894
    %v1390 = vpack.c.b16 %v910, %v895
    %v1391 = vpack.c.b16 %v911, %v896
    %v1392 = vpack.c.b16 %v912, %v897
    %v1393 = vpack.c.b16 %v913, %v898
    %v1394 = vpack.c.b16 %v914, %v899
    %v1395 = vpack.c.b16 %v915, %v900
    %v1396 = vpack.c.b16 %v916, %v901
    %v1397 = vpack.c.b16 %v917, %v902
    %v1398 = vpack.c.b16 %v918, %v903
    %v1399 = vpack.c.b16 %v919, %v904
    %v1400 = vpack.c.b16 %v920, %v905
    %v1401 = vpack.c.b16 %v936, %v921
    %v1402 = vpack.c.b16 %v937, %v922
    %v1403 = vpack.c.b16 %v938, %v923
    %v1404 = vpack.c.b16 %v939, %v924
    %v1405 = vpack.c.b16 %v940, %v925
    %v1406 = vpack.c.b16 %v941, %v926
    %v1407 = vpack.c.b16 %v942, %v927
    %v1408 = vpack.c.b16 %v943, %v928
    %v1409 = vpack.c.b16 %v944, %v929
    %v1410 = vpack.c.b16 %v945, %v930
    %v1411 = vpack.c.b16 %v946, %v931
    %v1412 = vpack.c.b16 %v947, %v932
    %v1413 = vpack.c.b16 %v948, %v933
    %v1414 = vpack.c.b16 %v949, %v934
    %v1415 = vpack.c.b16 %v950, %v935
    %v1416 = vpack.c.b16 %v966, %v951
    %v1417 = vpack.c.b16 %v967, %v952
    %v1418 = vpack.c.b16 %v968, %v953
    %v1419 = vpack.c.b16 %v969, %v954
    %v1420 = vpack.c.b16 %v970, %v955
    %v1421 = vpack.c.b16 %v971, %v956
    %v1422 = vpack.c.b16 %v972, %v957
    %v1423 = vpack.c.b16 %v973, %v958
    %v1424 = vpack.c.b16 %v974, %v959
    %v1425 = vpack.c.b16 %v975, %v960
    %v1426 = vpack.c.b16 %v976, %v961
    %v1427 = vpack.c.b16 %v977, %v962
    %v1428 = vpack.c.b16 %v978, %v963
    %v1429 = vpack.c.b16 %v979, %v964
    %v1430 = vpack.c.b16 %v980, %v965
    %v1431 = vpack.c.b16 %v996, %v981
    %v1432 = vpack.c.b16 %v997, %v982
    %v1433 = vpack.c.b16 %v998, %v983
    %v1434 = vpack.c.b16 %v999, %v984
    %v1435 = vpack.c.b16 %v1000, %v985
    %v1436 = vpack.c.b16 %v1001, %v986
    %v1437 = vpack.c.b16 %v1002, %v987
    %v1438 = vpack.c.b16 %v1003, %v988
    %v1439 = vpack.c.b16 %v1004, %v989
    %v1440 = vpack.c.b16 %v1005, %v990
    %v1441 = vpack.c.b16 %v1006, %v991
    %v1442 = vpack.c.b16 %v1007, %v992
    %v1443 = vpack.c.b16 %v1008, %v993
    %v1444 = vpack.c.b16 %v1009, %v994
    %v1445 = vpack.c.b16 %v1010, %v995
    %v1446 = vpack.c.b16 %v1026, %v1011
    %v1447 = vpack.c.b16 %v1027, %v1012
    %v1448 = vpack.c.b16 %v1028, %v1013
    %v1449 = vpack.c.b16 %v1029, %v1014
    %v1450 = vpack.c.b16 %v1030, %v1015
    %v1451 = vpack.c.b16 %v1031, %v1016
    %v1452 = vpack.c.b16 %v1032, %v1017
    %v1453 = vpack.c.b16 %v1033, %v1018
    %v1454 = vpack.c.b16 %v1034, %v1019
    %v1455 = vpack.c.b16 %v1035, %v1020
    %v1456 = vpack.c.b16 %v1036, %v1021
    %v1457 = vpack.c.b16 %v1037, %v1022
    %v1458 = vpack.c.b16 %v1038, %v1023
    %v1459 = vpack.c.b16 %v1039, %v1024
    %v1460 = vpack.c.b16 %v1040, %v1025
    %v1461 = vpack.c.b16 %v1056, %v1041
    %v1462 = vpack.c.b16 %v1057, %v1042
    %v1463 = vpack.c.b16 %v1058, %v1043
    %v1464 = vpack.c.b16 %v1059, %v1044
    %v1465 = vpack.c.b16 %v1060, %v1045
    %v1466 = vpack.c.b16 %v1061, %v1046
    %v1467 = vpack.c.b16 %v1062, %v1047
    %v1468 = vpack.c.b16 %v1063, %v1048
    %v1469 = vpack.c.b16 %v1064, %v1049
    %v1470 = vpack.c.b16 %v1065, %v1050
    %v1471 = vpack.c.b16 %v1066, %v1051
    %v1472 = vpack.c.b16 %v1067, %v1052
    %v1473 = vpack.c.b16 %v1068, %v1053
    %v1474 = vpack.c.b16 %v1069, %v1054
    %v1475 = vpack.c.b16 %v1070, %v1055
    %v1476 = vpack.c.b16 %v1086, %v1071
    %v1477 = vpack.c.b16 %v1087, %v1072
    %v1478 = vpack.c.b16 %v1088, %v1073
    %v1479 = vpack.c.b16 %v1089, %v1074
    %v1480 = vpack.c.b16 %v1090, %v1075
    %v1481 = vpack.c.b16 %v1091, %v1076
    %v1482 = vpack.c.b16 %v1092, %v1077
    %v1483 = vpack.c.b16 %v1093, %v1078
    %v1484 = vpack.c.b16 %v1094, %v1079
    %v1485 = vpack.c.b16 %v1095, %v1080
    %v1486 = vpack.c.b16 %v1096, %v1081
    %v1487 = vpack.c.b16 %v1097, %v1082
    %v1488 = vpack.c.b16 %v1098, %v1083
    %v1489 = vpack.c.b16 %v1099, %v1084
    %v1490 = vpack.c.b16 %v1100, %v1085
    %v1491 = vpack.c.b16 %v1116, %v1101
    %v1492 = vpack.c.b16 %v1117, %v1102
    %v1493 = vpack.c.b16 %v1118, %v1103
    %v1494 = vpack.c.b16 %v1119, %v1104
    %v1495 = vpack.c.b16 %v1120, %v1105
    %v1496 = vpack.c.b16 %v1121, %v1106
    %v1497 = vpack.c.b16 %v1122, %v1107
    %v1498 = vpack.c.b16 %v1123, %v1108
    %v1499 = vpack.c.b16 %v1124, %v1109
    %v1500 = vpack.c.b16 %v1125, %v1110
    %v1501 = vpack.c.b16 %v1126, %v1111
    %v1502 = vpack.c.b16 %v1127, %v1112
    %v1503 = vpack.c.b16 %v1128, %v1113
    %v1504 = vpack.c.b16 %v1129, %v1114
    %v1505 = vpack.c.b16 %v1130, %v1115
    %v1506 = vpack.c.b16 %v1146, %v1131
    %v1507 = vpack.c.b16 %v1147, %v1132
    %v1508 = vpack.c.b16 %v1148, %v1133
    %v1509 = vpack.c.b16 %v1149, %v1134
    %v1510 = vpack.c.b16 %v1150, %v1135
    %v1511 = vpack.c.b16 %v1151, %v1136
    %v1512 = vpack.c.b16 %v1152, %v1137
    %v1513 = vpack.c.b16 %v1153, %v1138
    %v1514 = vpack.c.b16 %v1154, %v1139
    %v1515 = vpack.c.b16 %v1155, %v1140
    %v1516 = vpack.c.b16 %v1156, %v1141
    %v1517 = vpack.c.b16 %v1157, %v1142
    %v1518 = vpack.c.b16 %v1158, %v1143
    %v1519 = vpack.c.b16 %v1159, %v1144
    %v1520 = vpack.c.b16 %v1160, %v1145
    %v1521 = vpack.c.b16 %v1176, %v1161
    %v1522 = vpack.c.b16 %v1177, %v1162
    %v1523 = vpack.c.b16 %v1178, %v1163
    %v1524 = vpack.c.b16 %v1179, %v1164
    %v1525 = vpack.c.b16 %v1180, %v1165
    %v1526 = vpack.c.b16 %v1181, %v1166
    %v1527 = vpack.c.b16 %v1182, %v1167
    %v1528 = vpack.c.b16 %v1183, %v1168
    %v1529 = vpack.c.b16 %v1184, %v1169
    %v1530 = vpack.c.b16 %v1185, %v1170
    %v1531 = vpack.c.b16 %v1186, %v1171
    %v1532 = vpack.c.b16 %v1187, %v1172
    %v1533 = vpack.c.b16 %v1188, %v1173
    %v1534 = vpack.c.b16 %v1189, %v1174
    %v1535 = vpack.c.b16 %v1190, %v1175
    %v1536 = vpack.c.b16 %v1206, %v1191
    %v1537 = vpack.c.b16 %v1207, %v1192
    %v1538 = vpack.c.b16 %v1208, %v1193
    %v1539 = vpack.c.b16 %v1209, %v1194
    %v1540 = vpack.c.b16 %v1210, %v1195
    %v1541 = vpack.c.b16 %v1211, %v1196
    %v1542 = vpack.c.b16 %v1212, %v1197
    %v1543 = vpack.c.b16 %v1213, %v1198
    %v1544 = vpack.c.b16 %v1214, %v1199
    %v1545 = vpack.c.b16 %v1215, %v1200
    %v1546 = vpack.c.b16 %v1216, %v1201
    %v1547 = vpack.c.b16 %v1217, %v1202
    %v1548 = vpack.c.b16 %v1218, %v1203
    %v1549 = vpack.c.b16 %v1219, %v1204
    %v1550 = vpack.c.b16 %v1220, %v1205
    %v1551 = vpack.c.b16 %v1236, %v1221
    %v1552 = vpack.c.b16 %v1237, %v1222
    %v1553 = vpack.c.b16 %v1238, %v1223
    %v1554 = vpack.c.b16 %v1239, %v1224
    %v1555 = vpack.c.b16 %v1240, %v1225
    %v1556 = vpack.c.b16 %v1241, %v1226
    %v1557 = vpack.c.b16 %v1242, %v1227
    %v1558 = vpack.c.b16 %v1243, %v1228
    %v1559 = vpack.c.b16 %v1244, %v1229
    %v1560 = vpack.c.b16 %v1245, %v1230
    %v1561 = vpack.c.b16 %v1246, %v1231
    %v1562 = vpack.c.b16 %v1247, %v1232
    %v1563 = vpack.c.b16 %v1248, %v1233
    %v1564 = vpack.c.b16 %v1249, %v1234
    %v1565 = vpack.c.b16 %v1250, %v1235
    %v1566 = vpack.c.b16 %v1266, %v1251
    %v1567 = vpack.c.b16 %v1267, %v1252
    %v1568 = vpack.c.b16 %v1268, %v1253
    %v1569 = vpack.c.b16 %v1269, %v1254
    %v1570 = vpack.c.b16 %v1270, %v1255
    %v1571 = vpack.c.b16 %v1271, %v1256
    %v1572 = vpack.c.b16 %v1272, %v1257
    %v1573 = vpack.c.b16 %v1273, %v1258
    %v1574 = vpack.c.b16 %v1274, %v1259
    %v1575 = vpack.c.b16 %v1275, %v1260
    %v1576 = vpack.c.b16 %v1276, %v1261
    %v1577 = vpack.c.b16 %v1277, %v1262
    %v1578 = vpack.c.b16 %v1278, %v1263
    %v1579 = vpack.c.b16 %v1279, %v1264
    %v1580 = vpack.c.b16 %v1280, %v1265
    %v1581 = vpack.c.b16 %v1296, %v1281
    %v1582 = vpack.c.b16 %v1297, %v1282
    %v1583 = vpack.c.b16 %v1298, %v1283
    %v1584 = vpack.c.b16 %v1299, %v1284
    %v1585 = vpack.c.b16 %v1300, %v1285
    %v1586 = vpack.c.b16 %v1301, %v1286
    %v1587 = vpack.c.b16 %v1302, %v1287
    %v1588 = vpack.c.b16 %v1303, %v1288
    %v1589 = vpack.c.b16 %v1304, %v1289
    %v1590 = vpack.c.b16 %v1305, %v1290
    %v1591 = vpack.c.b16 %v1306, %v1291
    %v1592 = vpack.c.b16 %v1307, %v1292
    %v1593 = vpack.c.b16 %v1308, %v1293
    %v1594 = vpack.c.b16 %v1309, %v1294
    %v1595 = vpack.c.b16 %v1310, %v1295
    %vm1866 = vcmask 359424
    %v1868 = vsel %vm1866, %v123, 0
    %v1871 = vsel %vm1866, %v126, 0
    %v1874 = vsel %vm1866, %v129, 0
    %v1877 = vsel %vm1866, %v132, 0
    %vm1879 = vcmask 1045504
    %v1881 = vsel %vm1879, %v1581, 0
    %v1884 = vsel %vm1879, %v1582, 0
    %v1887 = vsel %vm1879, %v1583, 0
    %v1890 = vsel %vm1879, %v1584, 0
    %v1893 = vsel %vm1879, %v1585, 0
    %v1896 = vsel %vm1879, %v1586, 0
    %v1899 = vsel %vm1879, %v1587, 0
    %v1902 = vsel %vm1879, %v1588, 0
    %v1905 = vsel %vm1879, %v1589, 0
    %v1908 = vsel %vm1879, %v1590, 0
    %v1911 = vsel %vm1879, %v1591, 0
    %v1914 = vsel %vm1879, %v1592, 0
    %v1917 = vsel %vm1879, %v1593, 0
    %v1920 = vsel %vm1879, %v1594, 0
    %v1923 = vsel %vm1879, %v1595, 0
    %1925 = vmatpush.bf16.msra.mxu0 %v1416
    %1926 = vmatpush.bf16.msra.mxu0 %v1401
    %1927 = vmatpush.bf16.msra.mxu0 %v1386
    %1928 = vmatpush.bf16.msra.mxu0 %v1371
    %1929 = vmatpush.bf16.msra.mxu0 %v1356
    %1930 = vmatpush.bf16.msra.mxu0 %v1341
    %1931 = vmatpush.bf16.msra.mxu0 %v1326
    %1932 = vmatpush.bf16.msra.mxu0 %v1311
    %1933 = vmatmul.bf16.gmra.mxu0 %v121
    %v1934 = vpop.f32.mrf.mxu0
    %v1935 = vadd.f32 0.0, %v1934
    %v1936 = vpop.f32.mrf.mxu0
    %v1937 = vadd.f32 0.0, %v1936
    %1938 = vmatmul.bf16.gmra.mxu0 %v124
    %v1939 = vpop.f32.mrf.mxu0
    %v1940 = vadd.f32 0.0, %v1939
    %v1941 = vpop.f32.mrf.mxu0
    %v1942 = vadd.f32 0.0, %v1941
    %1943 = vmatmul.bf16.gmra.mxu0 %v127
    %v1944 = vpop.f32.mrf.mxu0
    %v1945 = vadd.f32 0.0, %v1944
    %v1946 = vpop.f32.mrf.mxu0
    %v1947 = vadd.f32 0.0, %v1946
    %1948 = vmatmul.bf16.gmra.mxu0 %v130
    %v1949 = vpop.f32.mrf.mxu0
    %v1950 = vadd.f32 0.0, %v1949
    %v1951 = vpop.f32.mrf.mxu0
    %v1952 = vadd.f32 0.0, %v1951
    %1953 = vdwg.mxu0
    %1954 = vmatpush.bf16.msra.mxu0 %v1536
    %1955 = vmatpush.bf16.msra.mxu0 %v1521
    %1956 = vmatpush.bf16.msra.mxu0 %v1506
    %1957 = vmatpush.bf16.msra.mxu0 %v1491
    %1958 = vmatpush.bf16.msra.mxu0 %v1476
    %1959 = vmatpush.bf16.msra.mxu0 %v1461
    %1960 = vmatpush.bf16.msra.mxu0 %v1446
    %1961 = vmatpush.bf16.msra.mxu0 %v1431
    %1962 = vmatmul.bf16.gmra.mxu0 %v122
    %v1963 = vpop.f32.mrf.mxu0
    %v1964 = vadd.f32 %v1935, %v1963
    %v1965 = vpop.f32.mrf.mxu0
    %v1966 = vadd.f32 %v1937, %v1965
    %1967 = vmatmul.bf16.gmra.mxu0 %v125
    %v1968 = vpop.f32.mrf.mxu0
    %v1969 = vadd.f32 %v1940, %v1968
    %v1970 = vpop.f32.mrf.mxu0
    %v1971 = vadd.f32 %v1942, %v1970
    %1972 = vmatmul.bf16.gmra.mxu0 %v128
    %v1973 = vpop.f32.mrf.mxu0
    %v1974 = vadd.f32 %v1945, %v1973
    %v1975 = vpop.f32.mrf.mxu0
    %v1976 = vadd.f32 %v1947, %v1975
    %1977 = vmatmul.bf16.gmra.mxu0 %v131
    %v1978 = vpop.f32.mrf.mxu0
    %v1979 = vadd.f32 %v1950, %v1978
    %v1980 = vpop.f32.mrf.mxu0
    %v1981 = vadd.f32 %v1952, %v1980
    %1982 = vdwg.mxu0
    %1983 = vmatpush.bf16.msra.mxu0 0
    %1984 = vmatpush.bf16.msra.mxu0 0
    %1985 = vmatpush.bf16.msra.mxu0 0
    %1986 = vmatpush.bf16.msra.mxu0 0
    %1987 = vmatpush.bf16.msra.mxu0 0
    %1988 = vmatpush.bf16.msra.mxu0 %v1881
    %1989 = vmatpush.bf16.msra.mxu0 %v1566
    %1990 = vmatpush.bf16.msra.mxu0 %v1551
    %1991 = vmatmul.bf16.gmra.mxu0 %v1868
    %v1992 = vpop.f32.mrf.mxu0
    %v1993 = vadd.f32 %v1964, %v1992
    %v1994 = vpop.f32.mrf.mxu0
    %v1995 = vadd.f32 %v1966, %v1994
    %1996 = vmatmul.bf16.gmra.mxu0 %v1871
    %v1997 = vpop.f32.mrf.mxu0
    %v1998 = vadd.f32 %v1969, %v1997
    %v1999 = vpop.f32.mrf.mxu0
    %v2000 = vadd.f32 %v1971, %v1999
    %2001 = vmatmul.bf16.gmra.mxu0 %v1874
    %v2002 = vpop.f32.mrf.mxu0
    %v2003 = vadd.f32 %v1974, %v2002
    %v2004 = vpop.f32.mrf.mxu0
    %v2005 = vadd.f32 %v1976, %v2004
    %2006 = vmatmul.bf16.gmra.mxu0 %v1877
    %v2007 = vpop.f32.mrf.mxu0
    %v2008 = vadd.f32 %v1979, %v2007
    %v2009 = vpop.f32.mrf.mxu0
    %v2010 = vadd.f32 %v1981, %v2009
    %2011 = vdwg.mxu0
    %2012 = vmatpush.bf16.msra.mxu0 %v1417
    %2013 = vmatpush.bf16.msra.mxu0 %v1402
    %2014 = vmatpush.bf16.msra.mxu0 %v1387
    %2015 = vmatpush.bf16.msra.mxu0 %v1372
    %2016 = vmatpush.bf16.msra.mxu0 %v1357
    %2017 = vmatpush.bf16.msra.mxu0 %v1342
    %2018 = vmatpush.bf16.msra.mxu0 %v1327
    %2019 = vmatpush.bf16.msra.mxu0 %v1312
    %2020 = vmatmul.bf16.gmra.mxu0 %v121
    %v2021 = vpop.f32.mrf.mxu0
    %v2022 = vadd.f32 0.0, %v2021
    %v2023 = vpop.f32.mrf.mxu0
    %v2024 = vadd.f32 0.0, %v2023
    %2025 = vmatmul.bf16.gmra.mxu0 %v124
    %v2026 = vpop.f32.mrf.mxu0
    %v2027 = vadd.f32 0.0, %v2026
    %v2028 = vpop.f32.mrf.mxu0
    %v2029 = vadd.f32 0.0, %v2028
    %2030 = vmatmul.bf16.gmra.mxu0 %v127
    %v2031 = vpop.f32.mrf.mxu0
    %v2032 = vadd.f32 0.0, %v2031
    %v2033 = vpop.f32.mrf.mxu0
    %v2034 = vadd.f32 0.0, %v2033
    %2035 = vmatmul.bf16.gmra.mxu0 %v130
    %v2036 = vpop.f32.mrf.mxu0
    %v2037 = vadd.f32 0.0, %v2036
    %v2038 = vpop.f32.mrf.mxu0
    %v2039 = vadd.f32 0.0, %v2038
    %2040 = vdwg.mxu0
    %2041 = vmatpush.bf16.msra.mxu0 %v1537
    %2042 = vmatpush.bf16.msra.mxu0 %v1522
    %2043 = vmatpush.bf16.msra.mxu0 %v1507
    %2044 = vmatpush.bf16.msra.mxu0 %v1492
    %2045 = vmatpush.bf16.msra.mxu0 %v1477
    %2046 = vmatpush.bf16.msra.mxu0 %v1462
    %2047 = vmatpush.bf16.msra.mxu0 %v1447
    %2048 = vmatpush.bf16.msra.mxu0 %v1432
    %2049 = vmatmul.bf16.gmra.mxu0 %v122
    %v2050 = vpop.f32.mrf.mxu0
    %v2051 = vadd.f32 %v2022, %v2050
    %v2052 = vpop.f32.mrf.mxu0
    %v2053 = vadd.f32 %v2024, %v2052
    %2054 = vmatmul.bf16.gmra.mxu0 %v125
    %v2055 = vpop.f32.mrf.mxu0
    %v2056 = vadd.f32 %v2027, %v2055
    %v2057 = vpop.f32.mrf.mxu0
    %v2058 = vadd.f32 %v2029, %v2057
    %2059 = vmatmul.bf16.gmra.mxu0 %v128
    %v2060 = vpop.f32.mrf.mxu0
    %v2061 = vadd.f32 %v2032, %v2060
    %v2062 = vpop.f32.mrf.mxu0
    %v2063 = vadd.f32 %v2034, %v2062
    %2064 = vmatmul.bf16.gmra.mxu0 %v131
    %v2065 = vpop.f32.mrf.mxu0
    %v2066 = vadd.f32 %v2037, %v2065
    %v2067 = vpop.f32.mrf.mxu0
    %v2068 = vadd.f32 %v2039, %v2067
    %2069 = vdwg.mxu0
    %2070 = vmatpush.bf16.msra.mxu0 0
    %2071 = vmatpush.bf16.msra.mxu0 0
    %2072 = vmatpush.bf16.msra.mxu0 0
    %2073 = vmatpush.bf16.msra.mxu0 0
    %2074 = vmatpush.bf16.msra.mxu0 0
    %2075 = vmatpush.bf16.msra.mxu0 %v1884
    %2076 = vmatpush.bf16.msra.mxu0 %v1567
    %2077 = vmatpush.bf16.msra.mxu0 %v1552
    %2078 = vmatmul.bf16.gmra.mxu0 %v1868
    %v2079 = vpop.f32.mrf.mxu0
    %v2080 = vadd.f32 %v2051, %v2079
    %v2081 = vpop.f32.mrf.mxu0
    %v2082 = vadd.f32 %v2053, %v2081
    %2083 = vmatmul.bf16.gmra.mxu0 %v1871
    %v2084 = vpop.f32.mrf.mxu0
    %v2085 = vadd.f32 %v2056, %v2084
    %v2086 = vpop.f32.mrf.mxu0
    %v2087 = vadd.f32 %v2058, %v2086
    %2088 = vmatmul.bf16.gmra.mxu0 %v1874
    %v2089 = vpop.f32.mrf.mxu0
    %v2090 = vadd.f32 %v2061, %v2089
    %v2091 = vpop.f32.mrf.mxu0
    %v2092 = vadd.f32 %v2063, %v2091
    %2093 = vmatmul.bf16.gmra.mxu0 %v1877
    %v2094 = vpop.f32.mrf.mxu0
    %v2095 = vadd.f32 %v2066, %v2094
    %v2096 = vpop.f32.mrf.mxu0
    %v2097 = vadd.f32 %v2068, %v2096
    %2098 = vdwg.mxu0
    %2099 = vmatpush.bf16.msra.mxu0 %v1418
    %2100 = vmatpush.bf16.msra.mxu0 %v1403
    %2101 = vmatpush.bf16.msra.mxu0 %v1388
    %2102 = vmatpush.bf16.msra.mxu0 %v1373
    %2103 = vmatpush.bf16.msra.mxu0 %v1358
    %2104 = vmatpush.bf16.msra.mxu0 %v1343
    %2105 = vmatpush.bf16.msra.mxu0 %v1328
    %2106 = vmatpush.bf16.msra.mxu0 %v1313
    %2107 = vmatmul.bf16.gmra.mxu0 %v121
    %v2108 = vpop.f32.mrf.mxu0
    %v2109 = vadd.f32 0.0, %v2108
    %v2110 = vpop.f32.mrf.mxu0
    %v2111 = vadd.f32 0.0, %v2110
    %2112 = vmatmul.bf16.gmra.mxu0 %v124
    %v2113 = vpop.f32.mrf.mxu0
    %v2114 = vadd.f32 0.0, %v2113
    %v2115 = vpop.f32.mrf.mxu0
    %v2116 = vadd.f32 0.0, %v2115
    %2117 = vmatmul.bf16.gmra.mxu0 %v127
    %v2118 = vpop.f32.mrf.mxu0
    %v2119 = vadd.f32 0.0, %v2118
    %v2120 = vpop.f32.mrf.mxu0
    %v2121 = vadd.f32 0.0, %v2120
    %2122 = vmatmul.bf16.gmra.mxu0 %v130
    %v2123 = vpop.f32.mrf.mxu0
    %v2124 = vadd.f32 0.0, %v2123
    %v2125 = vpop.f32.mrf.mxu0
    %v2126 = vadd.f32 0.0, %v2125
    %2127 = vdwg.mxu0
    %2128 = vmatpush.bf16.msra.mxu0 %v1538
    %2129 = vmatpush.bf16.msra.mxu0 %v1523
    %2130 = vmatpush.bf16.msra.mxu0 %v1508
    %2131 = vmatpush.bf16.msra.mxu0 %v1493
    %2132 = vmatpush.bf16.msra.mxu0 %v1478
    %2133 = vmatpush.bf16.msra.mxu0 %v1463
    %2134 = vmatpush.bf16.msra.mxu0 %v1448
    %2135 = vmatpush.bf16.msra.mxu0 %v1433
    %2136 = vmatmul.bf16.gmra.mxu0 %v122
    %v2137 = vpop.f32.mrf.mxu0
    %v2138 = vadd.f32 %v2109, %v2137
    %v2139 = vpop.f32.mrf.mxu0
    %v2140 = vadd.f32 %v2111, %v2139
    %2141 = vmatmul.bf16.gmra.mxu0 %v125
    %v2142 = vpop.f32.mrf.mxu0
    %v2143 = vadd.f32 %v2114, %v2142
    %v2144 = vpop.f32.mrf.mxu0
    %v2145 = vadd.f32 %v2116, %v2144
    %2146 = vmatmul.bf16.gmra.mxu0 %v128
    %v2147 = vpop.f32.mrf.mxu0
    %v2148 = vadd.f32 %v2119, %v2147
    %v2149 = vpop.f32.mrf.mxu0
    %v2150 = vadd.f32 %v2121, %v2149
    %2151 = vmatmul.bf16.gmra.mxu0 %v131
    %v2152 = vpop.f32.mrf.mxu0
    %v2153 = vadd.f32 %v2124, %v2152
    %v2154 = vpop.f32.mrf.mxu0
    %v2155 = vadd.f32 %v2126, %v2154
    %2156 = vdwg.mxu0
    %2157 = vmatpush.bf16.msra.mxu0 0
    %2158 = vmatpush.bf16.msra.mxu0 0
    %2159 = vmatpush.bf16.msra.mxu0 0
    %2160 = vmatpush.bf16.msra.mxu0 0
    %2161 = vmatpush.bf16.msra.mxu0 0
    %2162 = vmatpush.bf16.msra.mxu0 %v1887
    %2163 = vmatpush.bf16.msra.mxu0 %v1568
    %2164 = vmatpush.bf16.msra.mxu0 %v1553
    %2165 = vmatmul.bf16.gmra.mxu0 %v1868
    %v2166 = vpop.f32.mrf.mxu0
    %v2167 = vadd.f32 %v2138, %v2166
    %v2168 = vpop.f32.mrf.mxu0
    %v2169 = vadd.f32 %v2140, %v2168
    %2170 = vmatmul.bf16.gmra.mxu0 %v1871
    %v2171 = vpop.f32.mrf.mxu0
    %v2172 = vadd.f32 %v2143, %v2171
    %v2173 = vpop.f32.mrf.mxu0
    %v2174 = vadd.f32 %v2145, %v2173
    %2175 = vmatmul.bf16.gmra.mxu0 %v1874
    %v2176 = vpop.f32.mrf.mxu0
    %v2177 = vadd.f32 %v2148, %v2176
    %v2178 = vpop.f32.mrf.mxu0
    %v2179 = vadd.f32 %v2150, %v2178
    %2180 = vmatmul.bf16.gmra.mxu0 %v1877
    %v2181 = vpop.f32.mrf.mxu0
    %v2182 = vadd.f32 %v2153, %v2181
    %v2183 = vpop.f32.mrf.mxu0
    %v2184 = vadd.f32 %v2155, %v2183
    %2185 = vdwg.mxu0
    %2186 = vmatpush.bf16.msra.mxu0 %v1419
    %2187 = vmatpush.bf16.msra.mxu0 %v1404
    %2188 = vmatpush.bf16.msra.mxu0 %v1389
    %2189 = vmatpush.bf16.msra.mxu0 %v1374
    %2190 = vmatpush.bf16.msra.mxu0 %v1359
    %2191 = vmatpush.bf16.msra.mxu0 %v1344
    %2192 = vmatpush.bf16.msra.mxu0 %v1329
    %2193 = vmatpush.bf16.msra.mxu0 %v1314
    %2194 = vmatmul.bf16.gmra.mxu0 %v121
    %v2195 = vpop.f32.mrf.mxu0
    %v2196 = vadd.f32 0.0, %v2195
    %v2197 = vpop.f32.mrf.mxu0
    %v2198 = vadd.f32 0.0, %v2197
    %2199 = vmatmul.bf16.gmra.mxu0 %v124
    %v2200 = vpop.f32.mrf.mxu0
    %v2201 = vadd.f32 0.0, %v2200
    %v2202 = vpop.f32.mrf.mxu0
    %v2203 = vadd.f32 0.0, %v2202
    %2204 = vmatmul.bf16.gmra.mxu0 %v127
    %v2205 = vpop.f32.mrf.mxu0
    %v2206 = vadd.f32 0.0, %v2205
    %v2207 = vpop.f32.mrf.mxu0
    %v2208 = vadd.f32 0.0, %v2207
    %2209 = vmatmul.bf16.gmra.mxu0 %v130
    %v2210 = vpop.f32.mrf.mxu0
    %v2211 = vadd.f32 0.0, %v2210
    %v2212 = vpop.f32.mrf.mxu0
    %v2213 = vadd.f32 0.0, %v2212
    %2214 = vdwg.mxu0
    %2215 = vmatpush.bf16.msra.mxu0 %v1539
    %2216 = vmatpush.bf16.msra.mxu0 %v1524
    %2217 = vmatpush.bf16.msra.mxu0 %v1509
    %2218 = vmatpush.bf16.msra.mxu0 %v1494
    %2219 = vmatpush.bf16.msra.mxu0 %v1479
    %2220 = vmatpush.bf16.msra.mxu0 %v1464
    %2221 = vmatpush.bf16.msra.mxu0 %v1449
    %2222 = vmatpush.bf16.msra.mxu0 %v1434
    %2223 = vmatmul.bf16.gmra.mxu0 %v122
    %v2224 = vpop.f32.mrf.mxu0
    %v2225 = vadd.f32 %v2196, %v2224
    %v2226 = vpop.f32.mrf.mxu0
    %v2227 = vadd.f32 %v2198, %v2226
    %2228 = vmatmul.bf16.gmra.mxu0 %v125
    %v2229 = vpop.f32.mrf.mxu0
    %v2230 = vadd.f32 %v2201, %v2229
    %v2231 = vpop.f32.mrf.mxu0
    %v2232 = vadd.f32 %v2203, %v2231
    %2233 = vmatmul.bf16.gmra.mxu0 %v128
    %v2234 = vpop.f32.mrf.mxu0
    %v2235 = vadd.f32 %v2206, %v2234
    %v2236 = vpop.f32.mrf.mxu0
    %v2237 = vadd.f32 %v2208, %v2236
    %2238 = vmatmul.bf16.gmra.mxu0 %v131
    %v2239 = vpop.f32.mrf.mxu0
    %v2240 = vadd.f32 %v2211, %v2239
    %v2241 = vpop.f32.mrf.mxu0
    %v2242 = vadd.f32 %v2213, %v2241
    %2243 = vdwg.mxu0
    %2244 = vmatpush.bf16.msra.mxu0 0
    %2245 = vmatpush.bf16.msra.mxu0 0
    %2246 = vmatpush.bf16.msra.mxu0 0
    %2247 = vmatpush.bf16.msra.mxu0 0
    %2248 = vmatpush.bf16.msra.mxu0 0
    %2249 = vmatpush.bf16.msra.mxu0 %v1890
    %2250 = vmatpush.bf16.msra.mxu0 %v1569
    %2251 = vmatpush.bf16.msra.mxu0 %v1554
    %2252 = vmatmul.bf16.gmra.mxu0 %v1868
    %v2253 = vpop.f32.mrf.mxu0
    %v2254 = vadd.f32 %v2225, %v2253
    %v2255 = vpop.f32.mrf.mxu0
    %v2256 = vadd.f32 %v2227, %v2255
    %2257 = vmatmul.bf16.gmra.mxu0 %v1871
    %v2258 = vpop.f32.mrf.mxu0
    %v2259 = vadd.f32 %v2230, %v2258
    %v2260 = vpop.f32.mrf.mxu0
    %v2261 = vadd.f32 %v2232, %v2260
    %2262 = vmatmul.bf16.gmra.mxu0 %v1874
    %v2263 = vpop.f32.mrf.mxu0
    %v2264 = vadd.f32 %v2235, %v2263
    %v2265 = vpop.f32.mrf.mxu0
    %v2266 = vadd.f32 %v2237, %v2265
    %2267 = vmatmul.bf16.gmra.mxu0 %v1877
    %v2268 = vpop.f32.mrf.mxu0
    %v2269 = vadd.f32 %v2240, %v2268
    %v2270 = vpop.f32.mrf.mxu0
    %v2271 = vadd.f32 %v2242, %v2270
    %2272 = vdwg.mxu0
    %2273 = vmatpush.bf16.msra.mxu0 %v1420
    %2274 = vmatpush.bf16.msra.mxu0 %v1405
    %2275 = vmatpush.bf16.msra.mxu0 %v1390
    %2276 = vmatpush.bf16.msra.mxu0 %v1375
    %2277 = vmatpush.bf16.msra.mxu0 %v1360
    %2278 = vmatpush.bf16.msra.mxu0 %v1345
    %2279 = vmatpush.bf16.msra.mxu0 %v1330
    %2280 = vmatpush.bf16.msra.mxu0 %v1315
    %2281 = vmatmul.bf16.gmra.mxu0 %v121
    %v2282 = vpop.f32.mrf.mxu0
    %v2283 = vadd.f32 0.0, %v2282
    %v2284 = vpop.f32.mrf.mxu0
    %v2285 = vadd.f32 0.0, %v2284
    %2286 = vmatmul.bf16.gmra.mxu0 %v124
    %v2287 = vpop.f32.mrf.mxu0
    %v2288 = vadd.f32 0.0, %v2287
    %v2289 = vpop.f32.mrf.mxu0
    %v2290 = vadd.f32 0.0, %v2289
    %2291 = vmatmul.bf16.gmra.mxu0 %v127
    %v2292 = vpop.f32.mrf.mxu0
    %v2293 = vadd.f32 0.0, %v2292
    %v2294 = vpop.f32.mrf.mxu0
    %v2295 = vadd.f32 0.0, %v2294
    %2296 = vmatmul.bf16.gmra.mxu0 %v130
    %v2297 = vpop.f32.mrf.mxu0
    %v2298 = vadd.f32 0.0, %v2297
    %v2299 = vpop.f32.mrf.mxu0
    %v2300 = vadd.f32 0.0, %v2299
    %2301 = vdwg.mxu0
    %2302 = vmatpush.bf16.msra.mxu0 %v1540
    %2303 = vmatpush.bf16.msra.mxu0 %v1525
    %2304 = vmatpush.bf16.msra.mxu0 %v1510
    %2305 = vmatpush.bf16.msra.mxu0 %v1495
    %2306 = vmatpush.bf16.msra.mxu0 %v1480
    %2307 = vmatpush.bf16.msra.mxu0 %v1465
    %2308 = vmatpush.bf16.msra.mxu0 %v1450
    %2309 = vmatpush.bf16.msra.mxu0 %v1435
    %2310 = vmatmul.bf16.gmra.mxu0 %v122
    %v2311 = vpop.f32.mrf.mxu0
    %v2312 = vadd.f32 %v2283, %v2311
    %v2313 = vpop.f32.mrf.mxu0
    %v2314 = vadd.f32 %v2285, %v2313
    %2315 = vmatmul.bf16.gmra.mxu0 %v125
    %v2316 = vpop.f32.mrf.mxu0
    %v2317 = vadd.f32 %v2288, %v2316
    %v2318 = vpop.f32.mrf.mxu0
    %v2319 = vadd.f32 %v2290, %v2318
    %2320 = vmatmul.bf16.gmra.mxu0 %v128
    %v2321 = vpop.f32.mrf.mxu0
    %v2322 = vadd.f32 %v2293, %v2321
    %v2323 = vpop.f32.mrf.mxu0
    %v2324 = vadd.f32 %v2295, %v2323
    %2325 = vmatmul.bf16.gmra.mxu0 %v131
    %v2326 = vpop.f32.mrf.mxu0
    %v2327 = vadd.f32 %v2298, %v2326
    %v2328 = vpop.f32.mrf.mxu0
    %v2329 = vadd.f32 %v2300, %v2328
    %2330 = vdwg.mxu0
    %2331 = vmatpush.bf16.msra.mxu0 0
    %2332 = vmatpush.bf16.msra.mxu0 0
    %2333 = vmatpush.bf16.msra.mxu0 0
    %2334 = vmatpush.bf16.msra.mxu0 0
    %2335 = vmatpush.bf16.msra.mxu0 0
    %2336 = vmatpush.bf16.msra.mxu0 %v1893
    %2337 = vmatpush.bf16.msra.mxu0 %v1570
    %2338 = vmatpush.bf16.msra.mxu0 %v1555
    %2339 = vmatmul.bf16.gmra.mxu0 %v1868
    %v2340 = vpop.f32.mrf.mxu0
    %v2341 = vadd.f32 %v2312, %v2340
    %v2342 = vpop.f32.mrf.mxu0
    %v2343 = vadd.f32 %v2314, %v2342
    %2344 = vmatmul.bf16.gmra.mxu0 %v1871
    %v2345 = vpop.f32.mrf.mxu0
    %v2346 = vadd.f32 %v2317, %v2345
    %v2347 = vpop.f32.mrf.mxu0
    %v2348 = vadd.f32 %v2319, %v2347
    %2349 = vmatmul.bf16.gmra.mxu0 %v1874
    %v2350 = vpop.f32.mrf.mxu0
    %v2351 = vadd.f32 %v2322, %v2350
    %v2352 = vpop.f32.mrf.mxu0
    %v2353 = vadd.f32 %v2324, %v2352
    %2354 = vmatmul.bf16.gmra.mxu0 %v1877
    %v2355 = vpop.f32.mrf.mxu0
    %v2356 = vadd.f32 %v2327, %v2355
    %v2357 = vpop.f32.mrf.mxu0
    %v2358 = vadd.f32 %v2329, %v2357
    %2359 = vdwg.mxu0
    %2360 = vmatpush.bf16.msra.mxu0 %v1421
    %2361 = vmatpush.bf16.msra.mxu0 %v1406
    %2362 = vmatpush.bf16.msra.mxu0 %v1391
    %2363 = vmatpush.bf16.msra.mxu0 %v1376
    %2364 = vmatpush.bf16.msra.mxu0 %v1361
    %2365 = vmatpush.bf16.msra.mxu0 %v1346
    %2366 = vmatpush.bf16.msra.mxu0 %v1331
    %2367 = vmatpush.bf16.msra.mxu0 %v1316
    %2368 = vmatmul.bf16.gmra.mxu0 %v121
    %v2369 = vpop.f32.mrf.mxu0
    %v2370 = vadd.f32 0.0, %v2369
    %v2371 = vpop.f32.mrf.mxu0
    %v2372 = vadd.f32 0.0, %v2371
    %2373 = vmatmul.bf16.gmra.mxu0 %v124
    %v2374 = vpop.f32.mrf.mxu0
    %v2375 = vadd.f32 0.0, %v2374
    %v2376 = vpop.f32.mrf.mxu0
    %v2377 = vadd.f32 0.0, %v2376
    %2378 = vmatmul.bf16.gmra.mxu0 %v127
    %v2379 = vpop.f32.mrf.mxu0
    %v2380 = vadd.f32 0.0, %v2379
    %v2381 = vpop.f32.mrf.mxu0
    %v2382 = vadd.f32 0.0, %v2381
    %2383 = vmatmul.bf16.gmra.mxu0 %v130
    %v2384 = vpop.f32.mrf.mxu0
    %v2385 = vadd.f32 0.0, %v2384
    %v2386 = vpop.f32.mrf.mxu0
    %v2387 = vadd.f32 0.0, %v2386
    %2388 = vdwg.mxu0
    %2389 = vmatpush.bf16.msra.mxu0 %v1541
    %2390 = vmatpush.bf16.msra.mxu0 %v1526
    %2391 = vmatpush.bf16.msra.mxu0 %v1511
    %2392 = vmatpush.bf16.msra.mxu0 %v1496
    %2393 = vmatpush.bf16.msra.mxu0 %v1481
    %2394 = vmatpush.bf16.msra.mxu0 %v1466
    %2395 = vmatpush.bf16.msra.mxu0 %v1451
    %2396 = vmatpush.bf16.msra.mxu0 %v1436
    %2397 = vmatmul.bf16.gmra.mxu0 %v122
    %v2398 = vpop.f32.mrf.mxu0
    %v2399 = vadd.f32 %v2370, %v2398
    %v2400 = vpop.f32.mrf.mxu0
    %v2401 = vadd.f32 %v2372, %v2400
    %2402 = vmatmul.bf16.gmra.mxu0 %v125
    %v2403 = vpop.f32.mrf.mxu0
    %v2404 = vadd.f32 %v2375, %v2403
    %v2405 = vpop.f32.mrf.mxu0
    %v2406 = vadd.f32 %v2377, %v2405
    %2407 = vmatmul.bf16.gmra.mxu0 %v128
    %v2408 = vpop.f32.mrf.mxu0
    %v2409 = vadd.f32 %v2380, %v2408
    %v2410 = vpop.f32.mrf.mxu0
    %v2411 = vadd.f32 %v2382, %v2410
    %2412 = vmatmul.bf16.gmra.mxu0 %v131
    %v2413 = vpop.f32.mrf.mxu0
    %v2414 = vadd.f32 %v2385, %v2413
    %v2415 = vpop.f32.mrf.mxu0
    %v2416 = vadd.f32 %v2387, %v2415
    %2417 = vdwg.mxu0
    %2418 = vmatpush.bf16.msra.mxu0 0
    %2419 = vmatpush.bf16.msra.mxu0 0
    %2420 = vmatpush.bf16.msra.mxu0 0
    %2421 = vmatpush.bf16.msra.mxu0 0
    %2422 = vmatpush.bf16.msra.mxu0 0
    %2423 = vmatpush.bf16.msra.mxu0 %v1896
    %2424 = vmatpush.bf16.msra.mxu0 %v1571
    %2425 = vmatpush.bf16.msra.mxu0 %v1556
    %2426 = vmatmul.bf16.gmra.mxu0 %v1868
    %v2427 = vpop.f32.mrf.mxu0
    %v2428 = vadd.f32 %v2399, %v2427
    %v2429 = vpop.f32.mrf.mxu0
    %v2430 = vadd.f32 %v2401, %v2429
    %2431 = vmatmul.bf16.gmra.mxu0 %v1871
    %v2432 = vpop.f32.mrf.mxu0
    %v2433 = vadd.f32 %v2404, %v2432
    %v2434 = vpop.f32.mrf.mxu0
    %v2435 = vadd.f32 %v2406, %v2434
    %2436 = vmatmul.bf16.gmra.mxu0 %v1874
    %v2437 = vpop.f32.mrf.mxu0
    %v2438 = vadd.f32 %v2409, %v2437
    %v2439 = vpop.f32.mrf.mxu0
    %v2440 = vadd.f32 %v2411, %v2439
    %2441 = vmatmul.bf16.gmra.mxu0 %v1877
    %v2442 = vpop.f32.mrf.mxu0
    %v2443 = vadd.f32 %v2414, %v2442
    %v2444 = vpop.f32.mrf.mxu0
    %v2445 = vadd.f32 %v2416, %v2444
    %2446 = vdwg.mxu0
    %2447 = vmatpush.bf16.msra.mxu0 %v1422
    %2448 = vmatpush.bf16.msra.mxu0 %v1407
    %2449 = vmatpush.bf16.msra.mxu0 %v1392
    %2450 = vmatpush.bf16.msra.mxu0 %v1377
    %2451 = vmatpush.bf16.msra.mxu0 %v1362
    %2452 = vmatpush.bf16.msra.mxu0 %v1347
    %2453 = vmatpush.bf16.msra.mxu0 %v1332
    %2454 = vmatpush.bf16.msra.mxu0 %v1317
    %2455 = vmatmul.bf16.gmra.mxu0 %v121
    %v2456 = vpop.f32.mrf.mxu0
    %v2457 = vadd.f32 0.0, %v2456
    %v2458 = vpop.f32.mrf.mxu0
    %v2459 = vadd.f32 0.0, %v2458
    %2460 = vmatmul.bf16.gmra.mxu0 %v124
    %v2461 = vpop.f32.mrf.mxu0
    %v2462 = vadd.f32 0.0, %v2461
    %v2463 = vpop.f32.mrf.mxu0
    %v2464 = vadd.f32 0.0, %v2463
    %2465 = vmatmul.bf16.gmra.mxu0 %v127
    %v2466 = vpop.f32.mrf.mxu0
    %v2467 = vadd.f32 0.0, %v2466
    %v2468 = vpop.f32.mrf.mxu0
    %v2469 = vadd.f32 0.0, %v2468
    %2470 = vmatmul.bf16.gmra.mxu0 %v130
    %v2471 = vpop.f32.mrf.mxu0
    %v2472 = vadd.f32 0.0, %v2471
    %v2473 = vpop.f32.mrf.mxu0
    %v2474 = vadd.f32 0.0, %v2473
    %2475 = vdwg.mxu0
    %2476 = vmatpush.bf16.msra.mxu0 %v1542
    %2477 = vmatpush.bf16.msra.mxu0 %v1527
    %2478 = vmatpush.bf16.msra.mxu0 %v1512
    %2479 = vmatpush.bf16.msra.mxu0 %v1497
    %2480 = vmatpush.bf16.msra.mxu0 %v1482
    %2481 = vmatpush.bf16.msra.mxu0 %v1467
    %2482 = vmatpush.bf16.msra.mxu0 %v1452
    %2483 = vmatpush.bf16.msra.mxu0 %v1437
    %2484 = vmatmul.bf16.gmra.mxu0 %v122
    %v2485 = vpop.f32.mrf.mxu0
    %v2486 = vadd.f32 %v2457, %v2485
    %v2487 = vpop.f32.mrf.mxu0
    %v2488 = vadd.f32 %v2459, %v2487
    %2489 = vmatmul.bf16.gmra.mxu0 %v125
    %v2490 = vpop.f32.mrf.mxu0
    %v2491 = vadd.f32 %v2462, %v2490
    %v2492 = vpop.f32.mrf.mxu0
    %v2493 = vadd.f32 %v2464, %v2492
    %2494 = vmatmul.bf16.gmra.mxu0 %v128
    %v2495 = vpop.f32.mrf.mxu0
    %v2496 = vadd.f32 %v2467, %v2495
    %v2497 = vpop.f32.mrf.mxu0
    %v2498 = vadd.f32 %v2469, %v2497
    %2499 = vmatmul.bf16.gmra.mxu0 %v131
    %v2500 = vpop.f32.mrf.mxu0
    %v2501 = vadd.f32 %v2472, %v2500
    %v2502 = vpop.f32.mrf.mxu0
    %v2503 = vadd.f32 %v2474, %v2502
    %2504 = vdwg.mxu0
    %2505 = vmatpush.bf16.msra.mxu0 0
    %2506 = vmatpush.bf16.msra.mxu0 0
    %2507 = vmatpush.bf16.msra.mxu0 0
    %2508 = vmatpush.bf16.msra.mxu0 0
    %2509 = vmatpush.bf16.msra.mxu0 0
    %2510 = vmatpush.bf16.msra.mxu0 %v1899
    %2511 = vmatpush.bf16.msra.mxu0 %v1572
    %2512 = vmatpush.bf16.msra.mxu0 %v1557
    %2513 = vmatmul.bf16.gmra.mxu0 %v1868
    %v2514 = vpop.f32.mrf.mxu0
    %v2515 = vadd.f32 %v2486, %v2514
    %v2516 = vpop.f32.mrf.mxu0
    %v2517 = vadd.f32 %v2488, %v2516
    %2518 = vmatmul.bf16.gmra.mxu0 %v1871
    %v2519 = vpop.f32.mrf.mxu0
    %v2520 = vadd.f32 %v2491, %v2519
    %v2521 = vpop.f32.mrf.mxu0
    %v2522 = vadd.f32 %v2493, %v2521
    %2523 = vmatmul.bf16.gmra.mxu0 %v1874
    %v2524 = vpop.f32.mrf.mxu0
    %v2525 = vadd.f32 %v2496, %v2524
    %v2526 = vpop.f32.mrf.mxu0
    %v2527 = vadd.f32 %v2498, %v2526
    %2528 = vmatmul.bf16.gmra.mxu0 %v1877
    %v2529 = vpop.f32.mrf.mxu0
    %v2530 = vadd.f32 %v2501, %v2529
    %v2531 = vpop.f32.mrf.mxu0
    %v2532 = vadd.f32 %v2503, %v2531
    %2533 = vdwg.mxu0
    %2534 = vmatpush.bf16.msra.mxu0 %v1423
    %2535 = vmatpush.bf16.msra.mxu0 %v1408
    %2536 = vmatpush.bf16.msra.mxu0 %v1393
    %2537 = vmatpush.bf16.msra.mxu0 %v1378
    %2538 = vmatpush.bf16.msra.mxu0 %v1363
    %2539 = vmatpush.bf16.msra.mxu0 %v1348
    %2540 = vmatpush.bf16.msra.mxu0 %v1333
    %2541 = vmatpush.bf16.msra.mxu0 %v1318
    %2542 = vmatmul.bf16.gmra.mxu0 %v121
    %v2543 = vpop.f32.mrf.mxu0
    %v2544 = vadd.f32 0.0, %v2543
    %v2545 = vpop.f32.mrf.mxu0
    %v2546 = vadd.f32 0.0, %v2545
    %2547 = vmatmul.bf16.gmra.mxu0 %v124
    %v2548 = vpop.f32.mrf.mxu0
    %v2549 = vadd.f32 0.0, %v2548
    %v2550 = vpop.f32.mrf.mxu0
    %v2551 = vadd.f32 0.0, %v2550
    %2552 = vmatmul.bf16.gmra.mxu0 %v127
    %v2553 = vpop.f32.mrf.mxu0
    %v2554 = vadd.f32 0.0, %v2553
    %v2555 = vpop.f32.mrf.mxu0
    %v2556 = vadd.f32 0.0, %v2555
    %2557 = vmatmul.bf16.gmra.mxu0 %v130
    %v2558 = vpop.f32.mrf.mxu0
    %v2559 = vadd.f32 0.0, %v2558
    %v2560 = vpop.f32.mrf.mxu0
    %v2561 = vadd.f32 0.0, %v2560
    %2562 = vdwg.mxu0
    %2563 = vmatpush.bf16.msra.mxu0 %v1543
    %2564 = vmatpush.bf16.msra.mxu0 %v1528
    %2565 = vmatpush.bf16.msra.mxu0 %v1513
    %2566 = vmatpush.bf16.msra.mxu0 %v1498
    %2567 = vmatpush.bf16.msra.mxu0 %v1483
    %2568 = vmatpush.bf16.msra.mxu0 %v1468
    %2569 = vmatpush.bf16.msra.mxu0 %v1453
    %2570 = vmatpush.bf16.msra.mxu0 %v1438
    %2571 = vmatmul.bf16.gmra.mxu0 %v122
    %v2572 = vpop.f32.mrf.mxu0
    %v2573 = vadd.f32 %v2544, %v2572
    %v2574 = vpop.f32.mrf.mxu0
    %v2575 = vadd.f32 %v2546, %v2574
    %2576 = vmatmul.bf16.gmra.mxu0 %v125
    %v2577 = vpop.f32.mrf.mxu0
    %v2578 = vadd.f32 %v2549, %v2577
    %v2579 = vpop.f32.mrf.mxu0
    %v2580 = vadd.f32 %v2551, %v2579
    %2581 = vmatmul.bf16.gmra.mxu0 %v128
    %v2582 = vpop.f32.mrf.mxu0
    %v2583 = vadd.f32 %v2554, %v2582
    %v2584 = vpop.f32.mrf.mxu0
    %v2585 = vadd.f32 %v2556, %v2584
    %2586 = vmatmul.bf16.gmra.mxu0 %v131
    %v2587 = vpop.f32.mrf.mxu0
    %v2588 = vadd.f32 %v2559, %v2587
    %v2589 = vpop.f32.mrf.mxu0
    %v2590 = vadd.f32 %v2561, %v2589
    %2591 = vdwg.mxu0
    %2592 = vmatpush.bf16.msra.mxu0 0
    %2593 = vmatpush.bf16.msra.mxu0 0
    %2594 = vmatpush.bf16.msra.mxu0 0
    %2595 = vmatpush.bf16.msra.mxu0 0
    %2596 = vmatpush.bf16.msra.mxu0 0
    %2597 = vmatpush.bf16.msra.mxu0 %v1902
    %2598 = vmatpush.bf16.msra.mxu0 %v1573
    %2599 = vmatpush.bf16.msra.mxu0 %v1558
    %2600 = vmatmul.bf16.gmra.mxu0 %v1868
    %v2601 = vpop.f32.mrf.mxu0
    %v2602 = vadd.f32 %v2573, %v2601
    %v2603 = vpop.f32.mrf.mxu0
    %v2604 = vadd.f32 %v2575, %v2603
    %2605 = vmatmul.bf16.gmra.mxu0 %v1871
    %v2606 = vpop.f32.mrf.mxu0
    %v2607 = vadd.f32 %v2578, %v2606
    %v2608 = vpop.f32.mrf.mxu0
    %v2609 = vadd.f32 %v2580, %v2608
    %2610 = vmatmul.bf16.gmra.mxu0 %v1874
    %v2611 = vpop.f32.mrf.mxu0
    %v2612 = vadd.f32 %v2583, %v2611
    %v2613 = vpop.f32.mrf.mxu0
    %v2614 = vadd.f32 %v2585, %v2613
    %2615 = vmatmul.bf16.gmra.mxu0 %v1877
    %v2616 = vpop.f32.mrf.mxu0
    %v2617 = vadd.f32 %v2588, %v2616
    %v2618 = vpop.f32.mrf.mxu0
    %v2619 = vadd.f32 %v2590, %v2618
    %2620 = vdwg.mxu0
    %2621 = vmatpush.bf16.msra.mxu0 %v1424
    %2622 = vmatpush.bf16.msra.mxu0 %v1409
    %2623 = vmatpush.bf16.msra.mxu0 %v1394
    %2624 = vmatpush.bf16.msra.mxu0 %v1379
    %2625 = vmatpush.bf16.msra.mxu0 %v1364
    %2626 = vmatpush.bf16.msra.mxu0 %v1349
    %2627 = vmatpush.bf16.msra.mxu0 %v1334
    %2628 = vmatpush.bf16.msra.mxu0 %v1319
    %2629 = vmatmul.bf16.gmra.mxu0 %v121
    %v2630 = vpop.f32.mrf.mxu0
    %v2631 = vadd.f32 0.0, %v2630
    %v2632 = vpop.f32.mrf.mxu0
    %v2633 = vadd.f32 0.0, %v2632
    %2634 = vmatmul.bf16.gmra.mxu0 %v124
    %v2635 = vpop.f32.mrf.mxu0
    %v2636 = vadd.f32 0.0, %v2635
    %v2637 = vpop.f32.mrf.mxu0
    %v2638 = vadd.f32 0.0, %v2637
    %2639 = vmatmul.bf16.gmra.mxu0 %v127
    %v2640 = vpop.f32.mrf.mxu0
    %v2641 = vadd.f32 0.0, %v2640
    %v2642 = vpop.f32.mrf.mxu0
    %v2643 = vadd.f32 0.0, %v2642
    %2644 = vmatmul.bf16.gmra.mxu0 %v130
    %v2645 = vpop.f32.mrf.mxu0
    %v2646 = vadd.f32 0.0, %v2645
    %v2647 = vpop.f32.mrf.mxu0
    %v2648 = vadd.f32 0.0, %v2647
    %2649 = vdwg.mxu0
    %2650 = vmatpush.bf16.msra.mxu0 %v1544
    %2651 = vmatpush.bf16.msra.mxu0 %v1529
    %2652 = vmatpush.bf16.msra.mxu0 %v1514
    %2653 = vmatpush.bf16.msra.mxu0 %v1499
    %2654 = vmatpush.bf16.msra.mxu0 %v1484
    %2655 = vmatpush.bf16.msra.mxu0 %v1469
    %2656 = vmatpush.bf16.msra.mxu0 %v1454
    %2657 = vmatpush.bf16.msra.mxu0 %v1439
    %2658 = vmatmul.bf16.gmra.mxu0 %v122
    %v2659 = vpop.f32.mrf.mxu0
    %v2660 = vadd.f32 %v2631, %v2659
    %v2661 = vpop.f32.mrf.mxu0
    %v2662 = vadd.f32 %v2633, %v2661
    %2663 = vmatmul.bf16.gmra.mxu0 %v125
    %v2664 = vpop.f32.mrf.mxu0
    %v2665 = vadd.f32 %v2636, %v2664
    %v2666 = vpop.f32.mrf.mxu0
    %v2667 = vadd.f32 %v2638, %v2666
    %2668 = vmatmul.bf16.gmra.mxu0 %v128
    %v2669 = vpop.f32.mrf.mxu0
    %v2670 = vadd.f32 %v2641, %v2669
    %v2671 = vpop.f32.mrf.mxu0
    %v2672 = vadd.f32 %v2643, %v2671
    %2673 = vmatmul.bf16.gmra.mxu0 %v131
    %v2674 = vpop.f32.mrf.mxu0
    %v2675 = vadd.f32 %v2646, %v2674
    %v2676 = vpop.f32.mrf.mxu0
    %v2677 = vadd.f32 %v2648, %v2676
    %2678 = vdwg.mxu0
    %2679 = vmatpush.bf16.msra.mxu0 0
    %2680 = vmatpush.bf16.msra.mxu0 0
    %2681 = vmatpush.bf16.msra.mxu0 0
    %2682 = vmatpush.bf16.msra.mxu0 0
    %2683 = vmatpush.bf16.msra.mxu0 0
    %2684 = vmatpush.bf16.msra.mxu0 %v1905
    %2685 = vmatpush.bf16.msra.mxu0 %v1574
    %2686 = vmatpush.bf16.msra.mxu0 %v1559
    %2687 = vmatmul.bf16.gmra.mxu0 %v1868
    %v2688 = vpop.f32.mrf.mxu0
    %v2689 = vadd.f32 %v2660, %v2688
    %v2690 = vpop.f32.mrf.mxu0
    %v2691 = vadd.f32 %v2662, %v2690
    %2692 = vmatmul.bf16.gmra.mxu0 %v1871
    %v2693 = vpop.f32.mrf.mxu0
    %v2694 = vadd.f32 %v2665, %v2693
    %v2695 = vpop.f32.mrf.mxu0
    %v2696 = vadd.f32 %v2667, %v2695
    %2697 = vmatmul.bf16.gmra.mxu0 %v1874
    %v2698 = vpop.f32.mrf.mxu0
    %v2699 = vadd.f32 %v2670, %v2698
    %v2700 = vpop.f32.mrf.mxu0
    %v2701 = vadd.f32 %v2672, %v2700
    %2702 = vmatmul.bf16.gmra.mxu0 %v1877
    %v2703 = vpop.f32.mrf.mxu0
    %v2704 = vadd.f32 %v2675, %v2703
    %v2705 = vpop.f32.mrf.mxu0
    %v2706 = vadd.f32 %v2677, %v2705
    %2707 = vdwg.mxu0
    %2708 = vmatpush.bf16.msra.mxu0 %v1425
    %2709 = vmatpush.bf16.msra.mxu0 %v1410
    %2710 = vmatpush.bf16.msra.mxu0 %v1395
    %2711 = vmatpush.bf16.msra.mxu0 %v1380
    %2712 = vmatpush.bf16.msra.mxu0 %v1365
    %2713 = vmatpush.bf16.msra.mxu0 %v1350
    %2714 = vmatpush.bf16.msra.mxu0 %v1335
    %2715 = vmatpush.bf16.msra.mxu0 %v1320
    %2716 = vmatmul.bf16.gmra.mxu0 %v121
    %v2717 = vpop.f32.mrf.mxu0
    %v2718 = vadd.f32 0.0, %v2717
    %v2719 = vpop.f32.mrf.mxu0
    %v2720 = vadd.f32 0.0, %v2719
    %2721 = vmatmul.bf16.gmra.mxu0 %v124
    %v2722 = vpop.f32.mrf.mxu0
    %v2723 = vadd.f32 0.0, %v2722
    %v2724 = vpop.f32.mrf.mxu0
    %v2725 = vadd.f32 0.0, %v2724
    %2726 = vmatmul.bf16.gmra.mxu0 %v127
    %v2727 = vpop.f32.mrf.mxu0
    %v2728 = vadd.f32 0.0, %v2727
    %v2729 = vpop.f32.mrf.mxu0
    %v2730 = vadd.f32 0.0, %v2729
    %2731 = vmatmul.bf16.gmra.mxu0 %v130
    %v2732 = vpop.f32.mrf.mxu0
    %v2733 = vadd.f32 0.0, %v2732
    %v2734 = vpop.f32.mrf.mxu0
    %v2735 = vadd.f32 0.0, %v2734
    %2736 = vdwg.mxu0
    %2737 = vmatpush.bf16.msra.mxu0 %v1545
    %2738 = vmatpush.bf16.msra.mxu0 %v1530
    %2739 = vmatpush.bf16.msra.mxu0 %v1515
    %2740 = vmatpush.bf16.msra.mxu0 %v1500
    %2741 = vmatpush.bf16.msra.mxu0 %v1485
    %2742 = vmatpush.bf16.msra.mxu0 %v1470
    %2743 = vmatpush.bf16.msra.mxu0 %v1455
    %2744 = vmatpush.bf16.msra.mxu0 %v1440
    %2745 = vmatmul.bf16.gmra.mxu0 %v122
    %v2746 = vpop.f32.mrf.mxu0
    %v2747 = vadd.f32 %v2718, %v2746
    %v2748 = vpop.f32.mrf.mxu0
    %v2749 = vadd.f32 %v2720, %v2748
    %2750 = vmatmul.bf16.gmra.mxu0 %v125
    %v2751 = vpop.f32.mrf.mxu0
    %v2752 = vadd.f32 %v2723, %v2751
    %v2753 = vpop.f32.mrf.mxu0
    %v2754 = vadd.f32 %v2725, %v2753
    %2755 = vmatmul.bf16.gmra.mxu0 %v128
    %v2756 = vpop.f32.mrf.mxu0
    %v2757 = vadd.f32 %v2728, %v2756
    %v2758 = vpop.f32.mrf.mxu0
    %v2759 = vadd.f32 %v2730, %v2758
    %2760 = vmatmul.bf16.gmra.mxu0 %v131
    %v2761 = vpop.f32.mrf.mxu0
    %v2762 = vadd.f32 %v2733, %v2761
    %v2763 = vpop.f32.mrf.mxu0
    %v2764 = vadd.f32 %v2735, %v2763
    %2765 = vdwg.mxu0
    %2766 = vmatpush.bf16.msra.mxu0 0
    %2767 = vmatpush.bf16.msra.mxu0 0
    %2768 = vmatpush.bf16.msra.mxu0 0
    %2769 = vmatpush.bf16.msra.mxu0 0
    %2770 = vmatpush.bf16.msra.mxu0 0
    %2771 = vmatpush.bf16.msra.mxu0 %v1908
    %2772 = vmatpush.bf16.msra.mxu0 %v1575
    %2773 = vmatpush.bf16.msra.mxu0 %v1560
    %2774 = vmatmul.bf16.gmra.mxu0 %v1868
    %v2775 = vpop.f32.mrf.mxu0
    %v2776 = vadd.f32 %v2747, %v2775
    %v2777 = vpop.f32.mrf.mxu0
    %v2778 = vadd.f32 %v2749, %v2777
    %2779 = vmatmul.bf16.gmra.mxu0 %v1871
    %v2780 = vpop.f32.mrf.mxu0
    %v2781 = vadd.f32 %v2752, %v2780
    %v2782 = vpop.f32.mrf.mxu0
    %v2783 = vadd.f32 %v2754, %v2782
    %2784 = vmatmul.bf16.gmra.mxu0 %v1874
    %v2785 = vpop.f32.mrf.mxu0
    %v2786 = vadd.f32 %v2757, %v2785
    %v2787 = vpop.f32.mrf.mxu0
    %v2788 = vadd.f32 %v2759, %v2787
    %2789 = vmatmul.bf16.gmra.mxu0 %v1877
    %v2790 = vpop.f32.mrf.mxu0
    %v2791 = vadd.f32 %v2762, %v2790
    %v2792 = vpop.f32.mrf.mxu0
    %v2793 = vadd.f32 %v2764, %v2792
    %2794 = vdwg.mxu0
    %2795 = vmatpush.bf16.msra.mxu0 %v1426
    %2796 = vmatpush.bf16.msra.mxu0 %v1411
    %2797 = vmatpush.bf16.msra.mxu0 %v1396
    %2798 = vmatpush.bf16.msra.mxu0 %v1381
    %2799 = vmatpush.bf16.msra.mxu0 %v1366
    %2800 = vmatpush.bf16.msra.mxu0 %v1351
    %2801 = vmatpush.bf16.msra.mxu0 %v1336
    %2802 = vmatpush.bf16.msra.mxu0 %v1321
    %2803 = vmatmul.bf16.gmra.mxu0 %v121
    %v2804 = vpop.f32.mrf.mxu0
    %v2805 = vadd.f32 0.0, %v2804
    %v2806 = vpop.f32.mrf.mxu0
    %v2807 = vadd.f32 0.0, %v2806
    %2808 = vmatmul.bf16.gmra.mxu0 %v124
    %v2809 = vpop.f32.mrf.mxu0
    %v2810 = vadd.f32 0.0, %v2809
    %v2811 = vpop.f32.mrf.mxu0
    %v2812 = vadd.f32 0.0, %v2811
    %2813 = vmatmul.bf16.gmra.mxu0 %v127
    %v2814 = vpop.f32.mrf.mxu0
    %v2815 = vadd.f32 0.0, %v2814
    %v2816 = vpop.f32.mrf.mxu0
    %v2817 = vadd.f32 0.0, %v2816
    %2818 = vmatmul.bf16.gmra.mxu0 %v130
    %v2819 = vpop.f32.mrf.mxu0
    %v2820 = vadd.f32 0.0, %v2819
    %v2821 = vpop.f32.mrf.mxu0
    %v2822 = vadd.f32 0.0, %v2821
    %2823 = vdwg.mxu0
    %2824 = vmatpush.bf16.msra.mxu0 %v1546
    %2825 = vmatpush.bf16.msra.mxu0 %v1531
    %2826 = vmatpush.bf16.msra.mxu0 %v1516
    %2827 = vmatpush.bf16.msra.mxu0 %v1501
    %2828 = vmatpush.bf16.msra.mxu0 %v1486
    %2829 = vmatpush.bf16.msra.mxu0 %v1471
    %2830 = vmatpush.bf16.msra.mxu0 %v1456
    %2831 = vmatpush.bf16.msra.mxu0 %v1441
    %2832 = vmatmul.bf16.gmra.mxu0 %v122
    %v2833 = vpop.f32.mrf.mxu0
    %v2834 = vadd.f32 %v2805, %v2833
    %v2835 = vpop.f32.mrf.mxu0
    %v2836 = vadd.f32 %v2807, %v2835
    %2837 = vmatmul.bf16.gmra.mxu0 %v125
    %v2838 = vpop.f32.mrf.mxu0
    %v2839 = vadd.f32 %v2810, %v2838
    %v2840 = vpop.f32.mrf.mxu0
    %v2841 = vadd.f32 %v2812, %v2840
    %2842 = vmatmul.bf16.gmra.mxu0 %v128
    %v2843 = vpop.f32.mrf.mxu0
    %v2844 = vadd.f32 %v2815, %v2843
    %v2845 = vpop.f32.mrf.mxu0
    %v2846 = vadd.f32 %v2817, %v2845
    %2847 = vmatmul.bf16.gmra.mxu0 %v131
    %v2848 = vpop.f32.mrf.mxu0
    %v2849 = vadd.f32 %v2820, %v2848
    %v2850 = vpop.f32.mrf.mxu0
    %v2851 = vadd.f32 %v2822, %v2850
    %2852 = vdwg.mxu0
    %2853 = vmatpush.bf16.msra.mxu0 0
    %2854 = vmatpush.bf16.msra.mxu0 0
    %2855 = vmatpush.bf16.msra.mxu0 0
    %2856 = vmatpush.bf16.msra.mxu0 0
    %2857 = vmatpush.bf16.msra.mxu0 0
    %2858 = vmatpush.bf16.msra.mxu0 %v1911
    %2859 = vmatpush.bf16.msra.mxu0 %v1576
    %2860 = vmatpush.bf16.msra.mxu0 %v1561
    %2861 = vmatmul.bf16.gmra.mxu0 %v1868
    %v2862 = vpop.f32.mrf.mxu0
    %v2863 = vadd.f32 %v2834, %v2862
    %v2864 = vpop.f32.mrf.mxu0
    %v2865 = vadd.f32 %v2836, %v2864
    %2866 = vmatmul.bf16.gmra.mxu0 %v1871
    %v2867 = vpop.f32.mrf.mxu0
    %v2868 = vadd.f32 %v2839, %v2867
    %v2869 = vpop.f32.mrf.mxu0
    %v2870 = vadd.f32 %v2841, %v2869
    %2871 = vmatmul.bf16.gmra.mxu0 %v1874
    %v2872 = vpop.f32.mrf.mxu0
    %v2873 = vadd.f32 %v2844, %v2872
    %v2874 = vpop.f32.mrf.mxu0
    %v2875 = vadd.f32 %v2846, %v2874
    %2876 = vmatmul.bf16.gmra.mxu0 %v1877
    %v2877 = vpop.f32.mrf.mxu0
    %v2878 = vadd.f32 %v2849, %v2877
    %v2879 = vpop.f32.mrf.mxu0
    %v2880 = vadd.f32 %v2851, %v2879
    %2881 = vdwg.mxu0
    %2882 = vmatpush.bf16.msra.mxu0 %v1427
    %2883 = vmatpush.bf16.msra.mxu0 %v1412
    %2884 = vmatpush.bf16.msra.mxu0 %v1397
    %2885 = vmatpush.bf16.msra.mxu0 %v1382
    %2886 = vmatpush.bf16.msra.mxu0 %v1367
    %2887 = vmatpush.bf16.msra.mxu0 %v1352
    %2888 = vmatpush.bf16.msra.mxu0 %v1337
    %2889 = vmatpush.bf16.msra.mxu0 %v1322
    %2890 = vmatmul.bf16.gmra.mxu0 %v121
    %v2891 = vpop.f32.mrf.mxu0
    %v2892 = vadd.f32 0.0, %v2891
    %v2893 = vpop.f32.mrf.mxu0
    %v2894 = vadd.f32 0.0, %v2893
    %2895 = vmatmul.bf16.gmra.mxu0 %v124
    %v2896 = vpop.f32.mrf.mxu0
    %v2897 = vadd.f32 0.0, %v2896
    %v2898 = vpop.f32.mrf.mxu0
    %v2899 = vadd.f32 0.0, %v2898
    %2900 = vmatmul.bf16.gmra.mxu0 %v127
    %v2901 = vpop.f32.mrf.mxu0
    %v2902 = vadd.f32 0.0, %v2901
    %v2903 = vpop.f32.mrf.mxu0
    %v2904 = vadd.f32 0.0, %v2903
    %2905 = vmatmul.bf16.gmra.mxu0 %v130
    %v2906 = vpop.f32.mrf.mxu0
    %v2907 = vadd.f32 0.0, %v2906
    %v2908 = vpop.f32.mrf.mxu0
    %v2909 = vadd.f32 0.0, %v2908
    %2910 = vdwg.mxu0
    %2911 = vmatpush.bf16.msra.mxu0 %v1547
    %2912 = vmatpush.bf16.msra.mxu0 %v1532
    %2913 = vmatpush.bf16.msra.mxu0 %v1517
    %2914 = vmatpush.bf16.msra.mxu0 %v1502
    %2915 = vmatpush.bf16.msra.mxu0 %v1487
    %2916 = vmatpush.bf16.msra.mxu0 %v1472
    %2917 = vmatpush.bf16.msra.mxu0 %v1457
    %2918 = vmatpush.bf16.msra.mxu0 %v1442
    %2919 = vmatmul.bf16.gmra.mxu0 %v122
    %v2920 = vpop.f32.mrf.mxu0
    %v2921 = vadd.f32 %v2892, %v2920
    %v2922 = vpop.f32.mrf.mxu0
    %v2923 = vadd.f32 %v2894, %v2922
    %2924 = vmatmul.bf16.gmra.mxu0 %v125
    %v2925 = vpop.f32.mrf.mxu0
    %v2926 = vadd.f32 %v2897, %v2925
    %v2927 = vpop.f32.mrf.mxu0
    %v2928 = vadd.f32 %v2899, %v2927
    %2929 = vmatmul.bf16.gmra.mxu0 %v128
    %v2930 = vpop.f32.mrf.mxu0
    %v2931 = vadd.f32 %v2902, %v2930
    %v2932 = vpop.f32.mrf.mxu0
    %v2933 = vadd.f32 %v2904, %v2932
    %2934 = vmatmul.bf16.gmra.mxu0 %v131
    %v2935 = vpop.f32.mrf.mxu0
    %v2936 = vadd.f32 %v2907, %v2935
    %v2937 = vpop.f32.mrf.mxu0
    %v2938 = vadd.f32 %v2909, %v2937
    %2939 = vdwg.mxu0
    %2940 = vmatpush.bf16.msra.mxu0 0
    %2941 = vmatpush.bf16.msra.mxu0 0
    %2942 = vmatpush.bf16.msra.mxu0 0
    %2943 = vmatpush.bf16.msra.mxu0 0
    %2944 = vmatpush.bf16.msra.mxu0 0
    %2945 = vmatpush.bf16.msra.mxu0 %v1914
    %2946 = vmatpush.bf16.msra.mxu0 %v1577
    %2947 = vmatpush.bf16.msra.mxu0 %v1562
    %2948 = vmatmul.bf16.gmra.mxu0 %v1868
    %v2949 = vpop.f32.mrf.mxu0
    %v2950 = vadd.f32 %v2921, %v2949
    %v2951 = vpop.f32.mrf.mxu0
    %v2952 = vadd.f32 %v2923, %v2951
    %2953 = vmatmul.bf16.gmra.mxu0 %v1871
    %v2954 = vpop.f32.mrf.mxu0
    %v2955 = vadd.f32 %v2926, %v2954
    %v2956 = vpop.f32.mrf.mxu0
    %v2957 = vadd.f32 %v2928, %v2956
    %2958 = vmatmul.bf16.gmra.mxu0 %v1874
    %v2959 = vpop.f32.mrf.mxu0
    %v2960 = vadd.f32 %v2931, %v2959
    %v2961 = vpop.f32.mrf.mxu0
    %v2962 = vadd.f32 %v2933, %v2961
    %2963 = vmatmul.bf16.gmra.mxu0 %v1877
    %v2964 = vpop.f32.mrf.mxu0
    %v2965 = vadd.f32 %v2936, %v2964
    %v2966 = vpop.f32.mrf.mxu0
    %v2967 = vadd.f32 %v2938, %v2966
    %2968 = vdwg.mxu0
    %2969 = vmatpush.bf16.msra.mxu0 %v1428
    %2970 = vmatpush.bf16.msra.mxu0 %v1413
    %2971 = vmatpush.bf16.msra.mxu0 %v1398
    %2972 = vmatpush.bf16.msra.mxu0 %v1383
    %2973 = vmatpush.bf16.msra.mxu0 %v1368
    %2974 = vmatpush.bf16.msra.mxu0 %v1353
    %2975 = vmatpush.bf16.msra.mxu0 %v1338
    %2976 = vmatpush.bf16.msra.mxu0 %v1323
    %2977 = vmatmul.bf16.gmra.mxu0 %v121
    %v2978 = vpop.f32.mrf.mxu0
    %v2979 = vadd.f32 0.0, %v2978
    %v2980 = vpop.f32.mrf.mxu0
    %v2981 = vadd.f32 0.0, %v2980
    %2982 = vmatmul.bf16.gmra.mxu0 %v124
    %v2983 = vpop.f32.mrf.mxu0
    %v2984 = vadd.f32 0.0, %v2983
    %v2985 = vpop.f32.mrf.mxu0
    %v2986 = vadd.f32 0.0, %v2985
    %2987 = vmatmul.bf16.gmra.mxu0 %v127
    %v2988 = vpop.f32.mrf.mxu0
    %v2989 = vadd.f32 0.0, %v2988
    %v2990 = vpop.f32.mrf.mxu0
    %v2991 = vadd.f32 0.0, %v2990
    %2992 = vmatmul.bf16.gmra.mxu0 %v130
    %v2993 = vpop.f32.mrf.mxu0
    %v2994 = vadd.f32 0.0, %v2993
    %v2995 = vpop.f32.mrf.mxu0
    %v2996 = vadd.f32 0.0, %v2995
    %2997 = vdwg.mxu0
    %2998 = vmatpush.bf16.msra.mxu0 %v1548
    %2999 = vmatpush.bf16.msra.mxu0 %v1533
    %3000 = vmatpush.bf16.msra.mxu0 %v1518
    %3001 = vmatpush.bf16.msra.mxu0 %v1503
    %3002 = vmatpush.bf16.msra.mxu0 %v1488
    %3003 = vmatpush.bf16.msra.mxu0 %v1473
    %3004 = vmatpush.bf16.msra.mxu0 %v1458
    %3005 = vmatpush.bf16.msra.mxu0 %v1443
    %3006 = vmatmul.bf16.gmra.mxu0 %v122
    %v3007 = vpop.f32.mrf.mxu0
    %v3008 = vadd.f32 %v2979, %v3007
    %v3009 = vpop.f32.mrf.mxu0
    %v3010 = vadd.f32 %v2981, %v3009
    %3011 = vmatmul.bf16.gmra.mxu0 %v125
    %v3012 = vpop.f32.mrf.mxu0
    %v3013 = vadd.f32 %v2984, %v3012
    %v3014 = vpop.f32.mrf.mxu0
    %v3015 = vadd.f32 %v2986, %v3014
    %3016 = vmatmul.bf16.gmra.mxu0 %v128
    %v3017 = vpop.f32.mrf.mxu0
    %v3018 = vadd.f32 %v2989, %v3017
    %v3019 = vpop.f32.mrf.mxu0
    %v3020 = vadd.f32 %v2991, %v3019
    %3021 = vmatmul.bf16.gmra.mxu0 %v131
    %v3022 = vpop.f32.mrf.mxu0
    %v3023 = vadd.f32 %v2994, %v3022
    %v3024 = vpop.f32.mrf.mxu0
    %v3025 = vadd.f32 %v2996, %v3024
    %3026 = vdwg.mxu0
    %3027 = vmatpush.bf16.msra.mxu0 0
    %3028 = vmatpush.bf16.msra.mxu0 0
    %3029 = vmatpush.bf16.msra.mxu0 0
    %3030 = vmatpush.bf16.msra.mxu0 0
    %3031 = vmatpush.bf16.msra.mxu0 0
    %3032 = vmatpush.bf16.msra.mxu0 %v1917
    %3033 = vmatpush.bf16.msra.mxu0 %v1578
    %3034 = vmatpush.bf16.msra.mxu0 %v1563
    %3035 = vmatmul.bf16.gmra.mxu0 %v1868
    %v3036 = vpop.f32.mrf.mxu0
    %v3037 = vadd.f32 %v3008, %v3036
    %v3038 = vpop.f32.mrf.mxu0
    %v3039 = vadd.f32 %v3010, %v3038
    %3040 = vmatmul.bf16.gmra.mxu0 %v1871
    %v3041 = vpop.f32.mrf.mxu0
    %v3042 = vadd.f32 %v3013, %v3041
    %v3043 = vpop.f32.mrf.mxu0
    %v3044 = vadd.f32 %v3015, %v3043
    %3045 = vmatmul.bf16.gmra.mxu0 %v1874
    %v3046 = vpop.f32.mrf.mxu0
    %v3047 = vadd.f32 %v3018, %v3046
    %v3048 = vpop.f32.mrf.mxu0
    %v3049 = vadd.f32 %v3020, %v3048
    %3050 = vmatmul.bf16.gmra.mxu0 %v1877
    %v3051 = vpop.f32.mrf.mxu0
    %v3052 = vadd.f32 %v3023, %v3051
    %v3053 = vpop.f32.mrf.mxu0
    %v3054 = vadd.f32 %v3025, %v3053
    %3055 = vdwg.mxu0
    %3056 = vmatpush.bf16.msra.mxu0 %v1429
    %3057 = vmatpush.bf16.msra.mxu0 %v1414
    %3058 = vmatpush.bf16.msra.mxu0 %v1399
    %3059 = vmatpush.bf16.msra.mxu0 %v1384
    %3060 = vmatpush.bf16.msra.mxu0 %v1369
    %3061 = vmatpush.bf16.msra.mxu0 %v1354
    %3062 = vmatpush.bf16.msra.mxu0 %v1339
    %3063 = vmatpush.bf16.msra.mxu0 %v1324
    %3064 = vmatmul.bf16.gmra.mxu0 %v121
    %v3065 = vpop.f32.mrf.mxu0
    %v3066 = vadd.f32 0.0, %v3065
    %v3067 = vpop.f32.mrf.mxu0
    %v3068 = vadd.f32 0.0, %v3067
    %3069 = vmatmul.bf16.gmra.mxu0 %v124
    %v3070 = vpop.f32.mrf.mxu0
    %v3071 = vadd.f32 0.0, %v3070
    %v3072 = vpop.f32.mrf.mxu0
    %v3073 = vadd.f32 0.0, %v3072
    %3074 = vmatmul.bf16.gmra.mxu0 %v127
    %v3075 = vpop.f32.mrf.mxu0
    %v3076 = vadd.f32 0.0, %v3075
    %v3077 = vpop.f32.mrf.mxu0
    %v3078 = vadd.f32 0.0, %v3077
    %3079 = vmatmul.bf16.gmra.mxu0 %v130
    %v3080 = vpop.f32.mrf.mxu0
    %v3081 = vadd.f32 0.0, %v3080
    %v3082 = vpop.f32.mrf.mxu0
    %v3083 = vadd.f32 0.0, %v3082
    %3084 = vdwg.mxu0
    %3085 = vmatpush.bf16.msra.mxu0 %v1549
    %3086 = vmatpush.bf16.msra.mxu0 %v1534
    %3087 = vmatpush.bf16.msra.mxu0 %v1519
    %3088 = vmatpush.bf16.msra.mxu0 %v1504
    %3089 = vmatpush.bf16.msra.mxu0 %v1489
    %3090 = vmatpush.bf16.msra.mxu0 %v1474
    %3091 = vmatpush.bf16.msra.mxu0 %v1459
    %3092 = vmatpush.bf16.msra.mxu0 %v1444
    %3093 = vmatmul.bf16.gmra.mxu0 %v122
    %v3094 = vpop.f32.mrf.mxu0
    %v3095 = vadd.f32 %v3066, %v3094
    %v3096 = vpop.f32.mrf.mxu0
    %v3097 = vadd.f32 %v3068, %v3096
    %3098 = vmatmul.bf16.gmra.mxu0 %v125
    %v3099 = vpop.f32.mrf.mxu0
    %v3100 = vadd.f32 %v3071, %v3099
    %v3101 = vpop.f32.mrf.mxu0
    %v3102 = vadd.f32 %v3073, %v3101
    %3103 = vmatmul.bf16.gmra.mxu0 %v128
    %v3104 = vpop.f32.mrf.mxu0
    %v3105 = vadd.f32 %v3076, %v3104
    %v3106 = vpop.f32.mrf.mxu0
    %v3107 = vadd.f32 %v3078, %v3106
    %3108 = vmatmul.bf16.gmra.mxu0 %v131
    %v3109 = vpop.f32.mrf.mxu0
    %v3110 = vadd.f32 %v3081, %v3109
    %v3111 = vpop.f32.mrf.mxu0
    %v3112 = vadd.f32 %v3083, %v3111
    %3113 = vdwg.mxu0
    %3114 = vmatpush.bf16.msra.mxu0 0
    %3115 = vmatpush.bf16.msra.mxu0 0
    %3116 = vmatpush.bf16.msra.mxu0 0
    %3117 = vmatpush.bf16.msra.mxu0 0
    %3118 = vmatpush.bf16.msra.mxu0 0
    %3119 = vmatpush.bf16.msra.mxu0 %v1920
    %3120 = vmatpush.bf16.msra.mxu0 %v1579
    %3121 = vmatpush.bf16.msra.mxu0 %v1564
    %3122 = vmatmul.bf16.gmra.mxu0 %v1868
    %v3123 = vpop.f32.mrf.mxu0
    %v3124 = vadd.f32 %v3095, %v3123
    %v3125 = vpop.f32.mrf.mxu0
    %v3126 = vadd.f32 %v3097, %v3125
    %3127 = vmatmul.bf16.gmra.mxu0 %v1871
    %v3128 = vpop.f32.mrf.mxu0
    %v3129 = vadd.f32 %v3100, %v3128
    %v3130 = vpop.f32.mrf.mxu0
    %v3131 = vadd.f32 %v3102, %v3130
    %3132 = vmatmul.bf16.gmra.mxu0 %v1874
    %v3133 = vpop.f32.mrf.mxu0
    %v3134 = vadd.f32 %v3105, %v3133
    %v3135 = vpop.f32.mrf.mxu0
    %v3136 = vadd.f32 %v3107, %v3135
    %3137 = vmatmul.bf16.gmra.mxu0 %v1877
    %v3138 = vpop.f32.mrf.mxu0
    %v3139 = vadd.f32 %v3110, %v3138
    %v3140 = vpop.f32.mrf.mxu0
    %v3141 = vadd.f32 %v3112, %v3140
    %3142 = vdwg.mxu0
    %3143 = vmatpush.bf16.msra.mxu0 %v1430
    %3144 = vmatpush.bf16.msra.mxu0 %v1415
    %3145 = vmatpush.bf16.msra.mxu0 %v1400
    %3146 = vmatpush.bf16.msra.mxu0 %v1385
    %3147 = vmatpush.bf16.msra.mxu0 %v1370
    %3148 = vmatpush.bf16.msra.mxu0 %v1355
    %3149 = vmatpush.bf16.msra.mxu0 %v1340
    %3150 = vmatpush.bf16.msra.mxu0 %v1325
    %3151 = vmatmul.bf16.gmra.mxu0 %v121
    %v3152 = vpop.f32.mrf.mxu0
    %v3153 = vadd.f32 0.0, %v3152
    %v3154 = vpop.f32.mrf.mxu0
    %v3155 = vadd.f32 0.0, %v3154
    %3156 = vmatmul.bf16.gmra.mxu0 %v124
    %v3157 = vpop.f32.mrf.mxu0
    %v3158 = vadd.f32 0.0, %v3157
    %v3159 = vpop.f32.mrf.mxu0
    %v3160 = vadd.f32 0.0, %v3159
    %3161 = vmatmul.bf16.gmra.mxu0 %v127
    %v3162 = vpop.f32.mrf.mxu0
    %v3163 = vadd.f32 0.0, %v3162
    %v3164 = vpop.f32.mrf.mxu0
    %v3165 = vadd.f32 0.0, %v3164
    %3166 = vmatmul.bf16.gmra.mxu0 %v130
    %v3167 = vpop.f32.mrf.mxu0
    %v3168 = vadd.f32 0.0, %v3167
    %v3169 = vpop.f32.mrf.mxu0
    %v3170 = vadd.f32 0.0, %v3169
    %3171 = vdwg.mxu0
    %3172 = vmatpush.bf16.msra.mxu0 %v1550
    %3173 = vmatpush.bf16.msra.mxu0 %v1535
    %3174 = vmatpush.bf16.msra.mxu0 %v1520
    %3175 = vmatpush.bf16.msra.mxu0 %v1505
    %3176 = vmatpush.bf16.msra.mxu0 %v1490
    %3177 = vmatpush.bf16.msra.mxu0 %v1475
    %3178 = vmatpush.bf16.msra.mxu0 %v1460
    %3179 = vmatpush.bf16.msra.mxu0 %v1445
    %3180 = vmatmul.bf16.gmra.mxu0 %v122
    %v3181 = vpop.f32.mrf.mxu0
    %v3182 = vadd.f32 %v3153, %v3181
    %v3183 = vpop.f32.mrf.mxu0
    %v3184 = vadd.f32 %v3155, %v3183
    %3185 = vmatmul.bf16.gmra.mxu0 %v125
    %v3186 = vpop.f32.mrf.mxu0
    %v3187 = vadd.f32 %v3158, %v3186
    %v3188 = vpop.f32.mrf.mxu0
    %v3189 = vadd.f32 %v3160, %v3188
    %3190 = vmatmul.bf16.gmra.mxu0 %v128
    %v3191 = vpop.f32.mrf.mxu0
    %v3192 = vadd.f32 %v3163, %v3191
    %v3193 = vpop.f32.mrf.mxu0
    %v3194 = vadd.f32 %v3165, %v3193
    %3195 = vmatmul.bf16.gmra.mxu0 %v131
    %v3196 = vpop.f32.mrf.mxu0
    %v3197 = vadd.f32 %v3168, %v3196
    %v3198 = vpop.f32.mrf.mxu0
    %v3199 = vadd.f32 %v3170, %v3198
    %3200 = vdwg.mxu0
    %3201 = vmatpush.bf16.msra.mxu0 0
    %3202 = vmatpush.bf16.msra.mxu0 0
    %3203 = vmatpush.bf16.msra.mxu0 0
    %3204 = vmatpush.bf16.msra.mxu0 0
    %3205 = vmatpush.bf16.msra.mxu0 0
    %3206 = vmatpush.bf16.msra.mxu0 %v1923
    %3207 = vmatpush.bf16.msra.mxu0 %v1580
    %3208 = vmatpush.bf16.msra.mxu0 %v1565
    %3209 = vmatmul.bf16.gmra.mxu0 %v1868
    %v3210 = vpop.f32.mrf.mxu0
    %v3211 = vadd.f32 %v3182, %v3210
    %v3212 = vpop.f32.mrf.mxu0
    %v3213 = vadd.f32 %v3184, %v3212
    %3214 = vmatmul.bf16.gmra.mxu0 %v1871
    %v3215 = vpop.f32.mrf.mxu0
    %v3216 = vadd.f32 %v3187, %v3215
    %v3217 = vpop.f32.mrf.mxu0
    %v3218 = vadd.f32 %v3189, %v3217
    %3219 = vmatmul.bf16.gmra.mxu0 %v1874
    %v3220 = vpop.f32.mrf.mxu0
    %v3221 = vadd.f32 %v3192, %v3220
    %v3222 = vpop.f32.mrf.mxu0
    %v3223 = vadd.f32 %v3194, %v3222
    %3224 = vmatmul.bf16.gmra.mxu0 %v1877
    %v3225 = vpop.f32.mrf.mxu0
    %v3226 = vadd.f32 %v3197, %v3225
    %v3227 = vpop.f32.mrf.mxu0
    %v3228 = vadd.f32 %v3199, %v3227
    %3229 = vdwg.mxu0
    %v3230 = vpack.c.bf16 %v1993, %v1993
    %v3231 = vpack.c.bf16 %v1995, %v1995
    %v3232 = vpack.c.bf16 %v1998, %v1998
    %v3233 = vpack.c.bf16 %v2000, %v2000
    %v3234 = vpack.c.bf16 %v2003, %v2003
    %v3235 = vpack.c.bf16 %v2005, %v2005
    %v3236 = vpack.c.bf16 %v2008, %v2008
    %v3237 = vpack.c.bf16 %v2010, %v2010
    %v3238 = vpack.c.bf16 %v2428, %v2428
    %v3239 = vpack.c.bf16 %v2430, %v2430
    %v3240 = vpack.c.bf16 %v2433, %v2433
    %v3241 = vpack.c.bf16 %v2435, %v2435
    %v3242 = vpack.c.bf16 %v2438, %v2438
    %v3243 = vpack.c.bf16 %v2440, %v2440
    %v3244 = vpack.c.bf16 %v2443, %v2443
    %v3245 = vpack.c.bf16 %v2445, %v2445
    %v3246 = vpack.c.bf16 %v2863, %v2863
    %v3247 = vpack.c.bf16 %v2865, %v2865
    %v3248 = vpack.c.bf16 %v2868, %v2868
    %v3249 = vpack.c.bf16 %v2870, %v2870
    %v3250 = vpack.c.bf16 %v2873, %v2873
    %v3251 = vpack.c.bf16 %v2875, %v2875
    %v3252 = vpack.c.bf16 %v2878, %v2878
    %v3253 = vpack.c.bf16 %v2880, %v2880
    %3254 = vmatpush.bf16.xpose.msra.mxu0 0
    %3255 = vmatpush.bf16.xpose.msra.mxu0 0
    %3256 = vmatpush.bf16.xpose.msra.mxu0 0
    %3257 = vmatpush.bf16.xpose.msra.mxu0 0
    %3258 = vmatpush.bf16.xpose.msra.mxu0 0
    %3259 = vmatpush.bf16.xpose.msra.mxu0 0
    %3260 = vmatpush.bf16.xpose.msra.mxu0 0
    %3261 = vmatpush.bf16.xpose.msra.mxu0 %v3238
    %3262 = vmatmul.bf16.gmra.mxu0 %v3230
    %v3263 = vpop.f32.mrf.mxu0
    %v3264 = vadd.f32 0.0, %v3263
    %v3265 = vpop.f32.mrf.mxu0
    %3266 = vdwg.mxu0
    %3267 = vmatpush.bf16.xpose.msra.mxu0 0
    %3268 = vmatpush.bf16.xpose.msra.mxu0 0
    %3269 = vmatpush.bf16.xpose.msra.mxu0 0
    %3270 = vmatpush.bf16.xpose.msra.mxu0 0
    %3271 = vmatpush.bf16.xpose.msra.mxu0 0
    %3272 = vmatpush.bf16.xpose.msra.mxu0 0
    %3273 = vmatpush.bf16.xpose.msra.mxu0 0
    %3274 = vmatpush.bf16.xpose.msra.mxu0 %v3239
    %3275 = vmatmul.bf16.gmra.mxu0 %v3231
    %v3276 = vpop.f32.mrf.mxu0
    %v3277 = vadd.f32 0.0, %v3276
    %v3278 = vpop.f32.mrf.mxu0
    %3279 = vdwg.mxu0
    %3280 = vmatpush.bf16.xpose.msra.mxu0 0
    %3281 = vmatpush.bf16.xpose.msra.mxu0 0
    %3282 = vmatpush.bf16.xpose.msra.mxu0 0
    %3283 = vmatpush.bf16.xpose.msra.mxu0 0
    %3284 = vmatpush.bf16.xpose.msra.mxu0 0
    %3285 = vmatpush.bf16.xpose.msra.mxu0 0
    %3286 = vmatpush.bf16.xpose.msra.mxu0 0
    %3287 = vmatpush.bf16.xpose.msra.mxu0 %v3240
    %3288 = vmatmul.bf16.gmra.mxu0 %v3232
    %v3289 = vpop.f32.mrf.mxu0
    %v3290 = vadd.f32 0.0, %v3289
    %v3291 = vpop.f32.mrf.mxu0
    %3292 = vdwg.mxu0
    %3293 = vmatpush.bf16.xpose.msra.mxu0 0
    %3294 = vmatpush.bf16.xpose.msra.mxu0 0
    %3295 = vmatpush.bf16.xpose.msra.mxu0 0
    %3296 = vmatpush.bf16.xpose.msra.mxu0 0
    %3297 = vmatpush.bf16.xpose.msra.mxu0 0
    %3298 = vmatpush.bf16.xpose.msra.mxu0 0
    %3299 = vmatpush.bf16.xpose.msra.mxu0 0
    %3300 = vmatpush.bf16.xpose.msra.mxu0 %v3241
    %3301 = vmatmul.bf16.gmra.mxu0 %v3233
    %v3302 = vpop.f32.mrf.mxu0
    %v3303 = vadd.f32 0.0, %v3302
    %v3304 = vpop.f32.mrf.mxu0
    %3305 = vdwg.mxu0
    %3306 = vmatpush.bf16.xpose.msra.mxu0 0
    %3307 = vmatpush.bf16.xpose.msra.mxu0 0
    %3308 = vmatpush.bf16.xpose.msra.mxu0 0
    %3309 = vmatpush.bf16.xpose.msra.mxu0 0
    %3310 = vmatpush.bf16.xpose.msra.mxu0 0
    %3311 = vmatpush.bf16.xpose.msra.mxu0 0
    %3312 = vmatpush.bf16.xpose.msra.mxu0 0
    %3313 = vmatpush.bf16.xpose.msra.mxu0 %v3242
    %3314 = vmatmul.bf16.gmra.mxu0 %v3234
    %v3315 = vpop.f32.mrf.mxu0
    %v3316 = vadd.f32 0.0, %v3315
    %v3317 = vpop.f32.mrf.mxu0
    %3318 = vdwg.mxu0
    %3319 = vmatpush.bf16.xpose.msra.mxu0 0
    %3320 = vmatpush.bf16.xpose.msra.mxu0 0
    %3321 = vmatpush.bf16.xpose.msra.mxu0 0
    %3322 = vmatpush.bf16.xpose.msra.mxu0 0
    %3323 = vmatpush.bf16.xpose.msra.mxu0 0
    %3324 = vmatpush.bf16.xpose.msra.mxu0 0
    %3325 = vmatpush.bf16.xpose.msra.mxu0 0
    %3326 = vmatpush.bf16.xpose.msra.mxu0 %v3243
    %3327 = vmatmul.bf16.gmra.mxu0 %v3235
    %v3328 = vpop.f32.mrf.mxu0
    %v3329 = vadd.f32 0.0, %v3328
    %v3330 = vpop.f32.mrf.mxu0
    %3331 = vdwg.mxu0
    %3332 = vmatpush.bf16.xpose.msra.mxu0 0
    %3333 = vmatpush.bf16.xpose.msra.mxu0 0
    %3334 = vmatpush.bf16.xpose.msra.mxu0 0
    %3335 = vmatpush.bf16.xpose.msra.mxu0 0
    %3336 = vmatpush.bf16.xpose.msra.mxu0 0
    %3337 = vmatpush.bf16.xpose.msra.mxu0 0
    %3338 = vmatpush.bf16.xpose.msra.mxu0 0
    %3339 = vmatpush.bf16.xpose.msra.mxu0 %v3244
    %3340 = vmatmul.bf16.gmra.mxu0 %v3236
    %v3341 = vpop.f32.mrf.mxu0
    %v3342 = vadd.f32 0.0, %v3341
    %v3343 = vpop.f32.mrf.mxu0
    %3344 = vdwg.mxu0
    %3345 = vmatpush.bf16.xpose.msra.mxu0 0
    %3346 = vmatpush.bf16.xpose.msra.mxu0 0
    %3347 = vmatpush.bf16.xpose.msra.mxu0 0
    %3348 = vmatpush.bf16.xpose.msra.mxu0 0
    %3349 = vmatpush.bf16.xpose.msra.mxu0 0
    %3350 = vmatpush.bf16.xpose.msra.mxu0 0
    %3351 = vmatpush.bf16.xpose.msra.mxu0 0
    %3352 = vmatpush.bf16.xpose.msra.mxu0 %v3245
    %3353 = vmatmul.bf16.gmra.mxu0 %v3237
    %v3354 = vpop.f32.mrf.mxu0
    %v3355 = vadd.f32 0.0, %v3354
    %v3356 = vpop.f32.mrf.mxu0
    %3357 = vdwg.mxu0
    %v3358 = vmul.f32 %v3264, 0.09128709
    %v3359 = vmul.f32 %v3277, 0.09128709
    %v3360 = vmul.f32 %v3290, 0.09128709
    %v3361 = vmul.f32 %v3303, 0.09128709
    %v3362 = vmul.f32 %v3316, 0.09128709
    %v3363 = vmul.f32 %v3329, 0.09128709
    %v3364 = vmul.f32 %v3342, 0.09128709
    %v3365 = vmul.f32 %v3355, 0.09128709
    %vm3366 = vcmask 64512
    %v3367 = vsel %vm3366, %v3358, -inf
    %3368 = vmax.xlane.f32.xlu0 %v3367
    %v3369 = vpop.xlane.xlu0 %3368
    %v3370 = vsel %vm3366, %v3359, -inf
    %3371 = vmax.xlane.f32.xlu0 %v3370
    %v3372 = vpop.xlane.xlu0 %3371
    %v3373 = vsel %vm3366, %v3360, -inf
    %3374 = vmax.xlane.f32.xlu0 %v3373
    %v3375 = vpop.xlane.xlu0 %3374
    %v3376 = vsel %vm3366, %v3361, -inf
    %3377 = vmax.xlane.f32.xlu0 %v3376
    %v3378 = vpop.xlane.xlu0 %3377
    %v3379 = vsel %vm3366, %v3362, -inf
    %3380 = vmax.xlane.f32.xlu0 %v3379
    %v3381 = vpop.xlane.xlu0 %3380
    %v3382 = vsel %vm3366, %v3363, -inf
    %3383 = vmax.xlane.f32.xlu0 %v3382
    %v3384 = vpop.xlane.xlu0 %3383
    %v3385 = vsel %vm3366, %v3364, -inf
    %3386 = vmax.xlane.f32.xlu0 %v3385
    %v3387 = vpop.xlane.xlu0 %3386
    %v3388 = vsel %vm3366, %v3365, -inf
    %3389 = vmax.xlane.f32.xlu0 %v3388
    %v3390 = vpop.xlane.xlu0 %3389
    %v3391 = vsub.f32 %v3358, %v3369
    %v3392 = vsub.f32 %v3359, %v3372
    %v3393 = vsub.f32 %v3360, %v3375
    %v3394 = vsub.f32 %v3361, %v3378
    %v3395 = vsub.f32 %v3362, %v3381
    %v3396 = vsub.f32 %v3363, %v3384
    %v3397 = vsub.f32 %v3364, %v3387
    %v3398 = vsub.f32 %v3365, %v3390
    %v3399 = vmul.f32 %v3391, 1.442695
    %v3400 = vpow.pop %v3399
    %v3401 = vmul.f32 %v3392, 1.442695
    %v3402 = vpow.pop %v3401
    %v3403 = vmul.f32 %v3393, 1.442695
    %v3404 = vpow.pop %v3403
    %v3405 = vmul.f32 %v3394, 1.442695
    %v3406 = vpow.pop %v3405
    %v3407 = vmul.f32 %v3395, 1.442695
    %v3408 = vpow.pop %v3407
    %v3409 = vmul.f32 %v3396, 1.442695
    %v3410 = vpow.pop %v3409
    %v3411 = vmul.f32 %v3397, 1.442695
    %v3412 = vpow.pop %v3411
    %v3413 = vmul.f32 %v3398, 1.442695
    %v3414 = vpow.pop %v3413
    %v3415 = vsel %vm3366, %v3400, 0.0
    %3416 = vadd.xlane.f32.xlu0 %v3415
    %v3417 = vpop.xlane.xlu0 %3416
    %v3418 = vsel %vm3366, %v3402, 0.0
    %3419 = vadd.xlane.f32.xlu0 %v3418
    %v3420 = vpop.xlane.xlu0 %3419
    %v3421 = vsel %vm3366, %v3404, 0.0
    %3422 = vadd.xlane.f32.xlu0 %v3421
    %v3423 = vpop.xlane.xlu0 %3422
    %v3424 = vsel %vm3366, %v3406, 0.0
    %3425 = vadd.xlane.f32.xlu0 %v3424
    %v3426 = vpop.xlane.xlu0 %3425
    %v3427 = vsel %vm3366, %v3408, 0.0
    %3428 = vadd.xlane.f32.xlu0 %v3427
    %v3429 = vpop.xlane.xlu0 %3428
    %v3430 = vsel %vm3366, %v3410, 0.0
    %3431 = vadd.xlane.f32.xlu0 %v3430
    %v3432 = vpop.xlane.xlu0 %3431
    %v3433 = vsel %vm3366, %v3412, 0.0
    %3434 = vadd.xlane.f32.xlu0 %v3433
    %v3435 = vpop.xlane.xlu0 %3434
    %v3436 = vsel %vm3366, %v3414, 0.0
    %3437 = vadd.xlane.f32.xlu0 %v3436
    %v3438 = vpop.xlane.xlu0 %3437
    %v3439 = vrcp.pop %v3417
    %v3440 = vrcp.pop %v3420
    %v3441 = vrcp.pop %v3423
    %v3442 = vrcp.pop %v3426
    %v3443 = vrcp.pop %v3429
    %v3444 = vrcp.pop %v3432
    %v3445 = vrcp.pop %v3435
    %v3446 = vrcp.pop %v3438
    %v3447 = vmul.f32 %v3400, %v3439
    %v3448 = vmul.f32 %v3402, %v3440
    %v3449 = vmul.f32 %v3404, %v3441
    %v3450 = vmul.f32 %v3406, %v3442
    %v3451 = vmul.f32 %v3408, %v3443
    %v3452 = vmul.f32 %v3410, %v3444
    %v3453 = vmul.f32 %v3412, %v3445
    %v3454 = vmul.f32 %v3414, %v3446
    %v3455 = vpack.c.bf16 %v3447, %v3447
    %v3456 = vpack.c.bf16 %v3448, %v3448
    %v3457 = vpack.c.bf16 %v3449, %v3449
    %v3458 = vpack.c.bf16 %v3450, %v3450
    %v3459 = vpack.c.bf16 %v3451, %v3451
    %v3460 = vpack.c.bf16 %v3452, %v3452
    %v3461 = vpack.c.bf16 %v3453, %v3453
    %v3462 = vpack.c.bf16 %v3454, %v3454
    %v3464 = vsel %vm3366, %v3455, 0
    %vm3466 = vcmask 1043456
    %v3468 = vsel %vm3466, %v3246, 0
    %3470 = vmatpush.bf16.msra.mxu0 0
    %3471 = vmatpush.bf16.msra.mxu0 0
    %3472 = vmatpush.bf16.msra.mxu0 0
    %3473 = vmatpush.bf16.msra.mxu0 0
    %3474 = vmatpush.bf16.msra.mxu0 0
    %3475 = vmatpush.bf16.msra.mxu0 0
    %3476 = vmatpush.bf16.msra.mxu0 0
    %3477 = vmatpush.bf16.msra.mxu0 %v3468
    %3478 = vmatmul.bf16.gmra.mxu0 %v3464
    %v3479 = vpop.f32.mrf.mxu0
    %v3480 = vadd.f32 0.0, %v3479
    %v3481 = vpop.f32.mrf.mxu0
    %3482 = vdwg.mxu0
    %v3484 = vsel %vm3366, %v3456, 0
    %v3487 = vsel %vm3466, %v3247, 0
    %3489 = vmatpush.bf16.msra.mxu0 0
    %3490 = vmatpush.bf16.msra.mxu0 0
    %3491 = vmatpush.bf16.msra.mxu0 0
    %3492 = vmatpush.bf16.msra.mxu0 0
    %3493 = vmatpush.bf16.msra.mxu0 0
    %3494 = vmatpush.bf16.msra.mxu0 0
    %3495 = vmatpush.bf16.msra.mxu0 0
    %3496 = vmatpush.bf16.msra.mxu0 %v3487
    %3497 = vmatmul.bf16.gmra.mxu0 %v3484
    %v3498 = vpop.f32.mrf.mxu0
    %v3499 = vadd.f32 0.0, %v3498
    %v3500 = vpop.f32.mrf.mxu0
    %3501 = vdwg.mxu0
    %v3503 = vsel %vm3366, %v3457, 0
    %v3506 = vsel %vm3466, %v3248, 0
    %3508 = vmatpush.bf16.msra.mxu0 0
    %3509 = vmatpush.bf16.msra.mxu0 0
    %3510 = vmatpush.bf16.msra.mxu0 0
    %3511 = vmatpush.bf16.msra.mxu0 0
    %3512 = vmatpush.bf16.msra.mxu0 0
    %3513 = vmatpush.bf16.msra.mxu0 0
    %3514 = vmatpush.bf16.msra.mxu0 0
    %3515 = vmatpush.bf16.msra.mxu0 %v3506
    %3516 = vmatmul.bf16.gmra.mxu0 %v3503
    %v3517 = vpop.f32.mrf.mxu0
    %v3518 = vadd.f32 0.0, %v3517
    %v3519 = vpop.f32.mrf.mxu0
    %3520 = vdwg.mxu0
    %v3522 = vsel %vm3366, %v3458, 0
    %v3525 = vsel %vm3466, %v3249, 0
    %3527 = vmatpush.bf16.msra.mxu0 0
    %3528 = vmatpush.bf16.msra.mxu0 0
    %3529 = vmatpush.bf16.msra.mxu0 0
    %3530 = vmatpush.bf16.msra.mxu0 0
    %3531 = vmatpush.bf16.msra.mxu0 0
    %3532 = vmatpush.bf16.msra.mxu0 0
    %3533 = vmatpush.bf16.msra.mxu0 0
    %3534 = vmatpush.bf16.msra.mxu0 %v3525
    %3535 = vmatmul.bf16.gmra.mxu0 %v3522
    %v3536 = vpop.f32.mrf.mxu0
    %v3537 = vadd.f32 0.0, %v3536
    %v3538 = vpop.f32.mrf.mxu0
    %3539 = vdwg.mxu0
    %v3541 = vsel %vm3366, %v3459, 0
    %v3544 = vsel %vm3466, %v3250, 0
    %3546 = vmatpush.bf16.msra.mxu0 0
    %3547 = vmatpush.bf16.msra.mxu0 0
    %3548 = vmatpush.bf16.msra.mxu0 0
    %3549 = vmatpush.bf16.msra.mxu0 0
    %3550 = vmatpush.bf16.msra.mxu0 0
    %3551 = vmatpush.bf16.msra.mxu0 0
    %3552 = vmatpush.bf16.msra.mxu0 0
    %3553 = vmatpush.bf16.msra.mxu0 %v3544
    %3554 = vmatmul.bf16.gmra.mxu0 %v3541
    %v3555 = vpop.f32.mrf.mxu0
    %v3556 = vadd.f32 0.0, %v3555
    %v3557 = vpop.f32.mrf.mxu0
    %3558 = vdwg.mxu0
    %v3560 = vsel %vm3366, %v3460, 0
    %v3563 = vsel %vm3466, %v3251, 0
    %3565 = vmatpush.bf16.msra.mxu0 0
    %3566 = vmatpush.bf16.msra.mxu0 0
    %3567 = vmatpush.bf16.msra.mxu0 0
    %3568 = vmatpush.bf16.msra.mxu0 0
    %3569 = vmatpush.bf16.msra.mxu0 0
    %3570 = vmatpush.bf16.msra.mxu0 0
    %3571 = vmatpush.bf16.msra.mxu0 0
    %3572 = vmatpush.bf16.msra.mxu0 %v3563
    %3573 = vmatmul.bf16.gmra.mxu0 %v3560
    %v3574 = vpop.f32.mrf.mxu0
    %v3575 = vadd.f32 0.0, %v3574
    %v3576 = vpop.f32.mrf.mxu0
    %3577 = vdwg.mxu0
    %v3579 = vsel %vm3366, %v3461, 0
    %v3582 = vsel %vm3466, %v3252, 0
    %3584 = vmatpush.bf16.msra.mxu0 0
    %3585 = vmatpush.bf16.msra.mxu0 0
    %3586 = vmatpush.bf16.msra.mxu0 0
    %3587 = vmatpush.bf16.msra.mxu0 0
    %3588 = vmatpush.bf16.msra.mxu0 0
    %3589 = vmatpush.bf16.msra.mxu0 0
    %3590 = vmatpush.bf16.msra.mxu0 0
    %3591 = vmatpush.bf16.msra.mxu0 %v3582
    %3592 = vmatmul.bf16.gmra.mxu0 %v3579
    %v3593 = vpop.f32.mrf.mxu0
    %v3594 = vadd.f32 0.0, %v3593
    %v3595 = vpop.f32.mrf.mxu0
    %3596 = vdwg.mxu0
    %v3598 = vsel %vm3366, %v3462, 0
    %v3601 = vsel %vm3466, %v3253, 0
    %3603 = vmatpush.bf16.msra.mxu0 0
    %3604 = vmatpush.bf16.msra.mxu0 0
    %3605 = vmatpush.bf16.msra.mxu0 0
    %3606 = vmatpush.bf16.msra.mxu0 0
    %3607 = vmatpush.bf16.msra.mxu0 0
    %3608 = vmatpush.bf16.msra.mxu0 0
    %3609 = vmatpush.bf16.msra.mxu0 0
    %3610 = vmatpush.bf16.msra.mxu0 %v3601
    %3611 = vmatmul.bf16.gmra.mxu0 %v3598
    %v3612 = vpop.f32.mrf.mxu0
    %v3613 = vadd.f32 0.0, %v3612
    %v3614 = vpop.f32.mrf.mxu0
    %3615 = vdwg.mxu0
    %v3616 = vpack.c.bf16 %v2080, %v2080
    %v3617 = vpack.c.bf16 %v2082, %v2082
    %v3618 = vpack.c.bf16 %v2085, %v2085
    %v3619 = vpack.c.bf16 %v2087, %v2087
    %v3620 = vpack.c.bf16 %v2090, %v2090
    %v3621 = vpack.c.bf16 %v2092, %v2092
    %v3622 = vpack.c.bf16 %v2095, %v2095
    %v3623 = vpack.c.bf16 %v2097, %v2097
    %v3624 = vpack.c.bf16 %v2515, %v2515
    %v3625 = vpack.c.bf16 %v2517, %v2517
    %v3626 = vpack.c.bf16 %v2520, %v2520
    %v3627 = vpack.c.bf16 %v2522, %v2522
    %v3628 = vpack.c.bf16 %v2525, %v2525
    %v3629 = vpack.c.bf16 %v2527, %v2527
    %v3630 = vpack.c.bf16 %v2530, %v2530
    %v3631 = vpack.c.bf16 %v2532, %v2532
    %v3632 = vpack.c.bf16 %v2950, %v2950
    %v3633 = vpack.c.bf16 %v2952, %v2952
    %v3634 = vpack.c.bf16 %v2955, %v2955
    %v3635 = vpack.c.bf16 %v2957, %v2957
    %v3636 = vpack.c.bf16 %v2960, %v2960
    %v3637 = vpack.c.bf16 %v2962, %v2962
    %v3638 = vpack.c.bf16 %v2965, %v2965
    %v3639 = vpack.c.bf16 %v2967, %v2967
    %3640 = vmatpush.bf16.xpose.msra.mxu0 0
    %3641 = vmatpush.bf16.xpose.msra.mxu0 0
    %3642 = vmatpush.bf16.xpose.msra.mxu0 0
    %3643 = vmatpush.bf16.xpose.msra.mxu0 0
    %3644 = vmatpush.bf16.xpose.msra.mxu0 0
    %3645 = vmatpush.bf16.xpose.msra.mxu0 0
    %3646 = vmatpush.bf16.xpose.msra.mxu0 0
    %3647 = vmatpush.bf16.xpose.msra.mxu0 %v3624
    %3648 = vmatmul.bf16.gmra.mxu0 %v3616
    %v3649 = vpop.f32.mrf.mxu0
    %v3650 = vadd.f32 0.0, %v3649
    %v3651 = vpop.f32.mrf.mxu0
    %3652 = vdwg.mxu0
    %3653 = vmatpush.bf16.xpose.msra.mxu0 0
    %3654 = vmatpush.bf16.xpose.msra.mxu0 0
    %3655 = vmatpush.bf16.xpose.msra.mxu0 0
    %3656 = vmatpush.bf16.xpose.msra.mxu0 0
    %3657 = vmatpush.bf16.xpose.msra.mxu0 0
    %3658 = vmatpush.bf16.xpose.msra.mxu0 0
    %3659 = vmatpush.bf16.xpose.msra.mxu0 0
    %3660 = vmatpush.bf16.xpose.msra.mxu0 %v3625
    %3661 = vmatmul.bf16.gmra.mxu0 %v3617
    %v3662 = vpop.f32.mrf.mxu0
    %v3663 = vadd.f32 0.0, %v3662
    %v3664 = vpop.f32.mrf.mxu0
    %3665 = vdwg.mxu0
    %3666 = vmatpush.bf16.xpose.msra.mxu0 0
    %3667 = vmatpush.bf16.xpose.msra.mxu0 0
    %3668 = vmatpush.bf16.xpose.msra.mxu0 0
    %3669 = vmatpush.bf16.xpose.msra.mxu0 0
    %3670 = vmatpush.bf16.xpose.msra.mxu0 0
    %3671 = vmatpush.bf16.xpose.msra.mxu0 0
    %3672 = vmatpush.bf16.xpose.msra.mxu0 0
    %3673 = vmatpush.bf16.xpose.msra.mxu0 %v3626
    %3674 = vmatmul.bf16.gmra.mxu0 %v3618
    %v3675 = vpop.f32.mrf.mxu0
    %v3676 = vadd.f32 0.0, %v3675
    %v3677 = vpop.f32.mrf.mxu0
    %3678 = vdwg.mxu0
    %3679 = vmatpush.bf16.xpose.msra.mxu0 0
    %3680 = vmatpush.bf16.xpose.msra.mxu0 0
    %3681 = vmatpush.bf16.xpose.msra.mxu0 0
    %3682 = vmatpush.bf16.xpose.msra.mxu0 0
    %3683 = vmatpush.bf16.xpose.msra.mxu0 0
    %3684 = vmatpush.bf16.xpose.msra.mxu0 0
    %3685 = vmatpush.bf16.xpose.msra.mxu0 0
    %3686 = vmatpush.bf16.xpose.msra.mxu0 %v3627
    %3687 = vmatmul.bf16.gmra.mxu0 %v3619
    %v3688 = vpop.f32.mrf.mxu0
    %v3689 = vadd.f32 0.0, %v3688
    %v3690 = vpop.f32.mrf.mxu0
    %3691 = vdwg.mxu0
    %3692 = vmatpush.bf16.xpose.msra.mxu0 0
    %3693 = vmatpush.bf16.xpose.msra.mxu0 0
    %3694 = vmatpush.bf16.xpose.msra.mxu0 0
    %3695 = vmatpush.bf16.xpose.msra.mxu0 0
    %3696 = vmatpush.bf16.xpose.msra.mxu0 0
    %3697 = vmatpush.bf16.xpose.msra.mxu0 0
    %3698 = vmatpush.bf16.xpose.msra.mxu0 0
    %3699 = vmatpush.bf16.xpose.msra.mxu0 %v3628
    %3700 = vmatmul.bf16.gmra.mxu0 %v3620
    %v3701 = vpop.f32.mrf.mxu0
    %v3702 = vadd.f32 0.0, %v3701
    %v3703 = vpop.f32.mrf.mxu0
    %3704 = vdwg.mxu0
    %3705 = vmatpush.bf16.xpose.msra.mxu0 0
    %3706 = vmatpush.bf16.xpose.msra.mxu0 0
    %3707 = vmatpush.bf16.xpose.msra.mxu0 0
    %3708 = vmatpush.bf16.xpose.msra.mxu0 0
    %3709 = vmatpush.bf16.xpose.msra.mxu0 0
    %3710 = vmatpush.bf16.xpose.msra.mxu0 0
    %3711 = vmatpush.bf16.xpose.msra.mxu0 0
    %3712 = vmatpush.bf16.xpose.msra.mxu0 %v3629
    %3713 = vmatmul.bf16.gmra.mxu0 %v3621
    %v3714 = vpop.f32.mrf.mxu0
    %v3715 = vadd.f32 0.0, %v3714
    %v3716 = vpop.f32.mrf.mxu0
    %3717 = vdwg.mxu0
    %3718 = vmatpush.bf16.xpose.msra.mxu0 0
    %3719 = vmatpush.bf16.xpose.msra.mxu0 0
    %3720 = vmatpush.bf16.xpose.msra.mxu0 0
    %3721 = vmatpush.bf16.xpose.msra.mxu0 0
    %3722 = vmatpush.bf16.xpose.msra.mxu0 0
    %3723 = vmatpush.bf16.xpose.msra.mxu0 0
    %3724 = vmatpush.bf16.xpose.msra.mxu0 0
    %3725 = vmatpush.bf16.xpose.msra.mxu0 %v3630
    %3726 = vmatmul.bf16.gmra.mxu0 %v3622
    %v3727 = vpop.f32.mrf.mxu0
    %v3728 = vadd.f32 0.0, %v3727
    %v3729 = vpop.f32.mrf.mxu0
    %3730 = vdwg.mxu0
    %3731 = vmatpush.bf16.xpose.msra.mxu0 0
    %3732 = vmatpush.bf16.xpose.msra.mxu0 0
    %3733 = vmatpush.bf16.xpose.msra.mxu0 0
    %3734 = vmatpush.bf16.xpose.msra.mxu0 0
    %3735 = vmatpush.bf16.xpose.msra.mxu0 0
    %3736 = vmatpush.bf16.xpose.msra.mxu0 0
    %3737 = vmatpush.bf16.xpose.msra.mxu0 0
    %3738 = vmatpush.bf16.xpose.msra.mxu0 %v3631
    %3739 = vmatmul.bf16.gmra.mxu0 %v3623
    %v3740 = vpop.f32.mrf.mxu0
    %v3741 = vadd.f32 0.0, %v3740
    %v3742 = vpop.f32.mrf.mxu0
    %3743 = vdwg.mxu0
    %v3744 = vmul.f32 %v3650, 0.09128709
    %v3745 = vmul.f32 %v3663, 0.09128709
    %v3746 = vmul.f32 %v3676, 0.09128709
    %v3747 = vmul.f32 %v3689, 0.09128709
    %v3748 = vmul.f32 %v3702, 0.09128709
    %v3749 = vmul.f32 %v3715, 0.09128709
    %v3750 = vmul.f32 %v3728, 0.09128709
    %v3751 = vmul.f32 %v3741, 0.09128709
    %v3752 = vsel %vm3366, %v3744, -inf
    %3753 = vmax.xlane.f32.xlu0 %v3752
    %v3754 = vpop.xlane.xlu0 %3753
    %v3755 = vsel %vm3366, %v3745, -inf
    %3756 = vmax.xlane.f32.xlu0 %v3755
    %v3757 = vpop.xlane.xlu0 %3756
    %v3758 = vsel %vm3366, %v3746, -inf
    %3759 = vmax.xlane.f32.xlu0 %v3758
    %v3760 = vpop.xlane.xlu0 %3759
    %v3761 = vsel %vm3366, %v3747, -inf
    %3762 = vmax.xlane.f32.xlu0 %v3761
    %v3763 = vpop.xlane.xlu0 %3762
    %v3764 = vsel %vm3366, %v3748, -inf
    %3765 = vmax.xlane.f32.xlu0 %v3764
    %v3766 = vpop.xlane.xlu0 %3765
    %v3767 = vsel %vm3366, %v3749, -inf
    %3768 = vmax.xlane.f32.xlu0 %v3767
    %v3769 = vpop.xlane.xlu0 %3768
    %v3770 = vsel %vm3366, %v3750, -inf
    %3771 = vmax.xlane.f32.xlu0 %v3770
    %v3772 = vpop.xlane.xlu0 %3771
    %v3773 = vsel %vm3366, %v3751, -inf
    %3774 = vmax.xlane.f32.xlu0 %v3773
    %v3775 = vpop.xlane.xlu0 %3774
    %v3776 = vsub.f32 %v3744, %v3754
    %v3777 = vsub.f32 %v3745, %v3757
    %v3778 = vsub.f32 %v3746, %v3760
    %v3779 = vsub.f32 %v3747, %v3763
    %v3780 = vsub.f32 %v3748, %v3766
    %v3781 = vsub.f32 %v3749, %v3769
    %v3782 = vsub.f32 %v3750, %v3772
    %v3783 = vsub.f32 %v3751, %v3775
    %v3784 = vmul.f32 %v3776, 1.442695
    %v3785 = vpow.pop %v3784
    %v3786 = vmul.f32 %v3777, 1.442695
    %v3787 = vpow.pop %v3786
    %v3788 = vmul.f32 %v3778, 1.442695
    %v3789 = vpow.pop %v3788
    %v3790 = vmul.f32 %v3779, 1.442695
    %v3791 = vpow.pop %v3790
    %v3792 = vmul.f32 %v3780, 1.442695
    %v3793 = vpow.pop %v3792
    %v3794 = vmul.f32 %v3781, 1.442695
    %v3795 = vpow.pop %v3794
    %v3796 = vmul.f32 %v3782, 1.442695
    %v3797 = vpow.pop %v3796
    %v3798 = vmul.f32 %v3783, 1.442695
    %v3799 = vpow.pop %v3798
    %v3800 = vsel %vm3366, %v3785, 0.0
    %3801 = vadd.xlane.f32.xlu0 %v3800
    %v3802 = vpop.xlane.xlu0 %3801
    %v3803 = vsel %vm3366, %v3787, 0.0
    %3804 = vadd.xlane.f32.xlu0 %v3803
    %v3805 = vpop.xlane.xlu0 %3804
    %v3806 = vsel %vm3366, %v3789, 0.0
    %3807 = vadd.xlane.f32.xlu0 %v3806
    %v3808 = vpop.xlane.xlu0 %3807
    %v3809 = vsel %vm3366, %v3791, 0.0
    %3810 = vadd.xlane.f32.xlu0 %v3809
    %v3811 = vpop.xlane.xlu0 %3810
    %v3812 = vsel %vm3366, %v3793, 0.0
    %3813 = vadd.xlane.f32.xlu0 %v3812
    %v3814 = vpop.xlane.xlu0 %3813
    %v3815 = vsel %vm3366, %v3795, 0.0
    %3816 = vadd.xlane.f32.xlu0 %v3815
    %v3817 = vpop.xlane.xlu0 %3816
    %v3818 = vsel %vm3366, %v3797, 0.0
    %3819 = vadd.xlane.f32.xlu0 %v3818
    %v3820 = vpop.xlane.xlu0 %3819
    %v3821 = vsel %vm3366, %v3799, 0.0
    %3822 = vadd.xlane.f32.xlu0 %v3821
    %v3823 = vpop.xlane.xlu0 %3822
    %v3824 = vrcp.pop %v3802
    %v3825 = vrcp.pop %v3805
    %v3826 = vrcp.pop %v3808
    %v3827 = vrcp.pop %v3811
    %v3828 = vrcp.pop %v3814
    %v3829 = vrcp.pop %v3817
    %v3830 = vrcp.pop %v3820
    %v3831 = vrcp.pop %v3823
    %v3832 = vmul.f32 %v3785, %v3824
    %v3833 = vmul.f32 %v3787, %v3825
    %v3834 = vmul.f32 %v3789, %v3826
    %v3835 = vmul.f32 %v3791, %v3827
    %v3836 = vmul.f32 %v3793, %v3828
    %v3837 = vmul.f32 %v3795, %v3829
    %v3838 = vmul.f32 %v3797, %v3830
    %v3839 = vmul.f32 %v3799, %v3831
    %v3840 = vpack.c.bf16 %v3832, %v3832
    %v3841 = vpack.c.bf16 %v3833, %v3833
    %v3842 = vpack.c.bf16 %v3834, %v3834
    %v3843 = vpack.c.bf16 %v3835, %v3835
    %v3844 = vpack.c.bf16 %v3836, %v3836
    %v3845 = vpack.c.bf16 %v3837, %v3837
    %v3846 = vpack.c.bf16 %v3838, %v3838
    %v3847 = vpack.c.bf16 %v3839, %v3839
    %v3849 = vsel %vm3366, %v3840, 0
    %v3852 = vsel %vm3466, %v3632, 0
    %3854 = vmatpush.bf16.msra.mxu0 0
    %3855 = vmatpush.bf16.msra.mxu0 0
    %3856 = vmatpush.bf16.msra.mxu0 0
    %3857 = vmatpush.bf16.msra.mxu0 0
    %3858 = vmatpush.bf16.msra.mxu0 0
    %3859 = vmatpush.bf16.msra.mxu0 0
    %3860 = vmatpush.bf16.msra.mxu0 0
    %3861 = vmatpush.bf16.msra.mxu0 %v3852
    %3862 = vmatmul.bf16.gmra.mxu0 %v3849
    %v3863 = vpop.f32.mrf.mxu0
    %v3864 = vadd.f32 0.0, %v3863
    %v3865 = vpop.f32.mrf.mxu0
    %3866 = vdwg.mxu0
    %v3868 = vsel %vm3366, %v3841, 0
    %v3871 = vsel %vm3466, %v3633, 0
    %3873 = vmatpush.bf16.msra.mxu0 0
    %3874 = vmatpush.bf16.msra.mxu0 0
    %3875 = vmatpush.bf16.msra.mxu0 0
    %3876 = vmatpush.bf16.msra.mxu0 0
    %3877 = vmatpush.bf16.msra.mxu0 0
    %3878 = vmatpush.bf16.msra.mxu0 0
    %3879 = vmatpush.bf16.msra.mxu0 0
    %3880 = vmatpush.bf16.msra.mxu0 %v3871
    %3881 = vmatmul.bf16.gmra.mxu0 %v3868
    %v3882 = vpop.f32.mrf.mxu0
    %v3883 = vadd.f32 0.0, %v3882
    %v3884 = vpop.f32.mrf.mxu0
    %3885 = vdwg.mxu0
    %v3887 = vsel %vm3366, %v3842, 0
    %v3890 = vsel %vm3466, %v3634, 0
    %3892 = vmatpush.bf16.msra.mxu0 0
    %3893 = vmatpush.bf16.msra.mxu0 0
    %3894 = vmatpush.bf16.msra.mxu0 0
    %3895 = vmatpush.bf16.msra.mxu0 0
    %3896 = vmatpush.bf16.msra.mxu0 0
    %3897 = vmatpush.bf16.msra.mxu0 0
    %3898 = vmatpush.bf16.msra.mxu0 0
    %3899 = vmatpush.bf16.msra.mxu0 %v3890
    %3900 = vmatmul.bf16.gmra.mxu0 %v3887
    %v3901 = vpop.f32.mrf.mxu0
    %v3902 = vadd.f32 0.0, %v3901
    %v3903 = vpop.f32.mrf.mxu0
    %3904 = vdwg.mxu0
    %v3906 = vsel %vm3366, %v3843, 0
    %v3909 = vsel %vm3466, %v3635, 0
    %3911 = vmatpush.bf16.msra.mxu0 0
    %3912 = vmatpush.bf16.msra.mxu0 0
    %3913 = vmatpush.bf16.msra.mxu0 0
    %3914 = vmatpush.bf16.msra.mxu0 0
    %3915 = vmatpush.bf16.msra.mxu0 0
    %3916 = vmatpush.bf16.msra.mxu0 0
    %3917 = vmatpush.bf16.msra.mxu0 0
    %3918 = vmatpush.bf16.msra.mxu0 %v3909
    %3919 = vmatmul.bf16.gmra.mxu0 %v3906
    %v3920 = vpop.f32.mrf.mxu0
    %v3921 = vadd.f32 0.0, %v3920
    %v3922 = vpop.f32.mrf.mxu0
    %3923 = vdwg.mxu0
    %v3925 = vsel %vm3366, %v3844, 0
    %v3928 = vsel %vm3466, %v3636, 0
    %3930 = vmatpush.bf16.msra.mxu0 0
    %3931 = vmatpush.bf16.msra.mxu0 0
    %3932 = vmatpush.bf16.msra.mxu0 0
    %3933 = vmatpush.bf16.msra.mxu0 0
    %3934 = vmatpush.bf16.msra.mxu0 0
    %3935 = vmatpush.bf16.msra.mxu0 0
    %3936 = vmatpush.bf16.msra.mxu0 0
    %3937 = vmatpush.bf16.msra.mxu0 %v3928
    %3938 = vmatmul.bf16.gmra.mxu0 %v3925
    %v3939 = vpop.f32.mrf.mxu0
    %v3940 = vadd.f32 0.0, %v3939
    %v3941 = vpop.f32.mrf.mxu0
    %3942 = vdwg.mxu0
    %v3944 = vsel %vm3366, %v3845, 0
    %v3947 = vsel %vm3466, %v3637, 0
    %3949 = vmatpush.bf16.msra.mxu0 0
    %3950 = vmatpush.bf16.msra.mxu0 0
    %3951 = vmatpush.bf16.msra.mxu0 0
    %3952 = vmatpush.bf16.msra.mxu0 0
    %3953 = vmatpush.bf16.msra.mxu0 0
    %3954 = vmatpush.bf16.msra.mxu0 0
    %3955 = vmatpush.bf16.msra.mxu0 0
    %3956 = vmatpush.bf16.msra.mxu0 %v3947
    %3957 = vmatmul.bf16.gmra.mxu0 %v3944
    %v3958 = vpop.f32.mrf.mxu0
    %v3959 = vadd.f32 0.0, %v3958
    %v3960 = vpop.f32.mrf.mxu0
    %3961 = vdwg.mxu0
    %v3963 = vsel %vm3366, %v3846, 0
    %v3966 = vsel %vm3466, %v3638, 0
    %3968 = vmatpush.bf16.msra.mxu0 0
    %3969 = vmatpush.bf16.msra.mxu0 0
    %3970 = vmatpush.bf16.msra.mxu0 0
    %3971 = vmatpush.bf16.msra.mxu0 0
    %3972 = vmatpush.bf16.msra.mxu0 0
    %3973 = vmatpush.bf16.msra.mxu0 0
    %3974 = vmatpush.bf16.msra.mxu0 0
    %3975 = vmatpush.bf16.msra.mxu0 %v3966
    %3976 = vmatmul.bf16.gmra.mxu0 %v3963
    %v3977 = vpop.f32.mrf.mxu0
    %v3978 = vadd.f32 0.0, %v3977
    %v3979 = vpop.f32.mrf.mxu0
    %3980 = vdwg.mxu0
    %v3982 = vsel %vm3366, %v3847, 0
    %v3985 = vsel %vm3466, %v3639, 0
    %3987 = vmatpush.bf16.msra.mxu0 0
    %3988 = vmatpush.bf16.msra.mxu0 0
    %3989 = vmatpush.bf16.msra.mxu0 0
    %3990 = vmatpush.bf16.msra.mxu0 0
    %3991 = vmatpush.bf16.msra.mxu0 0
    %3992 = vmatpush.bf16.msra.mxu0 0
    %3993 = vmatpush.bf16.msra.mxu0 0
    %3994 = vmatpush.bf16.msra.mxu0 %v3985
    %3995 = vmatmul.bf16.gmra.mxu0 %v3982
    %v3996 = vpop.f32.mrf.mxu0
    %v3997 = vadd.f32 0.0, %v3996
    %v3998 = vpop.f32.mrf.mxu0
    %3999 = vdwg.mxu0
    %v4000 = vpack.c.bf16 %v2167, %v2167
    %v4001 = vpack.c.bf16 %v2169, %v2169
    %v4002 = vpack.c.bf16 %v2172, %v2172
    %v4003 = vpack.c.bf16 %v2174, %v2174
    %v4004 = vpack.c.bf16 %v2177, %v2177
    %v4005 = vpack.c.bf16 %v2179, %v2179
    %v4006 = vpack.c.bf16 %v2182, %v2182
    %v4007 = vpack.c.bf16 %v2184, %v2184
    %v4008 = vpack.c.bf16 %v2602, %v2602
    %v4009 = vpack.c.bf16 %v2604, %v2604
    %v4010 = vpack.c.bf16 %v2607, %v2607
    %v4011 = vpack.c.bf16 %v2609, %v2609
    %v4012 = vpack.c.bf16 %v2612, %v2612
    %v4013 = vpack.c.bf16 %v2614, %v2614
    %v4014 = vpack.c.bf16 %v2617, %v2617
    %v4015 = vpack.c.bf16 %v2619, %v2619
    %v4016 = vpack.c.bf16 %v3037, %v3037
    %v4017 = vpack.c.bf16 %v3039, %v3039
    %v4018 = vpack.c.bf16 %v3042, %v3042
    %v4019 = vpack.c.bf16 %v3044, %v3044
    %v4020 = vpack.c.bf16 %v3047, %v3047
    %v4021 = vpack.c.bf16 %v3049, %v3049
    %v4022 = vpack.c.bf16 %v3052, %v3052
    %v4023 = vpack.c.bf16 %v3054, %v3054
    %4024 = vmatpush.bf16.xpose.msra.mxu0 0
    %4025 = vmatpush.bf16.xpose.msra.mxu0 0
    %4026 = vmatpush.bf16.xpose.msra.mxu0 0
    %4027 = vmatpush.bf16.xpose.msra.mxu0 0
    %4028 = vmatpush.bf16.xpose.msra.mxu0 0
    %4029 = vmatpush.bf16.xpose.msra.mxu0 0
    %4030 = vmatpush.bf16.xpose.msra.mxu0 0
    %4031 = vmatpush.bf16.xpose.msra.mxu0 %v4008
    %4032 = vmatmul.bf16.gmra.mxu0 %v4000
    %v4033 = vpop.f32.mrf.mxu0
    %v4034 = vadd.f32 0.0, %v4033
    %v4035 = vpop.f32.mrf.mxu0
    %4036 = vdwg.mxu0
    %4037 = vmatpush.bf16.xpose.msra.mxu0 0
    %4038 = vmatpush.bf16.xpose.msra.mxu0 0
    %4039 = vmatpush.bf16.xpose.msra.mxu0 0
    %4040 = vmatpush.bf16.xpose.msra.mxu0 0
    %4041 = vmatpush.bf16.xpose.msra.mxu0 0
    %4042 = vmatpush.bf16.xpose.msra.mxu0 0
    %4043 = vmatpush.bf16.xpose.msra.mxu0 0
    %4044 = vmatpush.bf16.xpose.msra.mxu0 %v4009
    %4045 = vmatmul.bf16.gmra.mxu0 %v4001
    %v4046 = vpop.f32.mrf.mxu0
    %v4047 = vadd.f32 0.0, %v4046
    %v4048 = vpop.f32.mrf.mxu0
    %4049 = vdwg.mxu0
    %4050 = vmatpush.bf16.xpose.msra.mxu0 0
    %4051 = vmatpush.bf16.xpose.msra.mxu0 0
    %4052 = vmatpush.bf16.xpose.msra.mxu0 0
    %4053 = vmatpush.bf16.xpose.msra.mxu0 0
    %4054 = vmatpush.bf16.xpose.msra.mxu0 0
    %4055 = vmatpush.bf16.xpose.msra.mxu0 0
    %4056 = vmatpush.bf16.xpose.msra.mxu0 0
    %4057 = vmatpush.bf16.xpose.msra.mxu0 %v4010
    %4058 = vmatmul.bf16.gmra.mxu0 %v4002
    %v4059 = vpop.f32.mrf.mxu0
    %v4060 = vadd.f32 0.0, %v4059
    %v4061 = vpop.f32.mrf.mxu0
    %4062 = vdwg.mxu0
    %4063 = vmatpush.bf16.xpose.msra.mxu0 0
    %4064 = vmatpush.bf16.xpose.msra.mxu0 0
    %4065 = vmatpush.bf16.xpose.msra.mxu0 0
    %4066 = vmatpush.bf16.xpose.msra.mxu0 0
    %4067 = vmatpush.bf16.xpose.msra.mxu0 0
    %4068 = vmatpush.bf16.xpose.msra.mxu0 0
    %4069 = vmatpush.bf16.xpose.msra.mxu0 0
    %4070 = vmatpush.bf16.xpose.msra.mxu0 %v4011
    %4071 = vmatmul.bf16.gmra.mxu0 %v4003
    %v4072 = vpop.f32.mrf.mxu0
    %v4073 = vadd.f32 0.0, %v4072
    %v4074 = vpop.f32.mrf.mxu0
    %4075 = vdwg.mxu0
    %4076 = vmatpush.bf16.xpose.msra.mxu0 0
    %4077 = vmatpush.bf16.xpose.msra.mxu0 0
    %4078 = vmatpush.bf16.xpose.msra.mxu0 0
    %4079 = vmatpush.bf16.xpose.msra.mxu0 0
    %4080 = vmatpush.bf16.xpose.msra.mxu0 0
    %4081 = vmatpush.bf16.xpose.msra.mxu0 0
    %4082 = vmatpush.bf16.xpose.msra.mxu0 0
    %4083 = vmatpush.bf16.xpose.msra.mxu0 %v4012
    %4084 = vmatmul.bf16.gmra.mxu0 %v4004
    %v4085 = vpop.f32.mrf.mxu0
    %v4086 = vadd.f32 0.0, %v4085
    %v4087 = vpop.f32.mrf.mxu0
    %4088 = vdwg.mxu0
    %4089 = vmatpush.bf16.xpose.msra.mxu0 0
    %4090 = vmatpush.bf16.xpose.msra.mxu0 0
    %4091 = vmatpush.bf16.xpose.msra.mxu0 0
    %4092 = vmatpush.bf16.xpose.msra.mxu0 0
    %4093 = vmatpush.bf16.xpose.msra.mxu0 0
    %4094 = vmatpush.bf16.xpose.msra.mxu0 0
    %4095 = vmatpush.bf16.xpose.msra.mxu0 0
    %4096 = vmatpush.bf16.xpose.msra.mxu0 %v4013
    %4097 = vmatmul.bf16.gmra.mxu0 %v4005
    %v4098 = vpop.f32.mrf.mxu0
    %v4099 = vadd.f32 0.0, %v4098
    %v4100 = vpop.f32.mrf.mxu0
    %4101 = vdwg.mxu0
    %4102 = vmatpush.bf16.xpose.msra.mxu0 0
    %4103 = vmatpush.bf16.xpose.msra.mxu0 0
    %4104 = vmatpush.bf16.xpose.msra.mxu0 0
    %4105 = vmatpush.bf16.xpose.msra.mxu0 0
    %4106 = vmatpush.bf16.xpose.msra.mxu0 0
    %4107 = vmatpush.bf16.xpose.msra.mxu0 0
    %4108 = vmatpush.bf16.xpose.msra.mxu0 0
    %4109 = vmatpush.bf16.xpose.msra.mxu0 %v4014
    %4110 = vmatmul.bf16.gmra.mxu0 %v4006
    %v4111 = vpop.f32.mrf.mxu0
    %v4112 = vadd.f32 0.0, %v4111
    %v4113 = vpop.f32.mrf.mxu0
    %4114 = vdwg.mxu0
    %4115 = vmatpush.bf16.xpose.msra.mxu0 0
    %4116 = vmatpush.bf16.xpose.msra.mxu0 0
    %4117 = vmatpush.bf16.xpose.msra.mxu0 0
    %4118 = vmatpush.bf16.xpose.msra.mxu0 0
    %4119 = vmatpush.bf16.xpose.msra.mxu0 0
    %4120 = vmatpush.bf16.xpose.msra.mxu0 0
    %4121 = vmatpush.bf16.xpose.msra.mxu0 0
    %4122 = vmatpush.bf16.xpose.msra.mxu0 %v4015
    %4123 = vmatmul.bf16.gmra.mxu0 %v4007
    %v4124 = vpop.f32.mrf.mxu0
    %v4125 = vadd.f32 0.0, %v4124
    %v4126 = vpop.f32.mrf.mxu0
    %4127 = vdwg.mxu0
    %v4128 = vmul.f32 %v4034, 0.09128709
    %v4129 = vmul.f32 %v4047, 0.09128709
    %v4130 = vmul.f32 %v4060, 0.09128709
    %v4131 = vmul.f32 %v4073, 0.09128709
    %v4132 = vmul.f32 %v4086, 0.09128709
    %v4133 = vmul.f32 %v4099, 0.09128709
    %v4134 = vmul.f32 %v4112, 0.09128709
    %v4135 = vmul.f32 %v4125, 0.09128709
    %v4136 = vsel %vm3366, %v4128, -inf
    %4137 = vmax.xlane.f32.xlu0 %v4136
    %v4138 = vpop.xlane.xlu0 %4137
    %v4139 = vsel %vm3366, %v4129, -inf
    %4140 = vmax.xlane.f32.xlu0 %v4139
    %v4141 = vpop.xlane.xlu0 %4140
    %v4142 = vsel %vm3366, %v4130, -inf
    %4143 = vmax.xlane.f32.xlu0 %v4142
    %v4144 = vpop.xlane.xlu0 %4143
    %v4145 = vsel %vm3366, %v4131, -inf
    %4146 = vmax.xlane.f32.xlu0 %v4145
    %v4147 = vpop.xlane.xlu0 %4146
    %v4148 = vsel %vm3366, %v4132, -inf
    %4149 = vmax.xlane.f32.xlu0 %v4148
    %v4150 = vpop.xlane.xlu0 %4149
    %v4151 = vsel %vm3366, %v4133, -inf
    %4152 = vmax.xlane.f32.xlu0 %v4151
    %v4153 = vpop.xlane.xlu0 %4152
    %v4154 = vsel %vm3366, %v4134, -inf
    %4155 = vmax.xlane.f32.xlu0 %v4154
    %v4156 = vpop.xlane.xlu0 %4155
    %v4157 = vsel %vm3366, %v4135, -inf
    %4158 = vmax.xlane.f32.xlu0 %v4157
    %v4159 = vpop.xlane.xlu0 %4158
    %v4160 = vsub.f32 %v4128, %v4138
    %v4161 = vsub.f32 %v4129, %v4141
    %v4162 = vsub.f32 %v4130, %v4144
    %v4163 = vsub.f32 %v4131, %v4147
    %v4164 = vsub.f32 %v4132, %v4150
    %v4165 = vsub.f32 %v4133, %v4153
    %v4166 = vsub.f32 %v4134, %v4156
    %v4167 = vsub.f32 %v4135, %v4159
    %v4168 = vmul.f32 %v4160, 1.442695
    %v4169 = vpow.pop %v4168
    %v4170 = vmul.f32 %v4161, 1.442695
    %v4171 = vpow.pop %v4170
    %v4172 = vmul.f32 %v4162, 1.442695
    %v4173 = vpow.pop %v4172
    %v4174 = vmul.f32 %v4163, 1.442695
    %v4175 = vpow.pop %v4174
    %v4176 = vmul.f32 %v4164, 1.442695
    %v4177 = vpow.pop %v4176
    %v4178 = vmul.f32 %v4165, 1.442695
    %v4179 = vpow.pop %v4178
    %v4180 = vmul.f32 %v4166, 1.442695
    %v4181 = vpow.pop %v4180
    %v4182 = vmul.f32 %v4167, 1.442695
    %v4183 = vpow.pop %v4182
    %v4184 = vsel %vm3366, %v4169, 0.0
    %4185 = vadd.xlane.f32.xlu0 %v4184
    %v4186 = vpop.xlane.xlu0 %4185
    %v4187 = vsel %vm3366, %v4171, 0.0
    %4188 = vadd.xlane.f32.xlu0 %v4187
    %v4189 = vpop.xlane.xlu0 %4188
    %v4190 = vsel %vm3366, %v4173, 0.0
    %4191 = vadd.xlane.f32.xlu0 %v4190
    %v4192 = vpop.xlane.xlu0 %4191
    %v4193 = vsel %vm3366, %v4175, 0.0
    %4194 = vadd.xlane.f32.xlu0 %v4193
    %v4195 = vpop.xlane.xlu0 %4194
    %v4196 = vsel %vm3366, %v4177, 0.0
    %4197 = vadd.xlane.f32.xlu0 %v4196
    %v4198 = vpop.xlane.xlu0 %4197
    %v4199 = vsel %vm3366, %v4179, 0.0
    %4200 = vadd.xlane.f32.xlu0 %v4199
    %v4201 = vpop.xlane.xlu0 %4200
    %v4202 = vsel %vm3366, %v4181, 0.0
    %4203 = vadd.xlane.f32.xlu0 %v4202
    %v4204 = vpop.xlane.xlu0 %4203
    %v4205 = vsel %vm3366, %v4183, 0.0
    %4206 = vadd.xlane.f32.xlu0 %v4205
    %v4207 = vpop.xlane.xlu0 %4206
    %v4208 = vrcp.pop %v4186
    %v4209 = vrcp.pop %v4189
    %v4210 = vrcp.pop %v4192
    %v4211 = vrcp.pop %v4195
    %v4212 = vrcp.pop %v4198
    %v4213 = vrcp.pop %v4201
    %v4214 = vrcp.pop %v4204
    %v4215 = vrcp.pop %v4207
    %v4216 = vmul.f32 %v4169, %v4208
    %v4217 = vmul.f32 %v4171, %v4209
    %v4218 = vmul.f32 %v4173, %v4210
    %v4219 = vmul.f32 %v4175, %v4211
    %v4220 = vmul.f32 %v4177, %v4212
    %v4221 = vmul.f32 %v4179, %v4213
    %v4222 = vmul.f32 %v4181, %v4214
    %v4223 = vmul.f32 %v4183, %v4215
    %v4224 = vpack.c.bf16 %v4216, %v4216
    %v4225 = vpack.c.bf16 %v4217, %v4217
    %v4226 = vpack.c.bf16 %v4218, %v4218
    %v4227 = vpack.c.bf16 %v4219, %v4219
    %v4228 = vpack.c.bf16 %v4220, %v4220
    %v4229 = vpack.c.bf16 %v4221, %v4221
    %v4230 = vpack.c.bf16 %v4222, %v4222
    %v4231 = vpack.c.bf16 %v4223, %v4223
    %v4233 = vsel %vm3366, %v4224, 0
    %v4236 = vsel %vm3466, %v4016, 0
    %4238 = vmatpush.bf16.msra.mxu0 0
    %4239 = vmatpush.bf16.msra.mxu0 0
    %4240 = vmatpush.bf16.msra.mxu0 0
    %4241 = vmatpush.bf16.msra.mxu0 0
    %4242 = vmatpush.bf16.msra.mxu0 0
    %4243 = vmatpush.bf16.msra.mxu0 0
    %4244 = vmatpush.bf16.msra.mxu0 0
    %4245 = vmatpush.bf16.msra.mxu0 %v4236
    %4246 = vmatmul.bf16.gmra.mxu0 %v4233
    %v4247 = vpop.f32.mrf.mxu0
    %v4248 = vadd.f32 0.0, %v4247
    %v4249 = vpop.f32.mrf.mxu0
    %4250 = vdwg.mxu0
    %v4252 = vsel %vm3366, %v4225, 0
    %v4255 = vsel %vm3466, %v4017, 0
    %4257 = vmatpush.bf16.msra.mxu0 0
    %4258 = vmatpush.bf16.msra.mxu0 0
    %4259 = vmatpush.bf16.msra.mxu0 0
    %4260 = vmatpush.bf16.msra.mxu0 0
    %4261 = vmatpush.bf16.msra.mxu0 0
    %4262 = vmatpush.bf16.msra.mxu0 0
    %4263 = vmatpush.bf16.msra.mxu0 0
    %4264 = vmatpush.bf16.msra.mxu0 %v4255
    %4265 = vmatmul.bf16.gmra.mxu0 %v4252
    %v4266 = vpop.f32.mrf.mxu0
    %v4267 = vadd.f32 0.0, %v4266
    %v4268 = vpop.f32.mrf.mxu0
    %4269 = vdwg.mxu0
    %v4271 = vsel %vm3366, %v4226, 0
    %v4274 = vsel %vm3466, %v4018, 0
    %4276 = vmatpush.bf16.msra.mxu0 0
    %4277 = vmatpush.bf16.msra.mxu0 0
    %4278 = vmatpush.bf16.msra.mxu0 0
    %4279 = vmatpush.bf16.msra.mxu0 0
    %4280 = vmatpush.bf16.msra.mxu0 0
    %4281 = vmatpush.bf16.msra.mxu0 0
    %4282 = vmatpush.bf16.msra.mxu0 0
    %4283 = vmatpush.bf16.msra.mxu0 %v4274
    %4284 = vmatmul.bf16.gmra.mxu0 %v4271
    %v4285 = vpop.f32.mrf.mxu0
    %v4286 = vadd.f32 0.0, %v4285
    %v4287 = vpop.f32.mrf.mxu0
    %4288 = vdwg.mxu0
    %v4290 = vsel %vm3366, %v4227, 0
    %v4293 = vsel %vm3466, %v4019, 0
    %4295 = vmatpush.bf16.msra.mxu0 0
    %4296 = vmatpush.bf16.msra.mxu0 0
    %4297 = vmatpush.bf16.msra.mxu0 0
    %4298 = vmatpush.bf16.msra.mxu0 0
    %4299 = vmatpush.bf16.msra.mxu0 0
    %4300 = vmatpush.bf16.msra.mxu0 0
    %4301 = vmatpush.bf16.msra.mxu0 0
    %4302 = vmatpush.bf16.msra.mxu0 %v4293
    %4303 = vmatmul.bf16.gmra.mxu0 %v4290
    %v4304 = vpop.f32.mrf.mxu0
    %v4305 = vadd.f32 0.0, %v4304
    %v4306 = vpop.f32.mrf.mxu0
    %4307 = vdwg.mxu0
    %v4309 = vsel %vm3366, %v4228, 0
    %v4312 = vsel %vm3466, %v4020, 0
    %4314 = vmatpush.bf16.msra.mxu0 0
    %4315 = vmatpush.bf16.msra.mxu0 0
    %4316 = vmatpush.bf16.msra.mxu0 0
    %4317 = vmatpush.bf16.msra.mxu0 0
    %4318 = vmatpush.bf16.msra.mxu0 0
    %4319 = vmatpush.bf16.msra.mxu0 0
    %4320 = vmatpush.bf16.msra.mxu0 0
    %4321 = vmatpush.bf16.msra.mxu0 %v4312
    %4322 = vmatmul.bf16.gmra.mxu0 %v4309
    %v4323 = vpop.f32.mrf.mxu0
    %v4324 = vadd.f32 0.0, %v4323
    %v4325 = vpop.f32.mrf.mxu0
    %4326 = vdwg.mxu0
    %v4328 = vsel %vm3366, %v4229, 0
    %v4331 = vsel %vm3466, %v4021, 0
    %4333 = vmatpush.bf16.msra.mxu0 0
    %4334 = vmatpush.bf16.msra.mxu0 0
    %4335 = vmatpush.bf16.msra.mxu0 0
    %4336 = vmatpush.bf16.msra.mxu0 0
    %4337 = vmatpush.bf16.msra.mxu0 0
    %4338 = vmatpush.bf16.msra.mxu0 0
    %4339 = vmatpush.bf16.msra.mxu0 0
    %4340 = vmatpush.bf16.msra.mxu0 %v4331
    %4341 = vmatmul.bf16.gmra.mxu0 %v4328
    %v4342 = vpop.f32.mrf.mxu0
    %v4343 = vadd.f32 0.0, %v4342
    %v4344 = vpop.f32.mrf.mxu0
    %4345 = vdwg.mxu0
    %v4347 = vsel %vm3366, %v4230, 0
    %v4350 = vsel %vm3466, %v4022, 0
    %4352 = vmatpush.bf16.msra.mxu0 0
    %4353 = vmatpush.bf16.msra.mxu0 0
    %4354 = vmatpush.bf16.msra.mxu0 0
    %4355 = vmatpush.bf16.msra.mxu0 0
    %4356 = vmatpush.bf16.msra.mxu0 0
    %4357 = vmatpush.bf16.msra.mxu0 0
    %4358 = vmatpush.bf16.msra.mxu0 0
    %4359 = vmatpush.bf16.msra.mxu0 %v4350
    %4360 = vmatmul.bf16.gmra.mxu0 %v4347
    %v4361 = vpop.f32.mrf.mxu0
    %v4362 = vadd.f32 0.0, %v4361
    %v4363 = vpop.f32.mrf.mxu0
    %4364 = vdwg.mxu0
    %v4366 = vsel %vm3366, %v4231, 0
    %v4369 = vsel %vm3466, %v4023, 0
    %4371 = vmatpush.bf16.msra.mxu0 0
    %4372 = vmatpush.bf16.msra.mxu0 0
    %4373 = vmatpush.bf16.msra.mxu0 0
    %4374 = vmatpush.bf16.msra.mxu0 0
    %4375 = vmatpush.bf16.msra.mxu0 0
    %4376 = vmatpush.bf16.msra.mxu0 0
    %4377 = vmatpush.bf16.msra.mxu0 0
    %4378 = vmatpush.bf16.msra.mxu0 %v4369
    %4379 = vmatmul.bf16.gmra.mxu0 %v4366
    %v4380 = vpop.f32.mrf.mxu0
    %v4381 = vadd.f32 0.0, %v4380
    %v4382 = vpop.f32.mrf.mxu0
    %4383 = vdwg.mxu0
    %v4384 = vpack.c.bf16 %v2254, %v2254
    %v4385 = vpack.c.bf16 %v2256, %v2256
    %v4386 = vpack.c.bf16 %v2259, %v2259
    %v4387 = vpack.c.bf16 %v2261, %v2261
    %v4388 = vpack.c.bf16 %v2264, %v2264
    %v4389 = vpack.c.bf16 %v2266, %v2266
    %v4390 = vpack.c.bf16 %v2269, %v2269
    %v4391 = vpack.c.bf16 %v2271, %v2271
    %v4392 = vpack.c.bf16 %v2689, %v2689
    %v4393 = vpack.c.bf16 %v2691, %v2691
    %v4394 = vpack.c.bf16 %v2694, %v2694
    %v4395 = vpack.c.bf16 %v2696, %v2696
    %v4396 = vpack.c.bf16 %v2699, %v2699
    %v4397 = vpack.c.bf16 %v2701, %v2701
    %v4398 = vpack.c.bf16 %v2704, %v2704
    %v4399 = vpack.c.bf16 %v2706, %v2706
    %v4400 = vpack.c.bf16 %v3124, %v3124
    %v4401 = vpack.c.bf16 %v3126, %v3126
    %v4402 = vpack.c.bf16 %v3129, %v3129
    %v4403 = vpack.c.bf16 %v3131, %v3131
    %v4404 = vpack.c.bf16 %v3134, %v3134
    %v4405 = vpack.c.bf16 %v3136, %v3136
    %v4406 = vpack.c.bf16 %v3139, %v3139
    %v4407 = vpack.c.bf16 %v3141, %v3141
    %4408 = vmatpush.bf16.xpose.msra.mxu0 0
    %4409 = vmatpush.bf16.xpose.msra.mxu0 0
    %4410 = vmatpush.bf16.xpose.msra.mxu0 0
    %4411 = vmatpush.bf16.xpose.msra.mxu0 0
    %4412 = vmatpush.bf16.xpose.msra.mxu0 0
    %4413 = vmatpush.bf16.xpose.msra.mxu0 0
    %4414 = vmatpush.bf16.xpose.msra.mxu0 0
    %4415 = vmatpush.bf16.xpose.msra.mxu0 %v4392
    %4416 = vmatmul.bf16.gmra.mxu0 %v4384
    %v4417 = vpop.f32.mrf.mxu0
    %v4418 = vadd.f32 0.0, %v4417
    %v4419 = vpop.f32.mrf.mxu0
    %4420 = vdwg.mxu0
    %4421 = vmatpush.bf16.xpose.msra.mxu0 0
    %4422 = vmatpush.bf16.xpose.msra.mxu0 0
    %4423 = vmatpush.bf16.xpose.msra.mxu0 0
    %4424 = vmatpush.bf16.xpose.msra.mxu0 0
    %4425 = vmatpush.bf16.xpose.msra.mxu0 0
    %4426 = vmatpush.bf16.xpose.msra.mxu0 0
    %4427 = vmatpush.bf16.xpose.msra.mxu0 0
    %4428 = vmatpush.bf16.xpose.msra.mxu0 %v4393
    %4429 = vmatmul.bf16.gmra.mxu0 %v4385
    %v4430 = vpop.f32.mrf.mxu0
    %v4431 = vadd.f32 0.0, %v4430
    %v4432 = vpop.f32.mrf.mxu0
    %4433 = vdwg.mxu0
    %4434 = vmatpush.bf16.xpose.msra.mxu0 0
    %4435 = vmatpush.bf16.xpose.msra.mxu0 0
    %4436 = vmatpush.bf16.xpose.msra.mxu0 0
    %4437 = vmatpush.bf16.xpose.msra.mxu0 0
    %4438 = vmatpush.bf16.xpose.msra.mxu0 0
    %4439 = vmatpush.bf16.xpose.msra.mxu0 0
    %4440 = vmatpush.bf16.xpose.msra.mxu0 0
    %4441 = vmatpush.bf16.xpose.msra.mxu0 %v4394
    %4442 = vmatmul.bf16.gmra.mxu0 %v4386
    %v4443 = vpop.f32.mrf.mxu0
    %v4444 = vadd.f32 0.0, %v4443
    %v4445 = vpop.f32.mrf.mxu0
    %4446 = vdwg.mxu0
    %4447 = vmatpush.bf16.xpose.msra.mxu0 0
    %4448 = vmatpush.bf16.xpose.msra.mxu0 0
    %4449 = vmatpush.bf16.xpose.msra.mxu0 0
    %4450 = vmatpush.bf16.xpose.msra.mxu0 0
    %4451 = vmatpush.bf16.xpose.msra.mxu0 0
    %4452 = vmatpush.bf16.xpose.msra.mxu0 0
    %4453 = vmatpush.bf16.xpose.msra.mxu0 0
    %4454 = vmatpush.bf16.xpose.msra.mxu0 %v4395
    %4455 = vmatmul.bf16.gmra.mxu0 %v4387
    %v4456 = vpop.f32.mrf.mxu0
    %v4457 = vadd.f32 0.0, %v4456
    %v4458 = vpop.f32.mrf.mxu0
    %4459 = vdwg.mxu0
    %4460 = vmatpush.bf16.xpose.msra.mxu0 0
    %4461 = vmatpush.bf16.xpose.msra.mxu0 0
    %4462 = vmatpush.bf16.xpose.msra.mxu0 0
    %4463 = vmatpush.bf16.xpose.msra.mxu0 0
    %4464 = vmatpush.bf16.xpose.msra.mxu0 0
    %4465 = vmatpush.bf16.xpose.msra.mxu0 0
    %4466 = vmatpush.bf16.xpose.msra.mxu0 0
    %4467 = vmatpush.bf16.xpose.msra.mxu0 %v4396
    %4468 = vmatmul.bf16.gmra.mxu0 %v4388
    %v4469 = vpop.f32.mrf.mxu0
    %v4470 = vadd.f32 0.0, %v4469
    %v4471 = vpop.f32.mrf.mxu0
    %4472 = vdwg.mxu0
    %4473 = vmatpush.bf16.xpose.msra.mxu0 0
    %4474 = vmatpush.bf16.xpose.msra.mxu0 0
    %4475 = vmatpush.bf16.xpose.msra.mxu0 0
    %4476 = vmatpush.bf16.xpose.msra.mxu0 0
    %4477 = vmatpush.bf16.xpose.msra.mxu0 0
    %4478 = vmatpush.bf16.xpose.msra.mxu0 0
    %4479 = vmatpush.bf16.xpose.msra.mxu0 0
    %4480 = vmatpush.bf16.xpose.msra.mxu0 %v4397
    %4481 = vmatmul.bf16.gmra.mxu0 %v4389
    %v4482 = vpop.f32.mrf.mxu0
    %v4483 = vadd.f32 0.0, %v4482
    %v4484 = vpop.f32.mrf.mxu0
    %4485 = vdwg.mxu0
    %4486 = vmatpush.bf16.xpose.msra.mxu0 0
    %4487 = vmatpush.bf16.xpose.msra.mxu0 0
    %4488 = vmatpush.bf16.xpose.msra.mxu0 0
    %4489 = vmatpush.bf16.xpose.msra.mxu0 0
    %4490 = vmatpush.bf16.xpose.msra.mxu0 0
    %4491 = vmatpush.bf16.xpose.msra.mxu0 0
    %4492 = vmatpush.bf16.xpose.msra.mxu0 0
    %4493 = vmatpush.bf16.xpose.msra.mxu0 %v4398
    %4494 = vmatmul.bf16.gmra.mxu0 %v4390
    %v4495 = vpop.f32.mrf.mxu0
    %v4496 = vadd.f32 0.0, %v4495
    %v4497 = vpop.f32.mrf.mxu0
    %4498 = vdwg.mxu0
    %4499 = vmatpush.bf16.xpose.msra.mxu0 0
    %4500 = vmatpush.bf16.xpose.msra.mxu0 0
    %4501 = vmatpush.bf16.xpose.msra.mxu0 0
    %4502 = vmatpush.bf16.xpose.msra.mxu0 0
    %4503 = vmatpush.bf16.xpose.msra.mxu0 0
    %4504 = vmatpush.bf16.xpose.msra.mxu0 0
    %4505 = vmatpush.bf16.xpose.msra.mxu0 0
    %4506 = vmatpush.bf16.xpose.msra.mxu0 %v4399
    %4507 = vmatmul.bf16.gmra.mxu0 %v4391
    %v4508 = vpop.f32.mrf.mxu0
    %v4509 = vadd.f32 0.0, %v4508
    %v4510 = vpop.f32.mrf.mxu0
    %4511 = vdwg.mxu0
    %v4512 = vmul.f32 %v4418, 0.09128709
    %v4513 = vmul.f32 %v4431, 0.09128709
    %v4514 = vmul.f32 %v4444, 0.09128709
    %v4515 = vmul.f32 %v4457, 0.09128709
    %v4516 = vmul.f32 %v4470, 0.09128709
    %v4517 = vmul.f32 %v4483, 0.09128709
    %v4518 = vmul.f32 %v4496, 0.09128709
    %v4519 = vmul.f32 %v4509, 0.09128709
    %v4520 = vsel %vm3366, %v4512, -inf
    %4521 = vmax.xlane.f32.xlu0 %v4520
    %v4522 = vpop.xlane.xlu0 %4521
    %v4523 = vsel %vm3366, %v4513, -inf
    %4524 = vmax.xlane.f32.xlu0 %v4523
    %v4525 = vpop.xlane.xlu0 %4524
    %v4526 = vsel %vm3366, %v4514, -inf
    %4527 = vmax.xlane.f32.xlu0 %v4526
    %v4528 = vpop.xlane.xlu0 %4527
    %v4529 = vsel %vm3366, %v4515, -inf
    %4530 = vmax.xlane.f32.xlu0 %v4529
    %v4531 = vpop.xlane.xlu0 %4530
    %v4532 = vsel %vm3366, %v4516, -inf
    %4533 = vmax.xlane.f32.xlu0 %v4532
    %v4534 = vpop.xlane.xlu0 %4533
    %v4535 = vsel %vm3366, %v4517, -inf
    %4536 = vmax.xlane.f32.xlu0 %v4535
    %v4537 = vpop.xlane.xlu0 %4536
    %v4538 = vsel %vm3366, %v4518, -inf
    %4539 = vmax.xlane.f32.xlu0 %v4538
    %v4540 = vpop.xlane.xlu0 %4539
    %v4541 = vsel %vm3366, %v4519, -inf
    %4542 = vmax.xlane.f32.xlu0 %v4541
    %v4543 = vpop.xlane.xlu0 %4542
    %v4544 = vsub.f32 %v4512, %v4522
    %v4545 = vsub.f32 %v4513, %v4525
    %v4546 = vsub.f32 %v4514, %v4528
    %v4547 = vsub.f32 %v4515, %v4531
    %v4548 = vsub.f32 %v4516, %v4534
    %v4549 = vsub.f32 %v4517, %v4537
    %v4550 = vsub.f32 %v4518, %v4540
    %v4551 = vsub.f32 %v4519, %v4543
    %v4552 = vmul.f32 %v4544, 1.442695
    %v4553 = vpow.pop %v4552
    %v4554 = vmul.f32 %v4545, 1.442695
    %v4555 = vpow.pop %v4554
    %v4556 = vmul.f32 %v4546, 1.442695
    %v4557 = vpow.pop %v4556
    %v4558 = vmul.f32 %v4547, 1.442695
    %v4559 = vpow.pop %v4558
    %v4560 = vmul.f32 %v4548, 1.442695
    %v4561 = vpow.pop %v4560
    %v4562 = vmul.f32 %v4549, 1.442695
    %v4563 = vpow.pop %v4562
    %v4564 = vmul.f32 %v4550, 1.442695
    %v4565 = vpow.pop %v4564
    %v4566 = vmul.f32 %v4551, 1.442695
    %v4567 = vpow.pop %v4566
    %v4568 = vsel %vm3366, %v4553, 0.0
    %4569 = vadd.xlane.f32.xlu0 %v4568
    %v4570 = vpop.xlane.xlu0 %4569
    %v4571 = vsel %vm3366, %v4555, 0.0
    %4572 = vadd.xlane.f32.xlu0 %v4571
    %v4573 = vpop.xlane.xlu0 %4572
    %v4574 = vsel %vm3366, %v4557, 0.0
    %4575 = vadd.xlane.f32.xlu0 %v4574
    %v4576 = vpop.xlane.xlu0 %4575
    %v4577 = vsel %vm3366, %v4559, 0.0
    %4578 = vadd.xlane.f32.xlu0 %v4577
    %v4579 = vpop.xlane.xlu0 %4578
    %v4580 = vsel %vm3366, %v4561, 0.0
    %4581 = vadd.xlane.f32.xlu0 %v4580
    %v4582 = vpop.xlane.xlu0 %4581
    %v4583 = vsel %vm3366, %v4563, 0.0
    %4584 = vadd.xlane.f32.xlu0 %v4583
    %v4585 = vpop.xlane.xlu0 %4584
    %v4586 = vsel %vm3366, %v4565, 0.0
    %4587 = vadd.xlane.f32.xlu0 %v4586
    %v4588 = vpop.xlane.xlu0 %4587
    %v4589 = vsel %vm3366, %v4567, 0.0
    %4590 = vadd.xlane.f32.xlu0 %v4589
    %v4591 = vpop.xlane.xlu0 %4590
    %v4592 = vrcp.pop %v4570
    %v4593 = vrcp.pop %v4573
    %v4594 = vrcp.pop %v4576
    %v4595 = vrcp.pop %v4579
    %v4596 = vrcp.pop %v4582
    %v4597 = vrcp.pop %v4585
    %v4598 = vrcp.pop %v4588
    %v4599 = vrcp.pop %v4591
    %v4600 = vmul.f32 %v4553, %v4592
    %v4601 = vmul.f32 %v4555, %v4593
    %v4602 = vmul.f32 %v4557, %v4594
    %v4603 = vmul.f32 %v4559, %v4595
    %v4604 = vmul.f32 %v4561, %v4596
    %v4605 = vmul.f32 %v4563, %v4597
    %v4606 = vmul.f32 %v4565, %v4598
    %v4607 = vmul.f32 %v4567, %v4599
    %v4608 = vpack.c.bf16 %v4600, %v4600
    %v4609 = vpack.c.bf16 %v4601, %v4601
    %v4610 = vpack.c.bf16 %v4602, %v4602
    %v4611 = vpack.c.bf16 %v4603, %v4603
    %v4612 = vpack.c.bf16 %v4604, %v4604
    %v4613 = vpack.c.bf16 %v4605, %v4605
    %v4614 = vpack.c.bf16 %v4606, %v4606
    %v4615 = vpack.c.bf16 %v4607, %v4607
    %v4617 = vsel %vm3366, %v4608, 0
    %v4620 = vsel %vm3466, %v4400, 0
    %4622 = vmatpush.bf16.msra.mxu0 0
    %4623 = vmatpush.bf16.msra.mxu0 0
    %4624 = vmatpush.bf16.msra.mxu0 0
    %4625 = vmatpush.bf16.msra.mxu0 0
    %4626 = vmatpush.bf16.msra.mxu0 0
    %4627 = vmatpush.bf16.msra.mxu0 0
    %4628 = vmatpush.bf16.msra.mxu0 0
    %4629 = vmatpush.bf16.msra.mxu0 %v4620
    %4630 = vmatmul.bf16.gmra.mxu0 %v4617
    %v4631 = vpop.f32.mrf.mxu0
    %v4632 = vadd.f32 0.0, %v4631
    %v4633 = vpop.f32.mrf.mxu0
    %4634 = vdwg.mxu0
    %v4636 = vsel %vm3366, %v4609, 0
    %v4639 = vsel %vm3466, %v4401, 0
    %4641 = vmatpush.bf16.msra.mxu0 0
    %4642 = vmatpush.bf16.msra.mxu0 0
    %4643 = vmatpush.bf16.msra.mxu0 0
    %4644 = vmatpush.bf16.msra.mxu0 0
    %4645 = vmatpush.bf16.msra.mxu0 0
    %4646 = vmatpush.bf16.msra.mxu0 0
    %4647 = vmatpush.bf16.msra.mxu0 0
    %4648 = vmatpush.bf16.msra.mxu0 %v4639
    %4649 = vmatmul.bf16.gmra.mxu0 %v4636
    %v4650 = vpop.f32.mrf.mxu0
    %v4651 = vadd.f32 0.0, %v4650
    %v4652 = vpop.f32.mrf.mxu0
    %4653 = vdwg.mxu0
    %v4655 = vsel %vm3366, %v4610, 0
    %v4658 = vsel %vm3466, %v4402, 0
    %4660 = vmatpush.bf16.msra.mxu0 0
    %4661 = vmatpush.bf16.msra.mxu0 0
    %4662 = vmatpush.bf16.msra.mxu0 0
    %4663 = vmatpush.bf16.msra.mxu0 0
    %4664 = vmatpush.bf16.msra.mxu0 0
    %4665 = vmatpush.bf16.msra.mxu0 0
    %4666 = vmatpush.bf16.msra.mxu0 0
    %4667 = vmatpush.bf16.msra.mxu0 %v4658
    %4668 = vmatmul.bf16.gmra.mxu0 %v4655
    %v4669 = vpop.f32.mrf.mxu0
    %v4670 = vadd.f32 0.0, %v4669
    %v4671 = vpop.f32.mrf.mxu0
    %4672 = vdwg.mxu0
    %v4674 = vsel %vm3366, %v4611, 0
    %v4677 = vsel %vm3466, %v4403, 0
    %4679 = vmatpush.bf16.msra.mxu0 0
    %4680 = vmatpush.bf16.msra.mxu0 0
    %4681 = vmatpush.bf16.msra.mxu0 0
    %4682 = vmatpush.bf16.msra.mxu0 0
    %4683 = vmatpush.bf16.msra.mxu0 0
    %4684 = vmatpush.bf16.msra.mxu0 0
    %4685 = vmatpush.bf16.msra.mxu0 0
    %4686 = vmatpush.bf16.msra.mxu0 %v4677
    %4687 = vmatmul.bf16.gmra.mxu0 %v4674
    %v4688 = vpop.f32.mrf.mxu0
    %v4689 = vadd.f32 0.0, %v4688
    %v4690 = vpop.f32.mrf.mxu0
    %4691 = vdwg.mxu0
    %v4693 = vsel %vm3366, %v4612, 0
    %v4696 = vsel %vm3466, %v4404, 0
    %4698 = vmatpush.bf16.msra.mxu0 0
    %4699 = vmatpush.bf16.msra.mxu0 0
    %4700 = vmatpush.bf16.msra.mxu0 0
    %4701 = vmatpush.bf16.msra.mxu0 0
    %4702 = vmatpush.bf16.msra.mxu0 0
    %4703 = vmatpush.bf16.msra.mxu0 0
    %4704 = vmatpush.bf16.msra.mxu0 0
    %4705 = vmatpush.bf16.msra.mxu0 %v4696
    %4706 = vmatmul.bf16.gmra.mxu0 %v4693
    %v4707 = vpop.f32.mrf.mxu0
    %v4708 = vadd.f32 0.0, %v4707
    %v4709 = vpop.f32.mrf.mxu0
    %4710 = vdwg.mxu0
    %v4712 = vsel %vm3366, %v4613, 0
    %v4715 = vsel %vm3466, %v4405, 0
    %4717 = vmatpush.bf16.msra.mxu0 0
    %4718 = vmatpush.bf16.msra.mxu0 0
    %4719 = vmatpush.bf16.msra.mxu0 0
    %4720 = vmatpush.bf16.msra.mxu0 0
    %4721 = vmatpush.bf16.msra.mxu0 0
    %4722 = vmatpush.bf16.msra.mxu0 0
    %4723 = vmatpush.bf16.msra.mxu0 0
    %4724 = vmatpush.bf16.msra.mxu0 %v4715
    %4725 = vmatmul.bf16.gmra.mxu0 %v4712
    %v4726 = vpop.f32.mrf.mxu0
    %v4727 = vadd.f32 0.0, %v4726
    %v4728 = vpop.f32.mrf.mxu0
    %4729 = vdwg.mxu0
    %v4731 = vsel %vm3366, %v4614, 0
    %v4734 = vsel %vm3466, %v4406, 0
    %4736 = vmatpush.bf16.msra.mxu0 0
    %4737 = vmatpush.bf16.msra.mxu0 0
    %4738 = vmatpush.bf16.msra.mxu0 0
    %4739 = vmatpush.bf16.msra.mxu0 0
    %4740 = vmatpush.bf16.msra.mxu0 0
    %4741 = vmatpush.bf16.msra.mxu0 0
    %4742 = vmatpush.bf16.msra.mxu0 0
    %4743 = vmatpush.bf16.msra.mxu0 %v4734
    %4744 = vmatmul.bf16.gmra.mxu0 %v4731
    %v4745 = vpop.f32.mrf.mxu0
    %v4746 = vadd.f32 0.0, %v4745
    %v4747 = vpop.f32.mrf.mxu0
    %4748 = vdwg.mxu0
    %v4750 = vsel %vm3366, %v4615, 0
    %v4753 = vsel %vm3466, %v4407, 0
    %4755 = vmatpush.bf16.msra.mxu0 0
    %4756 = vmatpush.bf16.msra.mxu0 0
    %4757 = vmatpush.bf16.msra.mxu0 0
    %4758 = vmatpush.bf16.msra.mxu0 0
    %4759 = vmatpush.bf16.msra.mxu0 0
    %4760 = vmatpush.bf16.msra.mxu0 0
    %4761 = vmatpush.bf16.msra.mxu0 0
    %4762 = vmatpush.bf16.msra.mxu0 %v4753
    %4763 = vmatmul.bf16.gmra.mxu0 %v4750
    %v4764 = vpop.f32.mrf.mxu0
    %v4765 = vadd.f32 0.0, %v4764
    %v4766 = vpop.f32.mrf.mxu0
    %4767 = vdwg.mxu0
    %v4768 = vpack.c.bf16 %v2341, %v2341
    %v4769 = vpack.c.bf16 %v2343, %v2343
    %v4770 = vpack.c.bf16 %v2346, %v2346
    %v4771 = vpack.c.bf16 %v2348, %v2348
    %v4772 = vpack.c.bf16 %v2351, %v2351
    %v4773 = vpack.c.bf16 %v2353, %v2353
    %v4774 = vpack.c.bf16 %v2356, %v2356
    %v4775 = vpack.c.bf16 %v2358, %v2358
    %v4776 = vpack.c.bf16 %v2776, %v2776
    %v4777 = vpack.c.bf16 %v2778, %v2778
    %v4778 = vpack.c.bf16 %v2781, %v2781
    %v4779 = vpack.c.bf16 %v2783, %v2783
    %v4780 = vpack.c.bf16 %v2786, %v2786
    %v4781 = vpack.c.bf16 %v2788, %v2788
    %v4782 = vpack.c.bf16 %v2791, %v2791
    %v4783 = vpack.c.bf16 %v2793, %v2793
    %v4784 = vpack.c.bf16 %v3211, %v3211
    %v4785 = vpack.c.bf16 %v3213, %v3213
    %v4786 = vpack.c.bf16 %v3216, %v3216
    %v4787 = vpack.c.bf16 %v3218, %v3218
    %v4788 = vpack.c.bf16 %v3221, %v3221
    %v4789 = vpack.c.bf16 %v3223, %v3223
    %v4790 = vpack.c.bf16 %v3226, %v3226
    %v4791 = vpack.c.bf16 %v3228, %v3228
    %4792 = vmatpush.bf16.xpose.msra.mxu0 0
    %4793 = vmatpush.bf16.xpose.msra.mxu0 0
    %4794 = vmatpush.bf16.xpose.msra.mxu0 0
    %4795 = vmatpush.bf16.xpose.msra.mxu0 0
    %4796 = vmatpush.bf16.xpose.msra.mxu0 0
    %4797 = vmatpush.bf16.xpose.msra.mxu0 0
    %4798 = vmatpush.bf16.xpose.msra.mxu0 0
    %4799 = vmatpush.bf16.xpose.msra.mxu0 %v4776
    %4800 = vmatmul.bf16.gmra.mxu0 %v4768
    %v4801 = vpop.f32.mrf.mxu0
    %v4802 = vadd.f32 0.0, %v4801
    %v4803 = vpop.f32.mrf.mxu0
    %4804 = vdwg.mxu0
    %4805 = vmatpush.bf16.xpose.msra.mxu0 0
    %4806 = vmatpush.bf16.xpose.msra.mxu0 0
    %4807 = vmatpush.bf16.xpose.msra.mxu0 0
    %4808 = vmatpush.bf16.xpose.msra.mxu0 0
    %4809 = vmatpush.bf16.xpose.msra.mxu0 0
    %4810 = vmatpush.bf16.xpose.msra.mxu0 0
    %4811 = vmatpush.bf16.xpose.msra.mxu0 0
    %4812 = vmatpush.bf16.xpose.msra.mxu0 %v4777
    %4813 = vmatmul.bf16.gmra.mxu0 %v4769
    %v4814 = vpop.f32.mrf.mxu0
    %v4815 = vadd.f32 0.0, %v4814
    %v4816 = vpop.f32.mrf.mxu0
    %4817 = vdwg.mxu0
    %4818 = vmatpush.bf16.xpose.msra.mxu0 0
    %4819 = vmatpush.bf16.xpose.msra.mxu0 0
    %4820 = vmatpush.bf16.xpose.msra.mxu0 0
    %4821 = vmatpush.bf16.xpose.msra.mxu0 0
    %4822 = vmatpush.bf16.xpose.msra.mxu0 0
    %4823 = vmatpush.bf16.xpose.msra.mxu0 0
    %4824 = vmatpush.bf16.xpose.msra.mxu0 0
    %4825 = vmatpush.bf16.xpose.msra.mxu0 %v4778
    %4826 = vmatmul.bf16.gmra.mxu0 %v4770
    %v4827 = vpop.f32.mrf.mxu0
    %v4828 = vadd.f32 0.0, %v4827
    %v4829 = vpop.f32.mrf.mxu0
    %4830 = vdwg.mxu0
    %4831 = vmatpush.bf16.xpose.msra.mxu0 0
    %4832 = vmatpush.bf16.xpose.msra.mxu0 0
    %4833 = vmatpush.bf16.xpose.msra.mxu0 0
    %4834 = vmatpush.bf16.xpose.msra.mxu0 0
    %4835 = vmatpush.bf16.xpose.msra.mxu0 0
    %4836 = vmatpush.bf16.xpose.msra.mxu0 0
    %4837 = vmatpush.bf16.xpose.msra.mxu0 0
    %4838 = vmatpush.bf16.xpose.msra.mxu0 %v4779
    %4839 = vmatmul.bf16.gmra.mxu0 %v4771
    %v4840 = vpop.f32.mrf.mxu0
    %v4841 = vadd.f32 0.0, %v4840
    %v4842 = vpop.f32.mrf.mxu0
    %4843 = vdwg.mxu0
    %4844 = vmatpush.bf16.xpose.msra.mxu0 0
    %4845 = vmatpush.bf16.xpose.msra.mxu0 0
    %4846 = vmatpush.bf16.xpose.msra.mxu0 0
    %4847 = vmatpush.bf16.xpose.msra.mxu0 0
    %4848 = vmatpush.bf16.xpose.msra.mxu0 0
    %4849 = vmatpush.bf16.xpose.msra.mxu0 0
    %4850 = vmatpush.bf16.xpose.msra.mxu0 0
    %4851 = vmatpush.bf16.xpose.msra.mxu0 %v4780
    %4852 = vmatmul.bf16.gmra.mxu0 %v4772
    %v4853 = vpop.f32.mrf.mxu0
    %v4854 = vadd.f32 0.0, %v4853
    %v4855 = vpop.f32.mrf.mxu0
    %4856 = vdwg.mxu0
    %4857 = vmatpush.bf16.xpose.msra.mxu0 0
    %4858 = vmatpush.bf16.xpose.msra.mxu0 0
    %4859 = vmatpush.bf16.xpose.msra.mxu0 0
    %4860 = vmatpush.bf16.xpose.msra.mxu0 0
    %4861 = vmatpush.bf16.xpose.msra.mxu0 0
    %4862 = vmatpush.bf16.xpose.msra.mxu0 0
    %4863 = vmatpush.bf16.xpose.msra.mxu0 0
    %4864 = vmatpush.bf16.xpose.msra.mxu0 %v4781
    %4865 = vmatmul.bf16.gmra.mxu0 %v4773
    %v4866 = vpop.f32.mrf.mxu0
    %v4867 = vadd.f32 0.0, %v4866
    %v4868 = vpop.f32.mrf.mxu0
    %4869 = vdwg.mxu0
    %4870 = vmatpush.bf16.xpose.msra.mxu0 0
    %4871 = vmatpush.bf16.xpose.msra.mxu0 0
    %4872 = vmatpush.bf16.xpose.msra.mxu0 0
    %4873 = vmatpush.bf16.xpose.msra.mxu0 0
    %4874 = vmatpush.bf16.xpose.msra.mxu0 0
    %4875 = vmatpush.bf16.xpose.msra.mxu0 0
    %4876 = vmatpush.bf16.xpose.msra.mxu0 0
    %4877 = vmatpush.bf16.xpose.msra.mxu0 %v4782
    %4878 = vmatmul.bf16.gmra.mxu0 %v4774
    %v4879 = vpop.f32.mrf.mxu0
    %v4880 = vadd.f32 0.0, %v4879
    %v4881 = vpop.f32.mrf.mxu0
    %4882 = vdwg.mxu0
    %4883 = vmatpush.bf16.xpose.msra.mxu0 0
    %4884 = vmatpush.bf16.xpose.msra.mxu0 0
    %4885 = vmatpush.bf16.xpose.msra.mxu0 0
    %4886 = vmatpush.bf16.xpose.msra.mxu0 0
    %4887 = vmatpush.bf16.xpose.msra.mxu0 0
    %4888 = vmatpush.bf16.xpose.msra.mxu0 0
    %4889 = vmatpush.bf16.xpose.msra.mxu0 0
    %4890 = vmatpush.bf16.xpose.msra.mxu0 %v4783
    %4891 = vmatmul.bf16.gmra.mxu0 %v4775
    %v4892 = vpop.f32.mrf.mxu0
    %v4893 = vadd.f32 0.0, %v4892
    %v4894 = vpop.f32.mrf.mxu0
    %4895 = vdwg.mxu0
    %v4896 = vmul.f32 %v4802, 0.09128709
    %v4897 = vmul.f32 %v4815, 0.09128709
    %v4898 = vmul.f32 %v4828, 0.09128709
    %v4899 = vmul.f32 %v4841, 0.09128709
    %v4900 = vmul.f32 %v4854, 0.09128709
    %v4901 = vmul.f32 %v4867, 0.09128709
    %v4902 = vmul.f32 %v4880, 0.09128709
    %v4903 = vmul.f32 %v4893, 0.09128709
    %v4904 = vsel %vm3366, %v4896, -inf
    %4905 = vmax.xlane.f32.xlu0 %v4904
    %v4906 = vpop.xlane.xlu0 %4905
    %v4907 = vsel %vm3366, %v4897, -inf
    %4908 = vmax.xlane.f32.xlu0 %v4907
    %v4909 = vpop.xlane.xlu0 %4908
    %v4910 = vsel %vm3366, %v4898, -inf
    %4911 = vmax.xlane.f32.xlu0 %v4910
    %v4912 = vpop.xlane.xlu0 %4911
    %v4913 = vsel %vm3366, %v4899, -inf
    %4914 = vmax.xlane.f32.xlu0 %v4913
    %v4915 = vpop.xlane.xlu0 %4914
    %v4916 = vsel %vm3366, %v4900, -inf
    %4917 = vmax.xlane.f32.xlu0 %v4916
    %v4918 = vpop.xlane.xlu0 %4917
    %v4919 = vsel %vm3366, %v4901, -inf
    %4920 = vmax.xlane.f32.xlu0 %v4919
    %v4921 = vpop.xlane.xlu0 %4920
    %v4922 = vsel %vm3366, %v4902, -inf
    %4923 = vmax.xlane.f32.xlu0 %v4922
    %v4924 = vpop.xlane.xlu0 %4923
    %v4925 = vsel %vm3366, %v4903, -inf
    %4926 = vmax.xlane.f32.xlu0 %v4925
    %v4927 = vpop.xlane.xlu0 %4926
    %v4928 = vsub.f32 %v4896, %v4906
    %v4929 = vsub.f32 %v4897, %v4909
    %v4930 = vsub.f32 %v4898, %v4912
    %v4931 = vsub.f32 %v4899, %v4915
    %v4932 = vsub.f32 %v4900, %v4918
    %v4933 = vsub.f32 %v4901, %v4921
    %v4934 = vsub.f32 %v4902, %v4924
    %v4935 = vsub.f32 %v4903, %v4927
    %v4936 = vmul.f32 %v4928, 1.442695
    %v4937 = vpow.pop %v4936
    %v4938 = vmul.f32 %v4929, 1.442695
    %v4939 = vpow.pop %v4938
    %v4940 = vmul.f32 %v4930, 1.442695
    %v4941 = vpow.pop %v4940
    %v4942 = vmul.f32 %v4931, 1.442695
    %v4943 = vpow.pop %v4942
    %v4944 = vmul.f32 %v4932, 1.442695
    %v4945 = vpow.pop %v4944
    %v4946 = vmul.f32 %v4933, 1.442695
    %v4947 = vpow.pop %v4946
    %v4948 = vmul.f32 %v4934, 1.442695
    %v4949 = vpow.pop %v4948
    %v4950 = vmul.f32 %v4935, 1.442695
    %v4951 = vpow.pop %v4950
    %v4952 = vsel %vm3366, %v4937, 0.0
    %4953 = vadd.xlane.f32.xlu0 %v4952
    %v4954 = vpop.xlane.xlu0 %4953
    %v4955 = vsel %vm3366, %v4939, 0.0
    %4956 = vadd.xlane.f32.xlu0 %v4955
    %v4957 = vpop.xlane.xlu0 %4956
    %v4958 = vsel %vm3366, %v4941, 0.0
    %4959 = vadd.xlane.f32.xlu0 %v4958
    %v4960 = vpop.xlane.xlu0 %4959
    %v4961 = vsel %vm3366, %v4943, 0.0
    %4962 = vadd.xlane.f32.xlu0 %v4961
    %v4963 = vpop.xlane.xlu0 %4962
    %v4964 = vsel %vm3366, %v4945, 0.0
    %4965 = vadd.xlane.f32.xlu0 %v4964
    %v4966 = vpop.xlane.xlu0 %4965
    %v4967 = vsel %vm3366, %v4947, 0.0
    %4968 = vadd.xlane.f32.xlu0 %v4967
    %v4969 = vpop.xlane.xlu0 %4968
    %v4970 = vsel %vm3366, %v4949, 0.0
    %4971 = vadd.xlane.f32.xlu0 %v4970
    %v4972 = vpop.xlane.xlu0 %4971
    %v4973 = vsel %vm3366, %v4951, 0.0
    %4974 = vadd.xlane.f32.xlu0 %v4973
    %v4975 = vpop.xlane.xlu0 %4974
    %v4976 = vrcp.pop %v4954
    %v4977 = vrcp.pop %v4957
    %v4978 = vrcp.pop %v4960
    %v4979 = vrcp.pop %v4963
    %v4980 = vrcp.pop %v4966
    %v4981 = vrcp.pop %v4969
    %v4982 = vrcp.pop %v4972
    %v4983 = vrcp.pop %v4975
    %v4984 = vmul.f32 %v4937, %v4976
    %v4985 = vmul.f32 %v4939, %v4977
    %v4986 = vmul.f32 %v4941, %v4978
    %v4987 = vmul.f32 %v4943, %v4979
    %v4988 = vmul.f32 %v4945, %v4980
    %v4989 = vmul.f32 %v4947, %v4981
    %v4990 = vmul.f32 %v4949, %v4982
    %v4991 = vmul.f32 %v4951, %v4983
    %v4992 = vpack.c.bf16 %v4984, %v4984
    %v4993 = vpack.c.bf16 %v4985, %v4985
    %v4994 = vpack.c.bf16 %v4986, %v4986
    %v4995 = vpack.c.bf16 %v4987, %v4987
    %v4996 = vpack.c.bf16 %v4988, %v4988
    %v4997 = vpack.c.bf16 %v4989, %v4989
    %v4998 = vpack.c.bf16 %v4990, %v4990
    %v4999 = vpack.c.bf16 %v4991, %v4991
    %v5001 = vsel %vm3366, %v4992, 0
    %v5004 = vsel %vm3466, %v4784, 0
    %5006 = vmatpush.bf16.msra.mxu0 0
    %5007 = vmatpush.bf16.msra.mxu0 0
    %5008 = vmatpush.bf16.msra.mxu0 0
    %5009 = vmatpush.bf16.msra.mxu0 0
    %5010 = vmatpush.bf16.msra.mxu0 0
    %5011 = vmatpush.bf16.msra.mxu0 0
    %5012 = vmatpush.bf16.msra.mxu0 0
    %5013 = vmatpush.bf16.msra.mxu0 %v5004
    %5014 = vmatmul.bf16.gmra.mxu0 %v5001
    %v5015 = vpop.f32.mrf.mxu0
    %v5016 = vadd.f32 0.0, %v5015
    %v5017 = vpop.f32.mrf.mxu0
    %5018 = vdwg.mxu0
    %v5020 = vsel %vm3366, %v4993, 0
    %v5023 = vsel %vm3466, %v4785, 0
    %5025 = vmatpush.bf16.msra.mxu0 0
    %5026 = vmatpush.bf16.msra.mxu0 0
    %5027 = vmatpush.bf16.msra.mxu0 0
    %5028 = vmatpush.bf16.msra.mxu0 0
    %5029 = vmatpush.bf16.msra.mxu0 0
    %5030 = vmatpush.bf16.msra.mxu0 0
    %5031 = vmatpush.bf16.msra.mxu0 0
    %5032 = vmatpush.bf16.msra.mxu0 %v5023
    %5033 = vmatmul.bf16.gmra.mxu0 %v5020
    %v5034 = vpop.f32.mrf.mxu0
    %v5035 = vadd.f32 0.0, %v5034
    %v5036 = vpop.f32.mrf.mxu0
    %5037 = vdwg.mxu0
    %v5039 = vsel %vm3366, %v4994, 0
    %v5042 = vsel %vm3466, %v4786, 0
    %5044 = vmatpush.bf16.msra.mxu0 0
    %5045 = vmatpush.bf16.msra.mxu0 0
    %5046 = vmatpush.bf16.msra.mxu0 0
    %5047 = vmatpush.bf16.msra.mxu0 0
    %5048 = vmatpush.bf16.msra.mxu0 0
    %5049 = vmatpush.bf16.msra.mxu0 0
    %5050 = vmatpush.bf16.msra.mxu0 0
    %5051 = vmatpush.bf16.msra.mxu0 %v5042
    %5052 = vmatmul.bf16.gmra.mxu0 %v5039
    %v5053 = vpop.f32.mrf.mxu0
    %v5054 = vadd.f32 0.0, %v5053
    %v5055 = vpop.f32.mrf.mxu0
    %5056 = vdwg.mxu0
    %v5058 = vsel %vm3366, %v4995, 0
    %v5061 = vsel %vm3466, %v4787, 0
    %5063 = vmatpush.bf16.msra.mxu0 0
    %5064 = vmatpush.bf16.msra.mxu0 0
    %5065 = vmatpush.bf16.msra.mxu0 0
    %5066 = vmatpush.bf16.msra.mxu0 0
    %5067 = vmatpush.bf16.msra.mxu0 0
    %5068 = vmatpush.bf16.msra.mxu0 0
    %5069 = vmatpush.bf16.msra.mxu0 0
    %5070 = vmatpush.bf16.msra.mxu0 %v5061
    %5071 = vmatmul.bf16.gmra.mxu0 %v5058
    %v5072 = vpop.f32.mrf.mxu0
    %v5073 = vadd.f32 0.0, %v5072
    %v5074 = vpop.f32.mrf.mxu0
    %5075 = vdwg.mxu0
    %v5077 = vsel %vm3366, %v4996, 0
    %v5080 = vsel %vm3466, %v4788, 0
    %5082 = vmatpush.bf16.msra.mxu0 0
    %5083 = vmatpush.bf16.msra.mxu0 0
    %5084 = vmatpush.bf16.msra.mxu0 0
    %5085 = vmatpush.bf16.msra.mxu0 0
    %5086 = vmatpush.bf16.msra.mxu0 0
    %5087 = vmatpush.bf16.msra.mxu0 0
    %5088 = vmatpush.bf16.msra.mxu0 0
    %5089 = vmatpush.bf16.msra.mxu0 %v5080
    %5090 = vmatmul.bf16.gmra.mxu0 %v5077
    %v5091 = vpop.f32.mrf.mxu0
    %v5092 = vadd.f32 0.0, %v5091
    %v5093 = vpop.f32.mrf.mxu0
    %5094 = vdwg.mxu0
    %v5096 = vsel %vm3366, %v4997, 0
    %v5099 = vsel %vm3466, %v4789, 0
    %5101 = vmatpush.bf16.msra.mxu0 0
    %5102 = vmatpush.bf16.msra.mxu0 0
    %5103 = vmatpush.bf16.msra.mxu0 0
    %5104 = vmatpush.bf16.msra.mxu0 0
    %5105 = vmatpush.bf16.msra.mxu0 0
    %5106 = vmatpush.bf16.msra.mxu0 0
    %5107 = vmatpush.bf16.msra.mxu0 0
    %5108 = vmatpush.bf16.msra.mxu0 %v5099
    %5109 = vmatmul.bf16.gmra.mxu0 %v5096
    %v5110 = vpop.f32.mrf.mxu0
    %v5111 = vadd.f32 0.0, %v5110
    %v5112 = vpop.f32.mrf.mxu0
    %5113 = vdwg.mxu0
    %v5115 = vsel %vm3366, %v4998, 0
    %v5118 = vsel %vm3466, %v4790, 0
    %5120 = vmatpush.bf16.msra.mxu0 0
    %5121 = vmatpush.bf16.msra.mxu0 0
    %5122 = vmatpush.bf16.msra.mxu0 0
    %5123 = vmatpush.bf16.msra.mxu0 0
    %5124 = vmatpush.bf16.msra.mxu0 0
    %5125 = vmatpush.bf16.msra.mxu0 0
    %5126 = vmatpush.bf16.msra.mxu0 0
    %5127 = vmatpush.bf16.msra.mxu0 %v5118
    %5128 = vmatmul.bf16.gmra.mxu0 %v5115
    %v5129 = vpop.f32.mrf.mxu0
    %v5130 = vadd.f32 0.0, %v5129
    %v5131 = vpop.f32.mrf.mxu0
    %5132 = vdwg.mxu0
    %v5134 = vsel %vm3366, %v4999, 0
    %v5137 = vsel %vm3466, %v4791, 0
    %5139 = vmatpush.bf16.msra.mxu0 0
    %5140 = vmatpush.bf16.msra.mxu0 0
    %5141 = vmatpush.bf16.msra.mxu0 0
    %5142 = vmatpush.bf16.msra.mxu0 0
    %5143 = vmatpush.bf16.msra.mxu0 0
    %5144 = vmatpush.bf16.msra.mxu0 0
    %5145 = vmatpush.bf16.msra.mxu0 0
    %5146 = vmatpush.bf16.msra.mxu0 %v5137
    %5147 = vmatmul.bf16.gmra.mxu0 %v5134
    %v5148 = vpop.f32.mrf.mxu0
    %v5149 = vadd.f32 0.0, %v5148
    %v5150 = vpop.f32.mrf.mxu0
    %5151 = vdwg.mxu0
    %v5152 = vpack.c.bf16 %v3499, %v3480
    %v5153 = vpack.c.bf16 %v3883, %v3864
    %v5154 = vpack.c.bf16 %v4267, %v4248
    %v5155 = vpack.c.bf16 %v4651, %v4632
    %v5156 = vpack.c.bf16 %v5035, %v5016
    %v5157 = vpack.c.bf16 %v3537, %v3518
    %v5158 = vpack.c.bf16 %v3921, %v3902
    %v5159 = vpack.c.bf16 %v4305, %v4286
    %v5160 = vpack.c.bf16 %v4689, %v4670
    %v5161 = vpack.c.bf16 %v5073, %v5054
    %v5162 = vpack.c.bf16 %v3575, %v3556
    %v5163 = vpack.c.bf16 %v3959, %v3940
    %v5164 = vpack.c.bf16 %v4343, %v4324
    %v5165 = vpack.c.bf16 %v4727, %v4708
    %v5166 = vpack.c.bf16 %v5111, %v5092
    %v5167 = vpack.c.bf16 %v3613, %v3594
    %v5168 = vpack.c.bf16 %v3997, %v3978
    %v5169 = vpack.c.bf16 %v4381, %v4362
    %v5170 = vpack.c.bf16 %v4765, %v4746
    %v5171 = vpack.c.bf16 %v5149, %v5130
    %v5172 = vld [vmem:[%s2] sm:$0xff]
    %v5173 = vld [vmem:[%s2 + $0x8] sm:$0xf]
    %v5174 = vld [vmem:[%s2 + $0xc] sm:$0xff]
    %v5175 = vld [vmem:[%s2 + $0x14] sm:$0xf]
    %v5176 = vld [vmem:[%s2 + $0x18] sm:$0xff]
    %v5177 = vld [vmem:[%s2 + $0x20] sm:$0xf]
    %v5178 = vld [vmem:[%s2 + $0x24] sm:$0xff]
    %v5179 = vld [vmem:[%s2 + $0x2c] sm:$0xf]
    %v5180 = vld [vmem:[%s2 + $0x30] sm:$0xff]
    %v5181 = vld [vmem:[%s2 + $0x38] sm:$0xf]
    %v5182 = vld [vmem:[%s2 + $0x3c] sm:$0xff]
    %v5183 = vld [vmem:[%s2 + $0x44] sm:$0xf]
    %v5184 = vld [vmem:[%s2 + $0x48] sm:$0xff]
    %v5185 = vld [vmem:[%s2 + $0x50] sm:$0xf]
    %v5186 = vld [vmem:[%s2 + $0x54] sm:$0xff]
    %v5187 = vld [vmem:[%s2 + $0x5c] sm:$0xf]
    %v5188 = vld [vmem:[%s2 + $0x60] sm:$0xff]
    %v5189 = vld [vmem:[%s2 + $0x68] sm:$0xf]
    %v5190 = vld [vmem:[%s2 + $0x6c] sm:$0xff]
    %v5191 = vld [vmem:[%s2 + $0x74] sm:$0xf]
    %v5192 = vld [vmem:[%s2 + $0x78] sm:$0xff]
    %v5193 = vld [vmem:[%s2 + $0x80] sm:$0xf]
    %v5194 = vld [vmem:[%s2 + $0x84] sm:$0xff]
    %v5195 = vld [vmem:[%s2 + $0x8c] sm:$0xf]
    %v5196 = vld [vmem:[%s2 + $0x90] sm:$0xff]
    %v5197 = vld [vmem:[%s2 + $0x98] sm:$0xf]
    %v5198 = vld [vmem:[%s2 + $0x9c] sm:$0xff]
    %v5199 = vld [vmem:[%s2 + $0xa4] sm:$0xf]
    %v5200 = vld [vmem:[%s2 + $0xa8] sm:$0xff]
    %v5201 = vld [vmem:[%s2 + $0xb0] sm:$0xf]
    %v5202 = vld [vmem:[%s2 + $0xb4] sm:$0xff]
    %v5203 = vld [vmem:[%s2 + $0xbc] sm:$0xf]
    %v5204 = vld [vmem:[%s2 + $0xc0] sm:$0xff]
    %v5205 = vld [vmem:[%s2 + $0xc8] sm:$0xf]
    %v5206 = vld [vmem:[%s2 + $0xcc] sm:$0xff]
    %v5207 = vld [vmem:[%s2 + $0xd4] sm:$0xf]
    %v5208 = vld [vmem:[%s2 + $0xd8] sm:$0xff]
    %v5209 = vld [vmem:[%s2 + $0xe0] sm:$0xf]
    %v5210 = vld [vmem:[%s2 + $0xe4] sm:$0xff]
    %v5211 = vld [vmem:[%s2 + $0xec] sm:$0xf]
    %v5212 = vld [vmem:[%s2 + $0xf0] sm:$0xff]
    %v5213 = vld [vmem:[%s2 + $0xf8] sm:$0xf]
    %v5214 = vld [vmem:[%s2 + $0xfc] sm:$0xff]
    %v5215 = vld [vmem:[%s2 + $0x104] sm:$0xf]
    %v5216 = vld [vmem:[%s2 + $0x108] sm:$0xff]
    %v5217 = vld [vmem:[%s2 + $0x110] sm:$0xf]
    %v5218 = vld [vmem:[%s2 + $0x114] sm:$0xff]
    %v5219 = vld [vmem:[%s2 + $0x11c] sm:$0xf]
    %v5220 = vld [vmem:[%s2 + $0x120] sm:$0xff]
    %v5221 = vld [vmem:[%s2 + $0x128] sm:$0xf]
    %v5222 = vld [vmem:[%s2 + $0x12c] sm:$0xff]
    %v5223 = vld [vmem:[%s2 + $0x134] sm:$0xf]
    %v5224 = vld [vmem:[%s2 + $0x138] sm:$0xff]
    %v5225 = vld [vmem:[%s2 + $0x140] sm:$0xf]
    %v5226 = vld [vmem:[%s2 + $0x144] sm:$0xff]
    %v5227 = vld [vmem:[%s2 + $0x14c] sm:$0xf]
    %v5228 = vld [vmem:[%s2 + $0x150] sm:$0xff]
    %v5229 = vld [vmem:[%s2 + $0x158] sm:$0xf]
    %v5230 = vld [vmem:[%s2 + $0x15c] sm:$0xff]
    %v5231 = vld [vmem:[%s2 + $0x164] sm:$0xf]
    %v5232 = vld [vmem:[%s2 + $0x168] sm:$0xff]
    %v5233 = vld [vmem:[%s2 + $0x170] sm:$0xf]
    %v5234 = vld [vmem:[%s2 + $0x174] sm:$0xff]
    %v5235 = vld [vmem:[%s2 + $0x17c] sm:$0xf]
    %v5236 = vld [vmem:[%s2 + $0x180] sm:$0xff]
    %v5237 = vld [vmem:[%s2 + $0x188] sm:$0xf]
    %v5238 = vld [vmem:[%s2 + $0x18c] sm:$0xff]
    %v5239 = vld [vmem:[%s2 + $0x194] sm:$0xf]
    %v5240 = vld [vmem:[%s2 + $0x198] sm:$0xff]
    %v5241 = vld [vmem:[%s2 + $0x1a0] sm:$0xf]
    %v5242 = vld [vmem:[%s2 + $0x1a4] sm:$0xff]
    %v5243 = vld [vmem:[%s2 + $0x1ac] sm:$0xf]
    %v5244 = vld [vmem:[%s2 + $0x1b0] sm:$0xff]
    %v5245 = vld [vmem:[%s2 + $0x1b8] sm:$0xf]
    %v5246 = vld [vmem:[%s2 + $0x1bc] sm:$0xff]
    %v5247 = vld [vmem:[%s2 + $0x1c4] sm:$0xf]
    %v5248 = vld [vmem:[%s2 + $0x1c8] sm:$0xff]
    %v5249 = vld [vmem:[%s2 + $0x1d0] sm:$0xf]
    %v5250 = vld [vmem:[%s2 + $0x1d4] sm:$0xff]
    %v5251 = vld [vmem:[%s2 + $0x1dc] sm:$0xf]
    %v5252 = vld [vmem:[%s2 + $0x1e0] sm:$0xff]
    %v5253 = vld [vmem:[%s2 + $0x1e8] sm:$0xf]
    %v5254 = vld [vmem:[%s2 + $0x1ec] sm:$0xff]
    %v5255 = vld [vmem:[%s2 + $0x1f4] sm:$0xf]
    %v5256 = vld [vmem:[%s2 + $0x1f8] sm:$0xff]
    %v5257 = vld [vmem:[%s2 + $0x200] sm:$0xf]
    %v5258 = vld [vmem:[%s2 + $0x204] sm:$0xff]
    %v5259 = vld [vmem:[%s2 + $0x20c] sm:$0xf]
    %v5260 = vld [vmem:[%s2 + $0x210] sm:$0xff]
    %v5261 = vld [vmem:[%s2 + $0x218] sm:$0xf]
    %v5262 = vld [vmem:[%s2 + $0x21c] sm:$0xff]
    %v5263 = vld [vmem:[%s2 + $0x224] sm:$0xf]
    %v5264 = vld [vmem:[%s2 + $0x228] sm:$0xff]
    %v5265 = vld [vmem:[%s2 + $0x230] sm:$0xf]
    %v5266 = vld [vmem:[%s2 + $0x234] sm:$0xff]
    %v5267 = vld [vmem:[%s2 + $0x23c] sm:$0xf]
    %v5268 = vld [vmem:[%s2 + $0x240] sm:$0xff]
    %v5269 = vld [vmem:[%s2 + $0x248] sm:$0xf]
    %v5270 = vld [vmem:[%s2 + $0x24c] sm:$0xff]
    %v5271 = vld [vmem:[%s2 + $0x254] sm:$0xf]
    %v5272 = vld [vmem:[%s2 + $0x258] sm:$0xff]
    %v5273 = vld [vmem:[%s2 + $0x260] sm:$0xf]
    %v5274 = vld [vmem:[%s2 + $0x264] sm:$0xff]
    %v5275 = vld [vmem:[%s2 + $0x26c] sm:$0xf]
    %v5276 = vld [vmem:[%s2 + $0x270] sm:$0xff]
    %v5277 = vld [vmem:[%s2 + $0x278] sm:$0xf]
    %v5278 = vld [vmem:[%s2 + $0x27c] sm:$0xff]
    %v5279 = vld [vmem:[%s2 + $0x284] sm:$0xf]
    %v5280 = vld [vmem:[%s2 + $0x288] sm:$0xff]
    %v5281 = vld [vmem:[%s2 + $0x290] sm:$0xf]
    %v5282 = vld [vmem:[%s2 + $0x294] sm:$0xff]
    %v5283 = vld [vmem:[%s2 + $0x29c] sm:$0xf]
    %v5284 = vld [vmem:[%s2 + $0x2a0] sm:$0xff]
    %v5285 = vld [vmem:[%s2 + $0x2a8] sm:$0xf]
    %v5286 = vld [vmem:[%s2 + $0x2ac] sm:$0xff]
    %v5287 = vld [vmem:[%s2 + $0x2b4] sm:$0xf]
    %v5288 = vld [vmem:[%s2 + $0x2b8] sm:$0xff]
    %v5289 = vld [vmem:[%s2 + $0x2c0] sm:$0xf]
    %v5290 = vld [vmem:[%s2 + $0x2c4] sm:$0xff]
    %v5291 = vld [vmem:[%s2 + $0x2cc] sm:$0xf]
    %v5292 = vld [vmem:[%s2 + $0x2d0] sm:$0xff]
    %v5293 = vld [vmem:[%s2 + $0x2d8] sm:$0xf]
    %v5294 = vld [vmem:[%s2 + $0x2dc] sm:$0xff]
    %v5295 = vld [vmem:[%s2 + $0x2e4] sm:$0xf]
    %v5296 = vld [vmem:[%s2 + $0x2e8] sm:$0xff]
    %v5297 = vld [vmem:[%s2 + $0x2f0] sm:$0xf]
    %v5298 = vld [vmem:[%s2 + $0x2f4] sm:$0xff]
    %v5299 = vld [vmem:[%s2 + $0x2fc] sm:$0xf]
    %v5300 = vld [vmem:[%s2 + $0x300] sm:$0xff]
    %v5301 = vld [vmem:[%s2 + $0x308] sm:$0xf]
    %v5302 = vld [vmem:[%s2 + $0x30c] sm:$0xff]
    %v5303 = vld [vmem:[%s2 + $0x314] sm:$0xf]
    %v5304 = vld [vmem:[%s2 + $0x318] sm:$0xff]
    %v5305 = vld [vmem:[%s2 + $0x320] sm:$0xf]
    %v5306 = vld [vmem:[%s2 + $0x324] sm:$0xff]
    %v5307 = vld [vmem:[%s2 + $0x32c] sm:$0xf]
    %v5308 = vld [vmem:[%s2 + $0x330] sm:$0xff]
    %v5309 = vld [vmem:[%s2 + $0x338] sm:$0xf]
    %v5310 = vld [vmem:[%s2 + $0x33c] sm:$0xff]
    %v5311 = vld [vmem:[%s2 + $0x344] sm:$0xf]
    %v5312 = vld [vmem:[%s2 + $0x348] sm:$0xff]
    %v5313 = vld [vmem:[%s2 + $0x350] sm:$0xf]
    %v5314 = vld [vmem:[%s2 + $0x354] sm:$0xff]
    %v5315 = vld [vmem:[%s2 + $0x35c] sm:$0xf]
    %v5316 = vld [vmem:[%s2 + $0x360] sm:$0xff]
    %v5317 = vld [vmem:[%s2 + $0x368] sm:$0xf]
    %v5318 = vld [vmem:[%s2 + $0x36c] sm:$0xff]
    %v5319 = vld [vmem:[%s2 + $0x374] sm:$0xf]
    %v5320 = vld [vmem:[%s2 + $0x378] sm:$0xff]
    %v5321 = vld [vmem:[%s2 + $0x380] sm:$0xf]
    %v5322 = vld [vmem:[%s2 + $0x384] sm:$0xff]
    %v5323 = vld [vmem:[%s2 + $0x38c] sm:$0xf]
    %v5324 = vld [vmem:[%s2 + $0x390] sm:$0xff]
    %v5325 = vld [vmem:[%s2 + $0x398] sm:$0xf]
    %v5326 = vld [vmem:[%s2 + $0x39c] sm:$0xff]
    %v5327 = vld [vmem:[%s2 + $0x3a4] sm:$0xf]
    %v5328 = vld [vmem:[%s2 + $0x3a8] sm:$0xff]
    %v5329 = vld [vmem:[%s2 + $0x3b0] sm:$0xf]
    %v5330 = vld [vmem:[%s2 + $0x3b4] sm:$0xff]
    %v5331 = vld [vmem:[%s2 + $0x3bc] sm:$0xf]
    %v5332 = vld [vmem:[#allocation7] sm:$0x7]
    %v5334 = vperm.slane %v5332, 0
    %v5335 = vperm.slane %v5332, 1
    %v5336 = vperm.slane %v5332, 2
    %v5500 = vunpack.c.l.b16 %v5172
    %v5501 = vunpack.c.h.b16 %v5172
    %v5502 = vunpack.c.l.b16 %v5173
    %v5503 = vunpack.c.l.b16 %v5174
    %v5504 = vunpack.c.h.b16 %v5174
    %v5505 = vunpack.c.l.b16 %v5175
    %v5506 = vunpack.c.l.b16 %v5176
    %v5507 = vunpack.c.h.b16 %v5176
    %v5508 = vunpack.c.l.b16 %v5177
    %v5509 = vunpack.c.l.b16 %v5178
    %v5510 = vunpack.c.h.b16 %v5178
    %v5511 = vunpack.c.l.b16 %v5179
    %v5512 = vunpack.c.l.b16 %v5180
    %v5513 = vunpack.c.h.b16 %v5180
    %v5514 = vunpack.c.l.b16 %v5181
    %v5515 = vunpack.c.l.b16 %v5182
    %v5516 = vunpack.c.h.b16 %v5182
    %v5517 = vunpack.c.l.b16 %v5183
    %v5518 = vunpack.c.l.b16 %v5184
    %v5519 = vunpack.c.h.b16 %v5184
    %v5520 = vunpack.c.l.b16 %v5185
    %v5521 = vunpack.c.l.b16 %v5186
    %v5522 = vunpack.c.h.b16 %v5186
    %v5523 = vunpack.c.l.b16 %v5187
    %v5524 = vunpack.c.l.b16 %v5188
    %v5525 = vunpack.c.h.b16 %v5188
    %v5526 = vunpack.c.l.b16 %v5189
    %v5527 = vunpack.c.l.b16 %v5190
    %v5528 = vunpack.c.h.b16 %v5190
    %v5529 = vunpack.c.l.b16 %v5191
    %v5530 = vunpack.c.l.b16 %v5192
    %v5531 = vunpack.c.h.b16 %v5192
    %v5532 = vunpack.c.l.b16 %v5193
    %v5533 = vunpack.c.l.b16 %v5194
    %v5534 = vunpack.c.h.b16 %v5194
    %v5535 = vunpack.c.l.b16 %v5195
    %v5536 = vunpack.c.l.b16 %v5196
    %v5537 = vunpack.c.h.b16 %v5196
    %v5538 = vunpack.c.l.b16 %v5197
    %v5539 = vunpack.c.l.b16 %v5198
    %v5540 = vunpack.c.h.b16 %v5198
    %v5541 = vunpack.c.l.b16 %v5199
    %v5542 = vunpack.c.l.b16 %v5200
    %v5543 = vunpack.c.h.b16 %v5200
    %v5544 = vunpack.c.l.b16 %v5201
    %v5545 = vunpack.c.l.b16 %v5202
    %v5546 = vunpack.c.h.b16 %v5202
    %v5547 = vunpack.c.l.b16 %v5203
    %v5548 = vunpack.c.l.b16 %v5204
    %v5549 = vunpack.c.h.b16 %v5204
    %v5550 = vunpack.c.l.b16 %v5205
    %v5551 = vunpack.c.l.b16 %v5206
    %v5552 = vunpack.c.h.b16 %v5206
    %v5553 = vunpack.c.l.b16 %v5207
    %v5554 = vunpack.c.l.b16 %v5208
    %v5555 = vunpack.c.h.b16 %v5208
    %v5556 = vunpack.c.l.b16 %v5209
    %v5557 = vunpack.c.l.b16 %v5210
    %v5558 = vunpack.c.h.b16 %v5210
    %v5559 = vunpack.c.l.b16 %v5211
    %v5560 = vunpack.c.l.b16 %v5212
    %v5561 = vunpack.c.h.b16 %v5212
    %v5562 = vunpack.c.l.b16 %v5213
    %v5563 = vunpack.c.l.b16 %v5214
    %v5564 = vunpack.c.h.b16 %v5214
    %v5565 = vunpack.c.l.b16 %v5215
    %v5566 = vunpack.c.l.b16 %v5216
    %v5567 = vunpack.c.h.b16 %v5216
    %v5568 = vunpack.c.l.b16 %v5217
    %v5569 = vunpack.c.l.b16 %v5218
    %v5570 = vunpack.c.h.b16 %v5218
    %v5571 = vunpack.c.l.b16 %v5219
    %v5572 = vunpack.c.l.b16 %v5220
    %v5573 = vunpack.c.h.b16 %v5220
    %v5574 = vunpack.c.l.b16 %v5221
    %v5575 = vunpack.c.l.b16 %v5222
    %v5576 = vunpack.c.h.b16 %v5222
    %v5577 = vunpack.c.l.b16 %v5223
    %v5578 = vunpack.c.l.b16 %v5224
    %v5579 = vunpack.c.h.b16 %v5224
    %v5580 = vunpack.c.l.b16 %v5225
    %v5581 = vunpack.c.l.b16 %v5226
    %v5582 = vunpack.c.h.b16 %v5226
    %v5583 = vunpack.c.l.b16 %v5227
    %v5584 = vunpack.c.l.b16 %v5228
    %v5585 = vunpack.c.h.b16 %v5228
    %v5586 = vunpack.c.l.b16 %v5229
    %v5587 = vunpack.c.l.b16 %v5230
    %v5588 = vunpack.c.h.b16 %v5230
    %v5589 = vunpack.c.l.b16 %v5231
    %v5590 = vunpack.c.l.b16 %v5232
    %v5591 = vunpack.c.h.b16 %v5232
    %v5592 = vunpack.c.l.b16 %v5233
    %v5593 = vunpack.c.l.b16 %v5234
    %v5594 = vunpack.c.h.b16 %v5234
    %v5595 = vunpack.c.l.b16 %v5235
    %v5596 = vunpack.c.l.b16 %v5236
    %v5597 = vunpack.c.h.b16 %v5236
    %v5598 = vunpack.c.l.b16 %v5237
    %v5599 = vunpack.c.l.b16 %v5238
    %v5600 = vunpack.c.h.b16 %v5238
    %v5601 = vunpack.c.l.b16 %v5239
    %v5602 = vunpack.c.l.b16 %v5240
    %v5603 = vunpack.c.h.b16 %v5240
    %v5604 = vunpack.c.l.b16 %v5241
    %v5605 = vunpack.c.l.b16 %v5242
    %v5606 = vunpack.c.h.b16 %v5242
    %v5607 = vunpack.c.l.b16 %v5243
    %v5608 = vunpack.c.l.b16 %v5244
    %v5609 = vunpack.c.h.b16 %v5244
    %v5610 = vunpack.c.l.b16 %v5245
    %v5611 = vunpack.c.l.b16 %v5246
    %v5612 = vunpack.c.h.b16 %v5246
    %v5613 = vunpack.c.l.b16 %v5247
    %v5614 = vunpack.c.l.b16 %v5248
    %v5615 = vunpack.c.h.b16 %v5248
    %v5616 = vunpack.c.l.b16 %v5249
    %v5617 = vunpack.c.l.b16 %v5250
    %v5618 = vunpack.c.h.b16 %v5250
    %v5619 = vunpack.c.l.b16 %v5251
    %v5620 = vunpack.c.l.b16 %v5252
    %v5621 = vunpack.c.h.b16 %v5252
    %v5622 = vunpack.c.l.b16 %v5253
    %v5623 = vunpack.c.l.b16 %v5254
    %v5624 = vunpack.c.h.b16 %v5254
    %v5625 = vunpack.c.l.b16 %v5255
    %v5626 = vunpack.c.l.b16 %v5256
    %v5627 = vunpack.c.h.b16 %v5256
    %v5628 = vunpack.c.l.b16 %v5257
    %v5629 = vunpack.c.l.b16 %v5258
    %v5630 = vunpack.c.h.b16 %v5258
    %v5631 = vunpack.c.l.b16 %v5259
    %v5632 = vunpack.c.l.b16 %v5260
    %v5633 = vunpack.c.h.b16 %v5260
    %v5634 = vunpack.c.l.b16 %v5261
    %v5635 = vunpack.c.l.b16 %v5262
    %v5636 = vunpack.c.h.b16 %v5262
    %v5637 = vunpack.c.l.b16 %v5263
    %v5638 = vunpack.c.l.b16 %v5264
    %v5639 = vunpack.c.h.b16 %v5264
    %v5640 = vunpack.c.l.b16 %v5265
    %v5641 = vunpack.c.l.b16 %v5266
    %v5642 = vunpack.c.h.b16 %v5266
    %v5643 = vunpack.c.l.b16 %v5267
    %v5644 = vunpack.c.l.b16 %v5268
    %v5645 = vunpack.c.h.b16 %v5268
    %v5646 = vunpack.c.l.b16 %v5269
    %v5647 = vunpack.c.l.b16 %v5270
    %v5648 = vunpack.c.h.b16 %v5270
    %v5649 = vunpack.c.l.b16 %v5271
    %v5650 = vunpack.c.l.b16 %v5272
    %v5651 = vunpack.c.h.b16 %v5272
    %v5652 = vunpack.c.l.b16 %v5273
    %v5653 = vunpack.c.l.b16 %v5274
    %v5654 = vunpack.c.h.b16 %v5274
    %v5655 = vunpack.c.l.b16 %v5275
    %v5656 = vunpack.c.l.b16 %v5276
    %v5657 = vunpack.c.h.b16 %v5276
    %v5658 = vunpack.c.l.b16 %v5277
    %v5659 = vunpack.c.l.b16 %v5278
    %v5660 = vunpack.c.h.b16 %v5278
    %v5661 = vunpack.c.l.b16 %v5279
    %v5662 = vunpack.c.l.b16 %v5280
    %v5663 = vunpack.c.h.b16 %v5280
    %v5664 = vunpack.c.l.b16 %v5281
    %v5665 = vunpack.c.l.b16 %v5282
    %v5666 = vunpack.c.h.b16 %v5282
    %v5667 = vunpack.c.l.b16 %v5283
    %v5668 = vunpack.c.l.b16 %v5284
    %v5669 = vunpack.c.h.b16 %v5284
    %v5670 = vunpack.c.l.b16 %v5285
    %v5671 = vunpack.c.l.b16 %v5286
    %v5672 = vunpack.c.h.b16 %v5286
    %v5673 = vunpack.c.l.b16 %v5287
    %v5674 = vunpack.c.l.b16 %v5288
    %v5675 = vunpack.c.h.b16 %v5288
    %v5676 = vunpack.c.l.b16 %v5289
    %v5677 = vunpack.c.l.b16 %v5290
    %v5678 = vunpack.c.h.b16 %v5290
    %v5679 = vunpack.c.l.b16 %v5291
    %v5680 = vunpack.c.l.b16 %v5292
    %v5681 = vunpack.c.h.b16 %v5292
    %v5682 = vunpack.c.l.b16 %v5293
    %v5683 = vunpack.c.l.b16 %v5294
    %v5684 = vunpack.c.h.b16 %v5294
    %v5685 = vunpack.c.l.b16 %v5295
    %v5686 = vunpack.c.l.b16 %v5296
    %v5687 = vunpack.c.h.b16 %v5296
    %v5688 = vunpack.c.l.b16 %v5297
    %v5689 = vunpack.c.l.b16 %v5298
    %v5690 = vunpack.c.h.b16 %v5298
    %v5691 = vunpack.c.l.b16 %v5299
    %v5692 = vunpack.c.l.b16 %v5300
    %v5693 = vunpack.c.h.b16 %v5300
    %v5694 = vunpack.c.l.b16 %v5301
    %v5695 = vunpack.c.l.b16 %v5302
    %v5696 = vunpack.c.h.b16 %v5302
    %v5697 = vunpack.c.l.b16 %v5303
    %v5698 = vunpack.c.l.b16 %v5304
    %v5699 = vunpack.c.h.b16 %v5304
    %v5700 = vunpack.c.l.b16 %v5305
    %v5701 = vunpack.c.l.b16 %v5306
    %v5702 = vunpack.c.h.b16 %v5306
    %v5703 = vunpack.c.l.b16 %v5307
    %v5704 = vunpack.c.l.b16 %v5308
    %v5705 = vunpack.c.h.b16 %v5308
    %v5706 = vunpack.c.l.b16 %v5309
    %v5707 = vunpack.c.l.b16 %v5310
    %v5708 = vunpack.c.h.b16 %v5310
    %v5709 = vunpack.c.l.b16 %v5311
    %v5710 = vunpack.c.l.b16 %v5312
    %v5711 = vunpack.c.h.b16 %v5312
    %v5712 = vunpack.c.l.b16 %v5313
    %v5713 = vunpack.c.l.b16 %v5314
    %v5714 = vunpack.c.h.b16 %v5314
    %v5715 = vunpack.c.l.b16 %v5315
    %v5716 = vunpack.c.l.b16 %v5316
    %v5717 = vunpack.c.h.b16 %v5316
    %v5718 = vunpack.c.l.b16 %v5317
    %v5719 = vunpack.c.l.b16 %v5318
    %v5720 = vunpack.c.h.b16 %v5318
    %v5721 = vunpack.c.l.b16 %v5319
    %v5722 = vunpack.c.l.b16 %v5320
    %v5723 = vunpack.c.h.b16 %v5320
    %v5724 = vunpack.c.l.b16 %v5321
    %v5725 = vunpack.c.l.b16 %v5322
    %v5726 = vunpack.c.h.b16 %v5322
    %v5727 = vunpack.c.l.b16 %v5323
    %v5728 = vunpack.c.l.b16 %v5324
    %v5729 = vunpack.c.h.b16 %v5324
    %v5730 = vunpack.c.l.b16 %v5325
    %v5731 = vunpack.c.l.b16 %v5326
    %v5732 = vunpack.c.h.b16 %v5326
    %v5733 = vunpack.c.l.b16 %v5327
    %v5734 = vunpack.c.l.b16 %v5328
    %v5735 = vunpack.c.h.b16 %v5328
    %v5736 = vunpack.c.l.b16 %v5329
    %v5737 = vunpack.c.l.b16 %v5330
    %v5738 = vunpack.c.h.b16 %v5330
    %v5739 = vunpack.c.l.b16 %v5331
    %v5740 = vpack.c.b16 %v5503, %v5500
    %v5741 = vpack.c.b16 %v5504, %v5501
    %v5742 = vpack.c.b16 %v5505, %v5502
    %v5743 = vpack.c.b16 %v5509, %v5506
    %v5744 = vpack.c.b16 %v5510, %v5507
    %v5745 = vpack.c.b16 %v5511, %v5508
    %v5746 = vpack.c.b16 %v5515, %v5512
    %v5747 = vpack.c.b16 %v5516, %v5513
    %v5748 = vpack.c.b16 %v5517, %v5514
    %v5749 = vpack.c.b16 %v5521, %v5518
    %v5750 = vpack.c.b16 %v5522, %v5519
    %v5751 = vpack.c.b16 %v5523, %v5520
    %v5752 = vpack.c.b16 %v5527, %v5524
    %v5753 = vpack.c.b16 %v5528, %v5525
    %v5754 = vpack.c.b16 %v5529, %v5526
    %v5755 = vpack.c.b16 %v5533, %v5530
    %v5756 = vpack.c.b16 %v5534, %v5531
    %v5757 = vpack.c.b16 %v5535, %v5532
    %v5758 = vpack.c.b16 %v5539, %v5536
    %v5759 = vpack.c.b16 %v5540, %v5537
    %v5760 = vpack.c.b16 %v5541, %v5538
    %v5761 = vpack.c.b16 %v5545, %v5542
    %v5762 = vpack.c.b16 %v5546, %v5543
    %v5763 = vpack.c.b16 %v5547, %v5544
    %v5764 = vpack.c.b16 %v5551, %v5548
    %v5765 = vpack.c.b16 %v5552, %v5549
    %v5766 = vpack.c.b16 %v5553, %v5550
    %v5767 = vpack.c.b16 %v5557, %v5554
    %v5768 = vpack.c.b16 %v5558, %v5555
    %v5769 = vpack.c.b16 %v5559, %v5556
    %v5770 = vpack.c.b16 %v5563, %v5560
    %v5771 = vpack.c.b16 %v5564, %v5561
    %v5772 = vpack.c.b16 %v5565, %v5562
    %v5773 = vpack.c.b16 %v5569, %v5566
    %v5774 = vpack.c.b16 %v5570, %v5567
    %v5775 = vpack.c.b16 %v5571, %v5568
    %v5776 = vpack.c.b16 %v5575, %v5572
    %v5777 = vpack.c.b16 %v5576, %v5573
    %v5778 = vpack.c.b16 %v5577, %v5574
    %v5779 = vpack.c.b16 %v5581, %v5578
    %v5780 = vpack.c.b16 %v5582, %v5579
    %v5781 = vpack.c.b16 %v5583, %v5580
    %v5782 = vpack.c.b16 %v5587, %v5584
    %v5783 = vpack.c.b16 %v5588, %v5585
    %v5784 = vpack.c.b16 %v5589, %v5586
    %v5785 = vpack.c.b16 %v5593, %v5590
    %v5786 = vpack.c.b16 %v5594, %v5591
    %v5787 = vpack.c.b16 %v5595, %v5592
    %v5788 = vpack.c.b16 %v5599, %v5596
    %v5789 = vpack.c.b16 %v5600, %v5597
    %v5790 = vpack.c.b16 %v5601, %v5598
    %v5791 = vpack.c.b16 %v5605, %v5602
    %v5792 = vpack.c.b16 %v5606, %v5603
    %v5793 = vpack.c.b16 %v5607, %v5604
    %v5794 = vpack.c.b16 %v5611, %v5608
    %v5795 = vpack.c.b16 %v5612, %v5609
    %v5796 = vpack.c.b16 %v5613, %v5610
    %v5797 = vpack.c.b16 %v5617, %v5614
    %v5798 = vpack.c.b16 %v5618, %v5615
    %v5799 = vpack.c.b16 %v5619, %v5616
    %v5800 = vpack.c.b16 %v5623, %v5620
    %v5801 = vpack.c.b16 %v5624, %v5621
    %v5802 = vpack.c.b16 %v5625, %v5622
    %v5803 = vpack.c.b16 %v5629, %v5626
    %v5804 = vpack.c.b16 %v5630, %v5627
    %v5805 = vpack.c.b16 %v5631, %v5628
    %v5806 = vpack.c.b16 %v5635, %v5632
    %v5807 = vpack.c.b16 %v5636, %v5633
    %v5808 = vpack.c.b16 %v5637, %v5634
    %v5809 = vpack.c.b16 %v5641, %v5638
    %v5810 = vpack.c.b16 %v5642, %v5639
    %v5811 = vpack.c.b16 %v5643, %v5640
    %v5812 = vpack.c.b16 %v5647, %v5644
    %v5813 = vpack.c.b16 %v5648, %v5645
    %v5814 = vpack.c.b16 %v5649, %v5646
    %v5815 = vpack.c.b16 %v5653, %v5650
    %v5816 = vpack.c.b16 %v5654, %v5651
    %v5817 = vpack.c.b16 %v5655, %v5652
    %v5818 = vpack.c.b16 %v5659, %v5656
    %v5819 = vpack.c.b16 %v5660, %v5657
    %v5820 = vpack.c.b16 %v5661, %v5658
    %v5821 = vpack.c.b16 %v5665, %v5662
    %v5822 = vpack.c.b16 %v5666, %v5663
    %v5823 = vpack.c.b16 %v5667, %v5664
    %v5824 = vpack.c.b16 %v5671, %v5668
    %v5825 = vpack.c.b16 %v5672, %v5669
    %v5826 = vpack.c.b16 %v5673, %v5670
    %v5827 = vpack.c.b16 %v5677, %v5674
    %v5828 = vpack.c.b16 %v5678, %v5675
    %v5829 = vpack.c.b16 %v5679, %v5676
    %v5830 = vpack.c.b16 %v5683, %v5680
    %v5831 = vpack.c.b16 %v5684, %v5681
    %v5832 = vpack.c.b16 %v5685, %v5682
    %v5833 = vpack.c.b16 %v5689, %v5686
    %v5834 = vpack.c.b16 %v5690, %v5687
    %v5835 = vpack.c.b16 %v5691, %v5688
    %v5836 = vpack.c.b16 %v5695, %v5692
    %v5837 = vpack.c.b16 %v5696, %v5693
    %v5838 = vpack.c.b16 %v5697, %v5694
    %v5839 = vpack.c.b16 %v5701, %v5698
    %v5840 = vpack.c.b16 %v5702, %v5699
    %v5841 = vpack.c.b16 %v5703, %v5700
    %v5842 = vpack.c.b16 %v5707, %v5704
    %v5843 = vpack.c.b16 %v5708, %v5705
    %v5844 = vpack.c.b16 %v5709, %v5706
    %v5845 = vpack.c.b16 %v5713, %v5710
    %v5846 = vpack.c.b16 %v5714, %v5711
    %v5847 = vpack.c.b16 %v5715, %v5712
    %v5848 = vpack.c.b16 %v5719, %v5716
    %v5849 = vpack.c.b16 %v5720, %v5717
    %v5850 = vpack.c.b16 %v5721, %v5718
    %v5851 = vpack.c.b16 %v5725, %v5722
    %v5852 = vpack.c.b16 %v5726, %v5723
    %v5853 = vpack.c.b16 %v5727, %v5724
    %v5854 = vpack.c.b16 %v5731, %v5728
    %v5855 = vpack.c.b16 %v5732, %v5729
    %v5856 = vpack.c.b16 %v5733, %v5730
    %v5857 = vpack.c.b16 %v5737, %v5734
    %v5858 = vpack.c.b16 %v5738, %v5735
    %v5859 = vpack.c.b16 %v5739, %v5736
    %5980 = vmatpush.bf16.msra.mxu0 %v5761
    %5981 = vmatpush.bf16.msra.mxu0 %v5758
    %5982 = vmatpush.bf16.msra.mxu0 %v5755
    %5983 = vmatpush.bf16.msra.mxu0 %v5752
    %5984 = vmatpush.bf16.msra.mxu0 %v5749
    %5985 = vmatpush.bf16.msra.mxu0 %v5746
    %5986 = vmatpush.bf16.msra.mxu0 %v5743
    %5987 = vmatpush.bf16.msra.mxu0 %v5740
    %5988 = vmatmul.bf16.gmra.mxu0 %v5152
    %v5989 = vpop.f32.mrf.mxu0
    %v5990 = vadd.f32 %v5334, %v5989
    %v5991 = vpop.f32.mrf.mxu0
    %v5992 = vadd.f32 %v5334, %v5991
    %5993 = vmatmul.bf16.gmra.mxu0 %v5157
    %v5994 = vpop.f32.mrf.mxu0
    %v5995 = vadd.f32 %v5334, %v5994
    %v5996 = vpop.f32.mrf.mxu0
    %v5997 = vadd.f32 %v5334, %v5996
    %5998 = vmatmul.bf16.gmra.mxu0 %v5162
    %v5999 = vpop.f32.mrf.mxu0
    %v6000 = vadd.f32 %v5334, %v5999
    %v6001 = vpop.f32.mrf.mxu0
    %v6002 = vadd.f32 %v5334, %v6001
    %6003 = vmatmul.bf16.gmra.mxu0 %v5167
    %v6004 = vpop.f32.mrf.mxu0
    %v6005 = vadd.f32 %v5334, %v6004
    %v6006 = vpop.f32.mrf.mxu0
    %v6007 = vadd.f32 %v5334, %v6006
    %6008 = vdwg.mxu0
    %6009 = vmatpush.bf16.msra.mxu0 %v5785
    %6010 = vmatpush.bf16.msra.mxu0 %v5782
    %6011 = vmatpush.bf16.msra.mxu0 %v5779
    %6012 = vmatpush.bf16.msra.mxu0 %v5776
    %6013 = vmatpush.bf16.msra.mxu0 %v5773
    %6014 = vmatpush.bf16.msra.mxu0 %v5770
    %6015 = vmatpush.bf16.msra.mxu0 %v5767
    %6016 = vmatpush.bf16.msra.mxu0 %v5764
    %6017 = vmatmul.bf16.gmra.mxu0 %v5153
    %v6018 = vpop.f32.mrf.mxu0
    %v6019 = vadd.f32 %v5990, %v6018
    %v6020 = vpop.f32.mrf.mxu0
    %v6021 = vadd.f32 %v5992, %v6020
    %6022 = vmatmul.bf16.gmra.mxu0 %v5158
    %v6023 = vpop.f32.mrf.mxu0
    %v6024 = vadd.f32 %v5995, %v6023
    %v6025 = vpop.f32.mrf.mxu0
    %v6026 = vadd.f32 %v5997, %v6025
    %6027 = vmatmul.bf16.gmra.mxu0 %v5163
    %v6028 = vpop.f32.mrf.mxu0
    %v6029 = vadd.f32 %v6000, %v6028
    %v6030 = vpop.f32.mrf.mxu0
    %v6031 = vadd.f32 %v6002, %v6030
    %6032 = vmatmul.bf16.gmra.mxu0 %v5168
    %v6033 = vpop.f32.mrf.mxu0
    %v6034 = vadd.f32 %v6005, %v6033
    %v6035 = vpop.f32.mrf.mxu0
    %v6036 = vadd.f32 %v6007, %v6035
    %6037 = vdwg.mxu0
    %6038 = vmatpush.bf16.msra.mxu0 %v5809
    %6039 = vmatpush.bf16.msra.mxu0 %v5806
    %6040 = vmatpush.bf16.msra.mxu0 %v5803
    %6041 = vmatpush.bf16.msra.mxu0 %v5800
    %6042 = vmatpush.bf16.msra.mxu0 %v5797
    %6043 = vmatpush.bf16.msra.mxu0 %v5794
    %6044 = vmatpush.bf16.msra.mxu0 %v5791
    %6045 = vmatpush.bf16.msra.mxu0 %v5788
    %6046 = vmatmul.bf16.gmra.mxu0 %v5154
    %v6047 = vpop.f32.mrf.mxu0
    %v6048 = vadd.f32 %v6019, %v6047
    %v6049 = vpop.f32.mrf.mxu0
    %v6050 = vadd.f32 %v6021, %v6049
    %6051 = vmatmul.bf16.gmra.mxu0 %v5159
    %v6052 = vpop.f32.mrf.mxu0
    %v6053 = vadd.f32 %v6024, %v6052
    %v6054 = vpop.f32.mrf.mxu0
    %v6055 = vadd.f32 %v6026, %v6054
    %6056 = vmatmul.bf16.gmra.mxu0 %v5164
    %v6057 = vpop.f32.mrf.mxu0
    %v6058 = vadd.f32 %v6029, %v6057
    %v6059 = vpop.f32.mrf.mxu0
    %v6060 = vadd.f32 %v6031, %v6059
    %6061 = vmatmul.bf16.gmra.mxu0 %v5169
    %v6062 = vpop.f32.mrf.mxu0
    %v6063 = vadd.f32 %v6034, %v6062
    %v6064 = vpop.f32.mrf.mxu0
    %v6065 = vadd.f32 %v6036, %v6064
    %6066 = vdwg.mxu0
    %6067 = vmatpush.bf16.msra.mxu0 %v5833
    %6068 = vmatpush.bf16.msra.mxu0 %v5830
    %6069 = vmatpush.bf16.msra.mxu0 %v5827
    %6070 = vmatpush.bf16.msra.mxu0 %v5824
    %6071 = vmatpush.bf16.msra.mxu0 %v5821
    %6072 = vmatpush.bf16.msra.mxu0 %v5818
    %6073 = vmatpush.bf16.msra.mxu0 %v5815
    %6074 = vmatpush.bf16.msra.mxu0 %v5812
    %6075 = vmatmul.bf16.gmra.mxu0 %v5155
    %v6076 = vpop.f32.mrf.mxu0
    %v6077 = vadd.f32 %v6048, %v6076
    %v6078 = vpop.f32.mrf.mxu0
    %v6079 = vadd.f32 %v6050, %v6078
    %6080 = vmatmul.bf16.gmra.mxu0 %v5160
    %v6081 = vpop.f32.mrf.mxu0
    %v6082 = vadd.f32 %v6053, %v6081
    %v6083 = vpop.f32.mrf.mxu0
    %v6084 = vadd.f32 %v6055, %v6083
    %6085 = vmatmul.bf16.gmra.mxu0 %v5165
    %v6086 = vpop.f32.mrf.mxu0
    %v6087 = vadd.f32 %v6058, %v6086
    %v6088 = vpop.f32.mrf.mxu0
    %v6089 = vadd.f32 %v6060, %v6088
    %6090 = vmatmul.bf16.gmra.mxu0 %v5170
    %v6091 = vpop.f32.mrf.mxu0
    %v6092 = vadd.f32 %v6063, %v6091
    %v6093 = vpop.f32.mrf.mxu0
    %v6094 = vadd.f32 %v6065, %v6093
    %6095 = vdwg.mxu0
    %6096 = vmatpush.bf16.msra.mxu0 %v5857
    %6097 = vmatpush.bf16.msra.mxu0 %v5854
    %6098 = vmatpush.bf16.msra.mxu0 %v5851
    %6099 = vmatpush.bf16.msra.mxu0 %v5848
    %6100 = vmatpush.bf16.msra.mxu0 %v5845
    %6101 = vmatpush.bf16.msra.mxu0 %v5842
    %6102 = vmatpush.bf16.msra.mxu0 %v5839
    %6103 = vmatpush.bf16.msra.mxu0 %v5836
    %6104 = vmatmul.bf16.gmra.mxu0 %v5156
    %v6105 = vpop.f32.mrf.mxu0
    %v6106 = vadd.f32 %v6077, %v6105
    %v6107 = vpop.f32.mrf.mxu0
    %v6108 = vadd.f32 %v6079, %v6107
    %6109 = vmatmul.bf16.gmra.mxu0 %v5161
    %v6110 = vpop.f32.mrf.mxu0
    %v6111 = vadd.f32 %v6082, %v6110
    %v6112 = vpop.f32.mrf.mxu0
    %v6113 = vadd.f32 %v6084, %v6112
    %6114 = vmatmul.bf16.gmra.mxu0 %v5166
    %v6115 = vpop.f32.mrf.mxu0
    %v6116 = vadd.f32 %v6087, %v6115
    %v6117 = vpop.f32.mrf.mxu0
    %v6118 = vadd.f32 %v6089, %v6117
    %6119 = vmatmul.bf16.gmra.mxu0 %v5171
    %v6120 = vpop.f32.mrf.mxu0
    %v6121 = vadd.f32 %v6092, %v6120
    %v6122 = vpop.f32.mrf.mxu0
    %v6123 = vadd.f32 %v6094, %v6122
    %6124 = vdwg.mxu0
    %6125 = vmatpush.bf16.msra.mxu0 %v5762
    %6126 = vmatpush.bf16.msra.mxu0 %v5759
    %6127 = vmatpush.bf16.msra.mxu0 %v5756
    %6128 = vmatpush.bf16.msra.mxu0 %v5753
    %6129 = vmatpush.bf16.msra.mxu0 %v5750
    %6130 = vmatpush.bf16.msra.mxu0 %v5747
    %6131 = vmatpush.bf16.msra.mxu0 %v5744
    %6132 = vmatpush.bf16.msra.mxu0 %v5741
    %6133 = vmatmul.bf16.gmra.mxu0 %v5152
    %v6134 = vpop.f32.mrf.mxu0
    %v6135 = vadd.f32 %v5335, %v6134
    %v6136 = vpop.f32.mrf.mxu0
    %v6137 = vadd.f32 %v5335, %v6136
    %6138 = vmatmul.bf16.gmra.mxu0 %v5157
    %v6139 = vpop.f32.mrf.mxu0
    %v6140 = vadd.f32 %v5335, %v6139
    %v6141 = vpop.f32.mrf.mxu0
    %v6142 = vadd.f32 %v5335, %v6141
    %6143 = vmatmul.bf16.gmra.mxu0 %v5162
    %v6144 = vpop.f32.mrf.mxu0
    %v6145 = vadd.f32 %v5335, %v6144
    %v6146 = vpop.f32.mrf.mxu0
    %v6147 = vadd.f32 %v5335, %v6146
    %6148 = vmatmul.bf16.gmra.mxu0 %v5167
    %v6149 = vpop.f32.mrf.mxu0
    %v6150 = vadd.f32 %v5335, %v6149
    %v6151 = vpop.f32.mrf.mxu0
    %v6152 = vadd.f32 %v5335, %v6151
    %6153 = vdwg.mxu0
    %6154 = vmatpush.bf16.msra.mxu0 %v5786
    %6155 = vmatpush.bf16.msra.mxu0 %v5783
    %6156 = vmatpush.bf16.msra.mxu0 %v5780
    %6157 = vmatpush.bf16.msra.mxu0 %v5777
    %6158 = vmatpush.bf16.msra.mxu0 %v5774
    %6159 = vmatpush.bf16.msra.mxu0 %v5771
    %6160 = vmatpush.bf16.msra.mxu0 %v5768
    %6161 = vmatpush.bf16.msra.mxu0 %v5765
    %6162 = vmatmul.bf16.gmra.mxu0 %v5153
    %v6163 = vpop.f32.mrf.mxu0
    %v6164 = vadd.f32 %v6135, %v6163
    %v6165 = vpop.f32.mrf.mxu0
    %v6166 = vadd.f32 %v6137, %v6165
    %6167 = vmatmul.bf16.gmra.mxu0 %v5158
    %v6168 = vpop.f32.mrf.mxu0
    %v6169 = vadd.f32 %v6140, %v6168
    %v6170 = vpop.f32.mrf.mxu0
    %v6171 = vadd.f32 %v6142, %v6170
    %6172 = vmatmul.bf16.gmra.mxu0 %v5163
    %v6173 = vpop.f32.mrf.mxu0
    %v6174 = vadd.f32 %v6145, %v6173
    %v6175 = vpop.f32.mrf.mxu0
    %v6176 = vadd.f32 %v6147, %v6175
    %6177 = vmatmul.bf16.gmra.mxu0 %v5168
    %v6178 = vpop.f32.mrf.mxu0
    %v6179 = vadd.f32 %v6150, %v6178
    %v6180 = vpop.f32.mrf.mxu0
    %v6181 = vadd.f32 %v6152, %v6180
    %6182 = vdwg.mxu0
    %6183 = vmatpush.bf16.msra.mxu0 %v5810
    %6184 = vmatpush.bf16.msra.mxu0 %v5807
    %6185 = vmatpush.bf16.msra.mxu0 %v5804
    %6186 = vmatpush.bf16.msra.mxu0 %v5801
    %6187 = vmatpush.bf16.msra.mxu0 %v5798
    %6188 = vmatpush.bf16.msra.mxu0 %v5795
    %6189 = vmatpush.bf16.msra.mxu0 %v5792
    %6190 = vmatpush.bf16.msra.mxu0 %v5789
    %6191 = vmatmul.bf16.gmra.mxu0 %v5154
    %v6192 = vpop.f32.mrf.mxu0
    %v6193 = vadd.f32 %v6164, %v6192
    %v6194 = vpop.f32.mrf.mxu0
    %v6195 = vadd.f32 %v6166, %v6194
    %6196 = vmatmul.bf16.gmra.mxu0 %v5159
    %v6197 = vpop.f32.mrf.mxu0
    %v6198 = vadd.f32 %v6169, %v6197
    %v6199 = vpop.f32.mrf.mxu0
    %v6200 = vadd.f32 %v6171, %v6199
    %6201 = vmatmul.bf16.gmra.mxu0 %v5164
    %v6202 = vpop.f32.mrf.mxu0
    %v6203 = vadd.f32 %v6174, %v6202
    %v6204 = vpop.f32.mrf.mxu0
    %v6205 = vadd.f32 %v6176, %v6204
    %6206 = vmatmul.bf16.gmra.mxu0 %v5169
    %v6207 = vpop.f32.mrf.mxu0
    %v6208 = vadd.f32 %v6179, %v6207
    %v6209 = vpop.f32.mrf.mxu0
    %v6210 = vadd.f32 %v6181, %v6209
    %6211 = vdwg.mxu0
    %6212 = vmatpush.bf16.msra.mxu0 %v5834
    %6213 = vmatpush.bf16.msra.mxu0 %v5831
    %6214 = vmatpush.bf16.msra.mxu0 %v5828
    %6215 = vmatpush.bf16.msra.mxu0 %v5825
    %6216 = vmatpush.bf16.msra.mxu0 %v5822
    %6217 = vmatpush.bf16.msra.mxu0 %v5819
    %6218 = vmatpush.bf16.msra.mxu0 %v5816
    %6219 = vmatpush.bf16.msra.mxu0 %v5813
    %6220 = vmatmul.bf16.gmra.mxu0 %v5155
    %v6221 = vpop.f32.mrf.mxu0
    %v6222 = vadd.f32 %v6193, %v6221
    %v6223 = vpop.f32.mrf.mxu0
    %v6224 = vadd.f32 %v6195, %v6223
    %6225 = vmatmul.bf16.gmra.mxu0 %v5160
    %v6226 = vpop.f32.mrf.mxu0
    %v6227 = vadd.f32 %v6198, %v6226
    %v6228 = vpop.f32.mrf.mxu0
    %v6229 = vadd.f32 %v6200, %v6228
    %6230 = vmatmul.bf16.gmra.mxu0 %v5165
    %v6231 = vpop.f32.mrf.mxu0
    %v6232 = vadd.f32 %v6203, %v6231
    %v6233 = vpop.f32.mrf.mxu0
    %v6234 = vadd.f32 %v6205, %v6233
    %6235 = vmatmul.bf16.gmra.mxu0 %v5170
    %v6236 = vpop.f32.mrf.mxu0
    %v6237 = vadd.f32 %v6208, %v6236
    %v6238 = vpop.f32.mrf.mxu0
    %v6239 = vadd.f32 %v6210, %v6238
    %6240 = vdwg.mxu0
    %6241 = vmatpush.bf16.msra.mxu0 %v5858
    %6242 = vmatpush.bf16.msra.mxu0 %v5855
    %6243 = vmatpush.bf16.msra.mxu0 %v5852
    %6244 = vmatpush.bf16.msra.mxu0 %v5849
    %6245 = vmatpush.bf16.msra.mxu0 %v5846
    %6246 = vmatpush.bf16.msra.mxu0 %v5843
    %6247 = vmatpush.bf16.msra.mxu0 %v5840
    %6248 = vmatpush.bf16.msra.mxu0 %v5837
    %6249 = vmatmul.bf16.gmra.mxu0 %v5156
    %v6250 = vpop.f32.mrf.mxu0
    %v6251 = vadd.f32 %v6222, %v6250
    %v6252 = vpop.f32.mrf.mxu0
    %v6253 = vadd.f32 %v6224, %v6252
    %6254 = vmatmul.bf16.gmra.mxu0 %v5161
    %v6255 = vpop.f32.mrf.mxu0
    %v6256 = vadd.f32 %v6227, %v6255
    %v6257 = vpop.f32.mrf.mxu0
    %v6258 = vadd.f32 %v6229, %v6257
    %6259 = vmatmul.bf16.gmra.mxu0 %v5166
    %v6260 = vpop.f32.mrf.mxu0
    %v6261 = vadd.f32 %v6232, %v6260
    %v6262 = vpop.f32.mrf.mxu0
    %v6263 = vadd.f32 %v6234, %v6262
    %6264 = vmatmul.bf16.gmra.mxu0 %v5171
    %v6265 = vpop.f32.mrf.mxu0
    %v6266 = vadd.f32 %v6237, %v6265
    %v6267 = vpop.f32.mrf.mxu0
    %v6268 = vadd.f32 %v6239, %v6267
    %6269 = vdwg.mxu0
    %6270 = vmatpush.bf16.msra.mxu0 %v5763
    %6271 = vmatpush.bf16.msra.mxu0 %v5760
    %6272 = vmatpush.bf16.msra.mxu0 %v5757
    %6273 = vmatpush.bf16.msra.mxu0 %v5754
    %6274 = vmatpush.bf16.msra.mxu0 %v5751
    %6275 = vmatpush.bf16.msra.mxu0 %v5748
    %6276 = vmatpush.bf16.msra.mxu0 %v5745
    %6277 = vmatpush.bf16.msra.mxu0 %v5742
    %6278 = vmatmul.bf16.gmra.mxu0 %v5152
    %v6279 = vpop.f32.mrf.mxu0
    %v6280 = vadd.f32 %v5336, %v6279
    %v6281 = vpop.f32.mrf.mxu0
    %v6282 = vadd.f32 %v5336, %v6281
    %6283 = vmatmul.bf16.gmra.mxu0 %v5157
    %v6284 = vpop.f32.mrf.mxu0
    %v6285 = vadd.f32 %v5336, %v6284
    %v6286 = vpop.f32.mrf.mxu0
    %v6287 = vadd.f32 %v5336, %v6286
    %6288 = vmatmul.bf16.gmra.mxu0 %v5162
    %v6289 = vpop.f32.mrf.mxu0
    %v6290 = vadd.f32 %v5336, %v6289
    %v6291 = vpop.f32.mrf.mxu0
    %v6292 = vadd.f32 %v5336, %v6291
    %6293 = vmatmul.bf16.gmra.mxu0 %v5167
    %v6294 = vpop.f32.mrf.mxu0
    %v6295 = vadd.f32 %v5336, %v6294
    %v6296 = vpop.f32.mrf.mxu0
    %v6297 = vadd.f32 %v5336, %v6296
    %6298 = vdwg.mxu0
    %6299 = vmatpush.bf16.msra.mxu0 %v5787
    %6300 = vmatpush.bf16.msra.mxu0 %v5784
    %6301 = vmatpush.bf16.msra.mxu0 %v5781
    %6302 = vmatpush.bf16.msra.mxu0 %v5778
    %6303 = vmatpush.bf16.msra.mxu0 %v5775
    %6304 = vmatpush.bf16.msra.mxu0 %v5772
    %6305 = vmatpush.bf16.msra.mxu0 %v5769
    %6306 = vmatpush.bf16.msra.mxu0 %v5766
    %6307 = vmatmul.bf16.gmra.mxu0 %v5153
    %v6308 = vpop.f32.mrf.mxu0
    %v6309 = vadd.f32 %v6280, %v6308
    %v6310 = vpop.f32.mrf.mxu0
    %v6311 = vadd.f32 %v6282, %v6310
    %6312 = vmatmul.bf16.gmra.mxu0 %v5158
    %v6313 = vpop.f32.mrf.mxu0
    %v6314 = vadd.f32 %v6285, %v6313
    %v6315 = vpop.f32.mrf.mxu0
    %v6316 = vadd.f32 %v6287, %v6315
    %6317 = vmatmul.bf16.gmra.mxu0 %v5163
    %v6318 = vpop.f32.mrf.mxu0
    %v6319 = vadd.f32 %v6290, %v6318
    %v6320 = vpop.f32.mrf.mxu0
    %v6321 = vadd.f32 %v6292, %v6320
    %6322 = vmatmul.bf16.gmra.mxu0 %v5168
    %v6323 = vpop.f32.mrf.mxu0
    %v6324 = vadd.f32 %v6295, %v6323
    %v6325 = vpop.f32.mrf.mxu0
    %v6326 = vadd.f32 %v6297, %v6325
    %6327 = vdwg.mxu0
    %6328 = vmatpush.bf16.msra.mxu0 %v5811
    %6329 = vmatpush.bf16.msra.mxu0 %v5808
    %6330 = vmatpush.bf16.msra.mxu0 %v5805
    %6331 = vmatpush.bf16.msra.mxu0 %v5802
    %6332 = vmatpush.bf16.msra.mxu0 %v5799
    %6333 = vmatpush.bf16.msra.mxu0 %v5796
    %6334 = vmatpush.bf16.msra.mxu0 %v5793
    %6335 = vmatpush.bf16.msra.mxu0 %v5790
    %6336 = vmatmul.bf16.gmra.mxu0 %v5154
    %v6337 = vpop.f32.mrf.mxu0
    %v6338 = vadd.f32 %v6309, %v6337
    %v6339 = vpop.f32.mrf.mxu0
    %v6340 = vadd.f32 %v6311, %v6339
    %6341 = vmatmul.bf16.gmra.mxu0 %v5159
    %v6342 = vpop.f32.mrf.mxu0
    %v6343 = vadd.f32 %v6314, %v6342
    %v6344 = vpop.f32.mrf.mxu0
    %v6345 = vadd.f32 %v6316, %v6344
    %6346 = vmatmul.bf16.gmra.mxu0 %v5164
    %v6347 = vpop.f32.mrf.mxu0
    %v6348 = vadd.f32 %v6319, %v6347
    %v6349 = vpop.f32.mrf.mxu0
    %v6350 = vadd.f32 %v6321, %v6349
    %6351 = vmatmul.bf16.gmra.mxu0 %v5169
    %v6352 = vpop.f32.mrf.mxu0
    %v6353 = vadd.f32 %v6324, %v6352
    %v6354 = vpop.f32.mrf.mxu0
    %v6355 = vadd.f32 %v6326, %v6354
    %6356 = vdwg.mxu0
    %6357 = vmatpush.bf16.msra.mxu0 %v5835
    %6358 = vmatpush.bf16.msra.mxu0 %v5832
    %6359 = vmatpush.bf16.msra.mxu0 %v5829
    %6360 = vmatpush.bf16.msra.mxu0 %v5826
    %6361 = vmatpush.bf16.msra.mxu0 %v5823
    %6362 = vmatpush.bf16.msra.mxu0 %v5820
    %6363 = vmatpush.bf16.msra.mxu0 %v5817
    %6364 = vmatpush.bf16.msra.mxu0 %v5814
    %6365 = vmatmul.bf16.gmra.mxu0 %v5155
    %v6366 = vpop.f32.mrf.mxu0
    %v6367 = vadd.f32 %v6338, %v6366
    %v6368 = vpop.f32.mrf.mxu0
    %v6369 = vadd.f32 %v6340, %v6368
    %6370 = vmatmul.bf16.gmra.mxu0 %v5160
    %v6371 = vpop.f32.mrf.mxu0
    %v6372 = vadd.f32 %v6343, %v6371
    %v6373 = vpop.f32.mrf.mxu0
    %v6374 = vadd.f32 %v6345, %v6373
    %6375 = vmatmul.bf16.gmra.mxu0 %v5165
    %v6376 = vpop.f32.mrf.mxu0
    %v6377 = vadd.f32 %v6348, %v6376
    %v6378 = vpop.f32.mrf.mxu0
    %v6379 = vadd.f32 %v6350, %v6378
    %6380 = vmatmul.bf16.gmra.mxu0 %v5170
    %v6381 = vpop.f32.mrf.mxu0
    %v6382 = vadd.f32 %v6353, %v6381
    %v6383 = vpop.f32.mrf.mxu0
    %v6384 = vadd.f32 %v6355, %v6383
    %6385 = vdwg.mxu0
    %6386 = vmatpush.bf16.msra.mxu0 %v5859
    %6387 = vmatpush.bf16.msra.mxu0 %v5856
    %6388 = vmatpush.bf16.msra.mxu0 %v5853
    %6389 = vmatpush.bf16.msra.mxu0 %v5850
    %6390 = vmatpush.bf16.msra.mxu0 %v5847
    %6391 = vmatpush.bf16.msra.mxu0 %v5844
    %6392 = vmatpush.bf16.msra.mxu0 %v5841
    %6393 = vmatpush.bf16.msra.mxu0 %v5838
    %6394 = vmatmul.bf16.gmra.mxu0 %v5156
    %v6395 = vpop.f32.mrf.mxu0
    %v6396 = vadd.f32 %v6367, %v6395
    %v6397 = vpop.f32.mrf.mxu0
    %v6398 = vadd.f32 %v6369, %v6397
    %6399 = vmatmul.bf16.gmra.mxu0 %v5161
    %v6400 = vpop.f32.mrf.mxu0
    %v6401 = vadd.f32 %v6372, %v6400
    %v6402 = vpop.f32.mrf.mxu0
    %v6403 = vadd.f32 %v6374, %v6402
    %6404 = vmatmul.bf16.gmra.mxu0 %v5166
    %v6405 = vpop.f32.mrf.mxu0
    %v6406 = vadd.f32 %v6377, %v6405
    %v6407 = vpop.f32.mrf.mxu0
    %v6408 = vadd.f32 %v6379, %v6407
    %6409 = vmatmul.bf16.gmra.mxu0 %v5171
    %v6410 = vpop.f32.mrf.mxu0
    %v6411 = vadd.f32 %v6382, %v6410
    %v6412 = vpop.f32.mrf.mxu0
    %v6413 = vadd.f32 %v6384, %v6412
    %6414 = vdwg.mxu0
    %v6415 = vadd.f32 %v6106, %v97
    %v6416 = vadd.f32 %v6251, %v98
    %v6417 = vadd.f32 %v6396, %v99
    %v6418 = vadd.f32 %v6108, %v100
    %v6419 = vadd.f32 %v6253, %v101
    %v6420 = vadd.f32 %v6398, %v102
    %v6421 = vadd.f32 %v6111, %v103
    %v6422 = vadd.f32 %v6256, %v104
    %v6423 = vadd.f32 %v6401, %v105
    %v6424 = vadd.f32 %v6113, %v106
    %v6425 = vadd.f32 %v6258, %v107
    %v6426 = vadd.f32 %v6403, %v108
    %v6427 = vadd.f32 %v6116, %v109
    %v6428 = vadd.f32 %v6261, %v110
    %v6429 = vadd.f32 %v6406, %v111
    %v6430 = vadd.f32 %v6118, %v112
    %v6431 = vadd.f32 %v6263, %v113
    %v6432 = vadd.f32 %v6408, %v114
    %v6433 = vadd.f32 %v6121, %v115
    %v6434 = vadd.f32 %v6266, %v116
    %v6435 = vadd.f32 %v6411, %v117
    %v6436 = vadd.f32 %v6123, %v118
    %v6437 = vadd.f32 %v6268, %v119
    %v6438 = vadd.f32 %v6413, %v120
    %v6439 = vadd.f32 %v6415, %v6416
    %v6440 = vsel %vm1866, %v6417, 0.0
    %v6441 = vadd.f32 %v6439, %v6440
    %6442 = vadd.xlane.f32.xlu0 %v6441
    %v6443 = vpop.xlane.xlu0 %6442
    %v6444 = vadd.f32 %v6418, %v6419
    %v6445 = vsel %vm1866, %v6420, 0.0
    %v6446 = vadd.f32 %v6444, %v6445
    %6447 = vadd.xlane.f32.xlu0 %v6446
    %v6448 = vpop.xlane.xlu0 %6447
    %v6449 = vadd.f32 %v6421, %v6422
    %v6450 = vsel %vm1866, %v6423, 0.0
    %v6451 = vadd.f32 %v6449, %v6450
    %6452 = vadd.xlane.f32.xlu0 %v6451
    %v6453 = vpop.xlane.xlu0 %6452
    %v6454 = vadd.f32 %v6424, %v6425
    %v6455 = vsel %vm1866, %v6426, 0.0
    %v6456 = vadd.f32 %v6454, %v6455
    %6457 = vadd.xlane.f32.xlu0 %v6456
    %v6458 = vpop.xlane.xlu0 %6457
    %v6459 = vadd.f32 %v6427, %v6428
    %v6460 = vsel %vm1866, %v6429, 0.0
    %v6461 = vadd.f32 %v6459, %v6460
    %6462 = vadd.xlane.f32.xlu0 %v6461
    %v6463 = vpop.xlane.xlu0 %6462
    %v6464 = vadd.f32 %v6430, %v6431
    %v6465 = vsel %vm1866, %v6432, 0.0
    %v6466 = vadd.f32 %v6464, %v6465
    %6467 = vadd.xlane.f32.xlu0 %v6466
    %v6468 = vpop.xlane.xlu0 %6467
    %v6469 = vadd.f32 %v6433, %v6434
    %v6470 = vsel %vm1866, %v6435, 0.0
    %v6471 = vadd.f32 %v6469, %v6470
    %6472 = vadd.xlane.f32.xlu0 %v6471
    %v6473 = vpop.xlane.xlu0 %6472
    %v6474 = vadd.f32 %v6436, %v6437
    %v6475 = vsel %vm1866, %v6438, 0.0
    %v6476 = vadd.f32 %v6474, %v6475
    %6477 = vadd.xlane.f32.xlu0 %v6476
    %v6478 = vpop.xlane.xlu0 %6477
    %v6479 = vrcp.pop 300.0
    %v6480 = vmul.f32 300.0, %v6479
    %v6481 = vsub.f32 1.0, %v6480
    %v6482 = vmul.f32 %v6479, %v6481
    %v6483 = vadd.f32 %v6479, %v6482
    %vm6484 = vweird.f32 %v6479
    %v6485 = vsel %vm6484, %v6479, %v6483
    %v6486 = vmul.f32 %v6443, %v6485
    %v6487 = vmul.f32 %v6448, %v6485
    %v6488 = vmul.f32 %v6453, %v6485
    %v6489 = vmul.f32 %v6458, %v6485
    %v6490 = vmul.f32 %v6463, %v6485
    %v6491 = vmul.f32 %v6468, %v6485
    %v6492 = vmul.f32 %v6473, %v6485
    %v6493 = vmul.f32 %v6478, %v6485
    %v6494 = vsub.f32 %v6415, %v6486
    %v6495 = vsub.f32 %v6416, %v6486
    %v6496 = vsub.f32 %v6417, %v6486
    %v6497 = vsub.f32 %v6418, %v6487
    %v6498 = vsub.f32 %v6419, %v6487
    %v6499 = vsub.f32 %v6420, %v6487
    %v6500 = vsub.f32 %v6421, %v6488
    %v6501 = vsub.f32 %v6422, %v6488
    %v6502 = vsub.f32 %v6423, %v6488
    %v6503 = vsub.f32 %v6424, %v6489
    %v6504 = vsub.f32 %v6425, %v6489
    %v6505 = vsub.f32 %v6426, %v6489
    %v6506 = vsub.f32 %v6427, %v6490
    %v6507 = vsub.f32 %v6428, %v6490
    %v6508 = vsub.f32 %v6429, %v6490
    %v6509 = vsub.f32 %v6430, %v6491
    %v6510 = vsub.f32 %v6431, %v6491
    %v6511 = vsub.f32 %v6432, %v6491
    %v6512 = vsub.f32 %v6433, %v6492
    %v6513 = vsub.f32 %v6434, %v6492
    %v6514 = vsub.f32 %v6435, %v6492
    %v6515 = vsub.f32 %v6436, %v6493
    %v6516 = vsub.f32 %v6437, %v6493
    %v6517 = vsub.f32 %v6438, %v6493
    %v6518 = vmul.f32 %v6494, %v6494
    %v6519 = vmul.f32 %v6495, %v6495
    %v6520 = vmul.f32 %v6496, %v6496
    %v6521 = vmul.f32 %v6497, %v6497
    %v6522 = vmul.f32 %v6498, %v6498
    %v6523 = vmul.f32 %v6499, %v6499
    %v6524 = vmul.f32 %v6500, %v6500
    %v6525 = vmul.f32 %v6501, %v6501
    %v6526 = vmul.f32 %v6502, %v6502
    %v6527 = vmul.f32 %v6503, %v6503
    %v6528 = vmul.f32 %v6504, %v6504
    %v6529 = vmul.f32 %v6505, %v6505
    %v6530 = vmul.f32 %v6506, %v6506
    %v6531 = vmul.f32 %v6507, %v6507
    %v6532 = vmul.f32 %v6508, %v6508
    %v6533 = vmul.f32 %v6509, %v6509
    %v6534 = vmul.f32 %v6510, %v6510
    %v6535 = vmul.f32 %v6511, %v6511
    %v6536 = vmul.f32 %v6512, %v6512
    %v6537 = vmul.f32 %v6513, %v6513
    %v6538 = vmul.f32 %v6514, %v6514
    %v6539 = vmul.f32 %v6515, %v6515
    %v6540 = vmul.f32 %v6516, %v6516
    %v6541 = vmul.f32 %v6517, %v6517
    %v6542 = vadd.f32 %v6518, %v6519
    %v6543 = vsel %vm1866, %v6520, 0.0
    %v6544 = vadd.f32 %v6542, %v6543
    %6545 = vadd.xlane.f32.xlu0 %v6544
    %v6546 = vpop.xlane.xlu0 %6545
    %v6547 = vadd.f32 %v6521, %v6522
    %v6548 = vsel %vm1866, %v6523, 0.0
    %v6549 = vadd.f32 %v6547, %v6548
    %6550 = vadd.xlane.f32.xlu0 %v6549
    %v6551 = vpop.xlane.xlu0 %6550
    %v6552 = vadd.f32 %v6524, %v6525
    %v6553 = vsel %vm1866, %v6526, 0.0
    %v6554 = vadd.f32 %v6552, %v6553
    %6555 = vadd.xlane.f32.xlu0 %v6554
    %v6556 = vpop.xlane.xlu0 %6555
    %v6557 = vadd.f32 %v6527, %v6528
    %v6558 = vsel %vm1866, %v6529, 0.0
    %v6559 = vadd.f32 %v6557, %v6558
    %6560 = vadd.xlane.f32.xlu0 %v6559
    %v6561 = vpop.xlane.xlu0 %6560
    %v6562 = vadd.f32 %v6530, %v6531
    %v6563 = vsel %vm1866, %v6532, 0.0
    %v6564 = vadd.f32 %v6562, %v6563
    %6565 = vadd.xlane.f32.xlu0 %v6564
    %v6566 = vpop.xlane.xlu0 %6565
    %v6567 = vadd.f32 %v6533, %v6534
    %v6568 = vsel %vm1866, %v6535, 0.0
    %v6569 = vadd.f32 %v6567, %v6568
    %6570 = vadd.xlane.f32.xlu0 %v6569
    %v6571 = vpop.xlane.xlu0 %6570
    %v6572 = vadd.f32 %v6536, %v6537
    %v6573 = vsel %vm1866, %v6538, 0.0
    %v6574 = vadd.f32 %v6572, %v6573
    %6575 = vadd.xlane.f32.xlu0 %v6574
    %v6576 = vpop.xlane.xlu0 %6575
    %v6577 = vadd.f32 %v6539, %v6540
    %v6578 = vsel %vm1866, %v6541, 0.0
    %v6579 = vadd.f32 %v6577, %v6578
    %6580 = vadd.xlane.f32.xlu0 %v6579
    %v6581 = vpop.xlane.xlu0 %6580
    %v6582 = vmul.f32 %v6546, %v6485
    %v6583 = vmul.f32 %v6551, %v6485
    %v6584 = vmul.f32 %v6556, %v6485
    %v6585 = vmul.f32 %v6561, %v6485
    %v6586 = vmul.f32 %v6566, %v6485
    %v6587 = vmul.f32 %v6571, %v6485
    %v6588 = vmul.f32 %v6576, %v6485
    %v6589 = vmul.f32 %v6581, %v6485
    %v6590 = vadd.f32 %v6582, 1e-05
    %v6591 = vadd.f32 %v6583, 1e-05
    %v6592 = vadd.f32 %v6584, 1e-05
    %v6593 = vadd.f32 %v6585, 1e-05
    %v6594 = vadd.f32 %v6586, 1e-05
    %v6595 = vadd.f32 %v6587, 1e-05
    %v6596 = vadd.f32 %v6588, 1e-05
    %v6597 = vadd.f32 %v6589, 1e-05
    %v6598 = vrsqrt.pop %v6590
    %v6599 = vmul.f32 %v6598, %v6590
    %v6600 = vmul.f32 %v6599, %v6598
    %v6601 = vmul.f32 0.5, %v6600
    %v6602 = vsub.f32 1.5, %v6601
    %v6603 = vmul.f32 %v6598, %v6602
    %vm6604 = vweird.f32 %v6590
    %vm6605 = vweird.f32 %v6598
    %vm6606 = vmor %vm6604, %vm6605
    %v6607 = vsel %vm6606, %v6598, %v6603
    %v6608 = vrsqrt.pop %v6591
    %v6609 = vmul.f32 %v6608, %v6591
    %v6610 = vmul.f32 %v6609, %v6608
    %v6611 = vmul.f32 0.5, %v6610
    %v6612 = vsub.f32 1.5, %v6611
    %v6613 = vmul.f32 %v6608, %v6612
    %vm6614 = vweird.f32 %v6591
    %vm6615 = vweird.f32 %v6608
    %vm6616 = vmor %vm6614, %vm6615
    %v6617 = vsel %vm6616, %v6608, %v6613
    %v6618 = vrsqrt.pop %v6592
    %v6619 = vmul.f32 %v6618, %v6592
    %v6620 = vmul.f32 %v6619, %v6618
    %v6621 = vmul.f32 0.5, %v6620
    %v6622 = vsub.f32 1.5, %v6621
    %v6623 = vmul.f32 %v6618, %v6622
    %vm6624 = vweird.f32 %v6592
    %vm6625 = vweird.f32 %v6618
    %vm6626 = vmor %vm6624, %vm6625
    %v6627 = vsel %vm6626, %v6618, %v6623
    %v6628 = vrsqrt.pop %v6593
    %v6629 = vmul.f32 %v6628, %v6593
    %v6630 = vmul.f32 %v6629, %v6628
    %v6631 = vmul.f32 0.5, %v6630
    %v6632 = vsub.f32 1.5, %v6631
    %v6633 = vmul.f32 %v6628, %v6632
    %vm6634 = vweird.f32 %v6593
    %vm6635 = vweird.f32 %v6628
    %vm6636 = vmor %vm6634, %vm6635
    %v6637 = vsel %vm6636, %v6628, %v6633
    %v6638 = vrsqrt.pop %v6594
    %v6639 = vmul.f32 %v6638, %v6594
    %v6640 = vmul.f32 %v6639, %v6638
    %v6641 = vmul.f32 0.5, %v6640
    %v6642 = vsub.f32 1.5, %v6641
    %v6643 = vmul.f32 %v6638, %v6642
    %vm6644 = vweird.f32 %v6594
    %vm6645 = vweird.f32 %v6638
    %vm6646 = vmor %vm6644, %vm6645
    %v6647 = vsel %vm6646, %v6638, %v6643
    %v6648 = vrsqrt.pop %v6595
    %v6649 = vmul.f32 %v6648, %v6595
    %v6650 = vmul.f32 %v6649, %v6648
    %v6651 = vmul.f32 0.5, %v6650
    %v6652 = vsub.f32 1.5, %v6651
    %v6653 = vmul.f32 %v6648, %v6652
    %vm6654 = vweird.f32 %v6595
    %vm6655 = vweird.f32 %v6648
    %vm6656 = vmor %vm6654, %vm6655
    %v6657 = vsel %vm6656, %v6648, %v6653
    %v6658 = vrsqrt.pop %v6596
    %v6659 = vmul.f32 %v6658, %v6596
    %v6660 = vmul.f32 %v6659, %v6658
    %v6661 = vmul.f32 0.5, %v6660
    %v6662 = vsub.f32 1.5, %v6661
    %v6663 = vmul.f32 %v6658, %v6662
    %vm6664 = vweird.f32 %v6596
    %vm6665 = vweird.f32 %v6658
    %vm6666 = vmor %vm6664, %vm6665
    %v6667 = vsel %vm6666, %v6658, %v6663
    %v6668 = vrsqrt.pop %v6597
    %v6669 = vmul.f32 %v6668, %v6597
    %v6670 = vmul.f32 %v6669, %v6668
    %v6671 = vmul.f32 0.5, %v6670
    %v6672 = vsub.f32 1.5, %v6671
    %v6673 = vmul.f32 %v6668, %v6672
    %vm6674 = vweird.f32 %v6597
    %vm6675 = vweird.f32 %v6668
    %vm6676 = vmor %vm6674, %vm6675
    %v6677 = vsel %vm6676, %v6668, %v6673
    %v6678 = vmul.f32 %v6494, %v6607
    %v6679 = vmul.f32 %v6495, %v6607
    %v6680 = vmul.f32 %v6496, %v6607
    %v6681 = vmul.f32 %v6497, %v6617
    %v6682 = vmul.f32 %v6498, %v6617
    %v6683 = vmul.f32 %v6499, %v6617
    %v6684 = vmul.f32 %v6500, %v6627
    %v6685 = vmul.f32 %v6501, %v6627
    %v6686 = vmul.f32 %v6502, %v6627
    %v6687 = vmul.f32 %v6503, %v6637
    %v6688 = vmul.f32 %v6504, %v6637
    %v6689 = vmul.f32 %v6505, %v6637
    %v6690 = vmul.f32 %v6506, %v6647
    %v6691 = vmul.f32 %v6507, %v6647
    %v6692 = vmul.f32 %v6508, %v6647
    %v6693 = vmul.f32 %v6509, %v6657
    %v6694 = vmul.f32 %v6510, %v6657
    %v6695 = vmul.f32 %v6511, %v6657
    %v6696 = vmul.f32 %v6512, %v6667
    %v6697 = vmul.f32 %v6513, %v6667
    %v6698 = vmul.f32 %v6514, %v6667
    %v6699 = vmul.f32 %v6515, %v6677
    %v6700 = vmul.f32 %v6516, %v6677
    %v6701 = vmul.f32 %v6517, %v6677
    %v6702 = vld [vmem:[#allocation8] sm:$0x7]
    %v6704 = vperm.slane %v6702, 0
    %v6705 = vperm.slane %v6702, 1
    %v6706 = vperm.slane %v6702, 2
    %v6710 = vmul.f32 %v6678, %v6704
    %v6711 = vmul.f32 %v6679, %v6705
    %v6712 = vmul.f32 %v6680, %v6706
    %v6713 = vmul.f32 %v6681, %v6704
    %v6714 = vmul.f32 %v6682, %v6705
    %v6715 = vmul.f32 %v6683, %v6706
    %v6716 = vmul.f32 %v6684, %v6704
    %v6717 = vmul.f32 %v6685, %v6705
    %v6718 = vmul.f32 %v6686, %v6706
    %v6719 = vmul.f32 %v6687, %v6704
    %v6720 = vmul.f32 %v6688, %v6705
    %v6721 = vmul.f32 %v6689, %v6706
    %v6722 = vmul.f32 %v6690, %v6704
    %v6723 = vmul.f32 %v6691, %v6705
    %v6724 = vmul.f32 %v6692, %v6706
    %v6725 = vmul.f32 %v6693, %v6704
    %v6726 = vmul.f32 %v6694, %v6705
    %v6727 = vmul.f32 %v6695, %v6706
    %v6728 = vmul.f32 %v6696, %v6704
    %v6729 = vmul.f32 %v6697, %v6705
    %v6730 = vmul.f32 %v6698, %v6706
    %v6731 = vmul.f32 %v6699, %v6704
    %v6732 = vmul.f32 %v6700, %v6705
    %v6733 = vmul.f32 %v6701, %v6706
    %v6734 = vld [vmem:[#allocation10] sm:$0x7]
    %v6736 = vperm.slane %v6734, 0
    %v6737 = vperm.slane %v6734, 1
    %v6738 = vperm.slane %v6734, 2
    %v6742 = vadd.f32 %v6710, %v6736
    %v6743 = vadd.f32 %v6711, %v6737
    %v6744 = vadd.f32 %v6712, %v6738
    %v6745 = vadd.f32 %v6713, %v6736
    %v6746 = vadd.f32 %v6714, %v6737
    %v6747 = vadd.f32 %v6715, %v6738
    %v6748 = vadd.f32 %v6716, %v6736
    %v6749 = vadd.f32 %v6717, %v6737
    %v6750 = vadd.f32 %v6718, %v6738
    %v6751 = vadd.f32 %v6719, %v6736
    %v6752 = vadd.f32 %v6720, %v6737
    %v6753 = vadd.f32 %v6721, %v6738
    %v6754 = vadd.f32 %v6722, %v6736
    %v6755 = vadd.f32 %v6723, %v6737
    %v6756 = vadd.f32 %v6724, %v6738
    %v6757 = vadd.f32 %v6725, %v6736
    %v6758 = vadd.f32 %v6726, %v6737
    %v6759 = vadd.f32 %v6727, %v6738
    %v6760 = vadd.f32 %v6728, %v6736
    %v6761 = vadd.f32 %v6729, %v6737
    %v6762 = vadd.f32 %v6730, %v6738
    %v6763 = vadd.f32 %v6731, %v6736
    %v6764 = vadd.f32 %v6732, %v6737
    %v6765 = vadd.f32 %v6733, %v6738
    %v6766 = vrot.slane %v6742, 4
    %v6767 = vadd.f32 %v6742, %v6766
    %v6768 = vrot.slane %v6767, 2
    %v6769 = vadd.f32 %v6767, %v6768
    %v6770 = vrot.slane %v6769, 1
    %v6771 = vadd.f32 %v6769, %v6770
    %v6772 = vrot.slane %v6743, 4
    %v6773 = vadd.f32 %v6743, %v6772
    %v6774 = vrot.slane %v6773, 2
    %v6775 = vadd.f32 %v6773, %v6774
    %v6776 = vrot.slane %v6775, 1
    %v6777 = vadd.f32 %v6775, %v6776
    %v6778 = vsel %vm1866, %v6744, 0.0
    %v6779 = vrot.slane %v6778, 4
    %v6780 = vadd.f32 %v6778, %v6779
    %v6781 = vrot.slane %v6780, 2
    %v6782 = vadd.f32 %v6780, %v6781
    %v6783 = vrot.slane %v6782, 1
    %v6784 = vadd.f32 %v6782, %v6783
    %v6785 = vrot.slane %v6745, 4
    %v6786 = vadd.f32 %v6745, %v6785
    %v6787 = vrot.slane %v6786, 2
    %v6788 = vadd.f32 %v6786, %v6787
    %v6789 = vrot.slane %v6788, 1
    %v6790 = vadd.f32 %v6788, %v6789
    %v6791 = vrot.slane %v6746, 4
    %v6792 = vadd.f32 %v6746, %v6791
    %v6793 = vrot.slane %v6792, 2
    %v6794 = vadd.f32 %v6792, %v6793
    %v6795 = vrot.slane %v6794, 1
    %v6796 = vadd.f32 %v6794, %v6795
    %v6797 = vsel %vm1866, %v6747, 0.0
    %v6798 = vrot.slane %v6797, 4
    %v6799 = vadd.f32 %v6797, %v6798
    %v6800 = vrot.slane %v6799, 2
    %v6801 = vadd.f32 %v6799, %v6800
    %v6802 = vrot.slane %v6801, 1
    %v6803 = vadd.f32 %v6801, %v6802
    %v6804 = vrot.slane %v6748, 4
    %v6805 = vadd.f32 %v6748, %v6804
    %v6806 = vrot.slane %v6805, 2
    %v6807 = vadd.f32 %v6805, %v6806
    %v6808 = vrot.slane %v6807, 1
    %v6809 = vadd.f32 %v6807, %v6808
    %v6810 = vrot.slane %v6749, 4
    %v6811 = vadd.f32 %v6749, %v6810
    %v6812 = vrot.slane %v6811, 2
    %v6813 = vadd.f32 %v6811, %v6812
    %v6814 = vrot.slane %v6813, 1
    %v6815 = vadd.f32 %v6813, %v6814
    %v6816 = vsel %vm1866, %v6750, 0.0
    %v6817 = vrot.slane %v6816, 4
    %v6818 = vadd.f32 %v6816, %v6817
    %v6819 = vrot.slane %v6818, 2
    %v6820 = vadd.f32 %v6818, %v6819
    %v6821 = vrot.slane %v6820, 1
    %v6822 = vadd.f32 %v6820, %v6821
    %v6823 = vrot.slane %v6751, 4
    %v6824 = vadd.f32 %v6751, %v6823
    %v6825 = vrot.slane %v6824, 2
    %v6826 = vadd.f32 %v6824, %v6825
    %v6827 = vrot.slane %v6826, 1
    %v6828 = vadd.f32 %v6826, %v6827
    %v6829 = vrot.slane %v6752, 4
    %v6830 = vadd.f32 %v6752, %v6829
    %v6831 = vrot.slane %v6830, 2
    %v6832 = vadd.f32 %v6830, %v6831
    %v6833 = vrot.slane %v6832, 1
    %v6834 = vadd.f32 %v6832, %v6833
    %v6835 = vsel %vm1866, %v6753, 0.0
    %v6836 = vrot.slane %v6835, 4
    %v6837 = vadd.f32 %v6835, %v6836
    %v6838 = vrot.slane %v6837, 2
    %v6839 = vadd.f32 %v6837, %v6838
    %v6840 = vrot.slane %v6839, 1
    %v6841 = vadd.f32 %v6839, %v6840
    %v6842 = vrot.slane %v6754, 4
    %v6843 = vadd.f32 %v6754, %v6842
    %v6844 = vrot.slane %v6843, 2
    %v6845 = vadd.f32 %v6843, %v6844
    %v6846 = vrot.slane %v6845, 1
    %v6847 = vadd.f32 %v6845, %v6846
    %v6848 = vrot.slane %v6755, 4
    %v6849 = vadd.f32 %v6755, %v6848
    %v6850 = vrot.slane %v6849, 2
    %v6851 = vadd.f32 %v6849, %v6850
    %v6852 = vrot.slane %v6851, 1
    %v6853 = vadd.f32 %v6851, %v6852
    %v6854 = vsel %vm1866, %v6756, 0.0
    %v6855 = vrot.slane %v6854, 4
    %v6856 = vadd.f32 %v6854, %v6855
    %v6857 = vrot.slane %v6856, 2
    %v6858 = vadd.f32 %v6856, %v6857
    %v6859 = vrot.slane %v6858, 1
    %v6860 = vadd.f32 %v6858, %v6859
    %v6861 = vrot.slane %v6757, 4
    %v6862 = vadd.f32 %v6757, %v6861
    %v6863 = vrot.slane %v6862, 2
    %v6864 = vadd.f32 %v6862, %v6863
    %v6865 = vrot.slane %v6864, 1
    %v6866 = vadd.f32 %v6864, %v6865
    %v6867 = vrot.slane %v6758, 4
    %v6868 = vadd.f32 %v6758, %v6867
    %v6869 = vrot.slane %v6868, 2
    %v6870 = vadd.f32 %v6868, %v6869
    %v6871 = vrot.slane %v6870, 1
    %v6872 = vadd.f32 %v6870, %v6871
    %v6873 = vsel %vm1866, %v6759, 0.0
    %v6874 = vrot.slane %v6873, 4
    %v6875 = vadd.f32 %v6873, %v6874
    %v6876 = vrot.slane %v6875, 2
    %v6877 = vadd.f32 %v6875, %v6876
    %v6878 = vrot.slane %v6877, 1
    %v6879 = vadd.f32 %v6877, %v6878
    %v6880 = vrot.slane %v6760, 4
    %v6881 = vadd.f32 %v6760, %v6880
    %v6882 = vrot.slane %v6881, 2
    %v6883 = vadd.f32 %v6881, %v6882
    %v6884 = vrot.slane %v6883, 1
    %v6885 = vadd.f32 %v6883, %v6884
    %v6886 = vrot.slane %v6761, 4
    %v6887 = vadd.f32 %v6761, %v6886
    %v6888 = vrot.slane %v6887, 2
    %v6889 = vadd.f32 %v6887, %v6888
    %v6890 = vrot.slane %v6889, 1
    %v6891 = vadd.f32 %v6889, %v6890
    %v6892 = vsel %vm1866, %v6762, 0.0
    %v6893 = vrot.slane %v6892, 4
    %v6894 = vadd.f32 %v6892, %v6893
    %v6895 = vrot.slane %v6894, 2
    %v6896 = vadd.f32 %v6894, %v6895
    %v6897 = vrot.slane %v6896, 1
    %v6898 = vadd.f32 %v6896, %v6897
    %v6899 = vrot.slane %v6763, 4
    %v6900 = vadd.f32 %v6763, %v6899
    %v6901 = vrot.slane %v6900, 2
    %v6902 = vadd.f32 %v6900, %v6901
    %v6903 = vrot.slane %v6902, 1
    %v6904 = vadd.f32 %v6902, %v6903
    %v6905 = vrot.slane %v6764, 4
    %v6906 = vadd.f32 %v6764, %v6905
    %v6907 = vrot.slane %v6906, 2
    %v6908 = vadd.f32 %v6906, %v6907
    %v6909 = vrot.slane %v6908, 1
    %v6910 = vadd.f32 %v6908, %v6909
    %v6911 = vsel %vm1866, %v6765, 0.0
    %v6912 = vrot.slane %v6911, 4
    %v6913 = vadd.f32 %v6911, %v6912
    %v6914 = vrot.slane %v6913, 2
    %v6915 = vadd.f32 %v6913, %v6914
    %v6916 = vrot.slane %v6915, 1
    %v6917 = vadd.f32 %v6915, %v6916
    %v6918 = vrcp.pop 8.0
    %v6919 = vmul.f32 8.0, %v6918
    %v6920 = vsub.f32 1.0, %v6919
    %v6921 = vmul.f32 %v6918, %v6920
    %v6922 = vadd.f32 %v6918, %v6921
    %vm6923 = vweird.f32 %v6918
    %v6924 = vsel %vm6923, %v6918, %v6922
    %v6925 = vmul.f32 %v6771, %v6924
    %v6926 = vmul.f32 %v6777, %v6924
    %v6927 = vmul.f32 %v6784, %v6924
    %v6928 = vmul.f32 %v6790, %v6924
    %v6929 = vmul.f32 %v6796, %v6924
    %v6930 = vmul.f32 %v6803, %v6924
    %v6931 = vmul.f32 %v6809, %v6924
    %v6932 = vmul.f32 %v6815, %v6924
    %v6933 = vmul.f32 %v6822, %v6924
    %v6934 = vmul.f32 %v6828, %v6924
    %v6935 = vmul.f32 %v6834, %v6924
    %v6936 = vmul.f32 %v6841, %v6924
    %v6937 = vmul.f32 %v6847, %v6924
    %v6938 = vmul.f32 %v6853, %v6924
    %v6939 = vmul.f32 %v6860, %v6924
    %v6940 = vmul.f32 %v6866, %v6924
    %v6941 = vmul.f32 %v6872, %v6924
    %v6942 = vmul.f32 %v6879, %v6924
    %v6943 = vmul.f32 %v6885, %v6924
    %v6944 = vmul.f32 %v6891, %v6924
    %v6945 = vmul.f32 %v6898, %v6924
    %v6946 = vmul.f32 %v6904, %v6924
    %v6947 = vmul.f32 %v6910, %v6924
    %v6948 = vmul.f32 %v6917, %v6924
    %vm6973 = vcmask 1041409
    %v6974 = vsel %vm6973, %v6928, %v6925
    %vm6975 = vcmask 1042434
    %v6976 = vsel %vm6975, %v6931, %v6974
    %vm6977 = vcmask 1043459
    %v6978 = vsel %vm6977, %v6934, %v6976
    %vm6979 = vcmask 1044484
    %v6980 = vsel %vm6979, %v6937, %v6978
    %vm6981 = vcmask 1045509
    %v6982 = vsel %vm6981, %v6940, %v6980
    %vm6983 = vcmask 1046534
    %v6984 = vsel %vm6983, %v6943, %v6982
    %vm6985 = vcmask 1047559
    %v6986 = vsel %vm6985, %v6946, %v6984
    %v6987 = vsel %vm6973, %v6929, %v6926
    %v6988 = vsel %vm6975, %v6932, %v6987
    %v6989 = vsel %vm6977, %v6935, %v6988
    %v6990 = vsel %vm6979, %v6938, %v6989
    %v6991 = vsel %vm6981, %v6941, %v6990
    %v6992 = vsel %vm6983, %v6944, %v6991
    %v6993 = vsel %vm6985, %v6947, %v6992
    %v6994 = vsel %vm6973, %v6930, %v6927
    %v6995 = vsel %vm6975, %v6933, %v6994
    %v6996 = vsel %vm6977, %v6936, %v6995
    %v6997 = vsel %vm6979, %v6939, %v6996
    %v6998 = vsel %vm6981, %v6942, %v6997
    %v6999 = vsel %vm6983, %v6945, %v6998
    %v7000 = vsel %vm6985, %v6948, %v6999
    %7004 = vst [vmem:[#allocation11] sm:$0xff] %v6986
    %7005 = vst [vmem:[#allocation11 + $0x8] sm:$0xff] %v6993
    %7006 = vst.msk [vmem:[#allocation11 + $0x10] sm:$0xff] %vm1866, %v7000
    // Predicated region
    $region46: #{tpu_custom_call.1} parent=1 // pred_check
      _
    $region47: #{tpu_custom_call.1} parent=1 // pred_check_branch
      %7008 = sbr.rel (0) target = $region49
    $region48: #{tpu_custom_call.1} parent=1 // pred_region
      %7010 = vsyncadd [#allocation4], 0
      %s7012 = sshll.u32 [#allocation11], 4
      %s7013 = int_to_ptr.vmem [resolvable:$true] %s7012
      %s7014 = sshll.u32 %s6, 4
      %s7015 = int_to_ptr.hbm [resolvable:$true] %s7014
      %7017 = dma.vmem_to_hbm [thread:$0]  %s7013, 384, %s7015, [#allocation4]
    $region49: #{tpu_custom_call.1} parent=1 // pred_fallthru
      _
    // Predicated region
    $region50: #{tpu_custom_call.1} parent=1 // pred_check
      _
    $region51: #{tpu_custom_call.1} parent=1 // pred_check_branch
      %7019 = sbr.rel (0) target = $region53
    $region52: #{tpu_custom_call.1} parent=1 // pred_region
      %7021 = dma.done [#allocation4], 384
    $region53: #{tpu_custom_call.1} parent=1 // pred_fallthru
      _
    %7022 = vsyncpa [#allocation3], 1
    %7023 = vsyncpa [#allocation6], 1
    %7024 = vsyncpa [#allocation9], 1
    %7025 = vsyncpa [#allocation4], 1

</llo_original>
